<compile_context>
chip_gen: v7x
topology: tpu7x:2x2x1
jax: 0.10.0
libtpu: 0.0.40
codegen_flags: <defaults>
</compile_context>

<pallas_src>
import functools

import jax
import jax.numpy as jnp
from jax import lax
from jax.experimental import pallas as pl
from jax.experimental.pallas import tpu as pltpu

BN_EPS = 1e-5
HALO = 128                                   # halo block rows (>= row width + 8 for all stages)
TM_BY_C = {64: 2048, 128: 512, 256: 128, 512: 128}   # row tile of the implicit-GEMM conv
VMEM_LIMIT = 32 * 1024 * 1024                # safe scoped-VMEM cap on v5e/v6e/v7x


def _round_up(x, m):
    return (x + m - 1) // m * m


def _w_row(w):
    """Flattened padded-image row width: w+2 rounded up to a multiple of 8 (kept as-is when tiny)."""
    base = w + 2
    return base if base < 16 else _round_up(base, 8)


# ==========================================================================
# In-kernel interior-pixel mask (replaces the old HBM-resident mask array)
# ==========================================================================
def _divmod_const(x, d):
    """Exact floor-div / mod of a non-negative int32 vector (< 2**22) by a positive constant,
    via f32 reciprocal multiply (no vector integer division needed)."""
    xf = x.astype(jnp.float32)
    q = jnp.floor((xf + 0.5) * (1.0 / d)).astype(jnp.int32)
    return q, x - q * d


def _interior_mask_vec(row, w_row, h, w, mp):
    """row: (L,1) int32 global flat-row indices (may be negative / >= mp).
    Returns a boolean (L,1) mask that is True only for interior (non-padding) pixels."""
    rc = jnp.maximum(row, 0)
    q, cc = _divmod_const(rc, w_row)          # cc = column within the padded row
    _, rr = _divmod_const(q, h + 2)           # rr = row within the padded image
    return ((row >= 0) & (row < mp)
            & (cc >= 1) & (cc <= w) & (rr >= 1) & (rr <= h))


# ==========================================================================
# Implicit-GEMM 3x3 stride-1 conv kernel (fused BN pre-op + BN/PReLU/add epilogue)
# ==========================================================================
def _shift_conv_kernel(*refs, w_row, h, w, mp, has_pre, has_add):
    x0_ref, x1_ref, x2_ref = refs[0], refs[1], refs[2]
    idx = 3
    if has_pre:
        si_ref, bi_ref = refs[3], refs[4]
        idx = 5
    w_ref, so_ref, bo_ref, al_ref = refs[idx:idx + 4]
    idx += 4
    add_ref = refs[idx] if has_add else None
    o_ref = refs[-1]

    halo = x0_ref.shape[0]
    tm = x1_ref.shape[0]
    cin = x1_ref.shape[1]
    cout = o_ref.shape[1]
    big_l = tm + 2 * halo
    i = pl.program_id(0)

    # [prev-halo | current tile | next-halo] rows of the flattened padded grid (bf16).
    cat = jnp.concatenate([x0_ref[...], x1_ref[...], x2_ref[...]], axis=0)

    if has_pre:
        # BatchNorm applied to interior pixels only (padding / out-of-range rows stay zero).
        rowc = i * tm - halo + lax.broadcasted_iota(jnp.int32, (big_l, 1), 0)
        good = _interior_mask_vec(rowc, w_row, h, w, mp)
        catf = cat.astype(jnp.float32) * si_ref[...] + bi_ref[...]
        cat = jnp.where(good, catf, 0.0).astype(jnp.bfloat16)

    # Fold the three column (dj) shifts into the lane dimension: the 9 shifted matmuls
    # collapse into 3 dots of contraction depth 3*cin (one per row shift di).
    s = 7                                   # puts the row-shift slices on 8-aligned offsets
    lp = big_l - (s + 2)
    c0 = lax.slice(cat, (s, 0), (s + lp, cin))
    c1 = lax.slice(cat, (s + 1, 0), (s + 1 + lp, cin))
    c2 = lax.slice(cat, (s + 2, 0), (s + 2 + lp, cin))
    cat3 = jnp.concatenate([c0, c1, c2], axis=1)        # (lp, 3*cin) bf16

    acc = jnp.zeros((tm, cout), jnp.float32)
    for di in range(3):
        u0 = halo - 1 - s + (di - 1) * w_row
        a = lax.slice(cat3, (u0, 0), (u0 + tm, 3 * cin))
        acc = acc + jnp.dot(a, w_ref[di], preferred_element_type=jnp.float32)

    y = acc * so_ref[...] + bo_ref[...]                  # BatchNorm (or identity)
    y = jnp.where(y > 0.0, y, y * al_ref[...])           # PReLU (alpha=1 -> identity)
    if has_add:
        y = y + add_ref[...].astype(jnp.float32)         # residual shortcut

    # Re-zero padding / out-of-range rows of the output slab (mask computed in-kernel).
    rowo = i * tm + lax.broadcasted_iota(jnp.int32, (tm, 1), 0)
    keep = _interior_mask_vec(rowo, w_row, h, w, mp)
    o_ref[...] = jnp.where(keep, y, 0.0).astype(o_ref.dtype)


def _shift_conv(x_can, w3, s_in, b_in, s_out, b_out, alpha, add, *, spatial, batch):
    """3x3 stride-1 'same' conv on the canonical (Mpad, Cin) flattened padded-grid slab."""
    mpad, cin = x_can.shape
    cout = w3.shape[2]
    h = w = spatial
    wr = _w_row(w)
    mp = batch * (h + 2) * wr
    tm = TM_BY_C[max(cin, cout)]

    # Static safety checks (the clamped-halo scheme relies on these).
    assert tm % HALO == 0 and mpad % tm == 0, (tm, mpad)
    assert wr >= w + 2 and wr <= HALO - 8, (wr, HALO)
    assert mpad >= mp

    nblk = mpad // tm
    r = tm // HALO
    nhalo = mpad // HALO
    has_pre = s_in is not None
    has_add = add is not None

    if has_pre:
        s_in = s_in.reshape(1, cin).astype(jnp.float32)
        b_in = b_in.reshape(1, cin).astype(jnp.float32)
    s_out = s_out.reshape(1, cout).astype(jnp.float32)
    b_out = b_out.reshape(1, cout).astype(jnp.float32)
    alpha = alpha.reshape(1, cout).astype(jnp.float32)

    def prev_map(i):
        return (jnp.maximum(i * r - 1, 0), 0)

    def next_map(i):
        return (jnp.minimum((i + 1) * r, nhalo - 1), 0)

    x0s = pl.BlockSpec((HALO, cin), prev_map)
    x1s = pl.BlockSpec((tm, cin), lambda i: (i, 0))
    x2s = pl.BlockSpec((HALO, cin), next_map)
    wsp = pl.BlockSpec((3, 3 * cin, cout), lambda i: (0, 0, 0))
    vin = pl.BlockSpec((1, cin), lambda i: (0, 0))
    vout = pl.BlockSpec((1, cout), lambda i: (0, 0))
    tile = pl.BlockSpec((tm, cout), lambda i: (i, 0))

    inputs = [x_can, x_can, x_can]
    specs = [x0s, x1s, x2s]
    if has_pre:
        inputs += [s_in, b_in]
        specs += [vin, vin]
    inputs += [w3, s_out, b_out, alpha]
    specs += [wsp, vout, vout, vout]
    if has_add:
        inputs.append(add)
        specs.append(tile)

    kernel = functools.partial(_shift_conv_kernel, w_row=wr, h=h, w=w, mp=mp,
                               has_pre=has_pre, has_add=has_add)
    return pl.pallas_call(
        kernel,
        out_shape=jax.ShapeDtypeStruct((mpad, cout), jnp.bfloat16),
        grid_spec=pltpu.PrefetchScalarGridSpec(
            num_scalar_prefetch=0,
            grid=(nblk,),
            in_specs=specs,
            out_specs=tile),
        compiler_params=pltpu.CompilerParams(
            dimension_semantics=("parallel",),
            vmem_limit_bytes=VMEM_LIMIT),
    )(*inputs)


# ==========================================================================
# Generic fused matmul kernel (stem conv, stride-2 convs, 1x1 shortcuts, Linear)
# ==========================================================================
def _mm_epilogue_kernel(*refs, has_add):
    if has_add:
        a_ref, b_ref, s_ref, t_ref, al_ref, add_ref, o_ref, acc_ref = refs
    else:
        a_ref, b_ref, s_ref, t_ref, al_ref, o_ref, acc_ref = refs
        add_ref = None

    @pl.when(pl.program_id(2) == 0)
    def _():
        acc_ref[...] = jnp.zeros_like(acc_ref)

    acc_ref[...] += jnp.dot(a_ref[...], b_ref[...],
                            preferred_element_type=jnp.float32)

    @pl.when(pl.program_id(2) == pl.num_programs(2) - 1)
    def _():
        y = acc_ref[...] * s_ref[...] + t_ref[...]
        y = jnp.where(y > 0.0, y, y * al_ref[...])
        if has_add:
            y = y + add_ref[...].astype(jnp.float32)
        o_ref[...] = y.astype(o_ref.dtype)


def _mm_tiles(m, k, n, has_add):
    """Tile sizes budgeted against double-buffered A/B/out/add + f32 accumulator."""
    tn = n if n <= 512 else 512
    assert n % tn == 0
    if k * tn * 2 <= (5 << 20):
        tk = k
    elif k % 3584 == 0:
        tk = 3584
    else:
        tk = 2048
    budget = 24 << 20
    b_bytes = 2 * tk * tn * 2                               # B tile, double buffered
    per_row = 2 * tk * 2 + (4 if has_add else 2) * tn * 2 + tn * 4
    tm = max(8, (budget - b_bytes) // per_row)
    cap = 2048
    if m > cap:
        nb = -(-m // cap)                                   # split M evenly to minimize pad waste
        tm = min(tm, _round_up(-(-m // nb), 8))
    else:
        tm = min(tm, _round_up(m, 8))
    tm = max(8, tm // 8 * 8)
    return tm, tk, tn


def _fused_matmul(a, b, scale, shift, alpha, add, out_dtype):
    m, k = a.shape
    n = b.shape[1]
    has_add = add is not None
    tm, tk, tn = _mm_tiles(m, k, n, has_add)
    mpad = _round_up(m, tm)
    kpad = _round_up(k, tk)
    a = a.astype(jnp.bfloat16)
    b = b.astype(jnp.bfloat16)
    if mpad != m or kpad != k:
        a = jnp.pad(a, ((0, mpad - m), (0, kpad - k)))
    if kpad != k:
        b = jnp.pad(b, ((0, kpad - k), (0, 0)))
    scale = scale.reshape(1, n).astype(jnp.float32)
    shift = shift.reshape(1, n).astype(jnp.float32)
    alpha = alpha.reshape(1, n).astype(jnp.float32)

    inputs = [a, b, scale, shift, alpha]
    specs = [pl.BlockSpec((tm, tk), lambda i, j, kk: (i, kk)),
             pl.BlockSpec((tk, tn), lambda i, j, kk: (kk, j)),
             pl.BlockSpec((1, tn), lambda i, j, kk: (0, j)),
             pl.BlockSpec((1, tn), lambda i, j, kk: (0, j)),
             pl.BlockSpec((1, tn), lambda i, j, kk: (0, j))]
    if has_add:
        addp = add.astype(jnp.bfloat16)
        if mpad != m:
            addp = jnp.pad(addp, ((0, mpad - m), (0, 0)))
        inputs.append(addp)
        specs.append(pl.BlockSpec((tm, tn), lambda i, j, kk: (i, j)))

    kernel = functools.partial(_mm_epilogue_kernel, has_add=has_add)
    out = pl.pallas_call(
        kernel,
        out_shape=jax.ShapeDtypeStruct((mpad, n), out_dtype),
        grid_spec=pltpu.PrefetchScalarGridSpec(
            num_scalar_prefetch=0,
            grid=(mpad // tm, n // tn, kpad // tk),
            in_specs=specs,
            out_specs=pl.BlockSpec((tm, tn), lambda i, j, kk: (i, j)),
            scratch_shapes=[pltpu.VMEM((tm, tn), jnp.float32)]),
        compiler_params=pltpu.CompilerParams(
            dimension_semantics=("parallel", "parallel", "arbitrary"),
            vmem_limit_bytes=VMEM_LIMIT),
    )(*inputs)
    return out[:m]


# ==========================================================================
# Canonical activation layout (flattened zero-padded image grid, no mask array)
# ==========================================================================
def _to_canonical(x_nhwc):
    n, h, w, c = x_nhwc.shape
    wr = _w_row(w)
    tm = TM_BY_C[c]
    xp = jnp.pad(x_nhwc.astype(jnp.bfloat16),
                 ((0, 0), (1, 1), (1, wr - w - 1), (0, 0)))
    mp = n * (h + 2) * wr
    mpad = _round_up(mp, tm)
    flat = xp.reshape(mp, c)
    if mpad != mp:
        flat = jnp.pad(flat, ((0, mpad - mp), (0, 0)))
    return flat


# ==========================================================================
# Network pieces (jitted per shape signature to bound Mosaic compile count)
# ==========================================================================
@jax.jit
def _stem_fn(x_nhwc, w27, bn_s, bn_b, alpha):
    n, h, w, _ = x_nhwc.shape
    xp = jnp.pad(x_nhwc.astype(jnp.bfloat16), ((0, 0), (1, 1), (1, 1), (0, 0)))
    cols = [xp[:, di:di + h, dj:dj + w, :] for di in range(3) for dj in range(3)]
    a = jnp.concatenate(cols, axis=-1).reshape(n * h * w, 27)
    y = _fused_matmul(a, w27, bn_s, bn_b, alpha, None, jnp.bfloat16)
    return _to_canonical(y.reshape(n, h, w, 64))


@functools.partial(jax.jit, static_argnames=("spatial", "batch"))
def _block_s1(x_can, bn1_s, bn1_b, w1, alpha, w2, bn2_s, bn2_b, *, spatial, batch):
    depth = w1.shape[2]
    one = jnp.ones((depth,), jnp.float32)
    zero = jnp.zeros((depth,), jnp.float32)
    # res conv1: BN1 (fused pre-op) -> conv3x3 s1 -> PReLU        [one Pallas call]
    y = _shift_conv(x_can, w1, s_in=bn1_s, b_in=bn1_b,
                    s_out=one, b_out=zero, alpha=alpha, add=None,
                    spatial=spatial, batch=batch)
    # res conv2 -> BN2 + identity-shortcut residual add           [one Pallas call]
    return _shift_conv(y, w2, s_in=None, b_in=None,
                       s_out=bn2_s, b_out=bn2_b, alpha=one, add=x_can,
                       spatial=spatial, batch=batch)


@functools.partial(jax.jit, static_argnames=("spatial", "batch"))
def _block_s2(x_can, bn1_s, bn1_b, w1, alpha, w2_flat, bn2_s, bn2_b,
              sc_w, sc_s, sc_b, *, spatial, batch):
    cin = x_can.shape[1]
    depth = w1.shape[2]
    n, h, w = batch, spatial, spatial
    wr = _w_row(w)
    ho = wo = (h - 1) // 2 + 1
    one = jnp.ones((depth,), jnp.float32)
    zero = jnp.zeros((depth,), jnp.float32)
    # res conv1: BN1 -> conv3x3 s1 -> PReLU  (implicit-GEMM kernel)
    y_can = _shift_conv(x_can, w1, s_in=bn1_s, b_in=bn1_b,
                        s_out=one, b_out=zero, alpha=alpha, add=None,
                        spatial=h, batch=n)
    mp = n * (h + 2) * wr
    y_pg = y_can[:mp].reshape(n, h + 2, wr, depth)
    # res conv2: 3x3 stride-2 via small im2col + fused BN2 + residual add
    cols = [y_pg[:, di:di + 2 * ho - 1:2, dj:dj + 2 * wo - 1:2, :]
            for di in range(3) for dj in range(3)]
    a2 = jnp.concatenate(cols, axis=-1).reshape(n * ho * wo, 9 * depth)
    # shortcut branch
    x_pg = x_can[:mp].reshape(n, h + 2, wr, cin)
    sub = x_pg[:, 1:h + 1:2, 1:w + 1:2, :].reshape(n * ho * wo, cin)
    if sc_w is None:
        shortcut = sub                                   # MaxPool2d(kernel=1, stride=2)
    else:                                                # Conv1x1 stride-2 + BN
        shortcut = _fused_matmul(sub, sc_w, sc_s, sc_b, one, None, jnp.bfloat16)
    out = _fused_matmul(a2, w2_flat, bn2_s, bn2_b, one, shortcut, jnp.bfloat16)
    return _to_canonical(out.reshape(n, ho, wo, depth))


@functools.partial(jax.jit, static_argnames=("spatial", "batch"))
def _output_fn(x_can, bn2d_s, bn2d_b, lin_w, lin_b, bn1d_s, bn1d_b, *, spatial, batch):
    c = x_can.shape[1]
    h = w = spatial
    wr = _w_row(w)
    n = batch
    mp = n * (h + 2) * wr
    xpg = x_can[:mp].reshape(n, h + 2, wr, c)
    xin = xpg[:, 1:h + 1, 1:w + 1, :].astype(jnp.float32)
    xin = xin * bn2d_s + bn2d_b          # tiny output-layer BatchNorm2d (XLA glue)
    # Dropout: identity in inference mode.
    flat = jnp.transpose(xin, (0, 3, 1, 2)).reshape(n, c * h * w).astype(jnp.bfloat16)
    eff_shift = lin_b * bn1d_s + bn1d_b  # fold Linear bias through BatchNorm1d
    ones = jnp.ones((lin_w.shape[1],), jnp.float32)
    return _fused_matmul(flat, lin_w, bn1d_s, eff_shift, ones, None, jnp.float32)


# ==========================================================================
# Parameters (deterministic, mirrors Backbone112.__init__ / _initialize_weights)
# ==========================================================================
def get_blocks_cfg(num_layers=50):
    if num_layers == 50:
        units = [3, 4, 14, 3]
    elif num_layers == 100:
        units = [3, 13, 30, 3]
    else:
        units = [3, 8, 36, 3]
    chans = [(64, 64), (64, 128), (128, 256), (256, 512)]
    blocks = []
    for (in_c, depth), nu in zip(chans, units):
        blocks.append((in_c, depth, 2))
        for _ in range(nu - 1):
            blocks.append((depth, depth, 1))
    return blocks


def _bn_params(c):
    gamma = jnp.ones((c,), jnp.float32)
    beta = jnp.zeros((c,), jnp.float32)
    mean = jnp.zeros((c,), jnp.float32)
    var = jnp.ones((c,), jnp.float32)
    s = gamma / jnp.sqrt(var + BN_EPS)
    return s, beta - mean * s


def _xavier(key, shape, fan_in, fan_out):
    bound = (6.0 / (fan_in + fan_out)) ** 0.5
    return jax.random.uniform(key, shape, jnp.float32, -bound, bound)


def _conv_w(key, kh, kw, cin, cout):
    return _xavier(key, (kh, kw, cin, cout), cin * kh * kw, cout * kh * kw)


def init_params(key, num_layers=50):
    cfg = get_blocks_cfg(num_layers)
    keys = jax.random.split(key, 4 * len(cfg) + 8)
    it = iter(range(len(keys)))
    nk = lambda: keys[next(it)]

    s, b = _bn_params(64)
    params = {"stem": {
        "w": _conv_w(nk(), 3, 3, 3, 64).reshape(27, 64).astype(jnp.bfloat16),
        "bn_s": s, "bn_b": b,
        "alpha": jnp.full((64,), 0.25, jnp.float32)}}

    blocks = []
    for in_c, depth, stride in cfg:
        b1s, b1b = _bn_params(in_c)
        b2s, b2b = _bn_params(depth)
        # weights stored as (3, 3*cin, cout): the three dj taps packed along K
        w1 = _conv_w(nk(), 3, 3, in_c, depth).reshape(3, 3 * in_c, depth).astype(jnp.bfloat16)
        w2 = _conv_w(nk(), 3, 3, depth, depth)
        bp = {"bn1_s": b1s, "bn1_b": b1b, "w1": w1,
              "alpha": jnp.full((depth,), 0.25, jnp.float32),
              "bn2_s": b2s, "bn2_b": b2b}
        if stride == 1:
            bp["w2"] = w2.reshape(3, 3 * depth, depth).astype(jnp.bfloat16)
            bp["sc"] = None
        else:
            bp["w2"] = w2.reshape(9 * depth, depth).astype(jnp.bfloat16)
            if in_c == depth:
                bp["sc"] = None
            else:
                scs, scb = _bn_params(depth)
                bp["sc"] = {"w": _conv_w(nk(), 1, 1, in_c, depth
                                         ).reshape(in_c, depth).astype(jnp.bfloat16),
                            "s": scs, "b": scb}
        blocks.append(bp)
    params["blocks"] = blocks

    fin = 512 * 7 * 7
    b2ds, b2db = _bn_params(512)
    b1ds, b1db = _bn_params(512)
    params["out"] = {
        "bn2d_s": b2ds, "bn2d_b": b2db,
        "lin_w": _xavier(nk(), (fin, 512), fin, 512).astype(jnp.bfloat16),
        "lin_b": jnp.zeros((512,), jnp.float32),
        "bn1d_s": b1ds, "bn1d_b": b1db}
    return params


# ==========================================================================
# Forward pass
# ==========================================================================
def backbone112_forward(params, x_nchw, num_layers=50):
    cfg = get_blocks_cfg(num_layers)
    x = jnp.transpose(x_nchw, (0, 2, 3, 1)).astype(jnp.float32)   # NCHW -> NHWC once
    n = int(x.shape[0])
    spatial = int(x.shape[1])

    st = params["stem"]
    x_can = _stem_fn(x, st["w"], st["bn_s"], st["bn_b"], st["alpha"])

    for (in_c, depth, stride), bp in zip(cfg, params["blocks"]):
        if stride == 1:
            x_can = _block_s1(x_can, bp["bn1_s"], bp["bn1_b"], bp["w1"],
                              bp["alpha"], bp["w2"], bp["bn2_s"], bp["bn2_b"],
                              spatial=spatial, batch=n)
        else:
            sc = bp["sc"]
            sc_w = None if sc is None else sc["w"]
            sc_s = None if sc is None else sc["s"]
            sc_b = None if sc is None else sc["b"]
            x_can = _block_s2(x_can, bp["bn1_s"], bp["bn1_b"], bp["w1"],
                              bp["alpha"], bp["w2"], bp["bn2_s"], bp["bn2_b"],
                              sc_w, sc_s, sc_b, spatial=spatial, batch=n)
            spatial = (spatial - 1) // 2 + 1

    po = params["out"]
    return _output_fn(x_can, po["bn2d_s"], po["bn2d_b"], po["lin_w"], po["lin_b"],
                      po["bn1d_s"], po["bn1d_b"], spatial=spatial, batch=n)


# ==========================================================================
if __name__ == "__main__":
    key = jax.random.PRNGKey(0)
    pkey, xkey = jax.random.split(key)
    params = init_params(pkey, num_layers=50)
    # smallest valid input for this module: 112x112 RGB, batch=2
    x = jax.random.normal(xkey, (2, 3, 112, 112), jnp.float32)
    out = backbone112_forward(params, x)
    out = jax.block_until_ready(out)
    assert out.shape == (2, 512) and out.dtype == jnp.float32
    print("KERNEL_OK")
</pallas_src>

<mosaic_0001>
module attributes {stable_mosaic.version = 11 : i64} {
  func.func @_mm_epilogue_kernel(%arg0: i32, %arg1: i32, %arg2: i32, %arg3: memref<1936x27xbf16, #tpu.memory_space<vmem>>, %arg4: memref<27x64xbf16, #tpu.memory_space<vmem>>, %arg5: memref<1x64xf32, #tpu.memory_space<vmem>>, %arg6: memref<1x64xf32, #tpu.memory_space<vmem>>, %arg7: memref<1x64xf32, #tpu.memory_space<vmem>>, %arg8: memref<1936x64xbf16, #tpu.memory_space<vmem>>, %arg9: memref<1936x64xf32, #tpu.memory_space<vmem>>) attributes {dimension_semantics = [#tpu.dimension_semantics<parallel>, #tpu.dimension_semantics<parallel>, #tpu.dimension_semantics<arbitrary>], iteration_bounds = array<i64: 13, 1, 1>, scalar_prefetch = 0 : i64, scratch_operands = 1 : i64, tpu.core_type = #tpu.core_type<tc>, window_params = [{transform_indices = @transform_0, window_bounds = array<i64: 1936, 27>}, {transform_indices = @transform_1, window_bounds = array<i64: 27, 64>}, {transform_indices = @transform_2, window_bounds = array<i64: 1, 64>}, {transform_indices = @transform_3, window_bounds = array<i64: 1, 64>}, {transform_indices = @transform_4, window_bounds = array<i64: 1, 64>}, {transform_indices = @transform_5, window_bounds = array<i64: 1936, 64>}]} {
    %c0_i32 = arith.constant 0 : i32
    %0 = arith.cmpi eq, %arg2, %c0_i32 : i32
    %1 = arith.extui %0 : i1 to i32
    %c0_i32_0 = arith.constant 0 : i32
    %2 = arith.cmpi ne, %1, %c0_i32_0 : i32
    scf.if %2 {
      %cst_10 = arith.constant 0.000000e+00 : f32
      %12 = vector.broadcast %cst_10 : f32 to vector<1936x64xf32>
      %c0_11 = arith.constant 0 : index
      %c0_12 = arith.constant 0 : index
      %13 = vector.load %arg9[%c0_11, %c0_12] : memref<1936x64xf32, #tpu.memory_space<vmem>>, vector<1936x64xf32>
      tpu.vector_store %arg9[%c0_11, %c0_12], %12 {strides = array<i32>} : memref<1936x64xf32, #tpu.memory_space<vmem>>, vector<1936x64xf32>,
    } else {
    }
    %c0 = arith.constant 0 : index
    %c0_1 = arith.constant 0 : index
    %3 = vector.load %arg9[%c0, %c0_1] : memref<1936x64xf32, #tpu.memory_space<vmem>>, vector<1936x64xf32>
    %c0_2 = arith.constant 0 : index
    %c0_3 = arith.constant 0 : index
    %4 = vector.load %arg3[%c0_2, %c0_3] : memref<1936x27xbf16, #tpu.memory_space<vmem>>, vector<1936x27xbf16>
    %c0_4 = arith.constant 0 : index
    %c0_5 = arith.constant 0 : index
    %5 = vector.load %arg4[%c0_4, %c0_5] : memref<27x64xbf16, #tpu.memory_space<vmem>>, vector<27x64xbf16>
    %cst = arith.constant dense<0.000000e+00> : vector<1936x64xf32>
    %6 = tpu.matmul %4, %5, %cst {dimension_numbers = #tpu.dot_dimension_numbers<[1], [0], [0], [1], [0, 0, 1, 1], [], []>} : vector<1936x27xbf16>, vector<27x64xbf16>, vector<1936x64xf32> -> vector<1936x64xf32>
    %7 = arith.addf %3, %6 : vector<1936x64xf32>
    %c0_6 = arith.constant 0 : index
    %c0_7 = arith.constant 0 : index
    %8 = vector.load %arg9[%c0_6, %c0_7] : memref<1936x64xf32, #tpu.memory_space<vmem>>, vector<1936x64xf32>
    tpu.vector_store %arg9[%c0_6, %c0_7], %7 {strides = array<i32>} : memref<1936x64xf32, #tpu.memory_space<vmem>>, vector<1936x64xf32>,
    %c0_i32_8 = arith.constant 0 : i32
    %9 = arith.cmpi eq, %arg2, %c0_i32_8 : i32
    %10 = arith.extui %9 : i1 to i32
    %c0_i32_9 = arith.constant 0 : i32
    %11 = arith.cmpi ne, %10, %c0_i32_9 : i32
    scf.if %11 {
      %c0_10 = arith.constant 0 : index
      %c0_11 = arith.constant 0 : index
      %12 = vector.load %arg9[%c0_10, %c0_11] : memref<1936x64xf32, #tpu.memory_space<vmem>>, vector<1936x64xf32>
      %c0_12 = arith.constant 0 : index
      %c0_13 = arith.constant 0 : index
      %13 = vector.load %arg5[%c0_12, %c0_13] : memref<1x64xf32, #tpu.memory_space<vmem>>, vector<1x64xf32>
      %14 = vector.broadcast %13 : vector<1x64xf32> to vector<1936x64xf32>
      %15 = arith.mulf %12, %14 : vector<1936x64xf32>
      %c0_14 = arith.constant 0 : index
      %c0_15 = arith.constant 0 : index
      %16 = vector.load %arg6[%c0_14, %c0_15] : memref<1x64xf32, #tpu.memory_space<vmem>>, vector<1x64xf32>
      %17 = vector.broadcast %16 : vector<1x64xf32> to vector<1936x64xf32>
      %18 = arith.addf %15, %17 : vector<1936x64xf32>
      %cst_16 = arith.constant 0.000000e+00 : f32
      %19 = vector.broadcast %cst_16 : f32 to vector<1936x64xf32>
      %20 = arith.cmpf ogt, %18, %19 : vector<1936x64xf32>
      %c0_17 = arith.constant 0 : index
      %c0_18 = arith.constant 0 : index
      %21 = vector.load %arg7[%c0_17, %c0_18] : memref<1x64xf32, #tpu.memory_space<vmem>>, vector<1x64xf32>
      %22 = vector.broadcast %21 : vector<1x64xf32> to vector<1936x64xf32>
      %23 = arith.mulf %18, %22 : vector<1936x64xf32>
      %24 = arith.select %20, %18, %23 : vector<1936x64xi1>, vector<1936x64xf32>
      %25 = arith.truncf %24 : vector<1936x64xf32> to vector<1936x64xbf16>
      %c0_19 = arith.constant 0 : index
      %c0_20 = arith.constant 0 : index
      %26 = vector.load %arg8[%c0_19, %c0_20] : memref<1936x64xbf16, #tpu.memory_space<vmem>>, vector<1936x64xbf16>
      tpu.vector_store %arg8[%c0_19, %c0_20], %25 {strides = array<i32>} : memref<1936x64xbf16, #tpu.memory_space<vmem>>, vector<1936x64xbf16>,
    } else {
    }
    return
  }
  func.func @transform_0(%arg0: i32, %arg1: i32, %arg2: i32) -> (i32, i32) {
    %c0_i32 = arith.constant 0 : i32
    return %arg0, %arg2 : i32, i32
  }
  func.func @transform_1(%arg0: i32, %arg1: i32, %arg2: i32) -> (i32, i32) {
    %c0_i32 = arith.constant 0 : i32
    return %arg2, %arg1 : i32, i32
  }
  func.func @transform_2(%arg0: i32, %arg1: i32, %arg2: i32) -> (i32, i32) {
    %c0_i32 = arith.constant 0 : i32
    %c0_i32_0 = arith.constant 0 : i32
    return %c0_i32, %arg1 : i32, i32
  }
  func.func @transform_3(%arg0: i32, %arg1: i32, %arg2: i32) -> (i32, i32) {
    %c0_i32 = arith.constant 0 : i32
    %c0_i32_0 = arith.constant 0 : i32
    return %c0_i32, %arg1 : i32, i32
  }
  func.func @transform_4(%arg0: i32, %arg1: i32, %arg2: i32) -> (i32, i32) {
    %c0_i32 = arith.constant 0 : i32
    %c0_i32_0 = arith.constant 0 : i32
    return %c0_i32, %arg1 : i32, i32
  }
  func.func @transform_5(%arg0: i32, %arg1: i32, %arg2: i32) -> (i32, i32) {
    %c0_i32 = arith.constant 0 : i32
    return %arg0, %arg1 : i32, i32
  }
}

</mosaic_0001>

<llo_original>
// kernel: _stem_fn.1
$region0: #{_stem_fn.1}
  #allocation0 [shape = 'u32[]', space=smem, size = 0x4, offset = 0x4, fixed_abs, tag = 'smem constant byte address 0x4 - core index']
  #allocation1 [shape = 'u32[144,128]{1,0:T(1,128)}', space=vmem, size = 0x12000, scoped, tag = 'internal scratch']
  #allocation2 [shape = 'f32[1936,64]{1,0:T(8,128)}', space=vmem, size = 0xf2000, scoped, tag = 'scratch operand']
  %s0 = inlined_call_operand.vmem [shape: bf16[25168,27], index: 0, kind: input, shape index: {}]
  %s1 = inlined_call_operand.vmem [shape: bf16[27,64], index: 1, kind: input, shape index: {}]
  %s2 = inlined_call_operand.vmem [shape: f32[1,64], index: 2, kind: input, shape index: {}]
  %s3 = inlined_call_operand.vmem [shape: f32[1,64], index: 3, kind: input, shape index: {}]
  %s4 = inlined_call_operand.vmem [shape: f32[1,64], index: 4, kind: input, shape index: {}]
  %s5 = inlined_call_operand.vmem [shape: bf16[25168,64], index: 5, kind: output, shape index: {}]
  %s6 = sld [smem:[#allocation0]]
  $region61: #{_stem_fn.1} parent=0
    _
  %s8 = ssub.s32 1, %s6
  %s9 = scalar_select 0, %s8, %s6
  loop: start=0, step=1, limit=15
  $region2: #{_stem_fn.1} parent=0 // loop_pre_header
    _
  $region3: #{_stem_fn.1} parent=0 // loop_header
    %s11 = sphi 0, %s15
    %p12 = scmp.ge.s32.totalorder %s11, 15
    %s18 = sphi 0, %s37
    %s19 = sphi 0, %s33
    %s20 = sphi 0, %s29
    %s21 = sphi 0, %s18
    %s22 = sphi 0, %s19
    %s23 = sphi 0, %s20
    %s24 = sphi 0, %s21
    %s25 = sphi 0, %s22
    %s26 = sphi 0, %s23
    %s42 = sphi 0, %s44
    %s45 = sphi 0, %s42
    %s46 = sphi 0, %s45
    %s62 = sphi 0, %s46
    %s70 = sphi 0, %s72
    %s73 = sphi 0, %s70
    %s74 = sphi 0, %s73
    %s90 = sphi 0, %s74
    %s96 = sphi 0, %s98
    %s99 = sphi 0, %s96
    %s100 = sphi 0, %s99
    %s116 = sphi 0, %s100
    %s122 = sphi 0, %s124
    %s125 = sphi 0, %s122
    %s126 = sphi 0, %s125
    %s142 = sphi 0, %s126
    %s148 = sphi 0, %s150
    %s151 = sphi 0, %s148
    %s152 = sphi 0, %s151
    %s168 = sphi 0, %s152
    %s176 = sphi 0, %s178
    %s179 = sphi 0, %s176
    %s180 = sphi 0, %s179
    %s196 = sphi 0, %s180
  $region4: #{_stem_fn.1} parent=0 // loop_header_branch
    %14 = sbr.rel (%p12) target = $region8
  $region5: #{_stem_fn.1} parent=0 // loop_body
    %s16 = ssub.s32 %s11, 1
    %s17 = ssub.s32 %s11, 2
    %s27 = sadd.s32 1, %s20
    %p28 = scmp.ge.s32.totalorder %s27, 1
    %s29 = scalar_select %p28, 0, %s27
    %s30 = sadd.s32 1, %s19
    %s31 = scalar_select %p28, %s30, %s19
    %p32 = scmp.ge.s32.totalorder %s31, 1
    %s33 = scalar_select %p32, 0, %s31
    %s34 = sadd.s32 1, %s18
    %s35 = scalar_select %p32, %s34, %s18
    %p36 = scmp.ge.s32.totalorder %s35, 13
    %s37 = scalar_select %p36, 0, %s35
    %s38 = ssub.s32 %s18, %s37
    %s39 = ssub.s32 %s20, %s29
    %s40 = sor.u32 %s38, %s39
    %p41 = scmp.eq.s32.totalorder %s40, 0
    %s43 = sadd.s32 %s42, 1
    %s44 = scalar_select %p41, %s42, %s43
    %p47 = pneg %p41
    %p48 = scmp.eq.s32.totalorder %s11, 12
    %p49 = por %p47, %p48
    %p50 = scmp.ne.s32.totalorder %s42, %s45
    %p51 = scmp.eq.s32.totalorder %s11, 0
    %p52 = por %p50, %p51
    %p53 = scmp.ne.s32.totalorder %s42, %s45
    %p54 = scmp.eq.s32.totalorder %s16, 12
    %p55 = por %p53, %p54
    %p56 = scmp.ne.s32.totalorder %s45, %s46
    %p57 = scmp.eq.s32.totalorder %s16, 0
    %p58 = por %p56, %p57
    %p59 = scmp.ne.s32.totalorder %s45, %s46
    %p60 = scmp.eq.s32.totalorder %s17, 12
    %p61 = por %p59, %p60
    %p63 = scmp.ne.s32.totalorder %s46, %s62
    %p64 = scmp.eq.s32.totalorder %s17, 0
    %p65 = por %p63, %p64
    %s66 = ssub.s32 %s20, %s29
    %s67 = ssub.s32 %s19, %s33
    %s68 = sor.u32 %s66, %s67
    %p69 = scmp.eq.s32.totalorder %s68, 0
    %s71 = sadd.s32 %s70, 1
    %s72 = scalar_select %p69, %s70, %s71
    %p75 = pneg %p69
    %p76 = scmp.eq.s32.totalorder %s11, 12
    %p77 = por %p75, %p76
    %p78 = scmp.ne.s32.totalorder %s70, %s73
    %p79 = scmp.eq.s32.totalorder %s11, 0
    %p80 = por %p78, %p79
    %p81 = scmp.ne.s32.totalorder %s70, %s73
    %p82 = scmp.eq.s32.totalorder %s16, 12
    %p83 = por %p81, %p82
    %p84 = scmp.ne.s32.totalorder %s73, %s74
    %p85 = scmp.eq.s32.totalorder %s16, 0
    %p86 = por %p84, %p85
    %p87 = scmp.ne.s32.totalorder %s73, %s74
    %p88 = scmp.eq.s32.totalorder %s17, 12
    %p89 = por %p87, %p88
    %p91 = scmp.ne.s32.totalorder %s74, %s90
    %p92 = scmp.eq.s32.totalorder %s17, 0
    %p93 = por %p91, %p92
    %s94 = ssub.s32 %s19, %s33
    %p95 = scmp.eq.s32.totalorder %s94, 0
    %s97 = sadd.s32 %s96, 1
    %s98 = scalar_select %p95, %s96, %s97
    %p101 = pneg %p95
    %p102 = scmp.eq.s32.totalorder %s11, 12
    %p103 = por %p101, %p102
    %p104 = scmp.ne.s32.totalorder %s96, %s99
    %p105 = scmp.eq.s32.totalorder %s11, 0
    %p106 = por %p104, %p105
    %p107 = scmp.ne.s32.totalorder %s96, %s99
    %p108 = scmp.eq.s32.totalorder %s16, 12
    %p109 = por %p107, %p108
    %p110 = scmp.ne.s32.totalorder %s99, %s100
    %p111 = scmp.eq.s32.totalorder %s16, 0
    %p112 = por %p110, %p111
    %p113 = scmp.ne.s32.totalorder %s99, %s100
    %p114 = scmp.eq.s32.totalorder %s17, 12
    %p115 = por %p113, %p114
    %p117 = scmp.ne.s32.totalorder %s100, %s116
    %p118 = scmp.eq.s32.totalorder %s17, 0
    %p119 = por %p117, %p118
    %s120 = ssub.s32 %s19, %s33
    %p121 = scmp.eq.s32.totalorder %s120, 0
    %s123 = sadd.s32 %s122, 1
    %s124 = scalar_select %p121, %s122, %s123
    %p127 = pneg %p121
    %p128 = scmp.eq.s32.totalorder %s11, 12
    %p129 = por %p127, %p128
    %p130 = scmp.ne.s32.totalorder %s122, %s125
    %p131 = scmp.eq.s32.totalorder %s11, 0
    %p132 = por %p130, %p131
    %p133 = scmp.ne.s32.totalorder %s122, %s125
    %p134 = scmp.eq.s32.totalorder %s16, 12
    %p135 = por %p133, %p134
    %p136 = scmp.ne.s32.totalorder %s125, %s126
    %p137 = scmp.eq.s32.totalorder %s16, 0
    %p138 = por %p136, %p137
    %p139 = scmp.ne.s32.totalorder %s125, %s126
    %p140 = scmp.eq.s32.totalorder %s17, 12
    %p141 = por %p139, %p140
    %p143 = scmp.ne.s32.totalorder %s126, %s142
    %p144 = scmp.eq.s32.totalorder %s17, 0
    %p145 = por %p143, %p144
    %s146 = ssub.s32 %s19, %s33
    %p147 = scmp.eq.s32.totalorder %s146, 0
    %s149 = sadd.s32 %s148, 1
    %s150 = scalar_select %p147, %s148, %s149
    %p153 = pneg %p147
    %p154 = scmp.eq.s32.totalorder %s11, 12
    %p155 = por %p153, %p154
    %p156 = scmp.ne.s32.totalorder %s148, %s151
    %p157 = scmp.eq.s32.totalorder %s11, 0
    %p158 = por %p156, %p157
    %p159 = scmp.ne.s32.totalorder %s148, %s151
    %p160 = scmp.eq.s32.totalorder %s16, 12
    %p161 = por %p159, %p160
    %p162 = scmp.ne.s32.totalorder %s151, %s152
    %p163 = scmp.eq.s32.totalorder %s16, 0
    %p164 = por %p162, %p163
    %p165 = scmp.ne.s32.totalorder %s151, %s152
    %p166 = scmp.eq.s32.totalorder %s17, 12
    %p167 = por %p165, %p166
    %p169 = scmp.ne.s32.totalorder %s152, %s168
    %p170 = scmp.eq.s32.totalorder %s17, 0
    %p171 = por %p169, %p170
    %s172 = ssub.s32 %s18, %s37
    %s173 = ssub.s32 %s19, %s33
    %s174 = sor.u32 %s172, %s173
    %p175 = scmp.eq.s32.totalorder %s174, 0
    %s177 = sadd.s32 %s176, 1
    %s178 = scalar_select %p175, %s176, %s177
    %p181 = pneg %p175
    %p182 = scmp.eq.s32.totalorder %s11, 12
    %p183 = por %p181, %p182
    %p184 = scmp.ne.s32.totalorder %s176, %s179
    %p185 = scmp.eq.s32.totalorder %s11, 0
    %p186 = por %p184, %p185
    %p187 = scmp.ne.s32.totalorder %s176, %s179
    %p188 = scmp.eq.s32.totalorder %s16, 12
    %p189 = por %p187, %p188
    %p190 = scmp.ne.s32.totalorder %s179, %s180
    %p191 = scmp.eq.s32.totalorder %s16, 0
    %p192 = por %p190, %p191
    %p193 = scmp.ne.s32.totalorder %s179, %s180
    %p194 = scmp.eq.s32.totalorder %s17, 12
    %p195 = por %p193, %p194
    %p197 = scmp.ne.s32.totalorder %s180, %s196
    %p198 = scmp.eq.s32.totalorder %s17, 0
    %p199 = por %p197, %p198
    %p200 = scmp.le.s32.totalorder 1, %s11
    %p201 = scmp.lt.s32.totalorder %s11, 14
    %p202 = pnand %p200, %p201
    %p203 = pneg %p202
    // Predicated region
    $region9: #{_stem_fn.1} parent=5 // pred_check
      _
    $region10: #{_stem_fn.1} parent=5 // pred_check_branch
      %205 = sbr.rel (%p202) target = $region12
    $region11: #{_stem_fn.1} parent=5 // pred_region
      %s206 = ssub.s32 %s11, 1
      // Predicated region
      $region13: #{_stem_fn.1} parent=11 // pred_check
        %p207 = pneg %p86
      $region14: #{_stem_fn.1} parent=11 // pred_check_branch
        %209 = sbr.rel (%p207) target = $region16
      $region15: #{_stem_fn.1} parent=11 // pred_region
        %s210 = smul.u32 4, %s23
        %p211 = scmp.lt.s32.totalorder %s210, 3
        %s212 = scalar_select %p211, %s210, 3
        %p213 = scmp.lt.s32.totalorder %s22, 0
        %s214 = scalar_select %p213, %s22, 0
        %s215 = sadd.s32 %s214, %s212
        %s216 = smul.addr %s215, 4
        %s217 = scalar_lea.vmem %s1, %s216
        %s218 = smul.u32 4, %s23
      $region16: #{_stem_fn.1} parent=11 // pred_fallthru
        _
      // Predicated region
      $region17: #{_stem_fn.1} parent=11 // pred_check
        %p219 = pneg %p112
      $region18: #{_stem_fn.1} parent=11 // pred_check_branch
        %221 = sbr.rel (%p219) target = $region20
      $region19: #{_stem_fn.1} parent=11 // pred_region
        %p222 = scmp.lt.s32.totalorder %s22, 0
        %s223 = scalar_select %p222, %s22, 0
        %s224 = scalar_lea.vmem %s2, %s223
      $region20: #{_stem_fn.1} parent=11 // pred_fallthru
        _
      // Predicated region
      $region21: #{_stem_fn.1} parent=11 // pred_check
        %p225 = pneg %p138
      $region22: #{_stem_fn.1} parent=11 // pred_check_branch
        %227 = sbr.rel (%p225) target = $region24
      $region23: #{_stem_fn.1} parent=11 // pred_region
        %p228 = scmp.lt.s32.totalorder %s22, 0
        %s229 = scalar_select %p228, %s22, 0
        %s230 = scalar_lea.vmem %s3, %s229
      $region24: #{_stem_fn.1} parent=11 // pred_fallthru
        _
      // Predicated region
      $region25: #{_stem_fn.1} parent=11 // pred_check
        %p231 = pneg %p164
      $region26: #{_stem_fn.1} parent=11 // pred_check_branch
        %233 = sbr.rel (%p231) target = $region28
      $region27: #{_stem_fn.1} parent=11 // pred_region
        %p234 = scmp.lt.s32.totalorder %s22, 0
        %s235 = scalar_select %p234, %s22, 0
        %s236 = scalar_lea.vmem %s4, %s235
      $region28: #{_stem_fn.1} parent=11 // pred_fallthru
        _
    $region12: #{_stem_fn.1} parent=5 // pred_fallthru
      _
    %p237 = scmp.lt.s32.totalorder %s11, 13
    // Predicated region
    $region29: #{_stem_fn.1} parent=5 // pred_check
      %p238 = pneg %p237
    $region30: #{_stem_fn.1} parent=5 // pred_check_branch
      %240 = sbr.rel (%p238) target = $region32
    $region31: #{_stem_fn.1} parent=5 // pred_region
      // Predicated region
      $region33: #{_stem_fn.1} parent=31 // pred_check
        %p241 = pneg %p52
      $region34: #{_stem_fn.1} parent=31 // pred_check_branch
        %243 = sbr.rel (%p241) target = $region36
      $region35: #{_stem_fn.1} parent=31 // pred_region
        %s244 = smul.u32 242, %s18
        %p245 = scmp.lt.s32.totalorder %s244, 3145
        %s246 = scalar_select %p245, %s244, 3145
        %p247 = scmp.lt.s32.totalorder %s20, 0
        %s248 = scalar_select %p247, %s20, 0
        %s249 = sadd.s32 %s248, %s246
        %s250 = smul.addr %s249, 4
        %s251 = scalar_lea.vmem %s0, %s250
        %s252 = smul.u32 242, %s18
      $region36: #{_stem_fn.1} parent=31 // pred_fallthru
        _
    $region32: #{_stem_fn.1} parent=5 // pred_fallthru
      _
    %p253 = scmp.le.s32.totalorder 1, %s11
    %p254 = scmp.lt.s32.totalorder %s11, 14
    %p255 = pnand %p253, %p254
    %p256 = pneg %p255
    // Predicated region
    $region37: #{_stem_fn.1} parent=5 // pred_check
      _
    $region38: #{_stem_fn.1} parent=5 // pred_check_branch
      %258 = sbr.rel (%p255) target = $region40
    $region39: #{_stem_fn.1} parent=5 // pred_region
      %s259 = ssub.s32 %s11, 1
      %s260 = smul.u32 242, %s21
      %p261 = scmp.lt.s32.totalorder %s260, 3145
      %s262 = scalar_select %p261, %s260, 3145
      %p263 = scmp.lt.s32.totalorder %s23, 0
      %s264 = scalar_select %p263, %s23, 0
      %s265 = sadd.s32 %s264, %s262
      %s266 = smul.addr %s265, 4
      %s267 = scalar_lea.vmem %s0, %s266
      %p268 = pneg %p58
      %p269 = pneg %p55
      %s270 = smul.u32 4, %s23
      %p271 = scmp.lt.s32.totalorder %s270, 3
      %s272 = scalar_select %p271, %s270, 3
      %p273 = scmp.lt.s32.totalorder %s22, 0
      %s274 = scalar_select %p273, %s22, 0
      %s275 = sadd.s32 %s274, %s272
      %s276 = smul.addr %s275, 4
      %s277 = scalar_lea.vmem %s1, %s276
      %p278 = pneg %p86
      %p279 = pneg %p83
      %p280 = scmp.lt.s32.totalorder %s22, 0
      %s281 = scalar_select %p280, %s22, 0
      %s282 = scalar_lea.vmem %s2, %s281
      %p283 = pneg %p112
      %p284 = pneg %p109
      %p285 = scmp.lt.s32.totalorder %s22, 0
      %s286 = scalar_select %p285, %s22, 0
      %s287 = scalar_lea.vmem %s3, %s286
      %p288 = pneg %p138
      %p289 = pneg %p135
      %p290 = scmp.lt.s32.totalorder %s22, 0
      %s291 = scalar_select %p290, %s22, 0
      %s292 = scalar_lea.vmem %s4, %s291
      %p293 = pneg %p164
      %p294 = pneg %p161
      %p295 = pneg %p192
      %p296 = pneg %p189
      %s297 = smul.u32 242, %s21
      %p298 = scmp.lt.s32.totalorder %s297, 3145
      %s299 = scalar_select %p298, %s297, 3145
      %p300 = scmp.lt.s32.totalorder %s22, 0
      %s301 = scalar_select %p300, %s22, 0
      %s302 = sadd.s32 %s301, %s299
      %s303 = smul.addr %s302, 4
      %s304 = scalar_lea.vmem %s5, %s303
      %s305 = smul.u32 242, %s21
      %p306 = scmp.lt.s32.totalorder %s305, 3145
      %s307 = scalar_select %p306, %s305, 3145
      %p308 = scmp.lt.s32.totalorder %s23, 0
      %s309 = scalar_select %p308, %s23, 0
      %s310 = sadd.s32 %s309, %s307
      %s311 = smul.addr %s310, 4
      %s312 = scalar_lea.vmem %s0, %s311
      %s313 = smul.u32 242, %s21
      %s314 = smul.u32 4, %s23
      %p315 = scmp.lt.s32.totalorder %s314, 3
      %s316 = scalar_select %p315, %s314, 3
      %p317 = scmp.lt.s32.totalorder %s22, 0
      %s318 = scalar_select %p317, %s22, 0
      %s319 = sadd.s32 %s318, %s316
      %s320 = smul.addr %s319, 4
      %s321 = scalar_lea.vmem %s1, %s320
      %s322 = smul.u32 4, %s23
      %p323 = scmp.lt.s32.totalorder %s22, 0
      %s324 = scalar_select %p323, %s22, 0
      %s325 = scalar_lea.vmem %s2, %s324
      %p326 = scmp.lt.s32.totalorder %s22, 0
      %s327 = scalar_select %p326, %s22, 0
      %s328 = scalar_lea.vmem %s3, %s327
      %p329 = scmp.lt.s32.totalorder %s22, 0
      %s330 = scalar_select %p329, %s22, 0
      %s331 = scalar_lea.vmem %s4, %s330
      %s332 = smul.u32 242, %s21
      %p333 = scmp.lt.s32.totalorder %s332, 3145
      %s334 = scalar_select %p333, %s332, 3145
      %p335 = scmp.lt.s32.totalorder %s22, 0
      %s336 = scalar_select %p335, %s22, 0
      %s337 = sadd.s32 %s336, %s334
      %s338 = smul.addr %s337, 4
      %s339 = scalar_lea.vmem %s5, %s338
      %s340 = smul.u32 242, %s21
      %p342 = scmp.eq.s32.totalorder %s23, 0
      // Predicated region
      $region41: #{_stem_fn.1} parent=39 // pred_check
        %p343 = pneg %p342
      $region42: #{_stem_fn.1} parent=39 // pred_check_branch
        %345 = sbr.rel (%p343) target = $region44
      $region43: #{_stem_fn.1} parent=39 // pred_region
        %vm346 = vcmask 523264
        %347 = vst.msk [vmem:[#allocation2] sm:$0xff] %vm346, 0.0
        %348 = vst.msk [vmem:[#allocation2 + $0x8] sm:$0xff] %vm346, 0.0
        %349 = vst.msk [vmem:[#allocation2 + $0x10] sm:$0xff] %vm346, 0.0
        %350 = vst.msk [vmem:[#allocation2 + $0x18] sm:$0xff] %vm346, 0.0
        %351 = vst.msk [vmem:[#allocation2 + $0x20] sm:$0xff] %vm346, 0.0
        %352 = vst.msk [vmem:[#allocation2 + $0x28] sm:$0xff] %vm346, 0.0
        %353 = vst.msk [vmem:[#allocation2 + $0x30] sm:$0xff] %vm346, 0.0
        %354 = vst.msk [vmem:[#allocation2 + $0x38] sm:$0xff] %vm346, 0.0
        %355 = vst.msk [vmem:[#allocation2 + $0x40] sm:$0xff] %vm346, 0.0
        %356 = vst.msk [vmem:[#allocation2 + $0x48] sm:$0xff] %vm346, 0.0
        %357 = vst.msk [vmem:[#allocation2 + $0x50] sm:$0xff] %vm346, 0.0
        %358 = vst.msk [vmem:[#allocation2 + $0x58] sm:$0xff] %vm346, 0.0
        %359 = vst.msk [vmem:[#allocation2 + $0x60] sm:$0xff] %vm346, 0.0
        %360 = vst.msk [vmem:[#allocation2 + $0x68] sm:$0xff] %vm346, 0.0
        %361 = vst.msk [vmem:[#allocation2 + $0x70] sm:$0xff] %vm346, 0.0
        %362 = vst.msk [vmem:[#allocation2 + $0x78] sm:$0xff] %vm346, 0.0
        %363 = vst.msk [vmem:[#allocation2 + $0x80] sm:$0xff] %vm346, 0.0
        %364 = vst.msk [vmem:[#allocation2 + $0x88] sm:$0xff] %vm346, 0.0
        %365 = vst.msk [vmem:[#allocation2 + $0x90] sm:$0xff] %vm346, 0.0
        %366 = vst.msk [vmem:[#allocation2 + $0x98] sm:$0xff] %vm346, 0.0
        %367 = vst.msk [vmem:[#allocation2 + $0xa0] sm:$0xff] %vm346, 0.0
        %368 = vst.msk [vmem:[#allocation2 + $0xa8] sm:$0xff] %vm346, 0.0
        %369 = vst.msk [vmem:[#allocation2 + $0xb0] sm:$0xff] %vm346, 0.0
        %370 = vst.msk [vmem:[#allocation2 + $0xb8] sm:$0xff] %vm346, 0.0
        %371 = vst.msk [vmem:[#allocation2 + $0xc0] sm:$0xff] %vm346, 0.0
        %372 = vst.msk [vmem:[#allocation2 + $0xc8] sm:$0xff] %vm346, 0.0
        %373 = vst.msk [vmem:[#allocation2 + $0xd0] sm:$0xff] %vm346, 0.0
        %374 = vst.msk [vmem:[#allocation2 + $0xd8] sm:$0xff] %vm346, 0.0
        %375 = vst.msk [vmem:[#allocation2 + $0xe0] sm:$0xff] %vm346, 0.0
        %376 = vst.msk [vmem:[#allocation2 + $0xe8] sm:$0xff] %vm346, 0.0
        %377 = vst.msk [vmem:[#allocation2 + $0xf0] sm:$0xff] %vm346, 0.0
        %378 = vst.msk [vmem:[#allocation2 + $0xf8] sm:$0xff] %vm346, 0.0
        %379 = vst.msk [vmem:[#allocation2 + $0x100] sm:$0xff] %vm346, 0.0
        %380 = vst.msk [vmem:[#allocation2 + $0x108] sm:$0xff] %vm346, 0.0
        %381 = vst.msk [vmem:[#allocation2 + $0x110] sm:$0xff] %vm346, 0.0
        %382 = vst.msk [vmem:[#allocation2 + $0x118] sm:$0xff] %vm346, 0.0
        %383 = vst.msk [vmem:[#allocation2 + $0x120] sm:$0xff] %vm346, 0.0
        %384 = vst.msk [vmem:[#allocation2 + $0x128] sm:$0xff] %vm346, 0.0
        %385 = vst.msk [vmem:[#allocation2 + $0x130] sm:$0xff] %vm346, 0.0
        %386 = vst.msk [vmem:[#allocation2 + $0x138] sm:$0xff] %vm346, 0.0
        %387 = vst.msk [vmem:[#allocation2 + $0x140] sm:$0xff] %vm346, 0.0
        %388 = vst.msk [vmem:[#allocation2 + $0x148] sm:$0xff] %vm346, 0.0
        %389 = vst.msk [vmem:[#allocation2 + $0x150] sm:$0xff] %vm346, 0.0
        %390 = vst.msk [vmem:[#allocation2 + $0x158] sm:$0xff] %vm346, 0.0
        %391 = vst.msk [vmem:[#allocation2 + $0x160] sm:$0xff] %vm346, 0.0
        %392 = vst.msk [vmem:[#allocation2 + $0x168] sm:$0xff] %vm346, 0.0
        %393 = vst.msk [vmem:[#allocation2 + $0x170] sm:$0xff] %vm346, 0.0
        %394 = vst.msk [vmem:[#allocation2 + $0x178] sm:$0xff] %vm346, 0.0
        %395 = vst.msk [vmem:[#allocation2 + $0x180] sm:$0xff] %vm346, 0.0
        %396 = vst.msk [vmem:[#allocation2 + $0x188] sm:$0xff] %vm346, 0.0
        %397 = vst.msk [vmem:[#allocation2 + $0x190] sm:$0xff] %vm346, 0.0
        %398 = vst.msk [vmem:[#allocation2 + $0x198] sm:$0xff] %vm346, 0.0
        %399 = vst.msk [vmem:[#allocation2 + $0x1a0] sm:$0xff] %vm346, 0.0
        %400 = vst.msk [vmem:[#allocation2 + $0x1a8] sm:$0xff] %vm346, 0.0
        %401 = vst.msk [vmem:[#allocation2 + $0x1b0] sm:$0xff] %vm346, 0.0
        %402 = vst.msk [vmem:[#allocation2 + $0x1b8] sm:$0xff] %vm346, 0.0
        %403 = vst.msk [vmem:[#allocation2 + $0x1c0] sm:$0xff] %vm346, 0.0
        %404 = vst.msk [vmem:[#allocation2 + $0x1c8] sm:$0xff] %vm346, 0.0
        %405 = vst.msk [vmem:[#allocation2 + $0x1d0] sm:$0xff] %vm346, 0.0
        %406 = vst.msk [vmem:[#allocation2 + $0x1d8] sm:$0xff] %vm346, 0.0
        %407 = vst.msk [vmem:[#allocation2 + $0x1e0] sm:$0xff] %vm346, 0.0
        %408 = vst.msk [vmem:[#allocation2 + $0x1e8] sm:$0xff] %vm346, 0.0
        %409 = vst.msk [vmem:[#allocation2 + $0x1f0] sm:$0xff] %vm346, 0.0
        %410 = vst.msk [vmem:[#allocation2 + $0x1f8] sm:$0xff] %vm346, 0.0
        %411 = vst.msk [vmem:[#allocation2 + $0x200] sm:$0xff] %vm346, 0.0
        %412 = vst.msk [vmem:[#allocation2 + $0x208] sm:$0xff] %vm346, 0.0
        %413 = vst.msk [vmem:[#allocation2 + $0x210] sm:$0xff] %vm346, 0.0
        %414 = vst.msk [vmem:[#allocation2 + $0x218] sm:$0xff] %vm346, 0.0
        %415 = vst.msk [vmem:[#allocation2 + $0x220] sm:$0xff] %vm346, 0.0
        %416 = vst.msk [vmem:[#allocation2 + $0x228] sm:$0xff] %vm346, 0.0
        %417 = vst.msk [vmem:[#allocation2 + $0x230] sm:$0xff] %vm346, 0.0
        %418 = vst.msk [vmem:[#allocation2 + $0x238] sm:$0xff] %vm346, 0.0
        %419 = vst.msk [vmem:[#allocation2 + $0x240] sm:$0xff] %vm346, 0.0
        %420 = vst.msk [vmem:[#allocation2 + $0x248] sm:$0xff] %vm346, 0.0
        %421 = vst.msk [vmem:[#allocation2 + $0x250] sm:$0xff] %vm346, 0.0
        %422 = vst.msk [vmem:[#allocation2 + $0x258] sm:$0xff] %vm346, 0.0
        %423 = vst.msk [vmem:[#allocation2 + $0x260] sm:$0xff] %vm346, 0.0
        %424 = vst.msk [vmem:[#allocation2 + $0x268] sm:$0xff] %vm346, 0.0
        %425 = vst.msk [vmem:[#allocation2 + $0x270] sm:$0xff] %vm346, 0.0
        %426 = vst.msk [vmem:[#allocation2 + $0x278] sm:$0xff] %vm346, 0.0
        %427 = vst.msk [vmem:[#allocation2 + $0x280] sm:$0xff] %vm346, 0.0
        %428 = vst.msk [vmem:[#allocation2 + $0x288] sm:$0xff] %vm346, 0.0
        %429 = vst.msk [vmem:[#allocation2 + $0x290] sm:$0xff] %vm346, 0.0
        %430 = vst.msk [vmem:[#allocation2 + $0x298] sm:$0xff] %vm346, 0.0
        %431 = vst.msk [vmem:[#allocation2 + $0x2a0] sm:$0xff] %vm346, 0.0
        %432 = vst.msk [vmem:[#allocation2 + $0x2a8] sm:$0xff] %vm346, 0.0
        %433 = vst.msk [vmem:[#allocation2 + $0x2b0] sm:$0xff] %vm346, 0.0
        %434 = vst.msk [vmem:[#allocation2 + $0x2b8] sm:$0xff] %vm346, 0.0
        %435 = vst.msk [vmem:[#allocation2 + $0x2c0] sm:$0xff] %vm346, 0.0
        %436 = vst.msk [vmem:[#allocation2 + $0x2c8] sm:$0xff] %vm346, 0.0
        %437 = vst.msk [vmem:[#allocation2 + $0x2d0] sm:$0xff] %vm346, 0.0
        %438 = vst.msk [vmem:[#allocation2 + $0x2d8] sm:$0xff] %vm346, 0.0
        %439 = vst.msk [vmem:[#allocation2 + $0x2e0] sm:$0xff] %vm346, 0.0
        %440 = vst.msk [vmem:[#allocation2 + $0x2e8] sm:$0xff] %vm346, 0.0
        %441 = vst.msk [vmem:[#allocation2 + $0x2f0] sm:$0xff] %vm346, 0.0
        %442 = vst.msk [vmem:[#allocation2 + $0x2f8] sm:$0xff] %vm346, 0.0
        %443 = vst.msk [vmem:[#allocation2 + $0x300] sm:$0xff] %vm346, 0.0
        %444 = vst.msk [vmem:[#allocation2 + $0x308] sm:$0xff] %vm346, 0.0
        %445 = vst.msk [vmem:[#allocation2 + $0x310] sm:$0xff] %vm346, 0.0
        %446 = vst.msk [vmem:[#allocation2 + $0x318] sm:$0xff] %vm346, 0.0
        %447 = vst.msk [vmem:[#allocation2 + $0x320] sm:$0xff] %vm346, 0.0
        %448 = vst.msk [vmem:[#allocation2 + $0x328] sm:$0xff] %vm346, 0.0
        %449 = vst.msk [vmem:[#allocation2 + $0x330] sm:$0xff] %vm346, 0.0
        %450 = vst.msk [vmem:[#allocation2 + $0x338] sm:$0xff] %vm346, 0.0
        %451 = vst.msk [vmem:[#allocation2 + $0x340] sm:$0xff] %vm346, 0.0
        %452 = vst.msk [vmem:[#allocation2 + $0x348] sm:$0xff] %vm346, 0.0
        %453 = vst.msk [vmem:[#allocation2 + $0x350] sm:$0xff] %vm346, 0.0
        %454 = vst.msk [vmem:[#allocation2 + $0x358] sm:$0xff] %vm346, 0.0
        %455 = vst.msk [vmem:[#allocation2 + $0x360] sm:$0xff] %vm346, 0.0
        %456 = vst.msk [vmem:[#allocation2 + $0x368] sm:$0xff] %vm346, 0.0
        %457 = vst.msk [vmem:[#allocation2 + $0x370] sm:$0xff] %vm346, 0.0
        %458 = vst.msk [vmem:[#allocation2 + $0x378] sm:$0xff] %vm346, 0.0
        %459 = vst.msk [vmem:[#allocation2 + $0x380] sm:$0xff] %vm346, 0.0
        %460 = vst.msk [vmem:[#allocation2 + $0x388] sm:$0xff] %vm346, 0.0
        %461 = vst.msk [vmem:[#allocation2 + $0x390] sm:$0xff] %vm346, 0.0
        %462 = vst.msk [vmem:[#allocation2 + $0x398] sm:$0xff] %vm346, 0.0
        %463 = vst.msk [vmem:[#allocation2 + $0x3a0] sm:$0xff] %vm346, 0.0
        %464 = vst.msk [vmem:[#allocation2 + $0x3a8] sm:$0xff] %vm346, 0.0
        %465 = vst.msk [vmem:[#allocation2 + $0x3b0] sm:$0xff] %vm346, 0.0
        %466 = vst.msk [vmem:[#allocation2 + $0x3b8] sm:$0xff] %vm346, 0.0
        %467 = vst.msk [vmem:[#allocation2 + $0x3c0] sm:$0xff] %vm346, 0.0
        %468 = vst.msk [vmem:[#allocation2 + $0x3c8] sm:$0xff] %vm346, 0.0
        %469 = vst.msk [vmem:[#allocation2 + $0x3d0] sm:$0xff] %vm346, 0.0
        %470 = vst.msk [vmem:[#allocation2 + $0x3d8] sm:$0xff] %vm346, 0.0
        %471 = vst.msk [vmem:[#allocation2 + $0x3e0] sm:$0xff] %vm346, 0.0
        %472 = vst.msk [vmem:[#allocation2 + $0x3e8] sm:$0xff] %vm346, 0.0
        %473 = vst.msk [vmem:[#allocation2 + $0x3f0] sm:$0xff] %vm346, 0.0
        %474 = vst.msk [vmem:[#allocation2 + $0x3f8] sm:$0xff] %vm346, 0.0
        %475 = vst.msk [vmem:[#allocation2 + $0x400] sm:$0xff] %vm346, 0.0
        %476 = vst.msk [vmem:[#allocation2 + $0x408] sm:$0xff] %vm346, 0.0
        %477 = vst.msk [vmem:[#allocation2 + $0x410] sm:$0xff] %vm346, 0.0
        %478 = vst.msk [vmem:[#allocation2 + $0x418] sm:$0xff] %vm346, 0.0
        %479 = vst.msk [vmem:[#allocation2 + $0x420] sm:$0xff] %vm346, 0.0
        %480 = vst.msk [vmem:[#allocation2 + $0x428] sm:$0xff] %vm346, 0.0
        %481 = vst.msk [vmem:[#allocation2 + $0x430] sm:$0xff] %vm346, 0.0
        %482 = vst.msk [vmem:[#allocation2 + $0x438] sm:$0xff] %vm346, 0.0
        %483 = vst.msk [vmem:[#allocation2 + $0x440] sm:$0xff] %vm346, 0.0
        %484 = vst.msk [vmem:[#allocation2 + $0x448] sm:$0xff] %vm346, 0.0
        %485 = vst.msk [vmem:[#allocation2 + $0x450] sm:$0xff] %vm346, 0.0
        %486 = vst.msk [vmem:[#allocation2 + $0x458] sm:$0xff] %vm346, 0.0
        %487 = vst.msk [vmem:[#allocation2 + $0x460] sm:$0xff] %vm346, 0.0
        %488 = vst.msk [vmem:[#allocation2 + $0x468] sm:$0xff] %vm346, 0.0
        %489 = vst.msk [vmem:[#allocation2 + $0x470] sm:$0xff] %vm346, 0.0
        %490 = vst.msk [vmem:[#allocation2 + $0x478] sm:$0xff] %vm346, 0.0
        %491 = vst.msk [vmem:[#allocation2 + $0x480] sm:$0xff] %vm346, 0.0
        %492 = vst.msk [vmem:[#allocation2 + $0x488] sm:$0xff] %vm346, 0.0
        %493 = vst.msk [vmem:[#allocation2 + $0x490] sm:$0xff] %vm346, 0.0
        %494 = vst.msk [vmem:[#allocation2 + $0x498] sm:$0xff] %vm346, 0.0
        %495 = vst.msk [vmem:[#allocation2 + $0x4a0] sm:$0xff] %vm346, 0.0
        %496 = vst.msk [vmem:[#allocation2 + $0x4a8] sm:$0xff] %vm346, 0.0
        %497 = vst.msk [vmem:[#allocation2 + $0x4b0] sm:$0xff] %vm346, 0.0
        %498 = vst.msk [vmem:[#allocation2 + $0x4b8] sm:$0xff] %vm346, 0.0
        %499 = vst.msk [vmem:[#allocation2 + $0x4c0] sm:$0xff] %vm346, 0.0
        %500 = vst.msk [vmem:[#allocation2 + $0x4c8] sm:$0xff] %vm346, 0.0
        %501 = vst.msk [vmem:[#allocation2 + $0x4d0] sm:$0xff] %vm346, 0.0
        %502 = vst.msk [vmem:[#allocation2 + $0x4d8] sm:$0xff] %vm346, 0.0
        %503 = vst.msk [vmem:[#allocation2 + $0x4e0] sm:$0xff] %vm346, 0.0
        %504 = vst.msk [vmem:[#allocation2 + $0x4e8] sm:$0xff] %vm346, 0.0
        %505 = vst.msk [vmem:[#allocation2 + $0x4f0] sm:$0xff] %vm346, 0.0
        %506 = vst.msk [vmem:[#allocation2 + $0x4f8] sm:$0xff] %vm346, 0.0
        %507 = vst.msk [vmem:[#allocation2 + $0x500] sm:$0xff] %vm346, 0.0
        %508 = vst.msk [vmem:[#allocation2 + $0x508] sm:$0xff] %vm346, 0.0
        %509 = vst.msk [vmem:[#allocation2 + $0x510] sm:$0xff] %vm346, 0.0
        %510 = vst.msk [vmem:[#allocation2 + $0x518] sm:$0xff] %vm346, 0.0
        %511 = vst.msk [vmem:[#allocation2 + $0x520] sm:$0xff] %vm346, 0.0
        %512 = vst.msk [vmem:[#allocation2 + $0x528] sm:$0xff] %vm346, 0.0
        %513 = vst.msk [vmem:[#allocation2 + $0x530] sm:$0xff] %vm346, 0.0
        %514 = vst.msk [vmem:[#allocation2 + $0x538] sm:$0xff] %vm346, 0.0
        %515 = vst.msk [vmem:[#allocation2 + $0x540] sm:$0xff] %vm346, 0.0
        %516 = vst.msk [vmem:[#allocation2 + $0x548] sm:$0xff] %vm346, 0.0
        %517 = vst.msk [vmem:[#allocation2 + $0x550] sm:$0xff] %vm346, 0.0
        %518 = vst.msk [vmem:[#allocation2 + $0x558] sm:$0xff] %vm346, 0.0
        %519 = vst.msk [vmem:[#allocation2 + $0x560] sm:$0xff] %vm346, 0.0
        %520 = vst.msk [vmem:[#allocation2 + $0x568] sm:$0xff] %vm346, 0.0
        %521 = vst.msk [vmem:[#allocation2 + $0x570] sm:$0xff] %vm346, 0.0
        %522 = vst.msk [vmem:[#allocation2 + $0x578] sm:$0xff] %vm346, 0.0
        %523 = vst.msk [vmem:[#allocation2 + $0x580] sm:$0xff] %vm346, 0.0
        %524 = vst.msk [vmem:[#allocation2 + $0x588] sm:$0xff] %vm346, 0.0
        %525 = vst.msk [vmem:[#allocation2 + $0x590] sm:$0xff] %vm346, 0.0
        %526 = vst.msk [vmem:[#allocation2 + $0x598] sm:$0xff] %vm346, 0.0
        %527 = vst.msk [vmem:[#allocation2 + $0x5a0] sm:$0xff] %vm346, 0.0
        %528 = vst.msk [vmem:[#allocation2 + $0x5a8] sm:$0xff] %vm346, 0.0
        %529 = vst.msk [vmem:[#allocation2 + $0x5b0] sm:$0xff] %vm346, 0.0
        %530 = vst.msk [vmem:[#allocation2 + $0x5b8] sm:$0xff] %vm346, 0.0
        %531 = vst.msk [vmem:[#allocation2 + $0x5c0] sm:$0xff] %vm346, 0.0
        %532 = vst.msk [vmem:[#allocation2 + $0x5c8] sm:$0xff] %vm346, 0.0
        %533 = vst.msk [vmem:[#allocation2 + $0x5d0] sm:$0xff] %vm346, 0.0
        %534 = vst.msk [vmem:[#allocation2 + $0x5d8] sm:$0xff] %vm346, 0.0
        %535 = vst.msk [vmem:[#allocation2 + $0x5e0] sm:$0xff] %vm346, 0.0
        %536 = vst.msk [vmem:[#allocation2 + $0x5e8] sm:$0xff] %vm346, 0.0
        %537 = vst.msk [vmem:[#allocation2 + $0x5f0] sm:$0xff] %vm346, 0.0
        %538 = vst.msk [vmem:[#allocation2 + $0x5f8] sm:$0xff] %vm346, 0.0
        %539 = vst.msk [vmem:[#allocation2 + $0x600] sm:$0xff] %vm346, 0.0
        %540 = vst.msk [vmem:[#allocation2 + $0x608] sm:$0xff] %vm346, 0.0
        %541 = vst.msk [vmem:[#allocation2 + $0x610] sm:$0xff] %vm346, 0.0
        %542 = vst.msk [vmem:[#allocation2 + $0x618] sm:$0xff] %vm346, 0.0
        %543 = vst.msk [vmem:[#allocation2 + $0x620] sm:$0xff] %vm346, 0.0
        %544 = vst.msk [vmem:[#allocation2 + $0x628] sm:$0xff] %vm346, 0.0
        %545 = vst.msk [vmem:[#allocation2 + $0x630] sm:$0xff] %vm346, 0.0
        %546 = vst.msk [vmem:[#allocation2 + $0x638] sm:$0xff] %vm346, 0.0
        %547 = vst.msk [vmem:[#allocation2 + $0x640] sm:$0xff] %vm346, 0.0
        %548 = vst.msk [vmem:[#allocation2 + $0x648] sm:$0xff] %vm346, 0.0
        %549 = vst.msk [vmem:[#allocation2 + $0x650] sm:$0xff] %vm346, 0.0
        %550 = vst.msk [vmem:[#allocation2 + $0x658] sm:$0xff] %vm346, 0.0
        %551 = vst.msk [vmem:[#allocation2 + $0x660] sm:$0xff] %vm346, 0.0
        %552 = vst.msk [vmem:[#allocation2 + $0x668] sm:$0xff] %vm346, 0.0
        %553 = vst.msk [vmem:[#allocation2 + $0x670] sm:$0xff] %vm346, 0.0
        %554 = vst.msk [vmem:[#allocation2 + $0x678] sm:$0xff] %vm346, 0.0
        %555 = vst.msk [vmem:[#allocation2 + $0x680] sm:$0xff] %vm346, 0.0
        %556 = vst.msk [vmem:[#allocation2 + $0x688] sm:$0xff] %vm346, 0.0
        %557 = vst.msk [vmem:[#allocation2 + $0x690] sm:$0xff] %vm346, 0.0
        %558 = vst.msk [vmem:[#allocation2 + $0x698] sm:$0xff] %vm346, 0.0
        %559 = vst.msk [vmem:[#allocation2 + $0x6a0] sm:$0xff] %vm346, 0.0
        %560 = vst.msk [vmem:[#allocation2 + $0x6a8] sm:$0xff] %vm346, 0.0
        %561 = vst.msk [vmem:[#allocation2 + $0x6b0] sm:$0xff] %vm346, 0.0
        %562 = vst.msk [vmem:[#allocation2 + $0x6b8] sm:$0xff] %vm346, 0.0
        %563 = vst.msk [vmem:[#allocation2 + $0x6c0] sm:$0xff] %vm346, 0.0
        %564 = vst.msk [vmem:[#allocation2 + $0x6c8] sm:$0xff] %vm346, 0.0
        %565 = vst.msk [vmem:[#allocation2 + $0x6d0] sm:$0xff] %vm346, 0.0
        %566 = vst.msk [vmem:[#allocation2 + $0x6d8] sm:$0xff] %vm346, 0.0
        %567 = vst.msk [vmem:[#allocation2 + $0x6e0] sm:$0xff] %vm346, 0.0
        %568 = vst.msk [vmem:[#allocation2 + $0x6e8] sm:$0xff] %vm346, 0.0
        %569 = vst.msk [vmem:[#allocation2 + $0x6f0] sm:$0xff] %vm346, 0.0
        %570 = vst.msk [vmem:[#allocation2 + $0x6f8] sm:$0xff] %vm346, 0.0
        %571 = vst.msk [vmem:[#allocation2 + $0x700] sm:$0xff] %vm346, 0.0
        %572 = vst.msk [vmem:[#allocation2 + $0x708] sm:$0xff] %vm346, 0.0
        %573 = vst.msk [vmem:[#allocation2 + $0x710] sm:$0xff] %vm346, 0.0
        %574 = vst.msk [vmem:[#allocation2 + $0x718] sm:$0xff] %vm346, 0.0
        %575 = vst.msk [vmem:[#allocation2 + $0x720] sm:$0xff] %vm346, 0.0
        %576 = vst.msk [vmem:[#allocation2 + $0x728] sm:$0xff] %vm346, 0.0
        %577 = vst.msk [vmem:[#allocation2 + $0x730] sm:$0xff] %vm346, 0.0
        %578 = vst.msk [vmem:[#allocation2 + $0x738] sm:$0xff] %vm346, 0.0
        %579 = vst.msk [vmem:[#allocation2 + $0x740] sm:$0xff] %vm346, 0.0
        %580 = vst.msk [vmem:[#allocation2 + $0x748] sm:$0xff] %vm346, 0.0
        %581 = vst.msk [vmem:[#allocation2 + $0x750] sm:$0xff] %vm346, 0.0
        %582 = vst.msk [vmem:[#allocation2 + $0x758] sm:$0xff] %vm346, 0.0
        %583 = vst.msk [vmem:[#allocation2 + $0x760] sm:$0xff] %vm346, 0.0
        %584 = vst.msk [vmem:[#allocation2 + $0x768] sm:$0xff] %vm346, 0.0
        %585 = vst.msk [vmem:[#allocation2 + $0x770] sm:$0xff] %vm346, 0.0
        %586 = vst.msk [vmem:[#allocation2 + $0x778] sm:$0xff] %vm346, 0.0
        %587 = vst.msk [vmem:[#allocation2 + $0x780] sm:$0xff] %vm346, 0.0
        %588 = vst.msk [vmem:[#allocation2 + $0x788] sm:$0xff] %vm346, 0.0
      $region44: #{_stem_fn.1} parent=39 // pred_fallthru
        _
      %v589 = vld [vmem:[#allocation2] sm:$0xff]
      %v590 = vld [vmem:[#allocation2 + $0x8] sm:$0xff]
      %v591 = vld [vmem:[#allocation2 + $0x10] sm:$0xff]
      %v592 = vld [vmem:[#allocation2 + $0x18] sm:$0xff]
      %v593 = vld [vmem:[#allocation2 + $0x20] sm:$0xff]
      %v594 = vld [vmem:[#allocation2 + $0x28] sm:$0xff]
      %v595 = vld [vmem:[#allocation2 + $0x30] sm:$0xff]
      %v596 = vld [vmem:[#allocation2 + $0x38] sm:$0xff]
      %v597 = vld [vmem:[#allocation2 + $0x40] sm:$0xff]
      %v598 = vld [vmem:[#allocation2 + $0x48] sm:$0xff]
      %v599 = vld [vmem:[#allocation2 + $0x50] sm:$0xff]
      %v600 = vld [vmem:[#allocation2 + $0x58] sm:$0xff]
      %v601 = vld [vmem:[#allocation2 + $0x60] sm:$0xff]
      %v602 = vld [vmem:[#allocation2 + $0x68] sm:$0xff]
      %v603 = vld [vmem:[#allocation2 + $0x70] sm:$0xff]
      %v604 = vld [vmem:[#allocation2 + $0x78] sm:$0xff]
      %v605 = vld [vmem:[#allocation2 + $0x80] sm:$0xff]
      %v606 = vld [vmem:[#allocation2 + $0x88] sm:$0xff]
      %v607 = vld [vmem:[#allocation2 + $0x90] sm:$0xff]
      %v608 = vld [vmem:[#allocation2 + $0x98] sm:$0xff]
      %v609 = vld [vmem:[#allocation2 + $0xa0] sm:$0xff]
      %v610 = vld [vmem:[#allocation2 + $0xa8] sm:$0xff]
      %v611 = vld [vmem:[#allocation2 + $0xb0] sm:$0xff]
      %v612 = vld [vmem:[#allocation2 + $0xb8] sm:$0xff]
      %v613 = vld [vmem:[#allocation2 + $0xc0] sm:$0xff]
      %v614 = vld [vmem:[#allocation2 + $0xc8] sm:$0xff]
      %v615 = vld [vmem:[#allocation2 + $0xd0] sm:$0xff]
      %v616 = vld [vmem:[#allocation2 + $0xd8] sm:$0xff]
      %v617 = vld [vmem:[#allocation2 + $0xe0] sm:$0xff]
      %v618 = vld [vmem:[#allocation2 + $0xe8] sm:$0xff]
      %v619 = vld [vmem:[#allocation2 + $0xf0] sm:$0xff]
      %v620 = vld [vmem:[#allocation2 + $0xf8] sm:$0xff]
      %v621 = vld [vmem:[#allocation2 + $0x100] sm:$0xff]
      %v622 = vld [vmem:[#allocation2 + $0x108] sm:$0xff]
      %v623 = vld [vmem:[#allocation2 + $0x110] sm:$0xff]
      %v624 = vld [vmem:[#allocation2 + $0x118] sm:$0xff]
      %v625 = vld [vmem:[#allocation2 + $0x120] sm:$0xff]
      %v626 = vld [vmem:[#allocation2 + $0x128] sm:$0xff]
      %v627 = vld [vmem:[#allocation2 + $0x130] sm:$0xff]
      %v628 = vld [vmem:[#allocation2 + $0x138] sm:$0xff]
      %v629 = vld [vmem:[#allocation2 + $0x140] sm:$0xff]
      %v630 = vld [vmem:[#allocation2 + $0x148] sm:$0xff]
      %v631 = vld [vmem:[#allocation2 + $0x150] sm:$0xff]
      %v632 = vld [vmem:[#allocation2 + $0x158] sm:$0xff]
      %v633 = vld [vmem:[#allocation2 + $0x160] sm:$0xff]
      %v634 = vld [vmem:[#allocation2 + $0x168] sm:$0xff]
      %v635 = vld [vmem:[#allocation2 + $0x170] sm:$0xff]
      %v636 = vld [vmem:[#allocation2 + $0x178] sm:$0xff]
      %v637 = vld [vmem:[#allocation2 + $0x180] sm:$0xff]
      %v638 = vld [vmem:[#allocation2 + $0x188] sm:$0xff]
      %v639 = vld [vmem:[#allocation2 + $0x190] sm:$0xff]
      %v640 = vld [vmem:[#allocation2 + $0x198] sm:$0xff]
      %v641 = vld [vmem:[#allocation2 + $0x1a0] sm:$0xff]
      %v642 = vld [vmem:[#allocation2 + $0x1a8] sm:$0xff]
      %v643 = vld [vmem:[#allocation2 + $0x1b0] sm:$0xff]
      %v644 = vld [vmem:[#allocation2 + $0x1b8] sm:$0xff]
      %v645 = vld [vmem:[#allocation2 + $0x1c0] sm:$0xff]
      %v646 = vld [vmem:[#allocation2 + $0x1c8] sm:$0xff]
      %v647 = vld [vmem:[#allocation2 + $0x1d0] sm:$0xff]
      %v648 = vld [vmem:[#allocation2 + $0x1d8] sm:$0xff]
      %v649 = vld [vmem:[#allocation2 + $0x1e0] sm:$0xff]
      %v650 = vld [vmem:[#allocation2 + $0x1e8] sm:$0xff]
      %v651 = vld [vmem:[#allocation2 + $0x1f0] sm:$0xff]
      %v652 = vld [vmem:[#allocation2 + $0x1f8] sm:$0xff]
      %v653 = vld [vmem:[#allocation2 + $0x200] sm:$0xff]
      %v654 = vld [vmem:[#allocation2 + $0x208] sm:$0xff]
      %v655 = vld [vmem:[#allocation2 + $0x210] sm:$0xff]
      %v656 = vld [vmem:[#allocation2 + $0x218] sm:$0xff]
      %v657 = vld [vmem:[#allocation2 + $0x220] sm:$0xff]
      %v658 = vld [vmem:[#allocation2 + $0x228] sm:$0xff]
      %v659 = vld [vmem:[#allocation2 + $0x230] sm:$0xff]
      %v660 = vld [vmem:[#allocation2 + $0x238] sm:$0xff]
      %v661 = vld [vmem:[#allocation2 + $0x240] sm:$0xff]
      %v662 = vld [vmem:[#allocation2 + $0x248] sm:$0xff]
      %v663 = vld [vmem:[#allocation2 + $0x250] sm:$0xff]
      %v664 = vld [vmem:[#allocation2 + $0x258] sm:$0xff]
      %v665 = vld [vmem:[#allocation2 + $0x260] sm:$0xff]
      %v666 = vld [vmem:[#allocation2 + $0x268] sm:$0xff]
      %v667 = vld [vmem:[#allocation2 + $0x270] sm:$0xff]
      %v668 = vld [vmem:[#allocation2 + $0x278] sm:$0xff]
      %v669 = vld [vmem:[#allocation2 + $0x280] sm:$0xff]
      %v670 = vld [vmem:[#allocation2 + $0x288] sm:$0xff]
      %v671 = vld [vmem:[#allocation2 + $0x290] sm:$0xff]
      %v672 = vld [vmem:[#allocation2 + $0x298] sm:$0xff]
      %v673 = vld [vmem:[#allocation2 + $0x2a0] sm:$0xff]
      %v674 = vld [vmem:[#allocation2 + $0x2a8] sm:$0xff]
      %v675 = vld [vmem:[#allocation2 + $0x2b0] sm:$0xff]
      %v676 = vld [vmem:[#allocation2 + $0x2b8] sm:$0xff]
      %v677 = vld [vmem:[#allocation2 + $0x2c0] sm:$0xff]
      %v678 = vld [vmem:[#allocation2 + $0x2c8] sm:$0xff]
      %v679 = vld [vmem:[#allocation2 + $0x2d0] sm:$0xff]
      %v680 = vld [vmem:[#allocation2 + $0x2d8] sm:$0xff]
      %v681 = vld [vmem:[#allocation2 + $0x2e0] sm:$0xff]
      %v682 = vld [vmem:[#allocation2 + $0x2e8] sm:$0xff]
      %v683 = vld [vmem:[#allocation2 + $0x2f0] sm:$0xff]
      %v684 = vld [vmem:[#allocation2 + $0x2f8] sm:$0xff]
      %v685 = vld [vmem:[#allocation2 + $0x300] sm:$0xff]
      %v686 = vld [vmem:[#allocation2 + $0x308] sm:$0xff]
      %v687 = vld [vmem:[#allocation2 + $0x310] sm:$0xff]
      %v688 = vld [vmem:[#allocation2 + $0x318] sm:$0xff]
      %v689 = vld [vmem:[#allocation2 + $0x320] sm:$0xff]
      %v690 = vld [vmem:[#allocation2 + $0x328] sm:$0xff]
      %v691 = vld [vmem:[#allocation2 + $0x330] sm:$0xff]
      %v692 = vld [vmem:[#allocation2 + $0x338] sm:$0xff]
      %v693 = vld [vmem:[#allocation2 + $0x340] sm:$0xff]
      %v694 = vld [vmem:[#allocation2 + $0x348] sm:$0xff]
      %v695 = vld [vmem:[#allocation2 + $0x350] sm:$0xff]
      %v696 = vld [vmem:[#allocation2 + $0x358] sm:$0xff]
      %v697 = vld [vmem:[#allocation2 + $0x360] sm:$0xff]
      %v698 = vld [vmem:[#allocation2 + $0x368] sm:$0xff]
      %v699 = vld [vmem:[#allocation2 + $0x370] sm:$0xff]
      %v700 = vld [vmem:[#allocation2 + $0x378] sm:$0xff]
      %v701 = vld [vmem:[#allocation2 + $0x380] sm:$0xff]
      %v702 = vld [vmem:[#allocation2 + $0x388] sm:$0xff]
      %v703 = vld [vmem:[#allocation2 + $0x390] sm:$0xff]
      %v704 = vld [vmem:[#allocation2 + $0x398] sm:$0xff]
      %v705 = vld [vmem:[#allocation2 + $0x3a0] sm:$0xff]
      %v706 = vld [vmem:[#allocation2 + $0x3a8] sm:$0xff]
      %v707 = vld [vmem:[#allocation2 + $0x3b0] sm:$0xff]
      %v708 = vld [vmem:[#allocation2 + $0x3b8] sm:$0xff]
      %v709 = vld [vmem:[#allocation2 + $0x3c0] sm:$0xff]
      %v710 = vld [vmem:[#allocation2 + $0x3c8] sm:$0xff]
      %v711 = vld [vmem:[#allocation2 + $0x3d0] sm:$0xff]
      %v712 = vld [vmem:[#allocation2 + $0x3d8] sm:$0xff]
      %v713 = vld [vmem:[#allocation2 + $0x3e0] sm:$0xff]
      %v714 = vld [vmem:[#allocation2 + $0x3e8] sm:$0xff]
      %v715 = vld [vmem:[#allocation2 + $0x3f0] sm:$0xff]
      %v716 = vld [vmem:[#allocation2 + $0x3f8] sm:$0xff]
      %v717 = vld [vmem:[#allocation2 + $0x400] sm:$0xff]
      %v718 = vld [vmem:[#allocation2 + $0x408] sm:$0xff]
      %v719 = vld [vmem:[#allocation2 + $0x410] sm:$0xff]
      %v720 = vld [vmem:[#allocation2 + $0x418] sm:$0xff]
      %v721 = vld [vmem:[#allocation2 + $0x420] sm:$0xff]
      %v722 = vld [vmem:[#allocation2 + $0x428] sm:$0xff]
      %v723 = vld [vmem:[#allocation2 + $0x430] sm:$0xff]
      %v724 = vld [vmem:[#allocation2 + $0x438] sm:$0xff]
      %v725 = vld [vmem:[#allocation2 + $0x440] sm:$0xff]
      %v726 = vld [vmem:[#allocation2 + $0x448] sm:$0xff]
      %v727 = vld [vmem:[#allocation2 + $0x450] sm:$0xff]
      %v728 = vld [vmem:[#allocation2 + $0x458] sm:$0xff]
      %v729 = vld [vmem:[#allocation2 + $0x460] sm:$0xff]
      %v730 = vld [vmem:[#allocation2 + $0x468] sm:$0xff]
      %v731 = vld [vmem:[#allocation2 + $0x470] sm:$0xff]
      %v732 = vld [vmem:[#allocation2 + $0x478] sm:$0xff]
      %v733 = vld [vmem:[#allocation2 + $0x480] sm:$0xff]
      %v734 = vld [vmem:[#allocation2 + $0x488] sm:$0xff]
      %v735 = vld [vmem:[#allocation2 + $0x490] sm:$0xff]
      %v736 = vld [vmem:[#allocation2 + $0x498] sm:$0xff]
      %v737 = vld [vmem:[#allocation2 + $0x4a0] sm:$0xff]
      %v738 = vld [vmem:[#allocation2 + $0x4a8] sm:$0xff]
      %v739 = vld [vmem:[#allocation2 + $0x4b0] sm:$0xff]
      %v740 = vld [vmem:[#allocation2 + $0x4b8] sm:$0xff]
      %v741 = vld [vmem:[#allocation2 + $0x4c0] sm:$0xff]
      %v742 = vld [vmem:[#allocation2 + $0x4c8] sm:$0xff]
      %v743 = vld [vmem:[#allocation2 + $0x4d0] sm:$0xff]
      %v744 = vld [vmem:[#allocation2 + $0x4d8] sm:$0xff]
      %v745 = vld [vmem:[#allocation2 + $0x4e0] sm:$0xff]
      %v746 = vld [vmem:[#allocation2 + $0x4e8] sm:$0xff]
      %v747 = vld [vmem:[#allocation2 + $0x4f0] sm:$0xff]
      %v748 = vld [vmem:[#allocation2 + $0x4f8] sm:$0xff]
      %v749 = vld [vmem:[#allocation2 + $0x500] sm:$0xff]
      %v750 = vld [vmem:[#allocation2 + $0x508] sm:$0xff]
      %v751 = vld [vmem:[#allocation2 + $0x510] sm:$0xff]
      %v752 = vld [vmem:[#allocation2 + $0x518] sm:$0xff]
      %v753 = vld [vmem:[#allocation2 + $0x520] sm:$0xff]
      %v754 = vld [vmem:[#allocation2 + $0x528] sm:$0xff]
      %v755 = vld [vmem:[#allocation2 + $0x530] sm:$0xff]
      %v756 = vld [vmem:[#allocation2 + $0x538] sm:$0xff]
      %v757 = vld [vmem:[#allocation2 + $0x540] sm:$0xff]
      %v758 = vld [vmem:[#allocation2 + $0x548] sm:$0xff]
      %v759 = vld [vmem:[#allocation2 + $0x550] sm:$0xff]
      %v760 = vld [vmem:[#allocation2 + $0x558] sm:$0xff]
      %v761 = vld [vmem:[#allocation2 + $0x560] sm:$0xff]
      %v762 = vld [vmem:[#allocation2 + $0x568] sm:$0xff]
      %v763 = vld [vmem:[#allocation2 + $0x570] sm:$0xff]
      %v764 = vld [vmem:[#allocation2 + $0x578] sm:$0xff]
      %v765 = vld [vmem:[#allocation2 + $0x580] sm:$0xff]
      %v766 = vld [vmem:[#allocation2 + $0x588] sm:$0xff]
      %v767 = vld [vmem:[#allocation2 + $0x590] sm:$0xff]
      %v768 = vld [vmem:[#allocation2 + $0x598] sm:$0xff]
      %v769 = vld [vmem:[#allocation2 + $0x5a0] sm:$0xff]
      %v770 = vld [vmem:[#allocation2 + $0x5a8] sm:$0xff]
      %v771 = vld [vmem:[#allocation2 + $0x5b0] sm:$0xff]
      %v772 = vld [vmem:[#allocation2 + $0x5b8] sm:$0xff]
      %v773 = vld [vmem:[#allocation2 + $0x5c0] sm:$0xff]
      %v774 = vld [vmem:[#allocation2 + $0x5c8] sm:$0xff]
      %v775 = vld [vmem:[#allocation2 + $0x5d0] sm:$0xff]
      %v776 = vld [vmem:[#allocation2 + $0x5d8] sm:$0xff]
      %v777 = vld [vmem:[#allocation2 + $0x5e0] sm:$0xff]
      %v778 = vld [vmem:[#allocation2 + $0x5e8] sm:$0xff]
      %v779 = vld [vmem:[#allocation2 + $0x5f0] sm:$0xff]
      %v780 = vld [vmem:[#allocation2 + $0x5f8] sm:$0xff]
      %v781 = vld [vmem:[#allocation2 + $0x600] sm:$0xff]
      %v782 = vld [vmem:[#allocation2 + $0x608] sm:$0xff]
      %v783 = vld [vmem:[#allocation2 + $0x610] sm:$0xff]
      %v784 = vld [vmem:[#allocation2 + $0x618] sm:$0xff]
      %v785 = vld [vmem:[#allocation2 + $0x620] sm:$0xff]
      %v786 = vld [vmem:[#allocation2 + $0x628] sm:$0xff]
      %v787 = vld [vmem:[#allocation2 + $0x630] sm:$0xff]
      %v788 = vld [vmem:[#allocation2 + $0x638] sm:$0xff]
      %v789 = vld [vmem:[#allocation2 + $0x640] sm:$0xff]
      %v790 = vld [vmem:[#allocation2 + $0x648] sm:$0xff]
      %v791 = vld [vmem:[#allocation2 + $0x650] sm:$0xff]
      %v792 = vld [vmem:[#allocation2 + $0x658] sm:$0xff]
      %v793 = vld [vmem:[#allocation2 + $0x660] sm:$0xff]
      %v794 = vld [vmem:[#allocation2 + $0x668] sm:$0xff]
      %v795 = vld [vmem:[#allocation2 + $0x670] sm:$0xff]
      %v796 = vld [vmem:[#allocation2 + $0x678] sm:$0xff]
      %v797 = vld [vmem:[#allocation2 + $0x680] sm:$0xff]
      %v798 = vld [vmem:[#allocation2 + $0x688] sm:$0xff]
      %v799 = vld [vmem:[#allocation2 + $0x690] sm:$0xff]
      %v800 = vld [vmem:[#allocation2 + $0x698] sm:$0xff]
      %v801 = vld [vmem:[#allocation2 + $0x6a0] sm:$0xff]
      %v802 = vld [vmem:[#allocation2 + $0x6a8] sm:$0xff]
      %v803 = vld [vmem:[#allocation2 + $0x6b0] sm:$0xff]
      %v804 = vld [vmem:[#allocation2 + $0x6b8] sm:$0xff]
      %v805 = vld [vmem:[#allocation2 + $0x6c0] sm:$0xff]
      %v806 = vld [vmem:[#allocation2 + $0x6c8] sm:$0xff]
      %v807 = vld [vmem:[#allocation2 + $0x6d0] sm:$0xff]
      %v808 = vld [vmem:[#allocation2 + $0x6d8] sm:$0xff]
      %v809 = vld [vmem:[#allocation2 + $0x6e0] sm:$0xff]
      %v810 = vld [vmem:[#allocation2 + $0x6e8] sm:$0xff]
      %v811 = vld [vmem:[#allocation2 + $0x6f0] sm:$0xff]
      %v812 = vld [vmem:[#allocation2 + $0x6f8] sm:$0xff]
      %v813 = vld [vmem:[#allocation2 + $0x700] sm:$0xff]
      %v814 = vld [vmem:[#allocation2 + $0x708] sm:$0xff]
      %v815 = vld [vmem:[#allocation2 + $0x710] sm:$0xff]
      %v816 = vld [vmem:[#allocation2 + $0x718] sm:$0xff]
      %v817 = vld [vmem:[#allocation2 + $0x720] sm:$0xff]
      %v818 = vld [vmem:[#allocation2 + $0x728] sm:$0xff]
      %v819 = vld [vmem:[#allocation2 + $0x730] sm:$0xff]
      %v820 = vld [vmem:[#allocation2 + $0x738] sm:$0xff]
      %v821 = vld [vmem:[#allocation2 + $0x740] sm:$0xff]
      %v822 = vld [vmem:[#allocation2 + $0x748] sm:$0xff]
      %v823 = vld [vmem:[#allocation2 + $0x750] sm:$0xff]
      %v824 = vld [vmem:[#allocation2 + $0x758] sm:$0xff]
      %v825 = vld [vmem:[#allocation2 + $0x760] sm:$0xff]
      %v826 = vld [vmem:[#allocation2 + $0x768] sm:$0xff]
      %v827 = vld [vmem:[#allocation2 + $0x770] sm:$0xff]
      %v828 = vld [vmem:[#allocation2 + $0x778] sm:$0xff]
      %v829 = vld [vmem:[#allocation2 + $0x780] sm:$0xff]
      %v830 = vld [vmem:[#allocation2 + $0x788] sm:$0xff]
      %v831 = vld [vmem:[%s312] sm:$0xf]
      %v832 = vld [vmem:[%s312 + $0x4] sm:$0xf]
      %v833 = vld [vmem:[%s312 + $0x8] sm:$0xf]
      %v834 = vld [vmem:[%s312 + $0xc] sm:$0xf]
      %v835 = vld [vmem:[%s312 + $0x10] sm:$0xf]
      %v836 = vld [vmem:[%s312 + $0x14] sm:$0xf]
      %v837 = vld [vmem:[%s312 + $0x18] sm:$0xf]
      %v838 = vld [vmem:[%s312 + $0x1c] sm:$0xf]
      %v839 = vld [vmem:[%s312 + $0x20] sm:$0xf]
      %v840 = vld [vmem:[%s312 + $0x24] sm:$0xf]
      %v841 = vld [vmem:[%s312 + $0x28] sm:$0xf]
      %v842 = vld [vmem:[%s312 + $0x2c] sm:$0xf]
      %v843 = vld [vmem:[%s312 + $0x30] sm:$0xf]
      %v844 = vld [vmem:[%s312 + $0x34] sm:$0xf]
      %v845 = vld [vmem:[%s312 + $0x38] sm:$0xf]
      %v846 = vld [vmem:[%s312 + $0x3c] sm:$0xf]
      %v847 = vld [vmem:[%s312 + $0x40] sm:$0xf]
      %v848 = vld [vmem:[%s312 + $0x44] sm:$0xf]
      %v849 = vld [vmem:[%s312 + $0x48] sm:$0xf]
      %v850 = vld [vmem:[%s312 + $0x4c] sm:$0xf]
      %v851 = vld [vmem:[%s312 + $0x50] sm:$0xf]
      %v852 = vld [vmem:[%s312 + $0x54] sm:$0xf]
      %v853 = vld [vmem:[%s312 + $0x58] sm:$0xf]
      %v854 = vld [vmem:[%s312 + $0x5c] sm:$0xf]
      %v855 = vld [vmem:[%s312 + $0x60] sm:$0xf]
      %v856 = vld [vmem:[%s312 + $0x64] sm:$0xf]
      %v857 = vld [vmem:[%s312 + $0x68] sm:$0xf]
      %v858 = vld [vmem:[%s312 + $0x6c] sm:$0xf]
      %v859 = vld [vmem:[%s312 + $0x70] sm:$0xf]
      %v860 = vld [vmem:[%s312 + $0x74] sm:$0xf]
      %v861 = vld [vmem:[%s312 + $0x78] sm:$0xf]
      %v862 = vld [vmem:[%s312 + $0x7c] sm:$0xf]
      %v863 = vld [vmem:[%s312 + $0x80] sm:$0xf]
      %v864 = vld [vmem:[%s312 + $0x84] sm:$0xf]
      %v865 = vld [vmem:[%s312 + $0x88] sm:$0xf]
      %v866 = vld [vmem:[%s312 + $0x8c] sm:$0xf]
      %v867 = vld [vmem:[%s312 + $0x90] sm:$0xf]
      %v868 = vld [vmem:[%s312 + $0x94] sm:$0xf]
      %v869 = vld [vmem:[%s312 + $0x98] sm:$0xf]
      %v870 = vld [vmem:[%s312 + $0x9c] sm:$0xf]
      %v871 = vld [vmem:[%s312 + $0xa0] sm:$0xf]
      %v872 = vld [vmem:[%s312 + $0xa4] sm:$0xf]
      %v873 = vld [vmem:[%s312 + $0xa8] sm:$0xf]
      %v874 = vld [vmem:[%s312 + $0xac] sm:$0xf]
      %v875 = vld [vmem:[%s312 + $0xb0] sm:$0xf]
      %v876 = vld [vmem:[%s312 + $0xb4] sm:$0xf]
      %v877 = vld [vmem:[%s312 + $0xb8] sm:$0xf]
      %v878 = vld [vmem:[%s312 + $0xbc] sm:$0xf]
      %v879 = vld [vmem:[%s312 + $0xc0] sm:$0xf]
      %v880 = vld [vmem:[%s312 + $0xc4] sm:$0xf]
      %v881 = vld [vmem:[%s312 + $0xc8] sm:$0xf]
      %v882 = vld [vmem:[%s312 + $0xcc] sm:$0xf]
      %v883 = vld [vmem:[%s312 + $0xd0] sm:$0xf]
      %v884 = vld [vmem:[%s312 + $0xd4] sm:$0xf]
      %v885 = vld [vmem:[%s312 + $0xd8] sm:$0xf]
      %v886 = vld [vmem:[%s312 + $0xdc] sm:$0xf]
      %v887 = vld [vmem:[%s312 + $0xe0] sm:$0xf]
      %v888 = vld [vmem:[%s312 + $0xe4] sm:$0xf]
      %v889 = vld [vmem:[%s312 + $0xe8] sm:$0xf]
      %v890 = vld [vmem:[%s312 + $0xec] sm:$0xf]
      %v891 = vld [vmem:[%s312 + $0xf0] sm:$0xf]
      %v892 = vld [vmem:[%s312 + $0xf4] sm:$0xf]
      %v893 = vld [vmem:[%s312 + $0xf8] sm:$0xf]
      %v894 = vld [vmem:[%s312 + $0xfc] sm:$0xf]
      %v895 = vld [vmem:[%s312 + $0x100] sm:$0xf]
      %v896 = vld [vmem:[%s312 + $0x104] sm:$0xf]
      %v897 = vld [vmem:[%s312 + $0x108] sm:$0xf]
      %v898 = vld [vmem:[%s312 + $0x10c] sm:$0xf]
      %v899 = vld [vmem:[%s312 + $0x110] sm:$0xf]
      %v900 = vld [vmem:[%s312 + $0x114] sm:$0xf]
      %v901 = vld [vmem:[%s312 + $0x118] sm:$0xf]
      %v902 = vld [vmem:[%s312 + $0x11c] sm:$0xf]
      %v903 = vld [vmem:[%s312 + $0x120] sm:$0xf]
      %v904 = vld [vmem:[%s312 + $0x124] sm:$0xf]
      %v905 = vld [vmem:[%s312 + $0x128] sm:$0xf]
      %v906 = vld [vmem:[%s312 + $0x12c] sm:$0xf]
      %v907 = vld [vmem:[%s312 + $0x130] sm:$0xf]
      %v908 = vld [vmem:[%s312 + $0x134] sm:$0xf]
      %v909 = vld [vmem:[%s312 + $0x138] sm:$0xf]
      %v910 = vld [vmem:[%s312 + $0x13c] sm:$0xf]
      %v911 = vld [vmem:[%s312 + $0x140] sm:$0xf]
      %v912 = vld [vmem:[%s312 + $0x144] sm:$0xf]
      %v913 = vld [vmem:[%s312 + $0x148] sm:$0xf]
      %v914 = vld [vmem:[%s312 + $0x14c] sm:$0xf]
      %v915 = vld [vmem:[%s312 + $0x150] sm:$0xf]
      %v916 = vld [vmem:[%s312 + $0x154] sm:$0xf]
      %v917 = vld [vmem:[%s312 + $0x158] sm:$0xf]
      %v918 = vld [vmem:[%s312 + $0x15c] sm:$0xf]
      %v919 = vld [vmem:[%s312 + $0x160] sm:$0xf]
      %v920 = vld [vmem:[%s312 + $0x164] sm:$0xf]
      %v921 = vld [vmem:[%s312 + $0x168] sm:$0xf]
      %v922 = vld [vmem:[%s312 + $0x16c] sm:$0xf]
      %v923 = vld [vmem:[%s312 + $0x170] sm:$0xf]
      %v924 = vld [vmem:[%s312 + $0x174] sm:$0xf]
      %v925 = vld [vmem:[%s312 + $0x178] sm:$0xf]
      %v926 = vld [vmem:[%s312 + $0x17c] sm:$0xf]
      %v927 = vld [vmem:[%s312 + $0x180] sm:$0xf]
      %v928 = vld [vmem:[%s312 + $0x184] sm:$0xf]
      %v929 = vld [vmem:[%s312 + $0x188] sm:$0xf]
      %v930 = vld [vmem:[%s312 + $0x18c] sm:$0xf]
      %v931 = vld [vmem:[%s312 + $0x190] sm:$0xf]
      %v932 = vld [vmem:[%s312 + $0x194] sm:$0xf]
      %v933 = vld [vmem:[%s312 + $0x198] sm:$0xf]
      %v934 = vld [vmem:[%s312 + $0x19c] sm:$0xf]
      %v935 = vld [vmem:[%s312 + $0x1a0] sm:$0xf]
      %v936 = vld [vmem:[%s312 + $0x1a4] sm:$0xf]
      %v937 = vld [vmem:[%s312 + $0x1a8] sm:$0xf]
      %v938 = vld [vmem:[%s312 + $0x1ac] sm:$0xf]
      %v939 = vld [vmem:[%s312 + $0x1b0] sm:$0xf]
      %v940 = vld [vmem:[%s312 + $0x1b4] sm:$0xf]
      %v941 = vld [vmem:[%s312 + $0x1b8] sm:$0xf]
      %v942 = vld [vmem:[%s312 + $0x1bc] sm:$0xf]
      %v943 = vld [vmem:[%s312 + $0x1c0] sm:$0xf]
      %v944 = vld [vmem:[%s312 + $0x1c4] sm:$0xf]
      %v945 = vld [vmem:[%s312 + $0x1c8] sm:$0xf]
      %v946 = vld [vmem:[%s312 + $0x1cc] sm:$0xf]
      %v947 = vld [vmem:[%s312 + $0x1d0] sm:$0xf]
      %v948 = vld [vmem:[%s312 + $0x1d4] sm:$0xf]
      %v949 = vld [vmem:[%s312 + $0x1d8] sm:$0xf]
      %v950 = vld [vmem:[%s312 + $0x1dc] sm:$0xf]
      %v951 = vld [vmem:[%s312 + $0x1e0] sm:$0xf]
      %v952 = vld [vmem:[%s312 + $0x1e4] sm:$0xf]
      %v953 = vld [vmem:[%s312 + $0x1e8] sm:$0xf]
      %v954 = vld [vmem:[%s312 + $0x1ec] sm:$0xf]
      %v955 = vld [vmem:[%s312 + $0x1f0] sm:$0xf]
      %v956 = vld [vmem:[%s312 + $0x1f4] sm:$0xf]
      %v957 = vld [vmem:[%s312 + $0x1f8] sm:$0xf]
      %v958 = vld [vmem:[%s312 + $0x1fc] sm:$0xf]
      %v959 = vld [vmem:[%s312 + $0x200] sm:$0xf]
      %v960 = vld [vmem:[%s312 + $0x204] sm:$0xf]
      %v961 = vld [vmem:[%s312 + $0x208] sm:$0xf]
      %v962 = vld [vmem:[%s312 + $0x20c] sm:$0xf]
      %v963 = vld [vmem:[%s312 + $0x210] sm:$0xf]
      %v964 = vld [vmem:[%s312 + $0x214] sm:$0xf]
      %v965 = vld [vmem:[%s312 + $0x218] sm:$0xf]
      %v966 = vld [vmem:[%s312 + $0x21c] sm:$0xf]
      %v967 = vld [vmem:[%s312 + $0x220] sm:$0xf]
      %v968 = vld [vmem:[%s312 + $0x224] sm:$0xf]
      %v969 = vld [vmem:[%s312 + $0x228] sm:$0xf]
      %v970 = vld [vmem:[%s312 + $0x22c] sm:$0xf]
      %v971 = vld [vmem:[%s312 + $0x230] sm:$0xf]
      %v972 = vld [vmem:[%s312 + $0x234] sm:$0xf]
      %v973 = vld [vmem:[%s312 + $0x238] sm:$0xf]
      %v974 = vld [vmem:[%s312 + $0x23c] sm:$0xf]
      %v975 = vld [vmem:[%s312 + $0x240] sm:$0xf]
      %v976 = vld [vmem:[%s312 + $0x244] sm:$0xf]
      %v977 = vld [vmem:[%s312 + $0x248] sm:$0xf]
      %v978 = vld [vmem:[%s312 + $0x24c] sm:$0xf]
      %v979 = vld [vmem:[%s312 + $0x250] sm:$0xf]
      %v980 = vld [vmem:[%s312 + $0x254] sm:$0xf]
      %v981 = vld [vmem:[%s312 + $0x258] sm:$0xf]
      %v982 = vld [vmem:[%s312 + $0x25c] sm:$0xf]
      %v983 = vld [vmem:[%s312 + $0x260] sm:$0xf]
      %v984 = vld [vmem:[%s312 + $0x264] sm:$0xf]
      %v985 = vld [vmem:[%s312 + $0x268] sm:$0xf]
      %v986 = vld [vmem:[%s312 + $0x26c] sm:$0xf]
      %v987 = vld [vmem:[%s312 + $0x270] sm:$0xf]
      %v988 = vld [vmem:[%s312 + $0x274] sm:$0xf]
      %v989 = vld [vmem:[%s312 + $0x278] sm:$0xf]
      %v990 = vld [vmem:[%s312 + $0x27c] sm:$0xf]
      %v991 = vld [vmem:[%s312 + $0x280] sm:$0xf]
      %v992 = vld [vmem:[%s312 + $0x284] sm:$0xf]
      %v993 = vld [vmem:[%s312 + $0x288] sm:$0xf]
      %v994 = vld [vmem:[%s312 + $0x28c] sm:$0xf]
      %v995 = vld [vmem:[%s312 + $0x290] sm:$0xf]
      %v996 = vld [vmem:[%s312 + $0x294] sm:$0xf]
      %v997 = vld [vmem:[%s312 + $0x298] sm:$0xf]
      %v998 = vld [vmem:[%s312 + $0x29c] sm:$0xf]
      %v999 = vld [vmem:[%s312 + $0x2a0] sm:$0xf]
      %v1000 = vld [vmem:[%s312 + $0x2a4] sm:$0xf]
      %v1001 = vld [vmem:[%s312 + $0x2a8] sm:$0xf]
      %v1002 = vld [vmem:[%s312 + $0x2ac] sm:$0xf]
      %v1003 = vld [vmem:[%s312 + $0x2b0] sm:$0xf]
      %v1004 = vld [vmem:[%s312 + $0x2b4] sm:$0xf]
      %v1005 = vld [vmem:[%s312 + $0x2b8] sm:$0xf]
      %v1006 = vld [vmem:[%s312 + $0x2bc] sm:$0xf]
      %v1007 = vld [vmem:[%s312 + $0x2c0] sm:$0xf]
      %v1008 = vld [vmem:[%s312 + $0x2c4] sm:$0xf]
      %v1009 = vld [vmem:[%s312 + $0x2c8] sm:$0xf]
      %v1010 = vld [vmem:[%s312 + $0x2cc] sm:$0xf]
      %v1011 = vld [vmem:[%s312 + $0x2d0] sm:$0xf]
      %v1012 = vld [vmem:[%s312 + $0x2d4] sm:$0xf]
      %v1013 = vld [vmem:[%s312 + $0x2d8] sm:$0xf]
      %v1014 = vld [vmem:[%s312 + $0x2dc] sm:$0xf]
      %v1015 = vld [vmem:[%s312 + $0x2e0] sm:$0xf]
      %v1016 = vld [vmem:[%s312 + $0x2e4] sm:$0xf]
      %v1017 = vld [vmem:[%s312 + $0x2e8] sm:$0xf]
      %v1018 = vld [vmem:[%s312 + $0x2ec] sm:$0xf]
      %v1019 = vld [vmem:[%s312 + $0x2f0] sm:$0xf]
      %v1020 = vld [vmem:[%s312 + $0x2f4] sm:$0xf]
      %v1021 = vld [vmem:[%s312 + $0x2f8] sm:$0xf]
      %v1022 = vld [vmem:[%s312 + $0x2fc] sm:$0xf]
      %v1023 = vld [vmem:[%s312 + $0x300] sm:$0xf]
      %v1024 = vld [vmem:[%s312 + $0x304] sm:$0xf]
      %v1025 = vld [vmem:[%s312 + $0x308] sm:$0xf]
      %v1026 = vld [vmem:[%s312 + $0x30c] sm:$0xf]
      %v1027 = vld [vmem:[%s312 + $0x310] sm:$0xf]
      %v1028 = vld [vmem:[%s312 + $0x314] sm:$0xf]
      %v1029 = vld [vmem:[%s312 + $0x318] sm:$0xf]
      %v1030 = vld [vmem:[%s312 + $0x31c] sm:$0xf]
      %v1031 = vld [vmem:[%s312 + $0x320] sm:$0xf]
      %v1032 = vld [vmem:[%s312 + $0x324] sm:$0xf]
      %v1033 = vld [vmem:[%s312 + $0x328] sm:$0xf]
      %v1034 = vld [vmem:[%s312 + $0x32c] sm:$0xf]
      %v1035 = vld [vmem:[%s312 + $0x330] sm:$0xf]
      %v1036 = vld [vmem:[%s312 + $0x334] sm:$0xf]
      %v1037 = vld [vmem:[%s312 + $0x338] sm:$0xf]
      %v1038 = vld [vmem:[%s312 + $0x33c] sm:$0xf]
      %v1039 = vld [vmem:[%s312 + $0x340] sm:$0xf]
      %v1040 = vld [vmem:[%s312 + $0x344] sm:$0xf]
      %v1041 = vld [vmem:[%s312 + $0x348] sm:$0xf]
      %v1042 = vld [vmem:[%s312 + $0x34c] sm:$0xf]
      %v1043 = vld [vmem:[%s312 + $0x350] sm:$0xf]
      %v1044 = vld [vmem:[%s312 + $0x354] sm:$0xf]
      %v1045 = vld [vmem:[%s312 + $0x358] sm:$0xf]
      %v1046 = vld [vmem:[%s312 + $0x35c] sm:$0xf]
      %v1047 = vld [vmem:[%s312 + $0x360] sm:$0xf]
      %v1048 = vld [vmem:[%s312 + $0x364] sm:$0xf]
      %v1049 = vld [vmem:[%s312 + $0x368] sm:$0xf]
      %v1050 = vld [vmem:[%s312 + $0x36c] sm:$0xf]
      %v1051 = vld [vmem:[%s312 + $0x370] sm:$0xf]
      %v1052 = vld [vmem:[%s312 + $0x374] sm:$0xf]
      %v1053 = vld [vmem:[%s312 + $0x378] sm:$0xf]
      %v1054 = vld [vmem:[%s312 + $0x37c] sm:$0xf]
      %v1055 = vld [vmem:[%s312 + $0x380] sm:$0xf]
      %v1056 = vld [vmem:[%s312 + $0x384] sm:$0xf]
      %v1057 = vld [vmem:[%s312 + $0x388] sm:$0xf]
      %v1058 = vld [vmem:[%s312 + $0x38c] sm:$0xf]
      %v1059 = vld [vmem:[%s312 + $0x390] sm:$0xf]
      %v1060 = vld [vmem:[%s312 + $0x394] sm:$0xf]
      %v1061 = vld [vmem:[%s312 + $0x398] sm:$0xf]
      %v1062 = vld [vmem:[%s312 + $0x39c] sm:$0xf]
      %v1063 = vld [vmem:[%s312 + $0x3a0] sm:$0xf]
      %v1064 = vld [vmem:[%s312 + $0x3a4] sm:$0xf]
      %v1065 = vld [vmem:[%s312 + $0x3a8] sm:$0xf]
      %v1066 = vld [vmem:[%s312 + $0x3ac] sm:$0xf]
      %v1067 = vld [vmem:[%s312 + $0x3b0] sm:$0xf]
      %v1068 = vld [vmem:[%s312 + $0x3b4] sm:$0xf]
      %v1069 = vld [vmem:[%s312 + $0x3b8] sm:$0xf]
      %v1070 = vld [vmem:[%s312 + $0x3bc] sm:$0xf]
      %v1071 = vld [vmem:[%s312 + $0x3c0] sm:$0xf]
      %v1072 = vld [vmem:[%s312 + $0x3c4] sm:$0xf]
      %v1073 = vld [vmem:[%s321] sm:$0xf]
      %v1074 = vld [vmem:[%s321 + $0x4] sm:$0xf]
      %v1075 = vld [vmem:[%s321 + $0x8] sm:$0xf]
      %v1076 = vld [vmem:[%s321 + $0xc] sm:$0x3]
      %v1319 = vunpack.c.l.b16 %v831
      %v1320 = vunpack.c.l.b16 %v832
      %v1321 = vunpack.c.l.b16 %v833
      %v1322 = vunpack.c.l.b16 %v834
      %v1323 = vunpack.c.l.b16 %v835
      %v1324 = vunpack.c.l.b16 %v836
      %v1325 = vunpack.c.l.b16 %v837
      %v1326 = vunpack.c.l.b16 %v838
      %v1327 = vunpack.c.l.b16 %v839
      %v1328 = vunpack.c.l.b16 %v840
      %v1329 = vunpack.c.l.b16 %v841
      %v1330 = vunpack.c.l.b16 %v842
      %v1331 = vunpack.c.l.b16 %v843
      %v1332 = vunpack.c.l.b16 %v844
      %v1333 = vunpack.c.l.b16 %v845
      %v1334 = vunpack.c.l.b16 %v846
      %v1335 = vunpack.c.l.b16 %v847
      %v1336 = vunpack.c.l.b16 %v848
      %v1337 = vunpack.c.l.b16 %v849
      %v1338 = vunpack.c.l.b16 %v850
      %v1339 = vunpack.c.l.b16 %v851
      %v1340 = vunpack.c.l.b16 %v852
      %v1341 = vunpack.c.l.b16 %v853
      %v1342 = vunpack.c.l.b16 %v854
      %v1343 = vunpack.c.l.b16 %v855
      %v1344 = vunpack.c.l.b16 %v856
      %v1345 = vunpack.c.l.b16 %v857
      %v1346 = vunpack.c.l.b16 %v858
      %v1347 = vunpack.c.l.b16 %v859
      %v1348 = vunpack.c.l.b16 %v860
      %v1349 = vunpack.c.l.b16 %v861
      %v1350 = vunpack.c.l.b16 %v862
      %v1351 = vunpack.c.l.b16 %v863
      %v1352 = vunpack.c.l.b16 %v864
      %v1353 = vunpack.c.l.b16 %v865
      %v1354 = vunpack.c.l.b16 %v866
      %v1355 = vunpack.c.l.b16 %v867
      %v1356 = vunpack.c.l.b16 %v868
      %v1357 = vunpack.c.l.b16 %v869
      %v1358 = vunpack.c.l.b16 %v870
      %v1359 = vunpack.c.l.b16 %v871
      %v1360 = vunpack.c.l.b16 %v872
      %v1361 = vunpack.c.l.b16 %v873
      %v1362 = vunpack.c.l.b16 %v874
      %v1363 = vunpack.c.l.b16 %v875
      %v1364 = vunpack.c.l.b16 %v876
      %v1365 = vunpack.c.l.b16 %v877
      %v1366 = vunpack.c.l.b16 %v878
      %v1367 = vunpack.c.l.b16 %v879
      %v1368 = vunpack.c.l.b16 %v880
      %v1369 = vunpack.c.l.b16 %v881
      %v1370 = vunpack.c.l.b16 %v882
      %v1371 = vunpack.c.l.b16 %v883
      %v1372 = vunpack.c.l.b16 %v884
      %v1373 = vunpack.c.l.b16 %v885
      %v1374 = vunpack.c.l.b16 %v886
      %v1375 = vunpack.c.l.b16 %v887
      %v1376 = vunpack.c.l.b16 %v888
      %v1377 = vunpack.c.l.b16 %v889
      %v1378 = vunpack.c.l.b16 %v890
      %v1379 = vunpack.c.l.b16 %v891
      %v1380 = vunpack.c.l.b16 %v892
      %v1381 = vunpack.c.l.b16 %v893
      %v1382 = vunpack.c.l.b16 %v894
      %v1383 = vunpack.c.l.b16 %v895
      %v1384 = vunpack.c.l.b16 %v896
      %v1385 = vunpack.c.l.b16 %v897
      %v1386 = vunpack.c.l.b16 %v898
      %v1387 = vunpack.c.l.b16 %v899
      %v1388 = vunpack.c.l.b16 %v900
      %v1389 = vunpack.c.l.b16 %v901
      %v1390 = vunpack.c.l.b16 %v902
      %v1391 = vunpack.c.l.b16 %v903
      %v1392 = vunpack.c.l.b16 %v904
      %v1393 = vunpack.c.l.b16 %v905
      %v1394 = vunpack.c.l.b16 %v906
      %v1395 = vunpack.c.l.b16 %v907
      %v1396 = vunpack.c.l.b16 %v908
      %v1397 = vunpack.c.l.b16 %v909
      %v1398 = vunpack.c.l.b16 %v910
      %v1399 = vunpack.c.l.b16 %v911
      %v1400 = vunpack.c.l.b16 %v912
      %v1401 = vunpack.c.l.b16 %v913
      %v1402 = vunpack.c.l.b16 %v914
      %v1403 = vunpack.c.l.b16 %v915
      %v1404 = vunpack.c.l.b16 %v916
      %v1405 = vunpack.c.l.b16 %v917
      %v1406 = vunpack.c.l.b16 %v918
      %v1407 = vunpack.c.l.b16 %v919
      %v1408 = vunpack.c.l.b16 %v920
      %v1409 = vunpack.c.l.b16 %v921
      %v1410 = vunpack.c.l.b16 %v922
      %v1411 = vunpack.c.l.b16 %v923
      %v1412 = vunpack.c.l.b16 %v924
      %v1413 = vunpack.c.l.b16 %v925
      %v1414 = vunpack.c.l.b16 %v926
      %v1415 = vunpack.c.l.b16 %v927
      %v1416 = vunpack.c.l.b16 %v928
      %v1417 = vunpack.c.l.b16 %v929
      %v1418 = vunpack.c.l.b16 %v930
      %v1419 = vunpack.c.l.b16 %v931
      %v1420 = vunpack.c.l.b16 %v932
      %v1421 = vunpack.c.l.b16 %v933
      %v1422 = vunpack.c.l.b16 %v934
      %v1423 = vunpack.c.l.b16 %v935
      %v1424 = vunpack.c.l.b16 %v936
      %v1425 = vunpack.c.l.b16 %v937
      %v1426 = vunpack.c.l.b16 %v938
      %v1427 = vunpack.c.l.b16 %v939
      %v1428 = vunpack.c.l.b16 %v940
      %v1429 = vunpack.c.l.b16 %v941
      %v1430 = vunpack.c.l.b16 %v942
      %v1431 = vunpack.c.l.b16 %v943
      %v1432 = vunpack.c.l.b16 %v944
      %v1433 = vunpack.c.l.b16 %v945
      %v1434 = vunpack.c.l.b16 %v946
      %v1435 = vunpack.c.l.b16 %v947
      %v1436 = vunpack.c.l.b16 %v948
      %v1437 = vunpack.c.l.b16 %v949
      %v1438 = vunpack.c.l.b16 %v950
      %v1439 = vunpack.c.l.b16 %v951
      %v1440 = vunpack.c.l.b16 %v952
      %v1441 = vunpack.c.l.b16 %v953
      %v1442 = vunpack.c.l.b16 %v954
      %v1443 = vunpack.c.l.b16 %v955
      %v1444 = vunpack.c.l.b16 %v956
      %v1445 = vunpack.c.l.b16 %v957
      %v1446 = vunpack.c.l.b16 %v958
      %v1447 = vunpack.c.l.b16 %v959
      %v1448 = vunpack.c.l.b16 %v960
      %v1449 = vunpack.c.l.b16 %v961
      %v1450 = vunpack.c.l.b16 %v962
      %v1451 = vunpack.c.l.b16 %v963
      %v1452 = vunpack.c.l.b16 %v964
      %v1453 = vunpack.c.l.b16 %v965
      %v1454 = vunpack.c.l.b16 %v966
      %v1455 = vunpack.c.l.b16 %v967
      %v1456 = vunpack.c.l.b16 %v968
      %v1457 = vunpack.c.l.b16 %v969
      %v1458 = vunpack.c.l.b16 %v970
      %v1459 = vunpack.c.l.b16 %v971
      %v1460 = vunpack.c.l.b16 %v972
      %v1461 = vunpack.c.l.b16 %v973
      %v1462 = vunpack.c.l.b16 %v974
      %v1463 = vunpack.c.l.b16 %v975
      %v1464 = vunpack.c.l.b16 %v976
      %v1465 = vunpack.c.l.b16 %v977
      %v1466 = vunpack.c.l.b16 %v978
      %v1467 = vunpack.c.l.b16 %v979
      %v1468 = vunpack.c.l.b16 %v980
      %v1469 = vunpack.c.l.b16 %v981
      %v1470 = vunpack.c.l.b16 %v982
      %v1471 = vunpack.c.l.b16 %v983
      %v1472 = vunpack.c.l.b16 %v984
      %v1473 = vunpack.c.l.b16 %v985
      %v1474 = vunpack.c.l.b16 %v986
      %v1475 = vunpack.c.l.b16 %v987
      %v1476 = vunpack.c.l.b16 %v988
      %v1477 = vunpack.c.l.b16 %v989
      %v1478 = vunpack.c.l.b16 %v990
      %v1479 = vunpack.c.l.b16 %v991
      %v1480 = vunpack.c.l.b16 %v992
      %v1481 = vunpack.c.l.b16 %v993
      %v1482 = vunpack.c.l.b16 %v994
      %v1483 = vunpack.c.l.b16 %v995
      %v1484 = vunpack.c.l.b16 %v996
      %v1485 = vunpack.c.l.b16 %v997
      %v1486 = vunpack.c.l.b16 %v998
      %v1487 = vunpack.c.l.b16 %v999
      %v1488 = vunpack.c.l.b16 %v1000
      %v1489 = vunpack.c.l.b16 %v1001
      %v1490 = vunpack.c.l.b16 %v1002
      %v1491 = vunpack.c.l.b16 %v1003
      %v1492 = vunpack.c.l.b16 %v1004
      %v1493 = vunpack.c.l.b16 %v1005
      %v1494 = vunpack.c.l.b16 %v1006
      %v1495 = vunpack.c.l.b16 %v1007
      %v1496 = vunpack.c.l.b16 %v1008
      %v1497 = vunpack.c.l.b16 %v1009
      %v1498 = vunpack.c.l.b16 %v1010
      %v1499 = vunpack.c.l.b16 %v1011
      %v1500 = vunpack.c.l.b16 %v1012
      %v1501 = vunpack.c.l.b16 %v1013
      %v1502 = vunpack.c.l.b16 %v1014
      %v1503 = vunpack.c.l.b16 %v1015
      %v1504 = vunpack.c.l.b16 %v1016
      %v1505 = vunpack.c.l.b16 %v1017
      %v1506 = vunpack.c.l.b16 %v1018
      %v1507 = vunpack.c.l.b16 %v1019
      %v1508 = vunpack.c.l.b16 %v1020
      %v1509 = vunpack.c.l.b16 %v1021
      %v1510 = vunpack.c.l.b16 %v1022
      %v1511 = vunpack.c.l.b16 %v1023
      %v1512 = vunpack.c.l.b16 %v1024
      %v1513 = vunpack.c.l.b16 %v1025
      %v1514 = vunpack.c.l.b16 %v1026
      %v1515 = vunpack.c.l.b16 %v1027
      %v1516 = vunpack.c.l.b16 %v1028
      %v1517 = vunpack.c.l.b16 %v1029
      %v1518 = vunpack.c.l.b16 %v1030
      %v1519 = vunpack.c.l.b16 %v1031
      %v1520 = vunpack.c.l.b16 %v1032
      %v1521 = vunpack.c.l.b16 %v1033
      %v1522 = vunpack.c.l.b16 %v1034
      %v1523 = vunpack.c.l.b16 %v1035
      %v1524 = vunpack.c.l.b16 %v1036
      %v1525 = vunpack.c.l.b16 %v1037
      %v1526 = vunpack.c.l.b16 %v1038
      %v1527 = vunpack.c.l.b16 %v1039
      %v1528 = vunpack.c.l.b16 %v1040
      %v1529 = vunpack.c.l.b16 %v1041
      %v1530 = vunpack.c.l.b16 %v1042
      %v1531 = vunpack.c.l.b16 %v1043
      %v1532 = vunpack.c.l.b16 %v1044
      %v1533 = vunpack.c.l.b16 %v1045
      %v1534 = vunpack.c.l.b16 %v1046
      %v1535 = vunpack.c.l.b16 %v1047
      %v1536 = vunpack.c.l.b16 %v1048
      %v1537 = vunpack.c.l.b16 %v1049
      %v1538 = vunpack.c.l.b16 %v1050
      %v1539 = vunpack.c.l.b16 %v1051
      %v1540 = vunpack.c.l.b16 %v1052
      %v1541 = vunpack.c.l.b16 %v1053
      %v1542 = vunpack.c.l.b16 %v1054
      %v1543 = vunpack.c.l.b16 %v1055
      %v1544 = vunpack.c.l.b16 %v1056
      %v1545 = vunpack.c.l.b16 %v1057
      %v1546 = vunpack.c.l.b16 %v1058
      %v1547 = vunpack.c.l.b16 %v1059
      %v1548 = vunpack.c.l.b16 %v1060
      %v1549 = vunpack.c.l.b16 %v1061
      %v1550 = vunpack.c.l.b16 %v1062
      %v1551 = vunpack.c.l.b16 %v1063
      %v1552 = vunpack.c.l.b16 %v1064
      %v1553 = vunpack.c.l.b16 %v1065
      %v1554 = vunpack.c.l.b16 %v1066
      %v1555 = vunpack.c.l.b16 %v1067
      %v1556 = vunpack.c.l.b16 %v1068
      %v1557 = vunpack.c.l.b16 %v1069
      %v1558 = vunpack.c.l.b16 %v1070
      %v1559 = vunpack.c.l.b16 %v1071
      %v1560 = vunpack.c.l.b16 %v1072
      %v1561 = vpack.c.b16 %v1320, %v1319
      %v1562 = vpack.c.b16 %v1322, %v1321
      %v1563 = vpack.c.b16 %v1324, %v1323
      %v1564 = vpack.c.b16 %v1326, %v1325
      %v1565 = vpack.c.b16 %v1328, %v1327
      %v1566 = vpack.c.b16 %v1330, %v1329
      %v1567 = vpack.c.b16 %v1332, %v1331
      %v1568 = vpack.c.b16 %v1334, %v1333
      %v1569 = vpack.c.b16 %v1336, %v1335
      %v1570 = vpack.c.b16 %v1338, %v1337
      %v1571 = vpack.c.b16 %v1340, %v1339
      %v1572 = vpack.c.b16 %v1342, %v1341
      %v1573 = vpack.c.b16 %v1344, %v1343
      %v1574 = vpack.c.b16 %v1346, %v1345
      %v1575 = vpack.c.b16 %v1348, %v1347
      %v1576 = vpack.c.b16 %v1350, %v1349
      %v1577 = vpack.c.b16 %v1352, %v1351
      %v1578 = vpack.c.b16 %v1354, %v1353
      %v1579 = vpack.c.b16 %v1356, %v1355
      %v1580 = vpack.c.b16 %v1358, %v1357
      %v1581 = vpack.c.b16 %v1360, %v1359
      %v1582 = vpack.c.b16 %v1362, %v1361
      %v1583 = vpack.c.b16 %v1364, %v1363
      %v1584 = vpack.c.b16 %v1366, %v1365
      %v1585 = vpack.c.b16 %v1368, %v1367
      %v1586 = vpack.c.b16 %v1370, %v1369
      %v1587 = vpack.c.b16 %v1372, %v1371
      %v1588 = vpack.c.b16 %v1374, %v1373
      %v1589 = vpack.c.b16 %v1376, %v1375
      %v1590 = vpack.c.b16 %v1378, %v1377
      %v1591 = vpack.c.b16 %v1380, %v1379
      %v1592 = vpack.c.b16 %v1382, %v1381
      %v1593 = vpack.c.b16 %v1384, %v1383
      %v1594 = vpack.c.b16 %v1386, %v1385
      %v1595 = vpack.c.b16 %v1388, %v1387
      %v1596 = vpack.c.b16 %v1390, %v1389
      %v1597 = vpack.c.b16 %v1392, %v1391
      %v1598 = vpack.c.b16 %v1394, %v1393
      %v1599 = vpack.c.b16 %v1396, %v1395
      %v1600 = vpack.c.b16 %v1398, %v1397
      %v1601 = vpack.c.b16 %v1400, %v1399
      %v1602 = vpack.c.b16 %v1402, %v1401
      %v1603 = vpack.c.b16 %v1404, %v1403
      %v1604 = vpack.c.b16 %v1406, %v1405
      %v1605 = vpack.c.b16 %v1408, %v1407
      %v1606 = vpack.c.b16 %v1410, %v1409
      %v1607 = vpack.c.b16 %v1412, %v1411
      %v1608 = vpack.c.b16 %v1414, %v1413
      %v1609 = vpack.c.b16 %v1416, %v1415
      %v1610 = vpack.c.b16 %v1418, %v1417
      %v1611 = vpack.c.b16 %v1420, %v1419
      %v1612 = vpack.c.b16 %v1422, %v1421
      %v1613 = vpack.c.b16 %v1424, %v1423
      %v1614 = vpack.c.b16 %v1426, %v1425
      %v1615 = vpack.c.b16 %v1428, %v1427
      %v1616 = vpack.c.b16 %v1430, %v1429
      %v1617 = vpack.c.b16 %v1432, %v1431
      %v1618 = vpack.c.b16 %v1434, %v1433
      %v1619 = vpack.c.b16 %v1436, %v1435
      %v1620 = vpack.c.b16 %v1438, %v1437
      %v1621 = vpack.c.b16 %v1440, %v1439
      %v1622 = vpack.c.b16 %v1442, %v1441
      %v1623 = vpack.c.b16 %v1444, %v1443
      %v1624 = vpack.c.b16 %v1446, %v1445
      %v1625 = vpack.c.b16 %v1448, %v1447
      %v1626 = vpack.c.b16 %v1450, %v1449
      %v1627 = vpack.c.b16 %v1452, %v1451
      %v1628 = vpack.c.b16 %v1454, %v1453
      %v1629 = vpack.c.b16 %v1456, %v1455
      %v1630 = vpack.c.b16 %v1458, %v1457
      %v1631 = vpack.c.b16 %v1460, %v1459
      %v1632 = vpack.c.b16 %v1462, %v1461
      %v1633 = vpack.c.b16 %v1464, %v1463
      %v1634 = vpack.c.b16 %v1466, %v1465
      %v1635 = vpack.c.b16 %v1468, %v1467
      %v1636 = vpack.c.b16 %v1470, %v1469
      %v1637 = vpack.c.b16 %v1472, %v1471
      %v1638 = vpack.c.b16 %v1474, %v1473
      %v1639 = vpack.c.b16 %v1476, %v1475
      %v1640 = vpack.c.b16 %v1478, %v1477
      %v1641 = vpack.c.b16 %v1480, %v1479
      %v1642 = vpack.c.b16 %v1482, %v1481
      %v1643 = vpack.c.b16 %v1484, %v1483
      %v1644 = vpack.c.b16 %v1486, %v1485
      %v1645 = vpack.c.b16 %v1488, %v1487
      %v1646 = vpack.c.b16 %v1490, %v1489
      %v1647 = vpack.c.b16 %v1492, %v1491
      %v1648 = vpack.c.b16 %v1494, %v1493
      %v1649 = vpack.c.b16 %v1496, %v1495
      %v1650 = vpack.c.b16 %v1498, %v1497
      %v1651 = vpack.c.b16 %v1500, %v1499
      %v1652 = vpack.c.b16 %v1502, %v1501
      %v1653 = vpack.c.b16 %v1504, %v1503
      %v1654 = vpack.c.b16 %v1506, %v1505
      %v1655 = vpack.c.b16 %v1508, %v1507
      %v1656 = vpack.c.b16 %v1510, %v1509
      %v1657 = vpack.c.b16 %v1512, %v1511
      %v1658 = vpack.c.b16 %v1514, %v1513
      %v1659 = vpack.c.b16 %v1516, %v1515
      %v1660 = vpack.c.b16 %v1518, %v1517
      %v1661 = vpack.c.b16 %v1520, %v1519
      %v1662 = vpack.c.b16 %v1522, %v1521
      %v1663 = vpack.c.b16 %v1524, %v1523
      %v1664 = vpack.c.b16 %v1526, %v1525
      %v1665 = vpack.c.b16 %v1528, %v1527
      %v1666 = vpack.c.b16 %v1530, %v1529
      %v1667 = vpack.c.b16 %v1532, %v1531
      %v1668 = vpack.c.b16 %v1534, %v1533
      %v1669 = vpack.c.b16 %v1536, %v1535
      %v1670 = vpack.c.b16 %v1538, %v1537
      %v1671 = vpack.c.b16 %v1540, %v1539
      %v1672 = vpack.c.b16 %v1542, %v1541
      %v1673 = vpack.c.b16 %v1544, %v1543
      %v1674 = vpack.c.b16 %v1546, %v1545
      %v1675 = vpack.c.b16 %v1548, %v1547
      %v1676 = vpack.c.b16 %v1550, %v1549
      %v1677 = vpack.c.b16 %v1552, %v1551
      %v1678 = vpack.c.b16 %v1554, %v1553
      %v1679 = vpack.c.b16 %v1556, %v1555
      %v1680 = vpack.c.b16 %v1558, %v1557
      %v1681 = vpack.c.b16 %v1560, %v1559
      %v1686 = vunpack.c.l.b16 %v1073
      %v1687 = vunpack.c.l.b16 %v1074
      %v1688 = vunpack.c.l.b16 %v1075
      %v1689 = vunpack.c.l.b16 %v1076
      %v1690 = vpack.c.b16 %v1687, %v1686
      %v1691 = vpack.c.b16 %v1689, %v1688
      %vm1693 = vcmask 220160
      %v1695 = vsel %vm1693, %v1561, 0
      %v1698 = vsel %vm1693, %v1562, 0
      %v1701 = vsel %vm1693, %v1563, 0
      %v1704 = vsel %vm1693, %v1564, 0
      %v1707 = vsel %vm1693, %v1565, 0
      %v1710 = vsel %vm1693, %v1566, 0
      %v1713 = vsel %vm1693, %v1567, 0
      %v1716 = vsel %vm1693, %v1568, 0
      %v1719 = vsel %vm1693, %v1569, 0
      %v1722 = vsel %vm1693, %v1570, 0
      %v1725 = vsel %vm1693, %v1571, 0
      %v1728 = vsel %vm1693, %v1572, 0
      %v1731 = vsel %vm1693, %v1573, 0
      %v1734 = vsel %vm1693, %v1574, 0
      %v1737 = vsel %vm1693, %v1575, 0
      %v1740 = vsel %vm1693, %v1576, 0
      %v1743 = vsel %vm1693, %v1577, 0
      %v1746 = vsel %vm1693, %v1578, 0
      %v1749 = vsel %vm1693, %v1579, 0
      %v1752 = vsel %vm1693, %v1580, 0
      %v1755 = vsel %vm1693, %v1581, 0
      %v1758 = vsel %vm1693, %v1582, 0
      %v1761 = vsel %vm1693, %v1583, 0
      %v1764 = vsel %vm1693, %v1584, 0
      %v1767 = vsel %vm1693, %v1585, 0
      %v1770 = vsel %vm1693, %v1586, 0
      %v1773 = vsel %vm1693, %v1587, 0
      %v1776 = vsel %vm1693, %v1588, 0
      %v1779 = vsel %vm1693, %v1589, 0
      %v1782 = vsel %vm1693, %v1590, 0
      %v1785 = vsel %vm1693, %v1591, 0
      %v1788 = vsel %vm1693, %v1592, 0
      %v1791 = vsel %vm1693, %v1593, 0
      %v1794 = vsel %vm1693, %v1594, 0
      %v1797 = vsel %vm1693, %v1595, 0
      %v1800 = vsel %vm1693, %v1596, 0
      %v1803 = vsel %vm1693, %v1597, 0
      %v1806 = vsel %vm1693, %v1598, 0
      %v1809 = vsel %vm1693, %v1599, 0
      %v1812 = vsel %vm1693, %v1600, 0
      %v1815 = vsel %vm1693, %v1601, 0
      %v1818 = vsel %vm1693, %v1602, 0
      %v1821 = vsel %vm1693, %v1603, 0
      %v1824 = vsel %vm1693, %v1604, 0
      %v1827 = vsel %vm1693, %v1605, 0
      %v1830 = vsel %vm1693, %v1606, 0
      %v1833 = vsel %vm1693, %v1607, 0
      %v1836 = vsel %vm1693, %v1608, 0
      %v1839 = vsel %vm1693, %v1609, 0
      %v1842 = vsel %vm1693, %v1610, 0
      %v1845 = vsel %vm1693, %v1611, 0
      %v1848 = vsel %vm1693, %v1612, 0
      %v1851 = vsel %vm1693, %v1613, 0
      %v1854 = vsel %vm1693, %v1614, 0
      %v1857 = vsel %vm1693, %v1615, 0
      %v1860 = vsel %vm1693, %v1616, 0
      %v1863 = vsel %vm1693, %v1617, 0
      %v1866 = vsel %vm1693, %v1618, 0
      %v1869 = vsel %vm1693, %v1619, 0
      %v1872 = vsel %vm1693, %v1620, 0
      %v1875 = vsel %vm1693, %v1621, 0
      %v1878 = vsel %vm1693, %v1622, 0
      %v1881 = vsel %vm1693, %v1623, 0
      %v1884 = vsel %vm1693, %v1624, 0
      %v1887 = vsel %vm1693, %v1625, 0
      %v1890 = vsel %vm1693, %v1626, 0
      %v1893 = vsel %vm1693, %v1627, 0
      %v1896 = vsel %vm1693, %v1628, 0
      %v1899 = vsel %vm1693, %v1629, 0
      %v1902 = vsel %vm1693, %v1630, 0
      %v1905 = vsel %vm1693, %v1631, 0
      %v1908 = vsel %vm1693, %v1632, 0
      %v1911 = vsel %vm1693, %v1633, 0
      %v1914 = vsel %vm1693, %v1634, 0
      %v1917 = vsel %vm1693, %v1635, 0
      %v1920 = vsel %vm1693, %v1636, 0
      %v1923 = vsel %vm1693, %v1637, 0
      %v1926 = vsel %vm1693, %v1638, 0
      %v1929 = vsel %vm1693, %v1639, 0
      %v1932 = vsel %vm1693, %v1640, 0
      %v1935 = vsel %vm1693, %v1641, 0
      %v1938 = vsel %vm1693, %v1642, 0
      %v1941 = vsel %vm1693, %v1643, 0
      %v1944 = vsel %vm1693, %v1644, 0
      %v1947 = vsel %vm1693, %v1645, 0
      %v1950 = vsel %vm1693, %v1646, 0
      %v1953 = vsel %vm1693, %v1647, 0
      %v1956 = vsel %vm1693, %v1648, 0
      %v1959 = vsel %vm1693, %v1649, 0
      %v1962 = vsel %vm1693, %v1650, 0
      %v1965 = vsel %vm1693, %v1651, 0
      %v1968 = vsel %vm1693, %v1652, 0
      %v1971 = vsel %vm1693, %v1653, 0
      %v1974 = vsel %vm1693, %v1654, 0
      %v1977 = vsel %vm1693, %v1655, 0
      %v1980 = vsel %vm1693, %v1656, 0
      %v1983 = vsel %vm1693, %v1657, 0
      %v1986 = vsel %vm1693, %v1658, 0
      %v1989 = vsel %vm1693, %v1659, 0
      %v1992 = vsel %vm1693, %v1660, 0
      %v1995 = vsel %vm1693, %v1661, 0
      %v1998 = vsel %vm1693, %v1662, 0
      %v2001 = vsel %vm1693, %v1663, 0
      %v2004 = vsel %vm1693, %v1664, 0
      %v2007 = vsel %vm1693, %v1665, 0
      %v2010 = vsel %vm1693, %v1666, 0
      %v2013 = vsel %vm1693, %v1667, 0
      %v2016 = vsel %vm1693, %v1668, 0
      %v2019 = vsel %vm1693, %v1669, 0
      %v2022 = vsel %vm1693, %v1670, 0
      %v2025 = vsel %vm1693, %v1671, 0
      %v2028 = vsel %vm1693, %v1672, 0
      %v2031 = vsel %vm1693, %v1673, 0
      %v2034 = vsel %vm1693, %v1674, 0
      %v2037 = vsel %vm1693, %v1675, 0
      %v2040 = vsel %vm1693, %v1676, 0
      %v2043 = vsel %vm1693, %v1677, 0
      %v2046 = vsel %vm1693, %v1678, 0
      %v2049 = vsel %vm1693, %v1679, 0
      %v2052 = vsel %vm1693, %v1680, 0
      %v2055 = vsel %vm1693, %v1681, 0
      %vm2057 = vcmask 1044480
      %vm2058 = vcmask 1045504
      %v2059 = vsel %vm2057, 4294967295, 65535
      %v2060 = vsel %vm2058, %v2059, 0
      %v2062 = vand.u32 %v1691, %v2060
      %2064 = vmatprep.subr.bf16.mxu0 0
      %2065 = vmatpush1.bf16.msra.mxu0 %v1690
      %2066 = vmatprep.subr.bf16.mxu0 0
      %2067 = vmatpush1.bf16.msra.mxu0 %v2062
      %2068 = vmatprep.subr.bf16.mxu0 0
      %2069 = vmatpush1.bf16.msra.mxu0 0
      %2070 = vmatprep.subr.bf16.mxu0 0
      %2071 = vmatpush1.bf16.msra.mxu0 0
      %2072 = vmatprep.subr.bf16.mxu0 0
      %2073 = vmatpush1.bf16.msra.mxu0 0
      %2074 = vmatprep.subr.bf16.mxu0 0
      %2075 = vmatpush1.bf16.msra.mxu0 0
      %2076 = vmatprep.subr.bf16.mxu0 0
      %2077 = vmatpush1.bf16.msra.mxu0 0
      %2078 = vmatprep.subr.bf16.mxu0 0
      %2079 = vmatpush1.bf16.msra.mxu0 0
      %2080 = vmatprep.subr.bf16.mxu0 0
      %2081 = vmatpush1.bf16.msra.mxu0 0
      %2082 = vmatprep.subr.bf16.mxu0 0
      %2083 = vmatpush1.bf16.msra.mxu0 0
      %2084 = vmatprep.subr.bf16.mxu0 0
      %2085 = vmatpush1.bf16.msra.mxu0 0
      %2086 = vmatprep.subr.bf16.mxu0 0
      %2087 = vmatpush1.bf16.msra.mxu0 0
      %2088 = vmatprep.subr.bf16.mxu0 0
      %2089 = vmatpush1.bf16.msra.mxu0 0
      %2090 = vmatprep.subr.bf16.mxu0 0
      %2091 = vmatpush1.bf16.msra.mxu0 0
      %2092 = vmatprep.subr.bf16.mxu0 0
      %2093 = vmatpush1.bf16.msra.mxu0 0
      %2094 = vmatprep.subr.bf16.mxu0 0
      %2095 = vmatpush1.bf16.msra.mxu0 0
      %2096 = vmatprep.mubr.bf16.mxu0 0
      %2097 = vmatmul.mubr.bf16.gmra.mrb[0].mxu0 %v1695
      %v2098 = vpop.f32.mrb[0].mxu0
      %v2099 = vadd.f32 0.0, %v2098
      %v2100 = vpop.f32.mrb[0].mxu0
      %v2101 = vpop.f32.mrb[0].mxu0
      %v2102 = vadd.f32 0.0, %v2101
      %v2103 = vpop.f32.mrb[0].mxu0
      %2104 = vmatprep.mubr.bf16.mxu0 0
      %2105 = vmatmul.mubr.bf16.gmra.mrb[0].mxu0 %v1698
      %v2106 = vpop.f32.mrb[0].mxu0
      %v2107 = vadd.f32 0.0, %v2106
      %v2108 = vpop.f32.mrb[0].mxu0
      %v2109 = vpop.f32.mrb[0].mxu0
      %v2110 = vadd.f32 0.0, %v2109
      %v2111 = vpop.f32.mrb[0].mxu0
      %2112 = vmatprep.mubr.bf16.mxu0 0
      %2113 = vmatmul.mubr.bf16.gmra.mrb[0].mxu0 %v1701
      %v2114 = vpop.f32.mrb[0].mxu0
      %v2115 = vadd.f32 0.0, %v2114
      %v2116 = vpop.f32.mrb[0].mxu0
      %v2117 = vpop.f32.mrb[0].mxu0
      %v2118 = vadd.f32 0.0, %v2117
      %v2119 = vpop.f32.mrb[0].mxu0
      %2120 = vmatprep.mubr.bf16.mxu0 0
      %2121 = vmatmul.mubr.bf16.gmra.mrb[0].mxu0 %v1704
      %v2122 = vpop.f32.mrb[0].mxu0
      %v2123 = vadd.f32 0.0, %v2122
      %v2124 = vpop.f32.mrb[0].mxu0
      %v2125 = vpop.f32.mrb[0].mxu0
      %v2126 = vadd.f32 0.0, %v2125
      %v2127 = vpop.f32.mrb[0].mxu0
      %2128 = vmatprep.mubr.bf16.mxu0 0
      %2129 = vmatmul.mubr.bf16.gmra.mrb[0].mxu0 %v1707
      %v2130 = vpop.f32.mrb[0].mxu0
      %v2131 = vadd.f32 0.0, %v2130
      %v2132 = vpop.f32.mrb[0].mxu0
      %v2133 = vpop.f32.mrb[0].mxu0
      %v2134 = vadd.f32 0.0, %v2133
      %v2135 = vpop.f32.mrb[0].mxu0
      %2136 = vmatprep.mubr.bf16.mxu0 0
      %2137 = vmatmul.mubr.bf16.gmra.mrb[0].mxu0 %v1710
      %v2138 = vpop.f32.mrb[0].mxu0
      %v2139 = vadd.f32 0.0, %v2138
      %v2140 = vpop.f32.mrb[0].mxu0
      %v2141 = vpop.f32.mrb[0].mxu0
      %v2142 = vadd.f32 0.0, %v2141
      %v2143 = vpop.f32.mrb[0].mxu0
      %2144 = vmatprep.mubr.bf16.mxu0 0
      %2145 = vmatmul.mubr.bf16.gmra.mrb[0].mxu0 %v1713
      %v2146 = vpop.f32.mrb[0].mxu0
      %v2147 = vadd.f32 0.0, %v2146
      %v2148 = vpop.f32.mrb[0].mxu0
      %v2149 = vpop.f32.mrb[0].mxu0
      %v2150 = vadd.f32 0.0, %v2149
      %v2151 = vpop.f32.mrb[0].mxu0
      %2152 = vmatprep.mubr.bf16.mxu0 0
      %2153 = vmatmul.mubr.bf16.gmra.mrb[0].mxu0 %v1716
      %v2154 = vpop.f32.mrb[0].mxu0
      %v2155 = vadd.f32 0.0, %v2154
      %v2156 = vpop.f32.mrb[0].mxu0
      %v2157 = vpop.f32.mrb[0].mxu0
      %v2158 = vadd.f32 0.0, %v2157
      %v2159 = vpop.f32.mrb[0].mxu0
      %2160 = vmatprep.mubr.bf16.mxu0 0
      %2161 = vmatmul.mubr.bf16.gmra.mrb[0].mxu0 %v1719
      %v2162 = vpop.f32.mrb[0].mxu0
      %v2163 = vadd.f32 0.0, %v2162
      %v2164 = vpop.f32.mrb[0].mxu0
      %v2165 = vpop.f32.mrb[0].mxu0
      %v2166 = vadd.f32 0.0, %v2165
      %v2167 = vpop.f32.mrb[0].mxu0
      %2168 = vmatprep.mubr.bf16.mxu0 0
      %2169 = vmatmul.mubr.bf16.gmra.mrb[0].mxu0 %v1722
      %v2170 = vpop.f32.mrb[0].mxu0
      %v2171 = vadd.f32 0.0, %v2170
      %v2172 = vpop.f32.mrb[0].mxu0
      %v2173 = vpop.f32.mrb[0].mxu0
      %v2174 = vadd.f32 0.0, %v2173
      %v2175 = vpop.f32.mrb[0].mxu0
      %2176 = vmatprep.mubr.bf16.mxu0 0
      %2177 = vmatmul.mubr.bf16.gmra.mrb[0].mxu0 %v1725
      %v2178 = vpop.f32.mrb[0].mxu0
      %v2179 = vadd.f32 0.0, %v2178
      %v2180 = vpop.f32.mrb[0].mxu0
      %v2181 = vpop.f32.mrb[0].mxu0
      %v2182 = vadd.f32 0.0, %v2181
      %v2183 = vpop.f32.mrb[0].mxu0
      %2184 = vmatprep.mubr.bf16.mxu0 0
      %2185 = vmatmul.mubr.bf16.gmra.mrb[0].mxu0 %v1728
      %v2186 = vpop.f32.mrb[0].mxu0
      %v2187 = vadd.f32 0.0, %v2186
      %v2188 = vpop.f32.mrb[0].mxu0
      %v2189 = vpop.f32.mrb[0].mxu0
      %v2190 = vadd.f32 0.0, %v2189
      %v2191 = vpop.f32.mrb[0].mxu0
      %2192 = vmatprep.mubr.bf16.mxu0 0
      %2193 = vmatmul.mubr.bf16.gmra.mrb[0].mxu0 %v1731
      %v2194 = vpop.f32.mrb[0].mxu0
      %v2195 = vadd.f32 0.0, %v2194
      %v2196 = vpop.f32.mrb[0].mxu0
      %v2197 = vpop.f32.mrb[0].mxu0
      %v2198 = vadd.f32 0.0, %v2197
      %v2199 = vpop.f32.mrb[0].mxu0
      %2200 = vmatprep.mubr.bf16.mxu0 0
      %2201 = vmatmul.mubr.bf16.gmra.mrb[0].mxu0 %v1734
      %v2202 = vpop.f32.mrb[0].mxu0
      %v2203 = vadd.f32 0.0, %v2202
      %v2204 = vpop.f32.mrb[0].mxu0
      %v2205 = vpop.f32.mrb[0].mxu0
      %v2206 = vadd.f32 0.0, %v2205
      %v2207 = vpop.f32.mrb[0].mxu0
      %2208 = vmatprep.mubr.bf16.mxu0 0
      %2209 = vmatmul.mubr.bf16.gmra.mrb[0].mxu0 %v1737
      %v2210 = vpop.f32.mrb[0].mxu0
      %v2211 = vadd.f32 0.0, %v2210
      %v2212 = vpop.f32.mrb[0].mxu0
      %v2213 = vpop.f32.mrb[0].mxu0
      %v2214 = vadd.f32 0.0, %v2213
      %v2215 = vpop.f32.mrb[0].mxu0
      %2216 = vmatprep.mubr.bf16.mxu0 0
      %2217 = vmatmul.mubr.bf16.gmra.mrb[0].mxu0 %v1740
      %v2218 = vpop.f32.mrb[0].mxu0
      %v2219 = vadd.f32 0.0, %v2218
      %v2220 = vpop.f32.mrb[0].mxu0
      %v2221 = vpop.f32.mrb[0].mxu0
      %v2222 = vadd.f32 0.0, %v2221
      %v2223 = vpop.f32.mrb[0].mxu0
      %2224 = vmatprep.mubr.bf16.mxu0 0
      %2225 = vmatmul.mubr.bf16.gmra.mrb[0].mxu0 %v1743
      %v2226 = vpop.f32.mrb[0].mxu0
      %v2227 = vadd.f32 0.0, %v2226
      %v2228 = vpop.f32.mrb[0].mxu0
      %v2229 = vpop.f32.mrb[0].mxu0
      %v2230 = vadd.f32 0.0, %v2229
      %v2231 = vpop.f32.mrb[0].mxu0
      %2232 = vmatprep.mubr.bf16.mxu0 0
      %2233 = vmatmul.mubr.bf16.gmra.mrb[0].mxu0 %v1746
      %v2234 = vpop.f32.mrb[0].mxu0
      %v2235 = vadd.f32 0.0, %v2234
      %v2236 = vpop.f32.mrb[0].mxu0
      %v2237 = vpop.f32.mrb[0].mxu0
      %v2238 = vadd.f32 0.0, %v2237
      %v2239 = vpop.f32.mrb[0].mxu0
      %2240 = vmatprep.mubr.bf16.mxu0 0
      %2241 = vmatmul.mubr.bf16.gmra.mrb[0].mxu0 %v1749
      %v2242 = vpop.f32.mrb[0].mxu0
      %v2243 = vadd.f32 0.0, %v2242
      %v2244 = vpop.f32.mrb[0].mxu0
      %v2245 = vpop.f32.mrb[0].mxu0
      %v2246 = vadd.f32 0.0, %v2245
      %v2247 = vpop.f32.mrb[0].mxu0
      %2248 = vmatprep.mubr.bf16.mxu0 0
      %2249 = vmatmul.mubr.bf16.gmra.mrb[0].mxu0 %v1752
      %v2250 = vpop.f32.mrb[0].mxu0
      %v2251 = vadd.f32 0.0, %v2250
      %v2252 = vpop.f32.mrb[0].mxu0
      %v2253 = vpop.f32.mrb[0].mxu0
      %v2254 = vadd.f32 0.0, %v2253
      %v2255 = vpop.f32.mrb[0].mxu0
      %2256 = vmatprep.mubr.bf16.mxu0 0
      %2257 = vmatmul.mubr.bf16.gmra.mrb[0].mxu0 %v1755
      %v2258 = vpop.f32.mrb[0].mxu0
      %v2259 = vadd.f32 0.0, %v2258
      %v2260 = vpop.f32.mrb[0].mxu0
      %v2261 = vpop.f32.mrb[0].mxu0
      %v2262 = vadd.f32 0.0, %v2261
      %v2263 = vpop.f32.mrb[0].mxu0
      %2264 = vmatprep.mubr.bf16.mxu0 0
      %2265 = vmatmul.mubr.bf16.gmra.mrb[0].mxu0 %v1758
      %v2266 = vpop.f32.mrb[0].mxu0
      %v2267 = vadd.f32 0.0, %v2266
      %v2268 = vpop.f32.mrb[0].mxu0
      %v2269 = vpop.f32.mrb[0].mxu0
      %v2270 = vadd.f32 0.0, %v2269
      %v2271 = vpop.f32.mrb[0].mxu0
      %2272 = vmatprep.mubr.bf16.mxu0 0
      %2273 = vmatmul.mubr.bf16.gmra.mrb[0].mxu0 %v1761
      %v2274 = vpop.f32.mrb[0].mxu0
      %v2275 = vadd.f32 0.0, %v2274
      %v2276 = vpop.f32.mrb[0].mxu0
      %v2277 = vpop.f32.mrb[0].mxu0
      %v2278 = vadd.f32 0.0, %v2277
      %v2279 = vpop.f32.mrb[0].mxu0
      %2280 = vmatprep.mubr.bf16.mxu0 0
      %2281 = vmatmul.mubr.bf16.gmra.mrb[0].mxu0 %v1764
      %v2282 = vpop.f32.mrb[0].mxu0
      %v2283 = vadd.f32 0.0, %v2282
      %v2284 = vpop.f32.mrb[0].mxu0
      %v2285 = vpop.f32.mrb[0].mxu0
      %v2286 = vadd.f32 0.0, %v2285
      %v2287 = vpop.f32.mrb[0].mxu0
      %2288 = vmatprep.mubr.bf16.mxu0 0
      %2289 = vmatmul.mubr.bf16.gmra.mrb[0].mxu0 %v1767
      %v2290 = vpop.f32.mrb[0].mxu0
      %v2291 = vadd.f32 0.0, %v2290
      %v2292 = vpop.f32.mrb[0].mxu0
      %v2293 = vpop.f32.mrb[0].mxu0
      %v2294 = vadd.f32 0.0, %v2293
      %v2295 = vpop.f32.mrb[0].mxu0
      %2296 = vmatprep.mubr.bf16.mxu0 0
      %2297 = vmatmul.mubr.bf16.gmra.mrb[0].mxu0 %v1770
      %v2298 = vpop.f32.mrb[0].mxu0
      %v2299 = vadd.f32 0.0, %v2298
      %v2300 = vpop.f32.mrb[0].mxu0
      %v2301 = vpop.f32.mrb[0].mxu0
      %v2302 = vadd.f32 0.0, %v2301
      %v2303 = vpop.f32.mrb[0].mxu0
      %2304 = vmatprep.mubr.bf16.mxu0 0
      %2305 = vmatmul.mubr.bf16.gmra.mrb[0].mxu0 %v1773
      %v2306 = vpop.f32.mrb[0].mxu0
      %v2307 = vadd.f32 0.0, %v2306
      %v2308 = vpop.f32.mrb[0].mxu0
      %v2309 = vpop.f32.mrb[0].mxu0
      %v2310 = vadd.f32 0.0, %v2309
      %v2311 = vpop.f32.mrb[0].mxu0
      %2312 = vmatprep.mubr.bf16.mxu0 0
      %2313 = vmatmul.mubr.bf16.gmra.mrb[0].mxu0 %v1776
      %v2314 = vpop.f32.mrb[0].mxu0
      %v2315 = vadd.f32 0.0, %v2314
      %v2316 = vpop.f32.mrb[0].mxu0
      %v2317 = vpop.f32.mrb[0].mxu0
      %v2318 = vadd.f32 0.0, %v2317
      %v2319 = vpop.f32.mrb[0].mxu0
      %2320 = vmatprep.mubr.bf16.mxu0 0
      %2321 = vmatmul.mubr.bf16.gmra.mrb[0].mxu0 %v1779
      %v2322 = vpop.f32.mrb[0].mxu0
      %v2323 = vadd.f32 0.0, %v2322
      %v2324 = vpop.f32.mrb[0].mxu0
      %v2325 = vpop.f32.mrb[0].mxu0
      %v2326 = vadd.f32 0.0, %v2325
      %v2327 = vpop.f32.mrb[0].mxu0
      %2328 = vmatprep.mubr.bf16.mxu0 0
      %2329 = vmatmul.mubr.bf16.gmra.mrb[0].mxu0 %v1782
      %v2330 = vpop.f32.mrb[0].mxu0
      %v2331 = vadd.f32 0.0, %v2330
      %v2332 = vpop.f32.mrb[0].mxu0
      %v2333 = vpop.f32.mrb[0].mxu0
      %v2334 = vadd.f32 0.0, %v2333
      %v2335 = vpop.f32.mrb[0].mxu0
      %2336 = vmatprep.mubr.bf16.mxu0 0
      %2337 = vmatmul.mubr.bf16.gmra.mrb[0].mxu0 %v1785
      %v2338 = vpop.f32.mrb[0].mxu0
      %v2339 = vadd.f32 0.0, %v2338
      %v2340 = vpop.f32.mrb[0].mxu0
      %v2341 = vpop.f32.mrb[0].mxu0
      %v2342 = vadd.f32 0.0, %v2341
      %v2343 = vpop.f32.mrb[0].mxu0
      %2344 = vmatprep.mubr.bf16.mxu0 0
      %2345 = vmatmul.mubr.bf16.gmra.mrb[0].mxu0 %v1788
      %v2346 = vpop.f32.mrb[0].mxu0
      %v2347 = vadd.f32 0.0, %v2346
      %v2348 = vpop.f32.mrb[0].mxu0
      %v2349 = vpop.f32.mrb[0].mxu0
      %v2350 = vadd.f32 0.0, %v2349
      %v2351 = vpop.f32.mrb[0].mxu0
      %2352 = vmatprep.mubr.bf16.mxu0 0
      %2353 = vmatmul.mubr.bf16.gmra.mrb[0].mxu0 %v1791
      %v2354 = vpop.f32.mrb[0].mxu0
      %v2355 = vadd.f32 0.0, %v2354
      %v2356 = vpop.f32.mrb[0].mxu0
      %v2357 = vpop.f32.mrb[0].mxu0
      %v2358 = vadd.f32 0.0, %v2357
      %v2359 = vpop.f32.mrb[0].mxu0
      %2360 = vmatprep.mubr.bf16.mxu0 0
      %2361 = vmatmul.mubr.bf16.gmra.mrb[0].mxu0 %v1794
      %v2362 = vpop.f32.mrb[0].mxu0
      %v2363 = vadd.f32 0.0, %v2362
      %v2364 = vpop.f32.mrb[0].mxu0
      %v2365 = vpop.f32.mrb[0].mxu0
      %v2366 = vadd.f32 0.0, %v2365
      %v2367 = vpop.f32.mrb[0].mxu0
      %2368 = vmatprep.mubr.bf16.mxu0 0
      %2369 = vmatmul.mubr.bf16.gmra.mrb[0].mxu0 %v1797
      %v2370 = vpop.f32.mrb[0].mxu0
      %v2371 = vadd.f32 0.0, %v2370
      %v2372 = vpop.f32.mrb[0].mxu0
      %v2373 = vpop.f32.mrb[0].mxu0
      %v2374 = vadd.f32 0.0, %v2373
      %v2375 = vpop.f32.mrb[0].mxu0
      %2376 = vmatprep.mubr.bf16.mxu0 0
      %2377 = vmatmul.mubr.bf16.gmra.mrb[0].mxu0 %v1800
      %v2378 = vpop.f32.mrb[0].mxu0
      %v2379 = vadd.f32 0.0, %v2378
      %v2380 = vpop.f32.mrb[0].mxu0
      %v2381 = vpop.f32.mrb[0].mxu0
      %v2382 = vadd.f32 0.0, %v2381
      %v2383 = vpop.f32.mrb[0].mxu0
      %2384 = vmatprep.mubr.bf16.mxu0 0
      %2385 = vmatmul.mubr.bf16.gmra.mrb[0].mxu0 %v1803
      %v2386 = vpop.f32.mrb[0].mxu0
      %v2387 = vadd.f32 0.0, %v2386
      %v2388 = vpop.f32.mrb[0].mxu0
      %v2389 = vpop.f32.mrb[0].mxu0
      %v2390 = vadd.f32 0.0, %v2389
      %v2391 = vpop.f32.mrb[0].mxu0
      %2392 = vmatprep.mubr.bf16.mxu0 0
      %2393 = vmatmul.mubr.bf16.gmra.mrb[0].mxu0 %v1806
      %v2394 = vpop.f32.mrb[0].mxu0
      %v2395 = vadd.f32 0.0, %v2394
      %v2396 = vpop.f32.mrb[0].mxu0
      %v2397 = vpop.f32.mrb[0].mxu0
      %v2398 = vadd.f32 0.0, %v2397
      %v2399 = vpop.f32.mrb[0].mxu0
      %2400 = vmatprep.mubr.bf16.mxu0 0
      %2401 = vmatmul.mubr.bf16.gmra.mrb[0].mxu0 %v1809
      %v2402 = vpop.f32.mrb[0].mxu0
      %v2403 = vadd.f32 0.0, %v2402
      %v2404 = vpop.f32.mrb[0].mxu0
      %v2405 = vpop.f32.mrb[0].mxu0
      %v2406 = vadd.f32 0.0, %v2405
      %v2407 = vpop.f32.mrb[0].mxu0
      %2408 = vmatprep.mubr.bf16.mxu0 0
      %2409 = vmatmul.mubr.bf16.gmra.mrb[0].mxu0 %v1812
      %v2410 = vpop.f32.mrb[0].mxu0
      %v2411 = vadd.f32 0.0, %v2410
      %v2412 = vpop.f32.mrb[0].mxu0
      %v2413 = vpop.f32.mrb[0].mxu0
      %v2414 = vadd.f32 0.0, %v2413
      %v2415 = vpop.f32.mrb[0].mxu0
      %2416 = vmatprep.mubr.bf16.mxu0 0
      %2417 = vmatmul.mubr.bf16.gmra.mrb[0].mxu0 %v1815
      %v2418 = vpop.f32.mrb[0].mxu0
      %v2419 = vadd.f32 0.0, %v2418
      %v2420 = vpop.f32.mrb[0].mxu0
      %v2421 = vpop.f32.mrb[0].mxu0
      %v2422 = vadd.f32 0.0, %v2421
      %v2423 = vpop.f32.mrb[0].mxu0
      %2424 = vmatprep.mubr.bf16.mxu0 0
      %2425 = vmatmul.mubr.bf16.gmra.mrb[0].mxu0 %v1818
      %v2426 = vpop.f32.mrb[0].mxu0
      %v2427 = vadd.f32 0.0, %v2426
      %v2428 = vpop.f32.mrb[0].mxu0
      %v2429 = vpop.f32.mrb[0].mxu0
      %v2430 = vadd.f32 0.0, %v2429
      %v2431 = vpop.f32.mrb[0].mxu0
      %2432 = vmatprep.mubr.bf16.mxu0 0
      %2433 = vmatmul.mubr.bf16.gmra.mrb[0].mxu0 %v1821
      %v2434 = vpop.f32.mrb[0].mxu0
      %v2435 = vadd.f32 0.0, %v2434
      %v2436 = vpop.f32.mrb[0].mxu0
      %v2437 = vpop.f32.mrb[0].mxu0
      %v2438 = vadd.f32 0.0, %v2437
      %v2439 = vpop.f32.mrb[0].mxu0
      %2440 = vmatprep.mubr.bf16.mxu0 0
      %2441 = vmatmul.mubr.bf16.gmra.mrb[0].mxu0 %v1824
      %v2442 = vpop.f32.mrb[0].mxu0
      %v2443 = vadd.f32 0.0, %v2442
      %v2444 = vpop.f32.mrb[0].mxu0
      %v2445 = vpop.f32.mrb[0].mxu0
      %v2446 = vadd.f32 0.0, %v2445
      %v2447 = vpop.f32.mrb[0].mxu0
      %2448 = vmatprep.mubr.bf16.mxu0 0
      %2449 = vmatmul.mubr.bf16.gmra.mrb[0].mxu0 %v1827
      %v2450 = vpop.f32.mrb[0].mxu0
      %v2451 = vadd.f32 0.0, %v2450
      %v2452 = vpop.f32.mrb[0].mxu0
      %v2453 = vpop.f32.mrb[0].mxu0
      %v2454 = vadd.f32 0.0, %v2453
      %v2455 = vpop.f32.mrb[0].mxu0
      %2456 = vmatprep.mubr.bf16.mxu0 0
      %2457 = vmatmul.mubr.bf16.gmra.mrb[0].mxu0 %v1830
      %v2458 = vpop.f32.mrb[0].mxu0
      %v2459 = vadd.f32 0.0, %v2458
      %v2460 = vpop.f32.mrb[0].mxu0
      %v2461 = vpop.f32.mrb[0].mxu0
      %v2462 = vadd.f32 0.0, %v2461
      %v2463 = vpop.f32.mrb[0].mxu0
      %2464 = vmatprep.mubr.bf16.mxu0 0
      %2465 = vmatmul.mubr.bf16.gmra.mrb[0].mxu0 %v1833
      %v2466 = vpop.f32.mrb[0].mxu0
      %v2467 = vadd.f32 0.0, %v2466
      %v2468 = vpop.f32.mrb[0].mxu0
      %v2469 = vpop.f32.mrb[0].mxu0
      %v2470 = vadd.f32 0.0, %v2469
      %v2471 = vpop.f32.mrb[0].mxu0
      %2472 = vmatprep.mubr.bf16.mxu0 0
      %2473 = vmatmul.mubr.bf16.gmra.mrb[0].mxu0 %v1836
      %v2474 = vpop.f32.mrb[0].mxu0
      %v2475 = vadd.f32 0.0, %v2474
      %v2476 = vpop.f32.mrb[0].mxu0
      %v2477 = vpop.f32.mrb[0].mxu0
      %v2478 = vadd.f32 0.0, %v2477
      %v2479 = vpop.f32.mrb[0].mxu0
      %2480 = vmatprep.mubr.bf16.mxu0 0
      %2481 = vmatmul.mubr.bf16.gmra.mrb[0].mxu0 %v1839
      %v2482 = vpop.f32.mrb[0].mxu0
      %v2483 = vadd.f32 0.0, %v2482
      %v2484 = vpop.f32.mrb[0].mxu0
      %v2485 = vpop.f32.mrb[0].mxu0
      %v2486 = vadd.f32 0.0, %v2485
      %v2487 = vpop.f32.mrb[0].mxu0
      %2488 = vmatprep.mubr.bf16.mxu0 0
      %2489 = vmatmul.mubr.bf16.gmra.mrb[0].mxu0 %v1842
      %v2490 = vpop.f32.mrb[0].mxu0
      %v2491 = vadd.f32 0.0, %v2490
      %v2492 = vpop.f32.mrb[0].mxu0
      %v2493 = vpop.f32.mrb[0].mxu0
      %v2494 = vadd.f32 0.0, %v2493
      %v2495 = vpop.f32.mrb[0].mxu0
      %2496 = vmatprep.mubr.bf16.mxu0 0
      %2497 = vmatmul.mubr.bf16.gmra.mrb[0].mxu0 %v1845
      %v2498 = vpop.f32.mrb[0].mxu0
      %v2499 = vadd.f32 0.0, %v2498
      %v2500 = vpop.f32.mrb[0].mxu0
      %v2501 = vpop.f32.mrb[0].mxu0
      %v2502 = vadd.f32 0.0, %v2501
      %v2503 = vpop.f32.mrb[0].mxu0
      %2504 = vmatprep.mubr.bf16.mxu0 0
      %2505 = vmatmul.mubr.bf16.gmra.mrb[0].mxu0 %v1848
      %v2506 = vpop.f32.mrb[0].mxu0
      %v2507 = vadd.f32 0.0, %v2506
      %v2508 = vpop.f32.mrb[0].mxu0
      %v2509 = vpop.f32.mrb[0].mxu0
      %v2510 = vadd.f32 0.0, %v2509
      %v2511 = vpop.f32.mrb[0].mxu0
      %2512 = vmatprep.mubr.bf16.mxu0 0
      %2513 = vmatmul.mubr.bf16.gmra.mrb[0].mxu0 %v1851
      %v2514 = vpop.f32.mrb[0].mxu0
      %v2515 = vadd.f32 0.0, %v2514
      %v2516 = vpop.f32.mrb[0].mxu0
      %v2517 = vpop.f32.mrb[0].mxu0
      %v2518 = vadd.f32 0.0, %v2517
      %v2519 = vpop.f32.mrb[0].mxu0
      %2520 = vmatprep.mubr.bf16.mxu0 0
      %2521 = vmatmul.mubr.bf16.gmra.mrb[0].mxu0 %v1854
      %v2522 = vpop.f32.mrb[0].mxu0
      %v2523 = vadd.f32 0.0, %v2522
      %v2524 = vpop.f32.mrb[0].mxu0
      %v2525 = vpop.f32.mrb[0].mxu0
      %v2526 = vadd.f32 0.0, %v2525
      %v2527 = vpop.f32.mrb[0].mxu0
      %2528 = vmatprep.mubr.bf16.mxu0 0
      %2529 = vmatmul.mubr.bf16.gmra.mrb[0].mxu0 %v1857
      %v2530 = vpop.f32.mrb[0].mxu0
      %v2531 = vadd.f32 0.0, %v2530
      %v2532 = vpop.f32.mrb[0].mxu0
      %v2533 = vpop.f32.mrb[0].mxu0
      %v2534 = vadd.f32 0.0, %v2533
      %v2535 = vpop.f32.mrb[0].mxu0
      %2536 = vmatprep.mubr.bf16.mxu0 0
      %2537 = vmatmul.mubr.bf16.gmra.mrb[0].mxu0 %v1860
      %v2538 = vpop.f32.mrb[0].mxu0
      %v2539 = vadd.f32 0.0, %v2538
      %v2540 = vpop.f32.mrb[0].mxu0
      %v2541 = vpop.f32.mrb[0].mxu0
      %v2542 = vadd.f32 0.0, %v2541
      %v2543 = vpop.f32.mrb[0].mxu0
      %2544 = vmatprep.mubr.bf16.mxu0 0
      %2545 = vmatmul.mubr.bf16.gmra.mrb[0].mxu0 %v1863
      %v2546 = vpop.f32.mrb[0].mxu0
      %v2547 = vadd.f32 0.0, %v2546
      %v2548 = vpop.f32.mrb[0].mxu0
      %v2549 = vpop.f32.mrb[0].mxu0
      %v2550 = vadd.f32 0.0, %v2549
      %v2551 = vpop.f32.mrb[0].mxu0
      %2552 = vmatprep.mubr.bf16.mxu0 0
      %2553 = vmatmul.mubr.bf16.gmra.mrb[0].mxu0 %v1866
      %v2554 = vpop.f32.mrb[0].mxu0
      %v2555 = vadd.f32 0.0, %v2554
      %v2556 = vpop.f32.mrb[0].mxu0
      %v2557 = vpop.f32.mrb[0].mxu0
      %v2558 = vadd.f32 0.0, %v2557
      %v2559 = vpop.f32.mrb[0].mxu0
      %2560 = vmatprep.mubr.bf16.mxu0 0
      %2561 = vmatmul.mubr.bf16.gmra.mrb[0].mxu0 %v1869
      %v2562 = vpop.f32.mrb[0].mxu0
      %v2563 = vadd.f32 0.0, %v2562
      %v2564 = vpop.f32.mrb[0].mxu0
      %v2565 = vpop.f32.mrb[0].mxu0
      %v2566 = vadd.f32 0.0, %v2565
      %v2567 = vpop.f32.mrb[0].mxu0
      %2568 = vmatprep.mubr.bf16.mxu0 0
      %2569 = vmatmul.mubr.bf16.gmra.mrb[0].mxu0 %v1872
      %v2570 = vpop.f32.mrb[0].mxu0
      %v2571 = vadd.f32 0.0, %v2570
      %v2572 = vpop.f32.mrb[0].mxu0
      %v2573 = vpop.f32.mrb[0].mxu0
      %v2574 = vadd.f32 0.0, %v2573
      %v2575 = vpop.f32.mrb[0].mxu0
      %2576 = vmatprep.mubr.bf16.mxu0 0
      %2577 = vmatmul.mubr.bf16.gmra.mrb[0].mxu0 %v1875
      %v2578 = vpop.f32.mrb[0].mxu0
      %v2579 = vadd.f32 0.0, %v2578
      %v2580 = vpop.f32.mrb[0].mxu0
      %v2581 = vpop.f32.mrb[0].mxu0
      %v2582 = vadd.f32 0.0, %v2581
      %v2583 = vpop.f32.mrb[0].mxu0
      %2584 = vmatprep.mubr.bf16.mxu0 0
      %2585 = vmatmul.mubr.bf16.gmra.mrb[0].mxu0 %v1878
      %v2586 = vpop.f32.mrb[0].mxu0
      %v2587 = vadd.f32 0.0, %v2586
      %v2588 = vpop.f32.mrb[0].mxu0
      %v2589 = vpop.f32.mrb[0].mxu0
      %v2590 = vadd.f32 0.0, %v2589
      %v2591 = vpop.f32.mrb[0].mxu0
      %2592 = vmatprep.mubr.bf16.mxu0 0
      %2593 = vmatmul.mubr.bf16.gmra.mrb[0].mxu0 %v1881
      %v2594 = vpop.f32.mrb[0].mxu0
      %v2595 = vadd.f32 0.0, %v2594
      %v2596 = vpop.f32.mrb[0].mxu0
      %v2597 = vpop.f32.mrb[0].mxu0
      %v2598 = vadd.f32 0.0, %v2597
      %v2599 = vpop.f32.mrb[0].mxu0
      %2600 = vmatprep.mubr.bf16.mxu0 0
      %2601 = vmatmul.mubr.bf16.gmra.mrb[0].mxu0 %v1884
      %v2602 = vpop.f32.mrb[0].mxu0
      %v2603 = vadd.f32 0.0, %v2602
      %v2604 = vpop.f32.mrb[0].mxu0
      %v2605 = vpop.f32.mrb[0].mxu0
      %v2606 = vadd.f32 0.0, %v2605
      %v2607 = vpop.f32.mrb[0].mxu0
      %2608 = vmatprep.mubr.bf16.mxu0 0
      %2609 = vmatmul.mubr.bf16.gmra.mrb[0].mxu0 %v1887
      %v2610 = vpop.f32.mrb[0].mxu0
      %v2611 = vadd.f32 0.0, %v2610
      %v2612 = vpop.f32.mrb[0].mxu0
      %v2613 = vpop.f32.mrb[0].mxu0
      %v2614 = vadd.f32 0.0, %v2613
      %v2615 = vpop.f32.mrb[0].mxu0
      %2616 = vmatprep.mubr.bf16.mxu0 0
      %2617 = vmatmul.mubr.bf16.gmra.mrb[0].mxu0 %v1890
      %v2618 = vpop.f32.mrb[0].mxu0
      %v2619 = vadd.f32 0.0, %v2618
      %v2620 = vpop.f32.mrb[0].mxu0
      %v2621 = vpop.f32.mrb[0].mxu0
      %v2622 = vadd.f32 0.0, %v2621
      %v2623 = vpop.f32.mrb[0].mxu0
      %2624 = vmatprep.mubr.bf16.mxu0 0
      %2625 = vmatmul.mubr.bf16.gmra.mrb[0].mxu0 %v1893
      %v2626 = vpop.f32.mrb[0].mxu0
      %v2627 = vadd.f32 0.0, %v2626
      %v2628 = vpop.f32.mrb[0].mxu0
      %v2629 = vpop.f32.mrb[0].mxu0
      %v2630 = vadd.f32 0.0, %v2629
      %v2631 = vpop.f32.mrb[0].mxu0
      %2632 = vmatprep.mubr.bf16.mxu0 0
      %2633 = vmatmul.mubr.bf16.gmra.mrb[0].mxu0 %v1896
      %v2634 = vpop.f32.mrb[0].mxu0
      %v2635 = vadd.f32 0.0, %v2634
      %v2636 = vpop.f32.mrb[0].mxu0
      %v2637 = vpop.f32.mrb[0].mxu0
      %v2638 = vadd.f32 0.0, %v2637
      %v2639 = vpop.f32.mrb[0].mxu0
      %2640 = vmatprep.mubr.bf16.mxu0 0
      %2641 = vmatmul.mubr.bf16.gmra.mrb[0].mxu0 %v1899
      %v2642 = vpop.f32.mrb[0].mxu0
      %v2643 = vadd.f32 0.0, %v2642
      %v2644 = vpop.f32.mrb[0].mxu0
      %v2645 = vpop.f32.mrb[0].mxu0
      %v2646 = vadd.f32 0.0, %v2645
      %v2647 = vpop.f32.mrb[0].mxu0
      %2648 = vmatprep.mubr.bf16.mxu0 0
      %2649 = vmatmul.mubr.bf16.gmra.mrb[0].mxu0 %v1902
      %v2650 = vpop.f32.mrb[0].mxu0
      %v2651 = vadd.f32 0.0, %v2650
      %v2652 = vpop.f32.mrb[0].mxu0
      %v2653 = vpop.f32.mrb[0].mxu0
      %v2654 = vadd.f32 0.0, %v2653
      %v2655 = vpop.f32.mrb[0].mxu0
      %2656 = vmatprep.mubr.bf16.mxu0 0
      %2657 = vmatmul.mubr.bf16.gmra.mrb[0].mxu0 %v1905
      %v2658 = vpop.f32.mrb[0].mxu0
      %v2659 = vadd.f32 0.0, %v2658
      %v2660 = vpop.f32.mrb[0].mxu0
      %v2661 = vpop.f32.mrb[0].mxu0
      %v2662 = vadd.f32 0.0, %v2661
      %v2663 = vpop.f32.mrb[0].mxu0
      %2664 = vmatprep.mubr.bf16.mxu0 0
      %2665 = vmatmul.mubr.bf16.gmra.mrb[0].mxu0 %v1908
      %v2666 = vpop.f32.mrb[0].mxu0
      %v2667 = vadd.f32 0.0, %v2666
      %v2668 = vpop.f32.mrb[0].mxu0
      %v2669 = vpop.f32.mrb[0].mxu0
      %v2670 = vadd.f32 0.0, %v2669
      %v2671 = vpop.f32.mrb[0].mxu0
      %2672 = vmatprep.mubr.bf16.mxu0 0
      %2673 = vmatmul.mubr.bf16.gmra.mrb[0].mxu0 %v1911
      %v2674 = vpop.f32.mrb[0].mxu0
      %v2675 = vadd.f32 0.0, %v2674
      %v2676 = vpop.f32.mrb[0].mxu0
      %v2677 = vpop.f32.mrb[0].mxu0
      %v2678 = vadd.f32 0.0, %v2677
      %v2679 = vpop.f32.mrb[0].mxu0
      %2680 = vmatprep.mubr.bf16.mxu0 0
      %2681 = vmatmul.mubr.bf16.gmra.mrb[0].mxu0 %v1914
      %v2682 = vpop.f32.mrb[0].mxu0
      %v2683 = vadd.f32 0.0, %v2682
      %v2684 = vpop.f32.mrb[0].mxu0
      %v2685 = vpop.f32.mrb[0].mxu0
      %v2686 = vadd.f32 0.0, %v2685
      %v2687 = vpop.f32.mrb[0].mxu0
      %2688 = vmatprep.mubr.bf16.mxu0 0
      %2689 = vmatmul.mubr.bf16.gmra.mrb[0].mxu0 %v1917
      %v2690 = vpop.f32.mrb[0].mxu0
      %v2691 = vadd.f32 0.0, %v2690
      %v2692 = vpop.f32.mrb[0].mxu0
      %v2693 = vpop.f32.mrb[0].mxu0
      %v2694 = vadd.f32 0.0, %v2693
      %v2695 = vpop.f32.mrb[0].mxu0
      %2696 = vmatprep.mubr.bf16.mxu0 0
      %2697 = vmatmul.mubr.bf16.gmra.mrb[0].mxu0 %v1920
      %v2698 = vpop.f32.mrb[0].mxu0
      %v2699 = vadd.f32 0.0, %v2698
      %v2700 = vpop.f32.mrb[0].mxu0
      %v2701 = vpop.f32.mrb[0].mxu0
      %v2702 = vadd.f32 0.0, %v2701
      %v2703 = vpop.f32.mrb[0].mxu0
      %2704 = vmatprep.mubr.bf16.mxu0 0
      %2705 = vmatmul.mubr.bf16.gmra.mrb[0].mxu0 %v1923
      %v2706 = vpop.f32.mrb[0].mxu0
      %v2707 = vadd.f32 0.0, %v2706
      %v2708 = vpop.f32.mrb[0].mxu0
      %v2709 = vpop.f32.mrb[0].mxu0
      %v2710 = vadd.f32 0.0, %v2709
      %v2711 = vpop.f32.mrb[0].mxu0
      %2712 = vmatprep.mubr.bf16.mxu0 0
      %2713 = vmatmul.mubr.bf16.gmra.mrb[0].mxu0 %v1926
      %v2714 = vpop.f32.mrb[0].mxu0
      %v2715 = vadd.f32 0.0, %v2714
      %v2716 = vpop.f32.mrb[0].mxu0
      %v2717 = vpop.f32.mrb[0].mxu0
      %v2718 = vadd.f32 0.0, %v2717
      %v2719 = vpop.f32.mrb[0].mxu0
      %2720 = vmatprep.mubr.bf16.mxu0 0
      %2721 = vmatmul.mubr.bf16.gmra.mrb[0].mxu0 %v1929
      %v2722 = vpop.f32.mrb[0].mxu0
      %v2723 = vadd.f32 0.0, %v2722
      %v2724 = vpop.f32.mrb[0].mxu0
      %v2725 = vpop.f32.mrb[0].mxu0
      %v2726 = vadd.f32 0.0, %v2725
      %v2727 = vpop.f32.mrb[0].mxu0
      %2728 = vmatprep.mubr.bf16.mxu0 0
      %2729 = vmatmul.mubr.bf16.gmra.mrb[0].mxu0 %v1932
      %v2730 = vpop.f32.mrb[0].mxu0
      %v2731 = vadd.f32 0.0, %v2730
      %v2732 = vpop.f32.mrb[0].mxu0
      %v2733 = vpop.f32.mrb[0].mxu0
      %v2734 = vadd.f32 0.0, %v2733
      %v2735 = vpop.f32.mrb[0].mxu0
      %2736 = vmatprep.mubr.bf16.mxu0 0
      %2737 = vmatmul.mubr.bf16.gmra.mrb[0].mxu0 %v1935
      %v2738 = vpop.f32.mrb[0].mxu0
      %v2739 = vadd.f32 0.0, %v2738
      %v2740 = vpop.f32.mrb[0].mxu0
      %v2741 = vpop.f32.mrb[0].mxu0
      %v2742 = vadd.f32 0.0, %v2741
      %v2743 = vpop.f32.mrb[0].mxu0
      %2744 = vmatprep.mubr.bf16.mxu0 0
      %2745 = vmatmul.mubr.bf16.gmra.mrb[0].mxu0 %v1938
      %v2746 = vpop.f32.mrb[0].mxu0
      %v2747 = vadd.f32 0.0, %v2746
      %v2748 = vpop.f32.mrb[0].mxu0
      %v2749 = vpop.f32.mrb[0].mxu0
      %v2750 = vadd.f32 0.0, %v2749
      %v2751 = vpop.f32.mrb[0].mxu0
      %2752 = vmatprep.mubr.bf16.mxu0 0
      %2753 = vmatmul.mubr.bf16.gmra.mrb[0].mxu0 %v1941
      %v2754 = vpop.f32.mrb[0].mxu0
      %v2755 = vadd.f32 0.0, %v2754
      %v2756 = vpop.f32.mrb[0].mxu0
      %v2757 = vpop.f32.mrb[0].mxu0
      %v2758 = vadd.f32 0.0, %v2757
      %v2759 = vpop.f32.mrb[0].mxu0
      %2760 = vmatprep.mubr.bf16.mxu0 0
      %2761 = vmatmul.mubr.bf16.gmra.mrb[0].mxu0 %v1944
      %v2762 = vpop.f32.mrb[0].mxu0
      %v2763 = vadd.f32 0.0, %v2762
      %v2764 = vpop.f32.mrb[0].mxu0
      %v2765 = vpop.f32.mrb[0].mxu0
      %v2766 = vadd.f32 0.0, %v2765
      %v2767 = vpop.f32.mrb[0].mxu0
      %2768 = vmatprep.mubr.bf16.mxu0 0
      %2769 = vmatmul.mubr.bf16.gmra.mrb[0].mxu0 %v1947
      %v2770 = vpop.f32.mrb[0].mxu0
      %v2771 = vadd.f32 0.0, %v2770
      %v2772 = vpop.f32.mrb[0].mxu0
      %v2773 = vpop.f32.mrb[0].mxu0
      %v2774 = vadd.f32 0.0, %v2773
      %v2775 = vpop.f32.mrb[0].mxu0
      %2776 = vmatprep.mubr.bf16.mxu0 0
      %2777 = vmatmul.mubr.bf16.gmra.mrb[0].mxu0 %v1950
      %v2778 = vpop.f32.mrb[0].mxu0
      %v2779 = vadd.f32 0.0, %v2778
      %v2780 = vpop.f32.mrb[0].mxu0
      %v2781 = vpop.f32.mrb[0].mxu0
      %v2782 = vadd.f32 0.0, %v2781
      %v2783 = vpop.f32.mrb[0].mxu0
      %2784 = vmatprep.mubr.bf16.mxu0 0
      %2785 = vmatmul.mubr.bf16.gmra.mrb[0].mxu0 %v1953
      %v2786 = vpop.f32.mrb[0].mxu0
      %v2787 = vadd.f32 0.0, %v2786
      %v2788 = vpop.f32.mrb[0].mxu0
      %v2789 = vpop.f32.mrb[0].mxu0
      %v2790 = vadd.f32 0.0, %v2789
      %v2791 = vpop.f32.mrb[0].mxu0
      %2792 = vmatprep.mubr.bf16.mxu0 0
      %2793 = vmatmul.mubr.bf16.gmra.mrb[0].mxu0 %v1956
      %v2794 = vpop.f32.mrb[0].mxu0
      %v2795 = vadd.f32 0.0, %v2794
      %v2796 = vpop.f32.mrb[0].mxu0
      %v2797 = vpop.f32.mrb[0].mxu0
      %v2798 = vadd.f32 0.0, %v2797
      %v2799 = vpop.f32.mrb[0].mxu0
      %2800 = vmatprep.mubr.bf16.mxu0 0
      %2801 = vmatmul.mubr.bf16.gmra.mrb[0].mxu0 %v1959
      %v2802 = vpop.f32.mrb[0].mxu0
      %v2803 = vadd.f32 0.0, %v2802
      %v2804 = vpop.f32.mrb[0].mxu0
      %v2805 = vpop.f32.mrb[0].mxu0
      %v2806 = vadd.f32 0.0, %v2805
      %v2807 = vpop.f32.mrb[0].mxu0
      %2808 = vmatprep.mubr.bf16.mxu0 0
      %2809 = vmatmul.mubr.bf16.gmra.mrb[0].mxu0 %v1962
      %v2810 = vpop.f32.mrb[0].mxu0
      %v2811 = vadd.f32 0.0, %v2810
      %v2812 = vpop.f32.mrb[0].mxu0
      %v2813 = vpop.f32.mrb[0].mxu0
      %v2814 = vadd.f32 0.0, %v2813
      %v2815 = vpop.f32.mrb[0].mxu0
      %2816 = vmatprep.mubr.bf16.mxu0 0
      %2817 = vmatmul.mubr.bf16.gmra.mrb[0].mxu0 %v1965
      %v2818 = vpop.f32.mrb[0].mxu0
      %v2819 = vadd.f32 0.0, %v2818
      %v2820 = vpop.f32.mrb[0].mxu0
      %v2821 = vpop.f32.mrb[0].mxu0
      %v2822 = vadd.f32 0.0, %v2821
      %v2823 = vpop.f32.mrb[0].mxu0
      %2824 = vmatprep.mubr.bf16.mxu0 0
      %2825 = vmatmul.mubr.bf16.gmra.mrb[0].mxu0 %v1968
      %v2826 = vpop.f32.mrb[0].mxu0
      %v2827 = vadd.f32 0.0, %v2826
      %v2828 = vpop.f32.mrb[0].mxu0
      %v2829 = vpop.f32.mrb[0].mxu0
      %v2830 = vadd.f32 0.0, %v2829
      %v2831 = vpop.f32.mrb[0].mxu0
      %2832 = vmatprep.mubr.bf16.mxu0 0
      %2833 = vmatmul.mubr.bf16.gmra.mrb[0].mxu0 %v1971
      %v2834 = vpop.f32.mrb[0].mxu0
      %v2835 = vadd.f32 0.0, %v2834
      %v2836 = vpop.f32.mrb[0].mxu0
      %v2837 = vpop.f32.mrb[0].mxu0
      %v2838 = vadd.f32 0.0, %v2837
      %v2839 = vpop.f32.mrb[0].mxu0
      %2840 = vmatprep.mubr.bf16.mxu0 0
      %2841 = vmatmul.mubr.bf16.gmra.mrb[0].mxu0 %v1974
      %v2842 = vpop.f32.mrb[0].mxu0
      %v2843 = vadd.f32 0.0, %v2842
      %v2844 = vpop.f32.mrb[0].mxu0
      %v2845 = vpop.f32.mrb[0].mxu0
      %v2846 = vadd.f32 0.0, %v2845
      %v2847 = vpop.f32.mrb[0].mxu0
      %2848 = vmatprep.mubr.bf16.mxu0 0
      %2849 = vmatmul.mubr.bf16.gmra.mrb[0].mxu0 %v1977
      %v2850 = vpop.f32.mrb[0].mxu0
      %v2851 = vadd.f32 0.0, %v2850
      %v2852 = vpop.f32.mrb[0].mxu0
      %v2853 = vpop.f32.mrb[0].mxu0
      %v2854 = vadd.f32 0.0, %v2853
      %v2855 = vpop.f32.mrb[0].mxu0
      %2856 = vmatprep.mubr.bf16.mxu0 0
      %2857 = vmatmul.mubr.bf16.gmra.mrb[0].mxu0 %v1980
      %v2858 = vpop.f32.mrb[0].mxu0
      %v2859 = vadd.f32 0.0, %v2858
      %v2860 = vpop.f32.mrb[0].mxu0
      %v2861 = vpop.f32.mrb[0].mxu0
      %v2862 = vadd.f32 0.0, %v2861
      %v2863 = vpop.f32.mrb[0].mxu0
      %2864 = vmatprep.mubr.bf16.mxu0 0
      %2865 = vmatmul.mubr.bf16.gmra.mrb[0].mxu0 %v1983
      %v2866 = vpop.f32.mrb[0].mxu0
      %v2867 = vadd.f32 0.0, %v2866
      %v2868 = vpop.f32.mrb[0].mxu0
      %v2869 = vpop.f32.mrb[0].mxu0
      %v2870 = vadd.f32 0.0, %v2869
      %v2871 = vpop.f32.mrb[0].mxu0
      %2872 = vmatprep.mubr.bf16.mxu0 0
      %2873 = vmatmul.mubr.bf16.gmra.mrb[0].mxu0 %v1986
      %v2874 = vpop.f32.mrb[0].mxu0
      %v2875 = vadd.f32 0.0, %v2874
      %v2876 = vpop.f32.mrb[0].mxu0
      %v2877 = vpop.f32.mrb[0].mxu0
      %v2878 = vadd.f32 0.0, %v2877
      %v2879 = vpop.f32.mrb[0].mxu0
      %2880 = vmatprep.mubr.bf16.mxu0 0
      %2881 = vmatmul.mubr.bf16.gmra.mrb[0].mxu0 %v1989
      %v2882 = vpop.f32.mrb[0].mxu0
      %v2883 = vadd.f32 0.0, %v2882
      %v2884 = vpop.f32.mrb[0].mxu0
      %v2885 = vpop.f32.mrb[0].mxu0
      %v2886 = vadd.f32 0.0, %v2885
      %v2887 = vpop.f32.mrb[0].mxu0
      %2888 = vmatprep.mubr.bf16.mxu0 0
      %2889 = vmatmul.mubr.bf16.gmra.mrb[0].mxu0 %v1992
      %v2890 = vpop.f32.mrb[0].mxu0
      %v2891 = vadd.f32 0.0, %v2890
      %v2892 = vpop.f32.mrb[0].mxu0
      %v2893 = vpop.f32.mrb[0].mxu0
      %v2894 = vadd.f32 0.0, %v2893
      %v2895 = vpop.f32.mrb[0].mxu0
      %2896 = vmatprep.mubr.bf16.mxu0 0
      %2897 = vmatmul.mubr.bf16.gmra.mrb[0].mxu0 %v1995
      %v2898 = vpop.f32.mrb[0].mxu0
      %v2899 = vadd.f32 0.0, %v2898
      %v2900 = vpop.f32.mrb[0].mxu0
      %v2901 = vpop.f32.mrb[0].mxu0
      %v2902 = vadd.f32 0.0, %v2901
      %v2903 = vpop.f32.mrb[0].mxu0
      %2904 = vmatprep.mubr.bf16.mxu0 0
      %2905 = vmatmul.mubr.bf16.gmra.mrb[0].mxu0 %v1998
      %v2906 = vpop.f32.mrb[0].mxu0
      %v2907 = vadd.f32 0.0, %v2906
      %v2908 = vpop.f32.mrb[0].mxu0
      %v2909 = vpop.f32.mrb[0].mxu0
      %v2910 = vadd.f32 0.0, %v2909
      %v2911 = vpop.f32.mrb[0].mxu0
      %2912 = vmatprep.mubr.bf16.mxu0 0
      %2913 = vmatmul.mubr.bf16.gmra.mrb[0].mxu0 %v2001
      %v2914 = vpop.f32.mrb[0].mxu0
      %v2915 = vadd.f32 0.0, %v2914
      %v2916 = vpop.f32.mrb[0].mxu0
      %v2917 = vpop.f32.mrb[0].mxu0
      %v2918 = vadd.f32 0.0, %v2917
      %v2919 = vpop.f32.mrb[0].mxu0
      %2920 = vmatprep.mubr.bf16.mxu0 0
      %2921 = vmatmul.mubr.bf16.gmra.mrb[0].mxu0 %v2004
      %v2922 = vpop.f32.mrb[0].mxu0
      %v2923 = vadd.f32 0.0, %v2922
      %v2924 = vpop.f32.mrb[0].mxu0
      %v2925 = vpop.f32.mrb[0].mxu0
      %v2926 = vadd.f32 0.0, %v2925
      %v2927 = vpop.f32.mrb[0].mxu0
      %2928 = vmatprep.mubr.bf16.mxu0 0
      %2929 = vmatmul.mubr.bf16.gmra.mrb[0].mxu0 %v2007
      %v2930 = vpop.f32.mrb[0].mxu0
      %v2931 = vadd.f32 0.0, %v2930
      %v2932 = vpop.f32.mrb[0].mxu0
      %v2933 = vpop.f32.mrb[0].mxu0
      %v2934 = vadd.f32 0.0, %v2933
      %v2935 = vpop.f32.mrb[0].mxu0
      %2936 = vmatprep.mubr.bf16.mxu0 0
      %2937 = vmatmul.mubr.bf16.gmra.mrb[0].mxu0 %v2010
      %v2938 = vpop.f32.mrb[0].mxu0
      %v2939 = vadd.f32 0.0, %v2938
      %v2940 = vpop.f32.mrb[0].mxu0
      %v2941 = vpop.f32.mrb[0].mxu0
      %v2942 = vadd.f32 0.0, %v2941
      %v2943 = vpop.f32.mrb[0].mxu0
      %2944 = vmatprep.mubr.bf16.mxu0 0
      %2945 = vmatmul.mubr.bf16.gmra.mrb[0].mxu0 %v2013
      %v2946 = vpop.f32.mrb[0].mxu0
      %v2947 = vadd.f32 0.0, %v2946
      %v2948 = vpop.f32.mrb[0].mxu0
      %v2949 = vpop.f32.mrb[0].mxu0
      %v2950 = vadd.f32 0.0, %v2949
      %v2951 = vpop.f32.mrb[0].mxu0
      %2952 = vmatprep.mubr.bf16.mxu0 0
      %2953 = vmatmul.mubr.bf16.gmra.mrb[0].mxu0 %v2016
      %v2954 = vpop.f32.mrb[0].mxu0
      %v2955 = vadd.f32 0.0, %v2954
      %v2956 = vpop.f32.mrb[0].mxu0
      %v2957 = vpop.f32.mrb[0].mxu0
      %v2958 = vadd.f32 0.0, %v2957
      %v2959 = vpop.f32.mrb[0].mxu0
      %2960 = vmatprep.mubr.bf16.mxu0 0
      %2961 = vmatmul.mubr.bf16.gmra.mrb[0].mxu0 %v2019
      %v2962 = vpop.f32.mrb[0].mxu0
      %v2963 = vadd.f32 0.0, %v2962
      %v2964 = vpop.f32.mrb[0].mxu0
      %v2965 = vpop.f32.mrb[0].mxu0
      %v2966 = vadd.f32 0.0, %v2965
      %v2967 = vpop.f32.mrb[0].mxu0
      %2968 = vmatprep.mubr.bf16.mxu0 0
      %2969 = vmatmul.mubr.bf16.gmra.mrb[0].mxu0 %v2022
      %v2970 = vpop.f32.mrb[0].mxu0
      %v2971 = vadd.f32 0.0, %v2970
      %v2972 = vpop.f32.mrb[0].mxu0
      %v2973 = vpop.f32.mrb[0].mxu0
      %v2974 = vadd.f32 0.0, %v2973
      %v2975 = vpop.f32.mrb[0].mxu0
      %2976 = vmatprep.mubr.bf16.mxu0 0
      %2977 = vmatmul.mubr.bf16.gmra.mrb[0].mxu0 %v2025
      %v2978 = vpop.f32.mrb[0].mxu0
      %v2979 = vadd.f32 0.0, %v2978
      %v2980 = vpop.f32.mrb[0].mxu0
      %v2981 = vpop.f32.mrb[0].mxu0
      %v2982 = vadd.f32 0.0, %v2981
      %v2983 = vpop.f32.mrb[0].mxu0
      %2984 = vmatprep.mubr.bf16.mxu0 0
      %2985 = vmatmul.mubr.bf16.gmra.mrb[0].mxu0 %v2028
      %v2986 = vpop.f32.mrb[0].mxu0
      %v2987 = vadd.f32 0.0, %v2986
      %v2988 = vpop.f32.mrb[0].mxu0
      %v2989 = vpop.f32.mrb[0].mxu0
      %v2990 = vadd.f32 0.0, %v2989
      %v2991 = vpop.f32.mrb[0].mxu0
      %2992 = vmatprep.mubr.bf16.mxu0 0
      %2993 = vmatmul.mubr.bf16.gmra.mrb[0].mxu0 %v2031
      %v2994 = vpop.f32.mrb[0].mxu0
      %v2995 = vadd.f32 0.0, %v2994
      %v2996 = vpop.f32.mrb[0].mxu0
      %v2997 = vpop.f32.mrb[0].mxu0
      %v2998 = vadd.f32 0.0, %v2997
      %v2999 = vpop.f32.mrb[0].mxu0
      %3000 = vmatprep.mubr.bf16.mxu0 0
      %3001 = vmatmul.mubr.bf16.gmra.mrb[0].mxu0 %v2034
      %v3002 = vpop.f32.mrb[0].mxu0
      %v3003 = vadd.f32 0.0, %v3002
      %v3004 = vpop.f32.mrb[0].mxu0
      %v3005 = vpop.f32.mrb[0].mxu0
      %v3006 = vadd.f32 0.0, %v3005
      %v3007 = vpop.f32.mrb[0].mxu0
      %3008 = vmatprep.mubr.bf16.mxu0 0
      %3009 = vmatmul.mubr.bf16.gmra.mrb[0].mxu0 %v2037
      %v3010 = vpop.f32.mrb[0].mxu0
      %v3011 = vadd.f32 0.0, %v3010
      %v3012 = vpop.f32.mrb[0].mxu0
      %v3013 = vpop.f32.mrb[0].mxu0
      %v3014 = vadd.f32 0.0, %v3013
      %v3015 = vpop.f32.mrb[0].mxu0
      %3016 = vmatprep.mubr.bf16.mxu0 0
      %3017 = vmatmul.mubr.bf16.gmra.mrb[0].mxu0 %v2040
      %v3018 = vpop.f32.mrb[0].mxu0
      %v3019 = vadd.f32 0.0, %v3018
      %v3020 = vpop.f32.mrb[0].mxu0
      %v3021 = vpop.f32.mrb[0].mxu0
      %v3022 = vadd.f32 0.0, %v3021
      %v3023 = vpop.f32.mrb[0].mxu0
      %3024 = vmatprep.mubr.bf16.mxu0 0
      %3025 = vmatmul.mubr.bf16.gmra.mrb[0].mxu0 %v2043
      %v3026 = vpop.f32.mrb[0].mxu0
      %v3027 = vadd.f32 0.0, %v3026
      %v3028 = vpop.f32.mrb[0].mxu0
      %v3029 = vpop.f32.mrb[0].mxu0
      %v3030 = vadd.f32 0.0, %v3029
      %v3031 = vpop.f32.mrb[0].mxu0
      %3032 = vmatprep.mubr.bf16.mxu0 0
      %3033 = vmatmul.mubr.bf16.gmra.mrb[0].mxu0 %v2046
      %v3034 = vpop.f32.mrb[0].mxu0
      %v3035 = vadd.f32 0.0, %v3034
      %v3036 = vpop.f32.mrb[0].mxu0
      %v3037 = vpop.f32.mrb[0].mxu0
      %v3038 = vadd.f32 0.0, %v3037
      %v3039 = vpop.f32.mrb[0].mxu0
      %3040 = vmatprep.mubr.bf16.mxu0 0
      %3041 = vmatmul.mubr.bf16.gmra.mrb[0].mxu0 %v2049
      %v3042 = vpop.f32.mrb[0].mxu0
      %v3043 = vadd.f32 0.0, %v3042
      %v3044 = vpop.f32.mrb[0].mxu0
      %v3045 = vpop.f32.mrb[0].mxu0
      %v3046 = vadd.f32 0.0, %v3045
      %v3047 = vpop.f32.mrb[0].mxu0
      %3048 = vmatprep.mubr.bf16.mxu0 0
      %3049 = vmatmul.mubr.bf16.gmra.mrb[0].mxu0 %v2052
      %v3050 = vpop.f32.mrb[0].mxu0
      %v3051 = vadd.f32 0.0, %v3050
      %v3052 = vpop.f32.mrb[0].mxu0
      %v3053 = vpop.f32.mrb[0].mxu0
      %v3054 = vadd.f32 0.0, %v3053
      %v3055 = vpop.f32.mrb[0].mxu0
      %3056 = vmatprep.mubr.bf16.mxu0 0
      %3057 = vmatmul.mubr.bf16.gmra.mrb[0].mxu0 %v2055
      %v3058 = vpop.f32.mrb[0].mxu0
      %v3059 = vadd.f32 0.0, %v3058
      %v3060 = vpop.f32.mrb[0].mxu0
      %v3061 = vpop.f32.mrb[0].mxu0
      %v3062 = vadd.f32 0.0, %v3061
      %v3063 = vpop.f32.mrb[0].mxu0
      %3064 = vdwg.mxu0
      %v3065 = vadd.f32 %v589, %v2099
      %v3066 = vadd.f32 %v590, %v2102
      %v3067 = vadd.f32 %v591, %v2107
      %v3068 = vadd.f32 %v592, %v2110
      %v3069 = vadd.f32 %v593, %v2115
      %v3070 = vadd.f32 %v594, %v2118
      %v3071 = vadd.f32 %v595, %v2123
      %v3072 = vadd.f32 %v596, %v2126
      %v3073 = vadd.f32 %v597, %v2131
      %v3074 = vadd.f32 %v598, %v2134
      %v3075 = vadd.f32 %v599, %v2139
      %v3076 = vadd.f32 %v600, %v2142
      %v3077 = vadd.f32 %v601, %v2147
      %v3078 = vadd.f32 %v602, %v2150
      %v3079 = vadd.f32 %v603, %v2155
      %v3080 = vadd.f32 %v604, %v2158
      %v3081 = vadd.f32 %v605, %v2163
      %v3082 = vadd.f32 %v606, %v2166
      %v3083 = vadd.f32 %v607, %v2171
      %v3084 = vadd.f32 %v608, %v2174
      %v3085 = vadd.f32 %v609, %v2179
      %v3086 = vadd.f32 %v610, %v2182
      %v3087 = vadd.f32 %v611, %v2187
      %v3088 = vadd.f32 %v612, %v2190
      %v3089 = vadd.f32 %v613, %v2195
      %v3090 = vadd.f32 %v614, %v2198
      %v3091 = vadd.f32 %v615, %v2203
      %v3092 = vadd.f32 %v616, %v2206
      %v3093 = vadd.f32 %v617, %v2211
      %v3094 = vadd.f32 %v618, %v2214
      %v3095 = vadd.f32 %v619, %v2219
      %v3096 = vadd.f32 %v620, %v2222
      %v3097 = vadd.f32 %v621, %v2227
      %v3098 = vadd.f32 %v622, %v2230
      %v3099 = vadd.f32 %v623, %v2235
      %v3100 = vadd.f32 %v624, %v2238
      %v3101 = vadd.f32 %v625, %v2243
      %v3102 = vadd.f32 %v626, %v2246
      %v3103 = vadd.f32 %v627, %v2251
      %v3104 = vadd.f32 %v628, %v2254
      %v3105 = vadd.f32 %v629, %v2259
      %v3106 = vadd.f32 %v630, %v2262
      %v3107 = vadd.f32 %v631, %v2267
      %v3108 = vadd.f32 %v632, %v2270
      %v3109 = vadd.f32 %v633, %v2275
      %v3110 = vadd.f32 %v634, %v2278
      %v3111 = vadd.f32 %v635, %v2283
      %v3112 = vadd.f32 %v636, %v2286
      %v3113 = vadd.f32 %v637, %v2291
      %v3114 = vadd.f32 %v638, %v2294
      %v3115 = vadd.f32 %v639, %v2299
      %v3116 = vadd.f32 %v640, %v2302
      %v3117 = vadd.f32 %v641, %v2307
      %v3118 = vadd.f32 %v642, %v2310
      %v3119 = vadd.f32 %v643, %v2315
      %v3120 = vadd.f32 %v644, %v2318
      %v3121 = vadd.f32 %v645, %v2323
      %v3122 = vadd.f32 %v646, %v2326
      %v3123 = vadd.f32 %v647, %v2331
      %v3124 = vadd.f32 %v648, %v2334
      %v3125 = vadd.f32 %v649, %v2339
      %v3126 = vadd.f32 %v650, %v2342
      %v3127 = vadd.f32 %v651, %v2347
      %v3128 = vadd.f32 %v652, %v2350
      %v3129 = vadd.f32 %v653, %v2355
      %v3130 = vadd.f32 %v654, %v2358
      %v3131 = vadd.f32 %v655, %v2363
      %v3132 = vadd.f32 %v656, %v2366
      %v3133 = vadd.f32 %v657, %v2371
      %v3134 = vadd.f32 %v658, %v2374
      %v3135 = vadd.f32 %v659, %v2379
      %v3136 = vadd.f32 %v660, %v2382
      %v3137 = vadd.f32 %v661, %v2387
      %v3138 = vadd.f32 %v662, %v2390
      %v3139 = vadd.f32 %v663, %v2395
      %v3140 = vadd.f32 %v664, %v2398
      %v3141 = vadd.f32 %v665, %v2403
      %v3142 = vadd.f32 %v666, %v2406
      %v3143 = vadd.f32 %v667, %v2411
      %v3144 = vadd.f32 %v668, %v2414
      %v3145 = vadd.f32 %v669, %v2419
      %v3146 = vadd.f32 %v670, %v2422
      %v3147 = vadd.f32 %v671, %v2427
      %v3148 = vadd.f32 %v672, %v2430
      %v3149 = vadd.f32 %v673, %v2435
      %v3150 = vadd.f32 %v674, %v2438
      %v3151 = vadd.f32 %v675, %v2443
      %v3152 = vadd.f32 %v676, %v2446
      %v3153 = vadd.f32 %v677, %v2451
      %v3154 = vadd.f32 %v678, %v2454
      %v3155 = vadd.f32 %v679, %v2459
      %v3156 = vadd.f32 %v680, %v2462
      %v3157 = vadd.f32 %v681, %v2467
      %v3158 = vadd.f32 %v682, %v2470
      %v3159 = vadd.f32 %v683, %v2475
      %v3160 = vadd.f32 %v684, %v2478
      %v3161 = vadd.f32 %v685, %v2483
      %v3162 = vadd.f32 %v686, %v2486
      %v3163 = vadd.f32 %v687, %v2491
      %v3164 = vadd.f32 %v688, %v2494
      %v3165 = vadd.f32 %v689, %v2499
      %v3166 = vadd.f32 %v690, %v2502
      %v3167 = vadd.f32 %v691, %v2507
      %v3168 = vadd.f32 %v692, %v2510
      %v3169 = vadd.f32 %v693, %v2515
      %v3170 = vadd.f32 %v694, %v2518
      %v3171 = vadd.f32 %v695, %v2523
      %v3172 = vadd.f32 %v696, %v2526
      %v3173 = vadd.f32 %v697, %v2531
      %v3174 = vadd.f32 %v698, %v2534
      %v3175 = vadd.f32 %v699, %v2539
      %v3176 = vadd.f32 %v700, %v2542
      %v3177 = vadd.f32 %v701, %v2547
      %v3178 = vadd.f32 %v702, %v2550
      %v3179 = vadd.f32 %v703, %v2555
      %v3180 = vadd.f32 %v704, %v2558
      %v3181 = vadd.f32 %v705, %v2563
      %v3182 = vadd.f32 %v706, %v2566
      %v3183 = vadd.f32 %v707, %v2571
      %v3184 = vadd.f32 %v708, %v2574
      %v3185 = vadd.f32 %v709, %v2579
      %v3186 = vadd.f32 %v710, %v2582
      %v3187 = vadd.f32 %v711, %v2587
      %v3188 = vadd.f32 %v712, %v2590
      %v3189 = vadd.f32 %v713, %v2595
      %v3190 = vadd.f32 %v714, %v2598
      %v3191 = vadd.f32 %v715, %v2603
      %v3192 = vadd.f32 %v716, %v2606
      %v3193 = vadd.f32 %v717, %v2611
      %v3194 = vadd.f32 %v718, %v2614
      %v3195 = vadd.f32 %v719, %v2619
      %v3196 = vadd.f32 %v720, %v2622
      %v3197 = vadd.f32 %v721, %v2627
      %v3198 = vadd.f32 %v722, %v2630
      %v3199 = vadd.f32 %v723, %v2635
      %v3200 = vadd.f32 %v724, %v2638
      %v3201 = vadd.f32 %v725, %v2643
      %v3202 = vadd.f32 %v726, %v2646
      %v3203 = vadd.f32 %v727, %v2651
      %v3204 = vadd.f32 %v728, %v2654
      %v3205 = vadd.f32 %v729, %v2659
      %v3206 = vadd.f32 %v730, %v2662
      %v3207 = vadd.f32 %v731, %v2667
      %v3208 = vadd.f32 %v732, %v2670
      %v3209 = vadd.f32 %v733, %v2675
      %v3210 = vadd.f32 %v734, %v2678
      %v3211 = vadd.f32 %v735, %v2683
      %v3212 = vadd.f32 %v736, %v2686
      %v3213 = vadd.f32 %v737, %v2691
      %v3214 = vadd.f32 %v738, %v2694
      %v3215 = vadd.f32 %v739, %v2699
      %v3216 = vadd.f32 %v740, %v2702
      %v3217 = vadd.f32 %v741, %v2707
      %v3218 = vadd.f32 %v742, %v2710
      %v3219 = vadd.f32 %v743, %v2715
      %v3220 = vadd.f32 %v744, %v2718
      %v3221 = vadd.f32 %v745, %v2723
      %v3222 = vadd.f32 %v746, %v2726
      %v3223 = vadd.f32 %v747, %v2731
      %v3224 = vadd.f32 %v748, %v2734
      %v3225 = vadd.f32 %v749, %v2739
      %v3226 = vadd.f32 %v750, %v2742
      %v3227 = vadd.f32 %v751, %v2747
      %v3228 = vadd.f32 %v752, %v2750
      %v3229 = vadd.f32 %v753, %v2755
      %v3230 = vadd.f32 %v754, %v2758
      %v3231 = vadd.f32 %v755, %v2763
      %v3232 = vadd.f32 %v756, %v2766
      %v3233 = vadd.f32 %v757, %v2771
      %v3234 = vadd.f32 %v758, %v2774
      %v3235 = vadd.f32 %v759, %v2779
      %v3236 = vadd.f32 %v760, %v2782
      %v3237 = vadd.f32 %v761, %v2787
      %v3238 = vadd.f32 %v762, %v2790
      %v3239 = vadd.f32 %v763, %v2795
      %v3240 = vadd.f32 %v764, %v2798
      %v3241 = vadd.f32 %v765, %v2803
      %v3242 = vadd.f32 %v766, %v2806
      %v3243 = vadd.f32 %v767, %v2811
      %v3244 = vadd.f32 %v768, %v2814
      %v3245 = vadd.f32 %v769, %v2819
      %v3246 = vadd.f32 %v770, %v2822
      %v3247 = vadd.f32 %v771, %v2827
      %v3248 = vadd.f32 %v772, %v2830
      %v3249 = vadd.f32 %v773, %v2835
      %v3250 = vadd.f32 %v774, %v2838
      %v3251 = vadd.f32 %v775, %v2843
      %v3252 = vadd.f32 %v776, %v2846
      %v3253 = vadd.f32 %v777, %v2851
      %v3254 = vadd.f32 %v778, %v2854
      %v3255 = vadd.f32 %v779, %v2859
      %v3256 = vadd.f32 %v780, %v2862
      %v3257 = vadd.f32 %v781, %v2867
      %v3258 = vadd.f32 %v782, %v2870
      %v3259 = vadd.f32 %v783, %v2875
      %v3260 = vadd.f32 %v784, %v2878
      %v3261 = vadd.f32 %v785, %v2883
      %v3262 = vadd.f32 %v786, %v2886
      %v3263 = vadd.f32 %v787, %v2891
      %v3264 = vadd.f32 %v788, %v2894
      %v3265 = vadd.f32 %v789, %v2899
      %v3266 = vadd.f32 %v790, %v2902
      %v3267 = vadd.f32 %v791, %v2907
      %v3268 = vadd.f32 %v792, %v2910
      %v3269 = vadd.f32 %v793, %v2915
      %v3270 = vadd.f32 %v794, %v2918
      %v3271 = vadd.f32 %v795, %v2923
      %v3272 = vadd.f32 %v796, %v2926
      %v3273 = vadd.f32 %v797, %v2931
      %v3274 = vadd.f32 %v798, %v2934
      %v3275 = vadd.f32 %v799, %v2939
      %v3276 = vadd.f32 %v800, %v2942
      %v3277 = vadd.f32 %v801, %v2947
      %v3278 = vadd.f32 %v802, %v2950
      %v3279 = vadd.f32 %v803, %v2955
      %v3280 = vadd.f32 %v804, %v2958
      %v3281 = vadd.f32 %v805, %v2963
      %v3282 = vadd.f32 %v806, %v2966
      %v3283 = vadd.f32 %v807, %v2971
      %v3284 = vadd.f32 %v808, %v2974
      %v3285 = vadd.f32 %v809, %v2979
      %v3286 = vadd.f32 %v810, %v2982
      %v3287 = vadd.f32 %v811, %v2987
      %v3288 = vadd.f32 %v812, %v2990
      %v3289 = vadd.f32 %v813, %v2995
      %v3290 = vadd.f32 %v814, %v2998
      %v3291 = vadd.f32 %v815, %v3003
      %v3292 = vadd.f32 %v816, %v3006
      %v3293 = vadd.f32 %v817, %v3011
      %v3294 = vadd.f32 %v818, %v3014
      %v3295 = vadd.f32 %v819, %v3019
      %v3296 = vadd.f32 %v820, %v3022
      %v3297 = vadd.f32 %v821, %v3027
      %v3298 = vadd.f32 %v822, %v3030
      %v3299 = vadd.f32 %v823, %v3035
      %v3300 = vadd.f32 %v824, %v3038
      %v3301 = vadd.f32 %v825, %v3043
      %v3302 = vadd.f32 %v826, %v3046
      %v3303 = vadd.f32 %v827, %v3051
      %v3304 = vadd.f32 %v828, %v3054
      %v3305 = vadd.f32 %v829, %v3059
      %v3306 = vadd.f32 %v830, %v3062
      %vm3307 = vcmask 523264
      %3308 = vst.msk [vmem:[#allocation2] sm:$0xff] %vm3307, %v3065
      %3309 = vst.msk [vmem:[#allocation2 + $0x8] sm:$0xff] %vm3307, %v3066
      %3310 = vst.msk [vmem:[#allocation2 + $0x10] sm:$0xff] %vm3307, %v3067
      %3311 = vst.msk [vmem:[#allocation2 + $0x18] sm:$0xff] %vm3307, %v3068
      %3312 = vst.msk [vmem:[#allocation2 + $0x20] sm:$0xff] %vm3307, %v3069
      %3313 = vst.msk [vmem:[#allocation2 + $0x28] sm:$0xff] %vm3307, %v3070
      %3314 = vst.msk [vmem:[#allocation2 + $0x30] sm:$0xff] %vm3307, %v3071
      %3315 = vst.msk [vmem:[#allocation2 + $0x38] sm:$0xff] %vm3307, %v3072
      %3316 = vst.msk [vmem:[#allocation2 + $0x40] sm:$0xff] %vm3307, %v3073
      %3317 = vst.msk [vmem:[#allocation2 + $0x48] sm:$0xff] %vm3307, %v3074
      %3318 = vst.msk [vmem:[#allocation2 + $0x50] sm:$0xff] %vm3307, %v3075
      %3319 = vst.msk [vmem:[#allocation2 + $0x58] sm:$0xff] %vm3307, %v3076
      %3320 = vst.msk [vmem:[#allocation2 + $0x60] sm:$0xff] %vm3307, %v3077
      %3321 = vst.msk [vmem:[#allocation2 + $0x68] sm:$0xff] %vm3307, %v3078
      %3322 = vst.msk [vmem:[#allocation2 + $0x70] sm:$0xff] %vm3307, %v3079
      %3323 = vst.msk [vmem:[#allocation2 + $0x78] sm:$0xff] %vm3307, %v3080
      %3324 = vst.msk [vmem:[#allocation2 + $0x80] sm:$0xff] %vm3307, %v3081
      %3325 = vst.msk [vmem:[#allocation2 + $0x88] sm:$0xff] %vm3307, %v3082
      %3326 = vst.msk [vmem:[#allocation2 + $0x90] sm:$0xff] %vm3307, %v3083
      %3327 = vst.msk [vmem:[#allocation2 + $0x98] sm:$0xff] %vm3307, %v3084
      %3328 = vst.msk [vmem:[#allocation2 + $0xa0] sm:$0xff] %vm3307, %v3085
      %3329 = vst.msk [vmem:[#allocation2 + $0xa8] sm:$0xff] %vm3307, %v3086
      %3330 = vst.msk [vmem:[#allocation2 + $0xb0] sm:$0xff] %vm3307, %v3087
      %3331 = vst.msk [vmem:[#allocation2 + $0xb8] sm:$0xff] %vm3307, %v3088
      %3332 = vst.msk [vmem:[#allocation2 + $0xc0] sm:$0xff] %vm3307, %v3089
      %3333 = vst.msk [vmem:[#allocation2 + $0xc8] sm:$0xff] %vm3307, %v3090
      %3334 = vst.msk [vmem:[#allocation2 + $0xd0] sm:$0xff] %vm3307, %v3091
      %3335 = vst.msk [vmem:[#allocation2 + $0xd8] sm:$0xff] %vm3307, %v3092
      %3336 = vst.msk [vmem:[#allocation2 + $0xe0] sm:$0xff] %vm3307, %v3093
      %3337 = vst.msk [vmem:[#allocation2 + $0xe8] sm:$0xff] %vm3307, %v3094
      %3338 = vst.msk [vmem:[#allocation2 + $0xf0] sm:$0xff] %vm3307, %v3095
      %3339 = vst.msk [vmem:[#allocation2 + $0xf8] sm:$0xff] %vm3307, %v3096
      %3340 = vst.msk [vmem:[#allocation2 + $0x100] sm:$0xff] %vm3307, %v3097
      %3341 = vst.msk [vmem:[#allocation2 + $0x108] sm:$0xff] %vm3307, %v3098
      %3342 = vst.msk [vmem:[#allocation2 + $0x110] sm:$0xff] %vm3307, %v3099
      %3343 = vst.msk [vmem:[#allocation2 + $0x118] sm:$0xff] %vm3307, %v3100
      %3344 = vst.msk [vmem:[#allocation2 + $0x120] sm:$0xff] %vm3307, %v3101
      %3345 = vst.msk [vmem:[#allocation2 + $0x128] sm:$0xff] %vm3307, %v3102
      %3346 = vst.msk [vmem:[#allocation2 + $0x130] sm:$0xff] %vm3307, %v3103
      %3347 = vst.msk [vmem:[#allocation2 + $0x138] sm:$0xff] %vm3307, %v3104
      %3348 = vst.msk [vmem:[#allocation2 + $0x140] sm:$0xff] %vm3307, %v3105
      %3349 = vst.msk [vmem:[#allocation2 + $0x148] sm:$0xff] %vm3307, %v3106
      %3350 = vst.msk [vmem:[#allocation2 + $0x150] sm:$0xff] %vm3307, %v3107
      %3351 = vst.msk [vmem:[#allocation2 + $0x158] sm:$0xff] %vm3307, %v3108
      %3352 = vst.msk [vmem:[#allocation2 + $0x160] sm:$0xff] %vm3307, %v3109
      %3353 = vst.msk [vmem:[#allocation2 + $0x168] sm:$0xff] %vm3307, %v3110
      %3354 = vst.msk [vmem:[#allocation2 + $0x170] sm:$0xff] %vm3307, %v3111
      %3355 = vst.msk [vmem:[#allocation2 + $0x178] sm:$0xff] %vm3307, %v3112
      %3356 = vst.msk [vmem:[#allocation2 + $0x180] sm:$0xff] %vm3307, %v3113
      %3357 = vst.msk [vmem:[#allocation2 + $0x188] sm:$0xff] %vm3307, %v3114
      %3358 = vst.msk [vmem:[#allocation2 + $0x190] sm:$0xff] %vm3307, %v3115
      %3359 = vst.msk [vmem:[#allocation2 + $0x198] sm:$0xff] %vm3307, %v3116
      %3360 = vst.msk [vmem:[#allocation2 + $0x1a0] sm:$0xff] %vm3307, %v3117
      %3361 = vst.msk [vmem:[#allocation2 + $0x1a8] sm:$0xff] %vm3307, %v3118
      %3362 = vst.msk [vmem:[#allocation2 + $0x1b0] sm:$0xff] %vm3307, %v3119
      %3363 = vst.msk [vmem:[#allocation2 + $0x1b8] sm:$0xff] %vm3307, %v3120
      %3364 = vst.msk [vmem:[#allocation2 + $0x1c0] sm:$0xff] %vm3307, %v3121
      %3365 = vst.msk [vmem:[#allocation2 + $0x1c8] sm:$0xff] %vm3307, %v3122
      %3366 = vst.msk [vmem:[#allocation2 + $0x1d0] sm:$0xff] %vm3307, %v3123
      %3367 = vst.msk [vmem:[#allocation2 + $0x1d8] sm:$0xff] %vm3307, %v3124
      %3368 = vst.msk [vmem:[#allocation2 + $0x1e0] sm:$0xff] %vm3307, %v3125
      %3369 = vst.msk [vmem:[#allocation2 + $0x1e8] sm:$0xff] %vm3307, %v3126
      %3370 = vst.msk [vmem:[#allocation2 + $0x1f0] sm:$0xff] %vm3307, %v3127
      %3371 = vst.msk [vmem:[#allocation2 + $0x1f8] sm:$0xff] %vm3307, %v3128
      %3372 = vst.msk [vmem:[#allocation2 + $0x200] sm:$0xff] %vm3307, %v3129
      %3373 = vst.msk [vmem:[#allocation2 + $0x208] sm:$0xff] %vm3307, %v3130
      %3374 = vst.msk [vmem:[#allocation2 + $0x210] sm:$0xff] %vm3307, %v3131
      %3375 = vst.msk [vmem:[#allocation2 + $0x218] sm:$0xff] %vm3307, %v3132
      %3376 = vst.msk [vmem:[#allocation2 + $0x220] sm:$0xff] %vm3307, %v3133
      %3377 = vst.msk [vmem:[#allocation2 + $0x228] sm:$0xff] %vm3307, %v3134
      %3378 = vst.msk [vmem:[#allocation2 + $0x230] sm:$0xff] %vm3307, %v3135
      %3379 = vst.msk [vmem:[#allocation2 + $0x238] sm:$0xff] %vm3307, %v3136
      %3380 = vst.msk [vmem:[#allocation2 + $0x240] sm:$0xff] %vm3307, %v3137
      %3381 = vst.msk [vmem:[#allocation2 + $0x248] sm:$0xff] %vm3307, %v3138
      %3382 = vst.msk [vmem:[#allocation2 + $0x250] sm:$0xff] %vm3307, %v3139
      %3383 = vst.msk [vmem:[#allocation2 + $0x258] sm:$0xff] %vm3307, %v3140
      %3384 = vst.msk [vmem:[#allocation2 + $0x260] sm:$0xff] %vm3307, %v3141
      %3385 = vst.msk [vmem:[#allocation2 + $0x268] sm:$0xff] %vm3307, %v3142
      %3386 = vst.msk [vmem:[#allocation2 + $0x270] sm:$0xff] %vm3307, %v3143
      %3387 = vst.msk [vmem:[#allocation2 + $0x278] sm:$0xff] %vm3307, %v3144
      %3388 = vst.msk [vmem:[#allocation2 + $0x280] sm:$0xff] %vm3307, %v3145
      %3389 = vst.msk [vmem:[#allocation2 + $0x288] sm:$0xff] %vm3307, %v3146
      %3390 = vst.msk [vmem:[#allocation2 + $0x290] sm:$0xff] %vm3307, %v3147
      %3391 = vst.msk [vmem:[#allocation2 + $0x298] sm:$0xff] %vm3307, %v3148
      %3392 = vst.msk [vmem:[#allocation2 + $0x2a0] sm:$0xff] %vm3307, %v3149
      %3393 = vst.msk [vmem:[#allocation2 + $0x2a8] sm:$0xff] %vm3307, %v3150
      %3394 = vst.msk [vmem:[#allocation2 + $0x2b0] sm:$0xff] %vm3307, %v3151
      %3395 = vst.msk [vmem:[#allocation2 + $0x2b8] sm:$0xff] %vm3307, %v3152
      %3396 = vst.msk [vmem:[#allocation2 + $0x2c0] sm:$0xff] %vm3307, %v3153
      %3397 = vst.msk [vmem:[#allocation2 + $0x2c8] sm:$0xff] %vm3307, %v3154
      %3398 = vst.msk [vmem:[#allocation2 + $0x2d0] sm:$0xff] %vm3307, %v3155
      %3399 = vst.msk [vmem:[#allocation2 + $0x2d8] sm:$0xff] %vm3307, %v3156
      %3400 = vst.msk [vmem:[#allocation2 + $0x2e0] sm:$0xff] %vm3307, %v3157
      %3401 = vst.msk [vmem:[#allocation2 + $0x2e8] sm:$0xff] %vm3307, %v3158
      %3402 = vst.msk [vmem:[#allocation2 + $0x2f0] sm:$0xff] %vm3307, %v3159
      %3403 = vst.msk [vmem:[#allocation2 + $0x2f8] sm:$0xff] %vm3307, %v3160
      %3404 = vst.msk [vmem:[#allocation2 + $0x300] sm:$0xff] %vm3307, %v3161
      %3405 = vst.msk [vmem:[#allocation2 + $0x308] sm:$0xff] %vm3307, %v3162
      %3406 = vst.msk [vmem:[#allocation2 + $0x310] sm:$0xff] %vm3307, %v3163
      %3407 = vst.msk [vmem:[#allocation2 + $0x318] sm:$0xff] %vm3307, %v3164
      %3408 = vst.msk [vmem:[#allocation2 + $0x320] sm:$0xff] %vm3307, %v3165
      %3409 = vst.msk [vmem:[#allocation2 + $0x328] sm:$0xff] %vm3307, %v3166
      %3410 = vst.msk [vmem:[#allocation2 + $0x330] sm:$0xff] %vm3307, %v3167
      %3411 = vst.msk [vmem:[#allocation2 + $0x338] sm:$0xff] %vm3307, %v3168
      %3412 = vst.msk [vmem:[#allocation2 + $0x340] sm:$0xff] %vm3307, %v3169
      %3413 = vst.msk [vmem:[#allocation2 + $0x348] sm:$0xff] %vm3307, %v3170
      %3414 = vst.msk [vmem:[#allocation2 + $0x350] sm:$0xff] %vm3307, %v3171
      %3415 = vst.msk [vmem:[#allocation2 + $0x358] sm:$0xff] %vm3307, %v3172
      %3416 = vst.msk [vmem:[#allocation2 + $0x360] sm:$0xff] %vm3307, %v3173
      %3417 = vst.msk [vmem:[#allocation2 + $0x368] sm:$0xff] %vm3307, %v3174
      %3418 = vst.msk [vmem:[#allocation2 + $0x370] sm:$0xff] %vm3307, %v3175
      %3419 = vst.msk [vmem:[#allocation2 + $0x378] sm:$0xff] %vm3307, %v3176
      %3420 = vst.msk [vmem:[#allocation2 + $0x380] sm:$0xff] %vm3307, %v3177
      %3421 = vst.msk [vmem:[#allocation2 + $0x388] sm:$0xff] %vm3307, %v3178
      %3422 = vst.msk [vmem:[#allocation2 + $0x390] sm:$0xff] %vm3307, %v3179
      %3423 = vst.msk [vmem:[#allocation2 + $0x398] sm:$0xff] %vm3307, %v3180
      %3424 = vst.msk [vmem:[#allocation2 + $0x3a0] sm:$0xff] %vm3307, %v3181
      %3425 = vst.msk [vmem:[#allocation2 + $0x3a8] sm:$0xff] %vm3307, %v3182
      %3426 = vst.msk [vmem:[#allocation2 + $0x3b0] sm:$0xff] %vm3307, %v3183
      %3427 = vst.msk [vmem:[#allocation2 + $0x3b8] sm:$0xff] %vm3307, %v3184
      %3428 = vst.msk [vmem:[#allocation2 + $0x3c0] sm:$0xff] %vm3307, %v3185
      %3429 = vst.msk [vmem:[#allocation2 + $0x3c8] sm:$0xff] %vm3307, %v3186
      %3430 = vst.msk [vmem:[#allocation2 + $0x3d0] sm:$0xff] %vm3307, %v3187
      %3431 = vst.msk [vmem:[#allocation2 + $0x3d8] sm:$0xff] %vm3307, %v3188
      %3432 = vst.msk [vmem:[#allocation2 + $0x3e0] sm:$0xff] %vm3307, %v3189
      %3433 = vst.msk [vmem:[#allocation2 + $0x3e8] sm:$0xff] %vm3307, %v3190
      %3434 = vst.msk [vmem:[#allocation2 + $0x3f0] sm:$0xff] %vm3307, %v3191
      %3435 = vst.msk [vmem:[#allocation2 + $0x3f8] sm:$0xff] %vm3307, %v3192
      %3436 = vst.msk [vmem:[#allocation2 + $0x400] sm:$0xff] %vm3307, %v3193
      %3437 = vst.msk [vmem:[#allocation2 + $0x408] sm:$0xff] %vm3307, %v3194
      %3438 = vst.msk [vmem:[#allocation2 + $0x410] sm:$0xff] %vm3307, %v3195
      %3439 = vst.msk [vmem:[#allocation2 + $0x418] sm:$0xff] %vm3307, %v3196
      %3440 = vst.msk [vmem:[#allocation2 + $0x420] sm:$0xff] %vm3307, %v3197
      %3441 = vst.msk [vmem:[#allocation2 + $0x428] sm:$0xff] %vm3307, %v3198
      %3442 = vst.msk [vmem:[#allocation2 + $0x430] sm:$0xff] %vm3307, %v3199
      %3443 = vst.msk [vmem:[#allocation2 + $0x438] sm:$0xff] %vm3307, %v3200
      %3444 = vst.msk [vmem:[#allocation2 + $0x440] sm:$0xff] %vm3307, %v3201
      %3445 = vst.msk [vmem:[#allocation2 + $0x448] sm:$0xff] %vm3307, %v3202
      %3446 = vst.msk [vmem:[#allocation2 + $0x450] sm:$0xff] %vm3307, %v3203
      %3447 = vst.msk [vmem:[#allocation2 + $0x458] sm:$0xff] %vm3307, %v3204
      %3448 = vst.msk [vmem:[#allocation2 + $0x460] sm:$0xff] %vm3307, %v3205
      %3449 = vst.msk [vmem:[#allocation2 + $0x468] sm:$0xff] %vm3307, %v3206
      %3450 = vst.msk [vmem:[#allocation2 + $0x470] sm:$0xff] %vm3307, %v3207
      %3451 = vst.msk [vmem:[#allocation2 + $0x478] sm:$0xff] %vm3307, %v3208
      %3452 = vst.msk [vmem:[#allocation2 + $0x480] sm:$0xff] %vm3307, %v3209
      %3453 = vst.msk [vmem:[#allocation2 + $0x488] sm:$0xff] %vm3307, %v3210
      %3454 = vst.msk [vmem:[#allocation2 + $0x490] sm:$0xff] %vm3307, %v3211
      %3455 = vst.msk [vmem:[#allocation2 + $0x498] sm:$0xff] %vm3307, %v3212
      %3456 = vst.msk [vmem:[#allocation2 + $0x4a0] sm:$0xff] %vm3307, %v3213
      %3457 = vst.msk [vmem:[#allocation2 + $0x4a8] sm:$0xff] %vm3307, %v3214
      %3458 = vst.msk [vmem:[#allocation2 + $0x4b0] sm:$0xff] %vm3307, %v3215
      %3459 = vst.msk [vmem:[#allocation2 + $0x4b8] sm:$0xff] %vm3307, %v3216
      %3460 = vst.msk [vmem:[#allocation2 + $0x4c0] sm:$0xff] %vm3307, %v3217
      %3461 = vst.msk [vmem:[#allocation2 + $0x4c8] sm:$0xff] %vm3307, %v3218
      %3462 = vst.msk [vmem:[#allocation2 + $0x4d0] sm:$0xff] %vm3307, %v3219
      %3463 = vst.msk [vmem:[#allocation2 + $0x4d8] sm:$0xff] %vm3307, %v3220
      %3464 = vst.msk [vmem:[#allocation2 + $0x4e0] sm:$0xff] %vm3307, %v3221
      %3465 = vst.msk [vmem:[#allocation2 + $0x4e8] sm:$0xff] %vm3307, %v3222
      %3466 = vst.msk [vmem:[#allocation2 + $0x4f0] sm:$0xff] %vm3307, %v3223
      %3467 = vst.msk [vmem:[#allocation2 + $0x4f8] sm:$0xff] %vm3307, %v3224
      %3468 = vst.msk [vmem:[#allocation2 + $0x500] sm:$0xff] %vm3307, %v3225
      %3469 = vst.msk [vmem:[#allocation2 + $0x508] sm:$0xff] %vm3307, %v3226
      %3470 = vst.msk [vmem:[#allocation2 + $0x510] sm:$0xff] %vm3307, %v3227
      %3471 = vst.msk [vmem:[#allocation2 + $0x518] sm:$0xff] %vm3307, %v3228
      %3472 = vst.msk [vmem:[#allocation2 + $0x520] sm:$0xff] %vm3307, %v3229
      %3473 = vst.msk [vmem:[#allocation2 + $0x528] sm:$0xff] %vm3307, %v3230
      %3474 = vst.msk [vmem:[#allocation2 + $0x530] sm:$0xff] %vm3307, %v3231
      %3475 = vst.msk [vmem:[#allocation2 + $0x538] sm:$0xff] %vm3307, %v3232
      %3476 = vst.msk [vmem:[#allocation2 + $0x540] sm:$0xff] %vm3307, %v3233
      %3477 = vst.msk [vmem:[#allocation2 + $0x548] sm:$0xff] %vm3307, %v3234
      %3478 = vst.msk [vmem:[#allocation2 + $0x550] sm:$0xff] %vm3307, %v3235
      %3479 = vst.msk [vmem:[#allocation2 + $0x558] sm:$0xff] %vm3307, %v3236
      %3480 = vst.msk [vmem:[#allocation2 + $0x560] sm:$0xff] %vm3307, %v3237
      %3481 = vst.msk [vmem:[#allocation2 + $0x568] sm:$0xff] %vm3307, %v3238
      %3482 = vst.msk [vmem:[#allocation2 + $0x570] sm:$0xff] %vm3307, %v3239
      %3483 = vst.msk [vmem:[#allocation2 + $0x578] sm:$0xff] %vm3307, %v3240
      %3484 = vst.msk [vmem:[#allocation2 + $0x580] sm:$0xff] %vm3307, %v3241
      %3485 = vst.msk [vmem:[#allocation2 + $0x588] sm:$0xff] %vm3307, %v3242
      %3486 = vst.msk [vmem:[#allocation2 + $0x590] sm:$0xff] %vm3307, %v3243
      %3487 = vst.msk [vmem:[#allocation2 + $0x598] sm:$0xff] %vm3307, %v3244
      %3488 = vst.msk [vmem:[#allocation2 + $0x5a0] sm:$0xff] %vm3307, %v3245
      %3489 = vst.msk [vmem:[#allocation2 + $0x5a8] sm:$0xff] %vm3307, %v3246
      %3490 = vst.msk [vmem:[#allocation2 + $0x5b0] sm:$0xff] %vm3307, %v3247
      %3491 = vst.msk [vmem:[#allocation2 + $0x5b8] sm:$0xff] %vm3307, %v3248
      %3492 = vst.msk [vmem:[#allocation2 + $0x5c0] sm:$0xff] %vm3307, %v3249
      %3493 = vst.msk [vmem:[#allocation2 + $0x5c8] sm:$0xff] %vm3307, %v3250
      %3494 = vst.msk [vmem:[#allocation2 + $0x5d0] sm:$0xff] %vm3307, %v3251
      %3495 = vst.msk [vmem:[#allocation2 + $0x5d8] sm:$0xff] %vm3307, %v3252
      %3496 = vst.msk [vmem:[#allocation2 + $0x5e0] sm:$0xff] %vm3307, %v3253
      %3497 = vst.msk [vmem:[#allocation2 + $0x5e8] sm:$0xff] %vm3307, %v3254
      %3498 = vst.msk [vmem:[#allocation2 + $0x5f0] sm:$0xff] %vm3307, %v3255
      %3499 = vst.msk [vmem:[#allocation2 + $0x5f8] sm:$0xff] %vm3307, %v3256
      %3500 = vst.msk [vmem:[#allocation2 + $0x600] sm:$0xff] %vm3307, %v3257
      %3501 = vst.msk [vmem:[#allocation2 + $0x608] sm:$0xff] %vm3307, %v3258
      %3502 = vst.msk [vmem:[#allocation2 + $0x610] sm:$0xff] %vm3307, %v3259
      %3503 = vst.msk [vmem:[#allocation2 + $0x618] sm:$0xff] %vm3307, %v3260
      %3504 = vst.msk [vmem:[#allocation2 + $0x620] sm:$0xff] %vm3307, %v3261
      %3505 = vst.msk [vmem:[#allocation2 + $0x628] sm:$0xff] %vm3307, %v3262
      %3506 = vst.msk [vmem:[#allocation2 + $0x630] sm:$0xff] %vm3307, %v3263
      %3507 = vst.msk [vmem:[#allocation2 + $0x638] sm:$0xff] %vm3307, %v3264
      %3508 = vst.msk [vmem:[#allocation2 + $0x640] sm:$0xff] %vm3307, %v3265
      %3509 = vst.msk [vmem:[#allocation2 + $0x648] sm:$0xff] %vm3307, %v3266
      %3510 = vst.msk [vmem:[#allocation2 + $0x650] sm:$0xff] %vm3307, %v3267
      %3511 = vst.msk [vmem:[#allocation2 + $0x658] sm:$0xff] %vm3307, %v3268
      %3512 = vst.msk [vmem:[#allocation2 + $0x660] sm:$0xff] %vm3307, %v3269
      %3513 = vst.msk [vmem:[#allocation2 + $0x668] sm:$0xff] %vm3307, %v3270
      %3514 = vst.msk [vmem:[#allocation2 + $0x670] sm:$0xff] %vm3307, %v3271
      %3515 = vst.msk [vmem:[#allocation2 + $0x678] sm:$0xff] %vm3307, %v3272
      %3516 = vst.msk [vmem:[#allocation2 + $0x680] sm:$0xff] %vm3307, %v3273
      %3517 = vst.msk [vmem:[#allocation2 + $0x688] sm:$0xff] %vm3307, %v3274
      %3518 = vst.msk [vmem:[#allocation2 + $0x690] sm:$0xff] %vm3307, %v3275
      %3519 = vst.msk [vmem:[#allocation2 + $0x698] sm:$0xff] %vm3307, %v3276
      %3520 = vst.msk [vmem:[#allocation2 + $0x6a0] sm:$0xff] %vm3307, %v3277
      %3521 = vst.msk [vmem:[#allocation2 + $0x6a8] sm:$0xff] %vm3307, %v3278
      %3522 = vst.msk [vmem:[#allocation2 + $0x6b0] sm:$0xff] %vm3307, %v3279
      %3523 = vst.msk [vmem:[#allocation2 + $0x6b8] sm:$0xff] %vm3307, %v3280
      %3524 = vst.msk [vmem:[#allocation2 + $0x6c0] sm:$0xff] %vm3307, %v3281
      %3525 = vst.msk [vmem:[#allocation2 + $0x6c8] sm:$0xff] %vm3307, %v3282
      %3526 = vst.msk [vmem:[#allocation2 + $0x6d0] sm:$0xff] %vm3307, %v3283
      %3527 = vst.msk [vmem:[#allocation2 + $0x6d8] sm:$0xff] %vm3307, %v3284
      %3528 = vst.msk [vmem:[#allocation2 + $0x6e0] sm:$0xff] %vm3307, %v3285
      %3529 = vst.msk [vmem:[#allocation2 + $0x6e8] sm:$0xff] %vm3307, %v3286
      %3530 = vst.msk [vmem:[#allocation2 + $0x6f0] sm:$0xff] %vm3307, %v3287
      %3531 = vst.msk [vmem:[#allocation2 + $0x6f8] sm:$0xff] %vm3307, %v3288
      %3532 = vst.msk [vmem:[#allocation2 + $0x700] sm:$0xff] %vm3307, %v3289
      %3533 = vst.msk [vmem:[#allocation2 + $0x708] sm:$0xff] %vm3307, %v3290
      %3534 = vst.msk [vmem:[#allocation2 + $0x710] sm:$0xff] %vm3307, %v3291
      %3535 = vst.msk [vmem:[#allocation2 + $0x718] sm:$0xff] %vm3307, %v3292
      %3536 = vst.msk [vmem:[#allocation2 + $0x720] sm:$0xff] %vm3307, %v3293
      %3537 = vst.msk [vmem:[#allocation2 + $0x728] sm:$0xff] %vm3307, %v3294
      %3538 = vst.msk [vmem:[#allocation2 + $0x730] sm:$0xff] %vm3307, %v3295
      %3539 = vst.msk [vmem:[#allocation2 + $0x738] sm:$0xff] %vm3307, %v3296
      %3540 = vst.msk [vmem:[#allocation2 + $0x740] sm:$0xff] %vm3307, %v3297
      %3541 = vst.msk [vmem:[#allocation2 + $0x748] sm:$0xff] %vm3307, %v3298
      %3542 = vst.msk [vmem:[#allocation2 + $0x750] sm:$0xff] %vm3307, %v3299
      %3543 = vst.msk [vmem:[#allocation2 + $0x758] sm:$0xff] %vm3307, %v3300
      %3544 = vst.msk [vmem:[#allocation2 + $0x760] sm:$0xff] %vm3307, %v3301
      %3545 = vst.msk [vmem:[#allocation2 + $0x768] sm:$0xff] %vm3307, %v3302
      %3546 = vst.msk [vmem:[#allocation2 + $0x770] sm:$0xff] %vm3307, %v3303
      %3547 = vst.msk [vmem:[#allocation2 + $0x778] sm:$0xff] %vm3307, %v3304
      %3548 = vst.msk [vmem:[#allocation2 + $0x780] sm:$0xff] %vm3307, %v3305
      %3549 = vst.msk [vmem:[#allocation2 + $0x788] sm:$0xff] %vm3307, %v3306
      // Predicated region
      $region45: #{_stem_fn.1} parent=39 // pred_check
        %p3550 = pneg %p342
      $region46: #{_stem_fn.1} parent=39 // pred_check_branch
        %3552 = sbr.rel (%p3550) target = $region48
      $region47: #{_stem_fn.1} parent=39 // pred_region
        %v3553 = vld [vmem:[#allocation2] sm:$0xff]
        %v3554 = vld [vmem:[#allocation2 + $0x8] sm:$0xff]
        %v3555 = vld [vmem:[#allocation2 + $0x10] sm:$0xff]
        %v3556 = vld [vmem:[#allocation2 + $0x18] sm:$0xff]
        %v3557 = vld [vmem:[#allocation2 + $0x20] sm:$0xff]
        %v3558 = vld [vmem:[#allocation2 + $0x28] sm:$0xff]
        %v3559 = vld [vmem:[#allocation2 + $0x30] sm:$0xff]
        %v3560 = vld [vmem:[#allocation2 + $0x38] sm:$0xff]
        %v3561 = vld [vmem:[#allocation2 + $0x40] sm:$0xff]
        %v3562 = vld [vmem:[#allocation2 + $0x48] sm:$0xff]
        %v3563 = vld [vmem:[#allocation2 + $0x50] sm:$0xff]
        %v3564 = vld [vmem:[#allocation2 + $0x58] sm:$0xff]
        %v3565 = vld [vmem:[#allocation2 + $0x60] sm:$0xff]
        %v3566 = vld [vmem:[#allocation2 + $0x68] sm:$0xff]
        %v3567 = vld [vmem:[#allocation2 + $0x70] sm:$0xff]
        %v3568 = vld [vmem:[#allocation2 + $0x78] sm:$0xff]
        %v3569 = vld [vmem:[#allocation2 + $0x80] sm:$0xff]
        %v3570 = vld [vmem:[#allocation2 + $0x88] sm:$0xff]
        %v3571 = vld [vmem:[#allocation2 + $0x90] sm:$0xff]
        %v3572 = vld [vmem:[#allocation2 + $0x98] sm:$0xff]
        %v3573 = vld [vmem:[#allocation2 + $0xa0] sm:$0xff]
        %v3574 = vld [vmem:[#allocation2 + $0xa8] sm:$0xff]
        %v3575 = vld [vmem:[#allocation2 + $0xb0] sm:$0xff]
        %v3576 = vld [vmem:[#allocation2 + $0xb8] sm:$0xff]
        %v3577 = vld [vmem:[#allocation2 + $0xc0] sm:$0xff]
        %v3578 = vld [vmem:[#allocation2 + $0xc8] sm:$0xff]
        %v3579 = vld [vmem:[#allocation2 + $0xd0] sm:$0xff]
        %v3580 = vld [vmem:[#allocation2 + $0xd8] sm:$0xff]
        %v3581 = vld [vmem:[#allocation2 + $0xe0] sm:$0xff]
        %v3582 = vld [vmem:[#allocation2 + $0xe8] sm:$0xff]
        %v3583 = vld [vmem:[#allocation2 + $0xf0] sm:$0xff]
        %v3584 = vld [vmem:[#allocation2 + $0xf8] sm:$0xff]
        %v3585 = vld [vmem:[#allocation2 + $0x100] sm:$0xff]
        %v3586 = vld [vmem:[#allocation2 + $0x108] sm:$0xff]
        %v3587 = vld [vmem:[#allocation2 + $0x110] sm:$0xff]
        %v3588 = vld [vmem:[#allocation2 + $0x118] sm:$0xff]
        %v3589 = vld [vmem:[#allocation2 + $0x120] sm:$0xff]
        %v3590 = vld [vmem:[#allocation2 + $0x128] sm:$0xff]
        %v3591 = vld [vmem:[#allocation2 + $0x130] sm:$0xff]
        %v3592 = vld [vmem:[#allocation2 + $0x138] sm:$0xff]
        %v3593 = vld [vmem:[#allocation2 + $0x140] sm:$0xff]
        %v3594 = vld [vmem:[#allocation2 + $0x148] sm:$0xff]
        %v3595 = vld [vmem:[#allocation2 + $0x150] sm:$0xff]
        %v3596 = vld [vmem:[#allocation2 + $0x158] sm:$0xff]
        %v3597 = vld [vmem:[#allocation2 + $0x160] sm:$0xff]
        %v3598 = vld [vmem:[#allocation2 + $0x168] sm:$0xff]
        %v3599 = vld [vmem:[#allocation2 + $0x170] sm:$0xff]
        %v3600 = vld [vmem:[#allocation2 + $0x178] sm:$0xff]
        %v3601 = vld [vmem:[#allocation2 + $0x180] sm:$0xff]
        %v3602 = vld [vmem:[#allocation2 + $0x188] sm:$0xff]
        %v3603 = vld [vmem:[#allocation2 + $0x190] sm:$0xff]
        %v3604 = vld [vmem:[#allocation2 + $0x198] sm:$0xff]
        %v3605 = vld [vmem:[#allocation2 + $0x1a0] sm:$0xff]
        %v3606 = vld [vmem:[#allocation2 + $0x1a8] sm:$0xff]
        %v3607 = vld [vmem:[#allocation2 + $0x1b0] sm:$0xff]
        %v3608 = vld [vmem:[#allocation2 + $0x1b8] sm:$0xff]
        %v3609 = vld [vmem:[#allocation2 + $0x1c0] sm:$0xff]
        %v3610 = vld [vmem:[#allocation2 + $0x1c8] sm:$0xff]
        %v3611 = vld [vmem:[#allocation2 + $0x1d0] sm:$0xff]
        %v3612 = vld [vmem:[#allocation2 + $0x1d8] sm:$0xff]
        %v3613 = vld [vmem:[#allocation2 + $0x1e0] sm:$0xff]
        %v3614 = vld [vmem:[#allocation2 + $0x1e8] sm:$0xff]
        %v3615 = vld [vmem:[#allocation2 + $0x1f0] sm:$0xff]
        %v3616 = vld [vmem:[#allocation2 + $0x1f8] sm:$0xff]
        %v3617 = vld [vmem:[#allocation2 + $0x200] sm:$0xff]
        %v3618 = vld [vmem:[#allocation2 + $0x208] sm:$0xff]
        %v3619 = vld [vmem:[#allocation2 + $0x210] sm:$0xff]
        %v3620 = vld [vmem:[#allocation2 + $0x218] sm:$0xff]
        %v3621 = vld [vmem:[#allocation2 + $0x220] sm:$0xff]
        %v3622 = vld [vmem:[#allocation2 + $0x228] sm:$0xff]
        %v3623 = vld [vmem:[#allocation2 + $0x230] sm:$0xff]
        %v3624 = vld [vmem:[#allocation2 + $0x238] sm:$0xff]
        %v3625 = vld [vmem:[#allocation2 + $0x240] sm:$0xff]
        %v3626 = vld [vmem:[#allocation2 + $0x248] sm:$0xff]
        %v3627 = vld [vmem:[#allocation2 + $0x250] sm:$0xff]
        %v3628 = vld [vmem:[#allocation2 + $0x258] sm:$0xff]
        %v3629 = vld [vmem:[#allocation2 + $0x260] sm:$0xff]
        %v3630 = vld [vmem:[#allocation2 + $0x268] sm:$0xff]
        %v3631 = vld [vmem:[#allocation2 + $0x270] sm:$0xff]
        %v3632 = vld [vmem:[#allocation2 + $0x278] sm:$0xff]
        %v3633 = vld [vmem:[#allocation2 + $0x280] sm:$0xff]
        %v3634 = vld [vmem:[#allocation2 + $0x288] sm:$0xff]
        %v3635 = vld [vmem:[#allocation2 + $0x290] sm:$0xff]
        %v3636 = vld [vmem:[#allocation2 + $0x298] sm:$0xff]
        %v3637 = vld [vmem:[#allocation2 + $0x2a0] sm:$0xff]
        %v3638 = vld [vmem:[#allocation2 + $0x2a8] sm:$0xff]
        %v3639 = vld [vmem:[#allocation2 + $0x2b0] sm:$0xff]
        %v3640 = vld [vmem:[#allocation2 + $0x2b8] sm:$0xff]
        %v3641 = vld [vmem:[#allocation2 + $0x2c0] sm:$0xff]
        %v3642 = vld [vmem:[#allocation2 + $0x2c8] sm:$0xff]
        %v3643 = vld [vmem:[#allocation2 + $0x2d0] sm:$0xff]
        %v3644 = vld [vmem:[#allocation2 + $0x2d8] sm:$0xff]
        %v3645 = vld [vmem:[#allocation2 + $0x2e0] sm:$0xff]
        %v3646 = vld [vmem:[#allocation2 + $0x2e8] sm:$0xff]
        %v3647 = vld [vmem:[#allocation2 + $0x2f0] sm:$0xff]
        %v3648 = vld [vmem:[#allocation2 + $0x2f8] sm:$0xff]
        %v3649 = vld [vmem:[#allocation2 + $0x300] sm:$0xff]
        %v3650 = vld [vmem:[#allocation2 + $0x308] sm:$0xff]
        %v3651 = vld [vmem:[#allocation2 + $0x310] sm:$0xff]
        %v3652 = vld [vmem:[#allocation2 + $0x318] sm:$0xff]
        %v3653 = vld [vmem:[#allocation2 + $0x320] sm:$0xff]
        %v3654 = vld [vmem:[#allocation2 + $0x328] sm:$0xff]
        %v3655 = vld [vmem:[#allocation2 + $0x330] sm:$0xff]
        %v3656 = vld [vmem:[#allocation2 + $0x338] sm:$0xff]
        %v3657 = vld [vmem:[#allocation2 + $0x340] sm:$0xff]
        %v3658 = vld [vmem:[#allocation2 + $0x348] sm:$0xff]
        %v3659 = vld [vmem:[#allocation2 + $0x350] sm:$0xff]
        %v3660 = vld [vmem:[#allocation2 + $0x358] sm:$0xff]
        %v3661 = vld [vmem:[#allocation2 + $0x360] sm:$0xff]
        %v3662 = vld [vmem:[#allocation2 + $0x368] sm:$0xff]
        %v3663 = vld [vmem:[#allocation2 + $0x370] sm:$0xff]
        %v3664 = vld [vmem:[#allocation2 + $0x378] sm:$0xff]
        %v3665 = vld [vmem:[#allocation2 + $0x380] sm:$0xff]
        %v3666 = vld [vmem:[#allocation2 + $0x388] sm:$0xff]
        %v3667 = vld [vmem:[#allocation2 + $0x390] sm:$0xff]
        %v3668 = vld [vmem:[#allocation2 + $0x398] sm:$0xff]
        %v3669 = vld [vmem:[#allocation2 + $0x3a0] sm:$0xff]
        %v3670 = vld [vmem:[#allocation2 + $0x3a8] sm:$0xff]
        %v3671 = vld [vmem:[#allocation2 + $0x3b0] sm:$0xff]
        %v3672 = vld [vmem:[#allocation2 + $0x3b8] sm:$0xff]
        %v3673 = vld [vmem:[#allocation2 + $0x3c0] sm:$0xff]
        %v3674 = vld [vmem:[#allocation2 + $0x3c8] sm:$0xff]
        %v3675 = vld [vmem:[#allocation2 + $0x3d0] sm:$0xff]
        %v3676 = vld [vmem:[#allocation2 + $0x3d8] sm:$0xff]
        %v3677 = vld [vmem:[#allocation2 + $0x3e0] sm:$0xff]
        %v3678 = vld [vmem:[#allocation2 + $0x3e8] sm:$0xff]
        %v3679 = vld [vmem:[#allocation2 + $0x3f0] sm:$0xff]
        %v3680 = vld [vmem:[#allocation2 + $0x3f8] sm:$0xff]
        %v3681 = vld [vmem:[#allocation2 + $0x400] sm:$0xff]
        %v3682 = vld [vmem:[#allocation2 + $0x408] sm:$0xff]
        %v3683 = vld [vmem:[#allocation2 + $0x410] sm:$0xff]
        %v3684 = vld [vmem:[#allocation2 + $0x418] sm:$0xff]
        %v3685 = vld [vmem:[#allocation2 + $0x420] sm:$0xff]
        %v3686 = vld [vmem:[#allocation2 + $0x428] sm:$0xff]
        %v3687 = vld [vmem:[#allocation2 + $0x430] sm:$0xff]
        %v3688 = vld [vmem:[#allocation2 + $0x438] sm:$0xff]
        %v3689 = vld [vmem:[#allocation2 + $0x440] sm:$0xff]
        %v3690 = vld [vmem:[#allocation2 + $0x448] sm:$0xff]
        %v3691 = vld [vmem:[#allocation2 + $0x450] sm:$0xff]
        %v3692 = vld [vmem:[#allocation2 + $0x458] sm:$0xff]
        %v3693 = vld [vmem:[#allocation2 + $0x460] sm:$0xff]
        %v3694 = vld [vmem:[#allocation2 + $0x468] sm:$0xff]
        %v3695 = vld [vmem:[#allocation2 + $0x470] sm:$0xff]
        %v3696 = vld [vmem:[#allocation2 + $0x478] sm:$0xff]
        %v3697 = vld [vmem:[#allocation2 + $0x480] sm:$0xff]
        %v3698 = vld [vmem:[#allocation2 + $0x488] sm:$0xff]
        %v3699 = vld [vmem:[#allocation2 + $0x490] sm:$0xff]
        %v3700 = vld [vmem:[#allocation2 + $0x498] sm:$0xff]
        %v3701 = vld [vmem:[#allocation2 + $0x4a0] sm:$0xff]
        %v3702 = vld [vmem:[#allocation2 + $0x4a8] sm:$0xff]
        %v3703 = vld [vmem:[#allocation2 + $0x4b0] sm:$0xff]
        %v3704 = vld [vmem:[#allocation2 + $0x4b8] sm:$0xff]
        %v3705 = vld [vmem:[#allocation2 + $0x4c0] sm:$0xff]
        %v3706 = vld [vmem:[#allocation2 + $0x4c8] sm:$0xff]
        %v3707 = vld [vmem:[#allocation2 + $0x4d0] sm:$0xff]
        %v3708 = vld [vmem:[#allocation2 + $0x4d8] sm:$0xff]
        %v3709 = vld [vmem:[#allocation2 + $0x4e0] sm:$0xff]
        %v3710 = vld [vmem:[#allocation2 + $0x4e8] sm:$0xff]
        %v3711 = vld [vmem:[#allocation2 + $0x4f0] sm:$0xff]
        %v3712 = vld [vmem:[#allocation2 + $0x4f8] sm:$0xff]
        %v3713 = vld [vmem:[#allocation2 + $0x500] sm:$0xff]
        %v3714 = vld [vmem:[#allocation2 + $0x508] sm:$0xff]
        %v3715 = vld [vmem:[#allocation2 + $0x510] sm:$0xff]
        %v3716 = vld [vmem:[#allocation2 + $0x518] sm:$0xff]
        %v3717 = vld [vmem:[#allocation2 + $0x520] sm:$0xff]
        %v3718 = vld [vmem:[#allocation2 + $0x528] sm:$0xff]
        %v3719 = vld [vmem:[#allocation2 + $0x530] sm:$0xff]
        %v3720 = vld [vmem:[#allocation2 + $0x538] sm:$0xff]
        %v3721 = vld [vmem:[#allocation2 + $0x540] sm:$0xff]
        %v3722 = vld [vmem:[#allocation2 + $0x548] sm:$0xff]
        %v3723 = vld [vmem:[#allocation2 + $0x550] sm:$0xff]
        %v3724 = vld [vmem:[#allocation2 + $0x558] sm:$0xff]
        %v3725 = vld [vmem:[#allocation2 + $0x560] sm:$0xff]
        %v3726 = vld [vmem:[#allocation2 + $0x568] sm:$0xff]
        %v3727 = vld [vmem:[#allocation2 + $0x570] sm:$0xff]
        %v3728 = vld [vmem:[#allocation2 + $0x578] sm:$0xff]
        %v3729 = vld [vmem:[#allocation2 + $0x580] sm:$0xff]
        %v3730 = vld [vmem:[#allocation2 + $0x588] sm:$0xff]
        %v3731 = vld [vmem:[#allocation2 + $0x590] sm:$0xff]
        %v3732 = vld [vmem:[#allocation2 + $0x598] sm:$0xff]
        %v3733 = vld [vmem:[#allocation2 + $0x5a0] sm:$0xff]
        %v3734 = vld [vmem:[#allocation2 + $0x5a8] sm:$0xff]
        %v3735 = vld [vmem:[#allocation2 + $0x5b0] sm:$0xff]
        %v3736 = vld [vmem:[#allocation2 + $0x5b8] sm:$0xff]
        %v3737 = vld [vmem:[#allocation2 + $0x5c0] sm:$0xff]
        %v3738 = vld [vmem:[#allocation2 + $0x5c8] sm:$0xff]
        %v3739 = vld [vmem:[#allocation2 + $0x5d0] sm:$0xff]
        %v3740 = vld [vmem:[#allocation2 + $0x5d8] sm:$0xff]
        %v3741 = vld [vmem:[#allocation2 + $0x5e0] sm:$0xff]
        %v3742 = vld [vmem:[#allocation2 + $0x5e8] sm:$0xff]
        %v3743 = vld [vmem:[#allocation2 + $0x5f0] sm:$0xff]
        %v3744 = vld [vmem:[#allocation2 + $0x5f8] sm:$0xff]
        %v3745 = vld [vmem:[#allocation2 + $0x600] sm:$0xff]
        %v3746 = vld [vmem:[#allocation2 + $0x608] sm:$0xff]
        %v3747 = vld [vmem:[#allocation2 + $0x610] sm:$0xff]
        %v3748 = vld [vmem:[#allocation2 + $0x618] sm:$0xff]
        %v3749 = vld [vmem:[#allocation2 + $0x620] sm:$0xff]
        %v3750 = vld [vmem:[#allocation2 + $0x628] sm:$0xff]
        %v3751 = vld [vmem:[#allocation2 + $0x630] sm:$0xff]
        %v3752 = vld [vmem:[#allocation2 + $0x638] sm:$0xff]
        %v3753 = vld [vmem:[#allocation2 + $0x640] sm:$0xff]
        %v3754 = vld [vmem:[#allocation2 + $0x648] sm:$0xff]
        %v3755 = vld [vmem:[#allocation2 + $0x650] sm:$0xff]
        %v3756 = vld [vmem:[#allocation2 + $0x658] sm:$0xff]
        %v3757 = vld [vmem:[#allocation2 + $0x660] sm:$0xff]
        %v3758 = vld [vmem:[#allocation2 + $0x668] sm:$0xff]
        %v3759 = vld [vmem:[#allocation2 + $0x670] sm:$0xff]
        %v3760 = vld [vmem:[#allocation2 + $0x678] sm:$0xff]
        %v3761 = vld [vmem:[#allocation2 + $0x680] sm:$0xff]
        %v3762 = vld [vmem:[#allocation2 + $0x688] sm:$0xff]
        %v3763 = vld [vmem:[#allocation2 + $0x690] sm:$0xff]
        %v3764 = vld [vmem:[#allocation2 + $0x698] sm:$0xff]
        %v3765 = vld [vmem:[#allocation2 + $0x6a0] sm:$0xff]
        %v3766 = vld [vmem:[#allocation2 + $0x6a8] sm:$0xff]
        %v3767 = vld [vmem:[#allocation2 + $0x6b0] sm:$0xff]
        %v3768 = vld [vmem:[#allocation2 + $0x6b8] sm:$0xff]
        %v3769 = vld [vmem:[#allocation2 + $0x6c0] sm:$0xff]
        %v3770 = vld [vmem:[#allocation2 + $0x6c8] sm:$0xff]
        %v3771 = vld [vmem:[#allocation2 + $0x6d0] sm:$0xff]
        %v3772 = vld [vmem:[#allocation2 + $0x6d8] sm:$0xff]
        %v3773 = vld [vmem:[#allocation2 + $0x6e0] sm:$0xff]
        %v3774 = vld [vmem:[#allocation2 + $0x6e8] sm:$0xff]
        %v3775 = vld [vmem:[#allocation2 + $0x6f0] sm:$0xff]
        %v3776 = vld [vmem:[#allocation2 + $0x6f8] sm:$0xff]
        %v3777 = vld [vmem:[#allocation2 + $0x700] sm:$0xff]
        %v3778 = vld [vmem:[#allocation2 + $0x708] sm:$0xff]
        %v3779 = vld [vmem:[#allocation2 + $0x710] sm:$0xff]
        %v3780 = vld [vmem:[#allocation2 + $0x718] sm:$0xff]
        %v3781 = vld [vmem:[#allocation2 + $0x720] sm:$0xff]
        %v3782 = vld [vmem:[#allocation2 + $0x728] sm:$0xff]
        %v3783 = vld [vmem:[#allocation2 + $0x730] sm:$0xff]
        %v3784 = vld [vmem:[#allocation2 + $0x738] sm:$0xff]
        %v3785 = vld [vmem:[#allocation2 + $0x740] sm:$0xff]
        %v3786 = vld [vmem:[#allocation2 + $0x748] sm:$0xff]
        %v3787 = vld [vmem:[#allocation2 + $0x750] sm:$0xff]
        %v3788 = vld [vmem:[#allocation2 + $0x758] sm:$0xff]
        %v3789 = vld [vmem:[#allocation2 + $0x760] sm:$0xff]
        %v3790 = vld [vmem:[#allocation2 + $0x768] sm:$0xff]
        %v3791 = vld [vmem:[#allocation2 + $0x770] sm:$0xff]
        %v3792 = vld [vmem:[#allocation2 + $0x778] sm:$0xff]
        %v3793 = vld [vmem:[#allocation2 + $0x780] sm:$0xff]
        %v3794 = vld [vmem:[#allocation2 + $0x788] sm:$0xff]
        %v3795 = vld [vmem:[%s325] sm:$0x1]
        %v3797 = vlaneseq
        %v3798 = vshrl.u32 %v3797, 7
        %v3799 = vsub.s32 0, %v3798
        %v3800 = vrot.slane %v3795, %v3799
        %v3802 = vmul.f32 %v3553, %v3800
        %v3803 = vmul.f32 %v3554, %v3800
        %v3804 = vmul.f32 %v3555, %v3800
        %v3805 = vmul.f32 %v3556, %v3800
        %v3806 = vmul.f32 %v3557, %v3800
        %v3807 = vmul.f32 %v3558, %v3800
        %v3808 = vmul.f32 %v3559, %v3800
        %v3809 = vmul.f32 %v3560, %v3800
        %v3810 = vmul.f32 %v3561, %v3800
        %v3811 = vmul.f32 %v3562, %v3800
        %v3812 = vmul.f32 %v3563, %v3800
        %v3813 = vmul.f32 %v3564, %v3800
        %v3814 = vmul.f32 %v3565, %v3800
        %v3815 = vmul.f32 %v3566, %v3800
        %v3816 = vmul.f32 %v3567, %v3800
        %v3817 = vmul.f32 %v3568, %v3800
        %v3818 = vmul.f32 %v3569, %v3800
        %v3819 = vmul.f32 %v3570, %v3800
        %v3820 = vmul.f32 %v3571, %v3800
        %v3821 = vmul.f32 %v3572, %v3800
        %v3822 = vmul.f32 %v3573, %v3800
        %v3823 = vmul.f32 %v3574, %v3800
        %v3824 = vmul.f32 %v3575, %v3800
        %v3825 = vmul.f32 %v3576, %v3800
        %v3826 = vmul.f32 %v3577, %v3800
        %v3827 = vmul.f32 %v3578, %v3800
        %v3828 = vmul.f32 %v3579, %v3800
        %v3829 = vmul.f32 %v3580, %v3800
        %v3830 = vmul.f32 %v3581, %v3800
        %v3831 = vmul.f32 %v3582, %v3800
        %v3832 = vmul.f32 %v3583, %v3800
        %v3833 = vmul.f32 %v3584, %v3800
        %v3834 = vmul.f32 %v3585, %v3800
        %v3835 = vmul.f32 %v3586, %v3800
        %v3836 = vmul.f32 %v3587, %v3800
        %v3837 = vmul.f32 %v3588, %v3800
        %v3838 = vmul.f32 %v3589, %v3800
        %v3839 = vmul.f32 %v3590, %v3800
        %v3840 = vmul.f32 %v3591, %v3800
        %v3841 = vmul.f32 %v3592, %v3800
        %v3842 = vmul.f32 %v3593, %v3800
        %v3843 = vmul.f32 %v3594, %v3800
        %v3844 = vmul.f32 %v3595, %v3800
        %v3845 = vmul.f32 %v3596, %v3800
        %v3846 = vmul.f32 %v3597, %v3800
        %v3847 = vmul.f32 %v3598, %v3800
        %v3848 = vmul.f32 %v3599, %v3800
        %v3849 = vmul.f32 %v3600, %v3800
        %v3850 = vmul.f32 %v3601, %v3800
        %v3851 = vmul.f32 %v3602, %v3800
        %v3852 = vmul.f32 %v3603, %v3800
        %v3853 = vmul.f32 %v3604, %v3800
        %v3854 = vmul.f32 %v3605, %v3800
        %v3855 = vmul.f32 %v3606, %v3800
        %v3856 = vmul.f32 %v3607, %v3800
        %v3857 = vmul.f32 %v3608, %v3800
        %v3858 = vmul.f32 %v3609, %v3800
        %v3859 = vmul.f32 %v3610, %v3800
        %v3860 = vmul.f32 %v3611, %v3800
        %v3861 = vmul.f32 %v3612, %v3800
        %v3862 = vmul.f32 %v3613, %v3800
        %v3863 = vmul.f32 %v3614, %v3800
        %v3864 = vmul.f32 %v3615, %v3800
        %v3865 = vmul.f32 %v3616, %v3800
        %v3866 = vmul.f32 %v3617, %v3800
        %v3867 = vmul.f32 %v3618, %v3800
        %v3868 = vmul.f32 %v3619, %v3800
        %v3869 = vmul.f32 %v3620, %v3800
        %v3870 = vmul.f32 %v3621, %v3800
        %v3871 = vmul.f32 %v3622, %v3800
        %v3872 = vmul.f32 %v3623, %v3800
        %v3873 = vmul.f32 %v3624, %v3800
        %v3874 = vmul.f32 %v3625, %v3800
        %v3875 = vmul.f32 %v3626, %v3800
        %v3876 = vmul.f32 %v3627, %v3800
        %v3877 = vmul.f32 %v3628, %v3800
        %v3878 = vmul.f32 %v3629, %v3800
        %v3879 = vmul.f32 %v3630, %v3800
        %v3880 = vmul.f32 %v3631, %v3800
        %v3881 = vmul.f32 %v3632, %v3800
        %v3882 = vmul.f32 %v3633, %v3800
        %v3883 = vmul.f32 %v3634, %v3800
        %v3884 = vmul.f32 %v3635, %v3800
        %v3885 = vmul.f32 %v3636, %v3800
        %v3886 = vmul.f32 %v3637, %v3800
        %v3887 = vmul.f32 %v3638, %v3800
        %v3888 = vmul.f32 %v3639, %v3800
        %v3889 = vmul.f32 %v3640, %v3800
        %v3890 = vmul.f32 %v3641, %v3800
        %v3891 = vmul.f32 %v3642, %v3800
        %v3892 = vmul.f32 %v3643, %v3800
        %v3893 = vmul.f32 %v3644, %v3800
        %v3894 = vmul.f32 %v3645, %v3800
        %v3895 = vmul.f32 %v3646, %v3800
        %v3896 = vmul.f32 %v3647, %v3800
        %v3897 = vmul.f32 %v3648, %v3800
        %v3898 = vmul.f32 %v3649, %v3800
        %v3899 = vmul.f32 %v3650, %v3800
        %v3900 = vmul.f32 %v3651, %v3800
        %v3901 = vmul.f32 %v3652, %v3800
        %v3902 = vmul.f32 %v3653, %v3800
        %v3903 = vmul.f32 %v3654, %v3800
        %v3904 = vmul.f32 %v3655, %v3800
        %v3905 = vmul.f32 %v3656, %v3800
        %v3906 = vmul.f32 %v3657, %v3800
        %v3907 = vmul.f32 %v3658, %v3800
        %v3908 = vmul.f32 %v3659, %v3800
        %v3909 = vmul.f32 %v3660, %v3800
        %v3910 = vmul.f32 %v3661, %v3800
        %v3911 = vmul.f32 %v3662, %v3800
        %v3912 = vmul.f32 %v3663, %v3800
        %v3913 = vmul.f32 %v3664, %v3800
        %v3914 = vmul.f32 %v3665, %v3800
        %v3915 = vmul.f32 %v3666, %v3800
        %v3916 = vmul.f32 %v3667, %v3800
        %v3917 = vmul.f32 %v3668, %v3800
        %v3918 = vmul.f32 %v3669, %v3800
        %v3919 = vmul.f32 %v3670, %v3800
        %v3920 = vmul.f32 %v3671, %v3800
        %v3921 = vmul.f32 %v3672, %v3800
        %v3922 = vmul.f32 %v3673, %v3800
        %v3923 = vmul.f32 %v3674, %v3800
        %v3924 = vmul.f32 %v3675, %v3800
        %v3925 = vmul.f32 %v3676, %v3800
        %v3926 = vmul.f32 %v3677, %v3800
        %v3927 = vmul.f32 %v3678, %v3800
        %v3928 = vmul.f32 %v3679, %v3800
        %v3929 = vmul.f32 %v3680, %v3800
        %v3930 = vmul.f32 %v3681, %v3800
        %v3931 = vmul.f32 %v3682, %v3800
        %v3932 = vmul.f32 %v3683, %v3800
        %v3933 = vmul.f32 %v3684, %v3800
        %v3934 = vmul.f32 %v3685, %v3800
        %v3935 = vmul.f32 %v3686, %v3800
        %v3936 = vmul.f32 %v3687, %v3800
        %v3937 = vmul.f32 %v3688, %v3800
        %v3938 = vmul.f32 %v3689, %v3800
        %v3939 = vmul.f32 %v3690, %v3800
        %v3940 = vmul.f32 %v3691, %v3800
        %v3941 = vmul.f32 %v3692, %v3800
        %v3942 = vmul.f32 %v3693, %v3800
        %v3943 = vmul.f32 %v3694, %v3800
        %v3944 = vmul.f32 %v3695, %v3800
        %v3945 = vmul.f32 %v3696, %v3800
        %v3946 = vmul.f32 %v3697, %v3800
        %v3947 = vmul.f32 %v3698, %v3800
        %v3948 = vmul.f32 %v3699, %v3800
        %v3949 = vmul.f32 %v3700, %v3800
        %v3950 = vmul.f32 %v3701, %v3800
        %v3951 = vmul.f32 %v3702, %v3800
        %v3952 = vmul.f32 %v3703, %v3800
        %v3953 = vmul.f32 %v3704, %v3800
        %v3954 = vmul.f32 %v3705, %v3800
        %v3955 = vmul.f32 %v3706, %v3800
        %v3956 = vmul.f32 %v3707, %v3800
        %v3957 = vmul.f32 %v3708, %v3800
        %v3958 = vmul.f32 %v3709, %v3800
        %v3959 = vmul.f32 %v3710, %v3800
        %v3960 = vmul.f32 %v3711, %v3800
        %v3961 = vmul.f32 %v3712, %v3800
        %v3962 = vmul.f32 %v3713, %v3800
        %v3963 = vmul.f32 %v3714, %v3800
        %v3964 = vmul.f32 %v3715, %v3800
        %v3965 = vmul.f32 %v3716, %v3800
        %v3966 = vmul.f32 %v3717, %v3800
        %v3967 = vmul.f32 %v3718, %v3800
        %v3968 = vmul.f32 %v3719, %v3800
        %v3969 = vmul.f32 %v3720, %v3800
        %v3970 = vmul.f32 %v3721, %v3800
        %v3971 = vmul.f32 %v3722, %v3800
        %v3972 = vmul.f32 %v3723, %v3800
        %v3973 = vmul.f32 %v3724, %v3800
        %v3974 = vmul.f32 %v3725, %v3800
        %v3975 = vmul.f32 %v3726, %v3800
        %v3976 = vmul.f32 %v3727, %v3800
        %v3977 = vmul.f32 %v3728, %v3800
        %v3978 = vmul.f32 %v3729, %v3800
        %v3979 = vmul.f32 %v3730, %v3800
        %v3980 = vmul.f32 %v3731, %v3800
        %v3981 = vmul.f32 %v3732, %v3800
        %v3982 = vmul.f32 %v3733, %v3800
        %v3983 = vmul.f32 %v3734, %v3800
        %v3984 = vmul.f32 %v3735, %v3800
        %v3985 = vmul.f32 %v3736, %v3800
        %v3986 = vmul.f32 %v3737, %v3800
        %v3987 = vmul.f32 %v3738, %v3800
        %v3988 = vmul.f32 %v3739, %v3800
        %v3989 = vmul.f32 %v3740, %v3800
        %v3990 = vmul.f32 %v3741, %v3800
        %v3991 = vmul.f32 %v3742, %v3800
        %v3992 = vmul.f32 %v3743, %v3800
        %v3993 = vmul.f32 %v3744, %v3800
        %v3994 = vmul.f32 %v3745, %v3800
        %v3995 = vmul.f32 %v3746, %v3800
        %v3996 = vmul.f32 %v3747, %v3800
        %v3997 = vmul.f32 %v3748, %v3800
        %v3998 = vmul.f32 %v3749, %v3800
        %v3999 = vmul.f32 %v3750, %v3800
        %v4000 = vmul.f32 %v3751, %v3800
        %v4001 = vmul.f32 %v3752, %v3800
        %v4002 = vmul.f32 %v3753, %v3800
        %v4003 = vmul.f32 %v3754, %v3800
        %v4004 = vmul.f32 %v3755, %v3800
        %v4005 = vmul.f32 %v3756, %v3800
        %v4006 = vmul.f32 %v3757, %v3800
        %v4007 = vmul.f32 %v3758, %v3800
        %v4008 = vmul.f32 %v3759, %v3800
        %v4009 = vmul.f32 %v3760, %v3800
        %v4010 = vmul.f32 %v3761, %v3800
        %v4011 = vmul.f32 %v3762, %v3800
        %v4012 = vmul.f32 %v3763, %v3800
        %v4013 = vmul.f32 %v3764, %v3800
        %v4014 = vmul.f32 %v3765, %v3800
        %v4015 = vmul.f32 %v3766, %v3800
        %v4016 = vmul.f32 %v3767, %v3800
        %v4017 = vmul.f32 %v3768, %v3800
        %v4018 = vmul.f32 %v3769, %v3800
        %v4019 = vmul.f32 %v3770, %v3800
        %v4020 = vmul.f32 %v3771, %v3800
        %v4021 = vmul.f32 %v3772, %v3800
        %v4022 = vmul.f32 %v3773, %v3800
        %v4023 = vmul.f32 %v3774, %v3800
        %v4024 = vmul.f32 %v3775, %v3800
        %v4025 = vmul.f32 %v3776, %v3800
        %v4026 = vmul.f32 %v3777, %v3800
        %v4027 = vmul.f32 %v3778, %v3800
        %v4028 = vmul.f32 %v3779, %v3800
        %v4029 = vmul.f32 %v3780, %v3800
        %v4030 = vmul.f32 %v3781, %v3800
        %v4031 = vmul.f32 %v3782, %v3800
        %v4032 = vmul.f32 %v3783, %v3800
        %v4033 = vmul.f32 %v3784, %v3800
        %v4034 = vmul.f32 %v3785, %v3800
        %v4035 = vmul.f32 %v3786, %v3800
        %v4036 = vmul.f32 %v3787, %v3800
        %v4037 = vmul.f32 %v3788, %v3800
        %v4038 = vmul.f32 %v3789, %v3800
        %v4039 = vmul.f32 %v3790, %v3800
        %v4040 = vmul.f32 %v3791, %v3800
        %v4041 = vmul.f32 %v3792, %v3800
        %v4042 = vmul.f32 %v3793, %v3800
        %v4043 = vmul.f32 %v3794, %v3800
        %v4044 = vld [vmem:[%s328] sm:$0x1]
        %v4046 = vlaneseq
        %v4047 = vshrl.u32 %v4046, 7
        %v4048 = vsub.s32 0, %v4047
        %v4049 = vrot.slane %v4044, %v4048
        %v4051 = vadd.f32 %v3802, %v4049
        %v4052 = vadd.f32 %v3803, %v4049
        %v4053 = vadd.f32 %v3804, %v4049
        %v4054 = vadd.f32 %v3805, %v4049
        %v4055 = vadd.f32 %v3806, %v4049
        %v4056 = vadd.f32 %v3807, %v4049
        %v4057 = vadd.f32 %v3808, %v4049
        %v4058 = vadd.f32 %v3809, %v4049
        %v4059 = vadd.f32 %v3810, %v4049
        %v4060 = vadd.f32 %v3811, %v4049
        %v4061 = vadd.f32 %v3812, %v4049
        %v4062 = vadd.f32 %v3813, %v4049
        %v4063 = vadd.f32 %v3814, %v4049
        %v4064 = vadd.f32 %v3815, %v4049
        %v4065 = vadd.f32 %v3816, %v4049
        %v4066 = vadd.f32 %v3817, %v4049
        %v4067 = vadd.f32 %v3818, %v4049
        %v4068 = vadd.f32 %v3819, %v4049
        %v4069 = vadd.f32 %v3820, %v4049
        %v4070 = vadd.f32 %v3821, %v4049
        %v4071 = vadd.f32 %v3822, %v4049
        %v4072 = vadd.f32 %v3823, %v4049
        %v4073 = vadd.f32 %v3824, %v4049
        %v4074 = vadd.f32 %v3825, %v4049
        %v4075 = vadd.f32 %v3826, %v4049
        %v4076 = vadd.f32 %v3827, %v4049
        %v4077 = vadd.f32 %v3828, %v4049
        %v4078 = vadd.f32 %v3829, %v4049
        %v4079 = vadd.f32 %v3830, %v4049
        %v4080 = vadd.f32 %v3831, %v4049
        %v4081 = vadd.f32 %v3832, %v4049
        %v4082 = vadd.f32 %v3833, %v4049
        %v4083 = vadd.f32 %v3834, %v4049
        %v4084 = vadd.f32 %v3835, %v4049
        %v4085 = vadd.f32 %v3836, %v4049
        %v4086 = vadd.f32 %v3837, %v4049
        %v4087 = vadd.f32 %v3838, %v4049
        %v4088 = vadd.f32 %v3839, %v4049
        %v4089 = vadd.f32 %v3840, %v4049
        %v4090 = vadd.f32 %v3841, %v4049
        %v4091 = vadd.f32 %v3842, %v4049
        %v4092 = vadd.f32 %v3843, %v4049
        %v4093 = vadd.f32 %v3844, %v4049
        %v4094 = vadd.f32 %v3845, %v4049
        %v4095 = vadd.f32 %v3846, %v4049
        %v4096 = vadd.f32 %v3847, %v4049
        %v4097 = vadd.f32 %v3848, %v4049
        %v4098 = vadd.f32 %v3849, %v4049
        %v4099 = vadd.f32 %v3850, %v4049
        %v4100 = vadd.f32 %v3851, %v4049
        %v4101 = vadd.f32 %v3852, %v4049
        %v4102 = vadd.f32 %v3853, %v4049
        %v4103 = vadd.f32 %v3854, %v4049
        %v4104 = vadd.f32 %v3855, %v4049
        %v4105 = vadd.f32 %v3856, %v4049
        %v4106 = vadd.f32 %v3857, %v4049
        %v4107 = vadd.f32 %v3858, %v4049
        %v4108 = vadd.f32 %v3859, %v4049
        %v4109 = vadd.f32 %v3860, %v4049
        %v4110 = vadd.f32 %v3861, %v4049
        %v4111 = vadd.f32 %v3862, %v4049
        %v4112 = vadd.f32 %v3863, %v4049
        %v4113 = vadd.f32 %v3864, %v4049
        %v4114 = vadd.f32 %v3865, %v4049
        %v4115 = vadd.f32 %v3866, %v4049
        %v4116 = vadd.f32 %v3867, %v4049
        %v4117 = vadd.f32 %v3868, %v4049
        %v4118 = vadd.f32 %v3869, %v4049
        %v4119 = vadd.f32 %v3870, %v4049
        %v4120 = vadd.f32 %v3871, %v4049
        %v4121 = vadd.f32 %v3872, %v4049
        %v4122 = vadd.f32 %v3873, %v4049
        %v4123 = vadd.f32 %v3874, %v4049
        %v4124 = vadd.f32 %v3875, %v4049
        %v4125 = vadd.f32 %v3876, %v4049
        %v4126 = vadd.f32 %v3877, %v4049
        %v4127 = vadd.f32 %v3878, %v4049
        %v4128 = vadd.f32 %v3879, %v4049
        %v4129 = vadd.f32 %v3880, %v4049
        %v4130 = vadd.f32 %v3881, %v4049
        %v4131 = vadd.f32 %v3882, %v4049
        %v4132 = vadd.f32 %v3883, %v4049
        %v4133 = vadd.f32 %v3884, %v4049
        %v4134 = vadd.f32 %v3885, %v4049
        %v4135 = vadd.f32 %v3886, %v4049
        %v4136 = vadd.f32 %v3887, %v4049
        %v4137 = vadd.f32 %v3888, %v4049
        %v4138 = vadd.f32 %v3889, %v4049
        %v4139 = vadd.f32 %v3890, %v4049
        %v4140 = vadd.f32 %v3891, %v4049
        %v4141 = vadd.f32 %v3892, %v4049
        %v4142 = vadd.f32 %v3893, %v4049
        %v4143 = vadd.f32 %v3894, %v4049
        %v4144 = vadd.f32 %v3895, %v4049
        %v4145 = vadd.f32 %v3896, %v4049
        %v4146 = vadd.f32 %v3897, %v4049
        %v4147 = vadd.f32 %v3898, %v4049
        %v4148 = vadd.f32 %v3899, %v4049
        %v4149 = vadd.f32 %v3900, %v4049
        %v4150 = vadd.f32 %v3901, %v4049
        %v4151 = vadd.f32 %v3902, %v4049
        %v4152 = vadd.f32 %v3903, %v4049
        %v4153 = vadd.f32 %v3904, %v4049
        %v4154 = vadd.f32 %v3905, %v4049
        %v4155 = vadd.f32 %v3906, %v4049
        %v4156 = vadd.f32 %v3907, %v4049
        %v4157 = vadd.f32 %v3908, %v4049
        %v4158 = vadd.f32 %v3909, %v4049
        %v4159 = vadd.f32 %v3910, %v4049
        %v4160 = vadd.f32 %v3911, %v4049
        %v4161 = vadd.f32 %v3912, %v4049
        %v4162 = vadd.f32 %v3913, %v4049
        %v4163 = vadd.f32 %v3914, %v4049
        %v4164 = vadd.f32 %v3915, %v4049
        %v4165 = vadd.f32 %v3916, %v4049
        %v4166 = vadd.f32 %v3917, %v4049
        %v4167 = vadd.f32 %v3918, %v4049
        %v4168 = vadd.f32 %v3919, %v4049
        %v4169 = vadd.f32 %v3920, %v4049
        %v4170 = vadd.f32 %v3921, %v4049
        %v4171 = vadd.f32 %v3922, %v4049
        %v4172 = vadd.f32 %v3923, %v4049
        %v4173 = vadd.f32 %v3924, %v4049
        %v4174 = vadd.f32 %v3925, %v4049
        %v4175 = vadd.f32 %v3926, %v4049
        %v4176 = vadd.f32 %v3927, %v4049
        %v4177 = vadd.f32 %v3928, %v4049
        %v4178 = vadd.f32 %v3929, %v4049
        %v4179 = vadd.f32 %v3930, %v4049
        %v4180 = vadd.f32 %v3931, %v4049
        %v4181 = vadd.f32 %v3932, %v4049
        %v4182 = vadd.f32 %v3933, %v4049
        %v4183 = vadd.f32 %v3934, %v4049
        %v4184 = vadd.f32 %v3935, %v4049
        %v4185 = vadd.f32 %v3936, %v4049
        %v4186 = vadd.f32 %v3937, %v4049
        %v4187 = vadd.f32 %v3938, %v4049
        %v4188 = vadd.f32 %v3939, %v4049
        %v4189 = vadd.f32 %v3940, %v4049
        %v4190 = vadd.f32 %v3941, %v4049
        %v4191 = vadd.f32 %v3942, %v4049
        %v4192 = vadd.f32 %v3943, %v4049
        %v4193 = vadd.f32 %v3944, %v4049
        %v4194 = vadd.f32 %v3945, %v4049
        %v4195 = vadd.f32 %v3946, %v4049
        %v4196 = vadd.f32 %v3947, %v4049
        %v4197 = vadd.f32 %v3948, %v4049
        %v4198 = vadd.f32 %v3949, %v4049
        %v4199 = vadd.f32 %v3950, %v4049
        %v4200 = vadd.f32 %v3951, %v4049
        %v4201 = vadd.f32 %v3952, %v4049
        %v4202 = vadd.f32 %v3953, %v4049
        %v4203 = vadd.f32 %v3954, %v4049
        %v4204 = vadd.f32 %v3955, %v4049
        %v4205 = vadd.f32 %v3956, %v4049
        %v4206 = vadd.f32 %v3957, %v4049
        %v4207 = vadd.f32 %v3958, %v4049
        %v4208 = vadd.f32 %v3959, %v4049
        %v4209 = vadd.f32 %v3960, %v4049
        %v4210 = vadd.f32 %v3961, %v4049
        %v4211 = vadd.f32 %v3962, %v4049
        %v4212 = vadd.f32 %v3963, %v4049
        %v4213 = vadd.f32 %v3964, %v4049
        %v4214 = vadd.f32 %v3965, %v4049
        %v4215 = vadd.f32 %v3966, %v4049
        %v4216 = vadd.f32 %v3967, %v4049
        %v4217 = vadd.f32 %v3968, %v4049
        %v4218 = vadd.f32 %v3969, %v4049
        %v4219 = vadd.f32 %v3970, %v4049
        %v4220 = vadd.f32 %v3971, %v4049
        %v4221 = vadd.f32 %v3972, %v4049
        %v4222 = vadd.f32 %v3973, %v4049
        %v4223 = vadd.f32 %v3974, %v4049
        %v4224 = vadd.f32 %v3975, %v4049
        %v4225 = vadd.f32 %v3976, %v4049
        %v4226 = vadd.f32 %v3977, %v4049
        %v4227 = vadd.f32 %v3978, %v4049
        %v4228 = vadd.f32 %v3979, %v4049
        %v4229 = vadd.f32 %v3980, %v4049
        %v4230 = vadd.f32 %v3981, %v4049
        %v4231 = vadd.f32 %v3982, %v4049
        %v4232 = vadd.f32 %v3983, %v4049
        %v4233 = vadd.f32 %v3984, %v4049
        %v4234 = vadd.f32 %v3985, %v4049
        %v4235 = vadd.f32 %v3986, %v4049
        %v4236 = vadd.f32 %v3987, %v4049
        %v4237 = vadd.f32 %v3988, %v4049
        %v4238 = vadd.f32 %v3989, %v4049
        %v4239 = vadd.f32 %v3990, %v4049
        %v4240 = vadd.f32 %v3991, %v4049
        %v4241 = vadd.f32 %v3992, %v4049
        %v4242 = vadd.f32 %v3993, %v4049
        %v4243 = vadd.f32 %v3994, %v4049
        %v4244 = vadd.f32 %v3995, %v4049
        %v4245 = vadd.f32 %v3996, %v4049
        %v4246 = vadd.f32 %v3997, %v4049
        %v4247 = vadd.f32 %v3998, %v4049
        %v4248 = vadd.f32 %v3999, %v4049
        %v4249 = vadd.f32 %v4000, %v4049
        %v4250 = vadd.f32 %v4001, %v4049
        %v4251 = vadd.f32 %v4002, %v4049
        %v4252 = vadd.f32 %v4003, %v4049
        %v4253 = vadd.f32 %v4004, %v4049
        %v4254 = vadd.f32 %v4005, %v4049
        %v4255 = vadd.f32 %v4006, %v4049
        %v4256 = vadd.f32 %v4007, %v4049
        %v4257 = vadd.f32 %v4008, %v4049
        %v4258 = vadd.f32 %v4009, %v4049
        %v4259 = vadd.f32 %v4010, %v4049
        %v4260 = vadd.f32 %v4011, %v4049
        %v4261 = vadd.f32 %v4012, %v4049
        %v4262 = vadd.f32 %v4013, %v4049
        %v4263 = vadd.f32 %v4014, %v4049
        %v4264 = vadd.f32 %v4015, %v4049
        %v4265 = vadd.f32 %v4016, %v4049
        %v4266 = vadd.f32 %v4017, %v4049
        %v4267 = vadd.f32 %v4018, %v4049
        %v4268 = vadd.f32 %v4019, %v4049
        %v4269 = vadd.f32 %v4020, %v4049
        %v4270 = vadd.f32 %v4021, %v4049
        %v4271 = vadd.f32 %v4022, %v4049
        %v4272 = vadd.f32 %v4023, %v4049
        %v4273 = vadd.f32 %v4024, %v4049
        %v4274 = vadd.f32 %v4025, %v4049
        %v4275 = vadd.f32 %v4026, %v4049
        %v4276 = vadd.f32 %v4027, %v4049
        %v4277 = vadd.f32 %v4028, %v4049
        %v4278 = vadd.f32 %v4029, %v4049
        %v4279 = vadd.f32 %v4030, %v4049
        %v4280 = vadd.f32 %v4031, %v4049
        %v4281 = vadd.f32 %v4032, %v4049
        %v4282 = vadd.f32 %v4033, %v4049
        %v4283 = vadd.f32 %v4034, %v4049
        %v4284 = vadd.f32 %v4035, %v4049
        %v4285 = vadd.f32 %v4036, %v4049
        %v4286 = vadd.f32 %v4037, %v4049
        %v4287 = vadd.f32 %v4038, %v4049
        %v4288 = vadd.f32 %v4039, %v4049
        %v4289 = vadd.f32 %v4040, %v4049
        %v4290 = vadd.f32 %v4041, %v4049
        %v4291 = vadd.f32 %v4042, %v4049
        %v4292 = vadd.f32 %v4043, %v4049
        %vm4293 = vcmp.gt.f32.partialorder %v4051, 0.0
        %vm4294 = vcmp.gt.f32.partialorder %v4052, 0.0
        %vm4295 = vcmp.gt.f32.partialorder %v4053, 0.0
        %vm4296 = vcmp.gt.f32.partialorder %v4054, 0.0
        %vm4297 = vcmp.gt.f32.partialorder %v4055, 0.0
        %vm4298 = vcmp.gt.f32.partialorder %v4056, 0.0
        %vm4299 = vcmp.gt.f32.partialorder %v4057, 0.0
        %vm4300 = vcmp.gt.f32.partialorder %v4058, 0.0
        %vm4301 = vcmp.gt.f32.partialorder %v4059, 0.0
        %vm4302 = vcmp.gt.f32.partialorder %v4060, 0.0
        %vm4303 = vcmp.gt.f32.partialorder %v4061, 0.0
        %vm4304 = vcmp.gt.f32.partialorder %v4062, 0.0
        %vm4305 = vcmp.gt.f32.partialorder %v4063, 0.0
        %vm4306 = vcmp.gt.f32.partialorder %v4064, 0.0
        %vm4307 = vcmp.gt.f32.partialorder %v4065, 0.0
        %vm4308 = vcmp.gt.f32.partialorder %v4066, 0.0
        %vm4309 = vcmp.gt.f32.partialorder %v4067, 0.0
        %vm4310 = vcmp.gt.f32.partialorder %v4068, 0.0
        %vm4311 = vcmp.gt.f32.partialorder %v4069, 0.0
        %vm4312 = vcmp.gt.f32.partialorder %v4070, 0.0
        %vm4313 = vcmp.gt.f32.partialorder %v4071, 0.0
        %vm4314 = vcmp.gt.f32.partialorder %v4072, 0.0
        %vm4315 = vcmp.gt.f32.partialorder %v4073, 0.0
        %vm4316 = vcmp.gt.f32.partialorder %v4074, 0.0
        %vm4317 = vcmp.gt.f32.partialorder %v4075, 0.0
        %vm4318 = vcmp.gt.f32.partialorder %v4076, 0.0
        %vm4319 = vcmp.gt.f32.partialorder %v4077, 0.0
        %vm4320 = vcmp.gt.f32.partialorder %v4078, 0.0
        %vm4321 = vcmp.gt.f32.partialorder %v4079, 0.0
        %vm4322 = vcmp.gt.f32.partialorder %v4080, 0.0
        %vm4323 = vcmp.gt.f32.partialorder %v4081, 0.0
        %vm4324 = vcmp.gt.f32.partialorder %v4082, 0.0
        %vm4325 = vcmp.gt.f32.partialorder %v4083, 0.0
        %vm4326 = vcmp.gt.f32.partialorder %v4084, 0.0
        %vm4327 = vcmp.gt.f32.partialorder %v4085, 0.0
        %vm4328 = vcmp.gt.f32.partialorder %v4086, 0.0
        %vm4329 = vcmp.gt.f32.partialorder %v4087, 0.0
        %vm4330 = vcmp.gt.f32.partialorder %v4088, 0.0
        %vm4331 = vcmp.gt.f32.partialorder %v4089, 0.0
        %vm4332 = vcmp.gt.f32.partialorder %v4090, 0.0
        %vm4333 = vcmp.gt.f32.partialorder %v4091, 0.0
        %vm4334 = vcmp.gt.f32.partialorder %v4092, 0.0
        %vm4335 = vcmp.gt.f32.partialorder %v4093, 0.0
        %vm4336 = vcmp.gt.f32.partialorder %v4094, 0.0
        %vm4337 = vcmp.gt.f32.partialorder %v4095, 0.0
        %vm4338 = vcmp.gt.f32.partialorder %v4096, 0.0
        %vm4339 = vcmp.gt.f32.partialorder %v4097, 0.0
        %vm4340 = vcmp.gt.f32.partialorder %v4098, 0.0
        %vm4341 = vcmp.gt.f32.partialorder %v4099, 0.0
        %vm4342 = vcmp.gt.f32.partialorder %v4100, 0.0
        %vm4343 = vcmp.gt.f32.partialorder %v4101, 0.0
        %vm4344 = vcmp.gt.f32.partialorder %v4102, 0.0
        %vm4345 = vcmp.gt.f32.partialorder %v4103, 0.0
        %vm4346 = vcmp.gt.f32.partialorder %v4104, 0.0
        %vm4347 = vcmp.gt.f32.partialorder %v4105, 0.0
        %vm4348 = vcmp.gt.f32.partialorder %v4106, 0.0
        %vm4349 = vcmp.gt.f32.partialorder %v4107, 0.0
        %vm4350 = vcmp.gt.f32.partialorder %v4108, 0.0
        %vm4351 = vcmp.gt.f32.partialorder %v4109, 0.0
        %vm4352 = vcmp.gt.f32.partialorder %v4110, 0.0
        %vm4353 = vcmp.gt.f32.partialorder %v4111, 0.0
        %vm4354 = vcmp.gt.f32.partialorder %v4112, 0.0
        %vm4355 = vcmp.gt.f32.partialorder %v4113, 0.0
        %vm4356 = vcmp.gt.f32.partialorder %v4114, 0.0
        %vm4357 = vcmp.gt.f32.partialorder %v4115, 0.0
        %vm4358 = vcmp.gt.f32.partialorder %v4116, 0.0
        %vm4359 = vcmp.gt.f32.partialorder %v4117, 0.0
        %vm4360 = vcmp.gt.f32.partialorder %v4118, 0.0
        %vm4361 = vcmp.gt.f32.partialorder %v4119, 0.0
        %vm4362 = vcmp.gt.f32.partialorder %v4120, 0.0
        %vm4363 = vcmp.gt.f32.partialorder %v4121, 0.0
        %vm4364 = vcmp.gt.f32.partialorder %v4122, 0.0
        %vm4365 = vcmp.gt.f32.partialorder %v4123, 0.0
        %vm4366 = vcmp.gt.f32.partialorder %v4124, 0.0
        %vm4367 = vcmp.gt.f32.partialorder %v4125, 0.0
        %vm4368 = vcmp.gt.f32.partialorder %v4126, 0.0
        %vm4369 = vcmp.gt.f32.partialorder %v4127, 0.0
        %vm4370 = vcmp.gt.f32.partialorder %v4128, 0.0
        %vm4371 = vcmp.gt.f32.partialorder %v4129, 0.0
        %vm4372 = vcmp.gt.f32.partialorder %v4130, 0.0
        %vm4373 = vcmp.gt.f32.partialorder %v4131, 0.0
        %vm4374 = vcmp.gt.f32.partialorder %v4132, 0.0
        %vm4375 = vcmp.gt.f32.partialorder %v4133, 0.0
        %vm4376 = vcmp.gt.f32.partialorder %v4134, 0.0
        %vm4377 = vcmp.gt.f32.partialorder %v4135, 0.0
        %vm4378 = vcmp.gt.f32.partialorder %v4136, 0.0
        %vm4379 = vcmp.gt.f32.partialorder %v4137, 0.0
        %vm4380 = vcmp.gt.f32.partialorder %v4138, 0.0
        %vm4381 = vcmp.gt.f32.partialorder %v4139, 0.0
        %vm4382 = vcmp.gt.f32.partialorder %v4140, 0.0
        %vm4383 = vcmp.gt.f32.partialorder %v4141, 0.0
        %vm4384 = vcmp.gt.f32.partialorder %v4142, 0.0
        %vm4385 = vcmp.gt.f32.partialorder %v4143, 0.0
        %vm4386 = vcmp.gt.f32.partialorder %v4144, 0.0
        %vm4387 = vcmp.gt.f32.partialorder %v4145, 0.0
        %vm4388 = vcmp.gt.f32.partialorder %v4146, 0.0
        %vm4389 = vcmp.gt.f32.partialorder %v4147, 0.0
        %vm4390 = vcmp.gt.f32.partialorder %v4148, 0.0
        %vm4391 = vcmp.gt.f32.partialorder %v4149, 0.0
        %vm4392 = vcmp.gt.f32.partialorder %v4150, 0.0
        %vm4393 = vcmp.gt.f32.partialorder %v4151, 0.0
        %vm4394 = vcmp.gt.f32.partialorder %v4152, 0.0
        %vm4395 = vcmp.gt.f32.partialorder %v4153, 0.0
        %vm4396 = vcmp.gt.f32.partialorder %v4154, 0.0
        %vm4397 = vcmp.gt.f32.partialorder %v4155, 0.0
        %vm4398 = vcmp.gt.f32.partialorder %v4156, 0.0
        %vm4399 = vcmp.gt.f32.partialorder %v4157, 0.0
        %vm4400 = vcmp.gt.f32.partialorder %v4158, 0.0
        %vm4401 = vcmp.gt.f32.partialorder %v4159, 0.0
        %vm4402 = vcmp.gt.f32.partialorder %v4160, 0.0
        %vm4403 = vcmp.gt.f32.partialorder %v4161, 0.0
        %vm4404 = vcmp.gt.f32.partialorder %v4162, 0.0
        %vm4405 = vcmp.gt.f32.partialorder %v4163, 0.0
        %vm4406 = vcmp.gt.f32.partialorder %v4164, 0.0
        %vm4407 = vcmp.gt.f32.partialorder %v4165, 0.0
        %vm4408 = vcmp.gt.f32.partialorder %v4166, 0.0
        %vm4409 = vcmp.gt.f32.partialorder %v4167, 0.0
        %vm4410 = vcmp.gt.f32.partialorder %v4168, 0.0
        %vm4411 = vcmp.gt.f32.partialorder %v4169, 0.0
        %vm4412 = vcmp.gt.f32.partialorder %v4170, 0.0
        %vm4413 = vcmp.gt.f32.partialorder %v4171, 0.0
        %vm4414 = vcmp.gt.f32.partialorder %v4172, 0.0
        %vm4415 = vcmp.gt.f32.partialorder %v4173, 0.0
        %vm4416 = vcmp.gt.f32.partialorder %v4174, 0.0
        %vm4417 = vcmp.gt.f32.partialorder %v4175, 0.0
        %vm4418 = vcmp.gt.f32.partialorder %v4176, 0.0
        %vm4419 = vcmp.gt.f32.partialorder %v4177, 0.0
        %vm4420 = vcmp.gt.f32.partialorder %v4178, 0.0
        %vm4421 = vcmp.gt.f32.partialorder %v4179, 0.0
        %vm4422 = vcmp.gt.f32.partialorder %v4180, 0.0
        %vm4423 = vcmp.gt.f32.partialorder %v4181, 0.0
        %vm4424 = vcmp.gt.f32.partialorder %v4182, 0.0
        %vm4425 = vcmp.gt.f32.partialorder %v4183, 0.0
        %vm4426 = vcmp.gt.f32.partialorder %v4184, 0.0
        %vm4427 = vcmp.gt.f32.partialorder %v4185, 0.0
        %vm4428 = vcmp.gt.f32.partialorder %v4186, 0.0
        %vm4429 = vcmp.gt.f32.partialorder %v4187, 0.0
        %vm4430 = vcmp.gt.f32.partialorder %v4188, 0.0
        %vm4431 = vcmp.gt.f32.partialorder %v4189, 0.0
        %vm4432 = vcmp.gt.f32.partialorder %v4190, 0.0
        %vm4433 = vcmp.gt.f32.partialorder %v4191, 0.0
        %vm4434 = vcmp.gt.f32.partialorder %v4192, 0.0
        %vm4435 = vcmp.gt.f32.partialorder %v4193, 0.0
        %vm4436 = vcmp.gt.f32.partialorder %v4194, 0.0
        %vm4437 = vcmp.gt.f32.partialorder %v4195, 0.0
        %vm4438 = vcmp.gt.f32.partialorder %v4196, 0.0
        %vm4439 = vcmp.gt.f32.partialorder %v4197, 0.0
        %vm4440 = vcmp.gt.f32.partialorder %v4198, 0.0
        %vm4441 = vcmp.gt.f32.partialorder %v4199, 0.0
        %vm4442 = vcmp.gt.f32.partialorder %v4200, 0.0
        %vm4443 = vcmp.gt.f32.partialorder %v4201, 0.0
        %vm4444 = vcmp.gt.f32.partialorder %v4202, 0.0
        %vm4445 = vcmp.gt.f32.partialorder %v4203, 0.0
        %vm4446 = vcmp.gt.f32.partialorder %v4204, 0.0
        %vm4447 = vcmp.gt.f32.partialorder %v4205, 0.0
        %vm4448 = vcmp.gt.f32.partialorder %v4206, 0.0
        %vm4449 = vcmp.gt.f32.partialorder %v4207, 0.0
        %vm4450 = vcmp.gt.f32.partialorder %v4208, 0.0
        %vm4451 = vcmp.gt.f32.partialorder %v4209, 0.0
        %vm4452 = vcmp.gt.f32.partialorder %v4210, 0.0
        %vm4453 = vcmp.gt.f32.partialorder %v4211, 0.0
        %vm4454 = vcmp.gt.f32.partialorder %v4212, 0.0
        %vm4455 = vcmp.gt.f32.partialorder %v4213, 0.0
        %vm4456 = vcmp.gt.f32.partialorder %v4214, 0.0
        %vm4457 = vcmp.gt.f32.partialorder %v4215, 0.0
        %vm4458 = vcmp.gt.f32.partialorder %v4216, 0.0
        %vm4459 = vcmp.gt.f32.partialorder %v4217, 0.0
        %vm4460 = vcmp.gt.f32.partialorder %v4218, 0.0
        %vm4461 = vcmp.gt.f32.partialorder %v4219, 0.0
        %vm4462 = vcmp.gt.f32.partialorder %v4220, 0.0
        %vm4463 = vcmp.gt.f32.partialorder %v4221, 0.0
        %vm4464 = vcmp.gt.f32.partialorder %v4222, 0.0
        %vm4465 = vcmp.gt.f32.partialorder %v4223, 0.0
        %vm4466 = vcmp.gt.f32.partialorder %v4224, 0.0
        %vm4467 = vcmp.gt.f32.partialorder %v4225, 0.0
        %vm4468 = vcmp.gt.f32.partialorder %v4226, 0.0
        %vm4469 = vcmp.gt.f32.partialorder %v4227, 0.0
        %vm4470 = vcmp.gt.f32.partialorder %v4228, 0.0
        %vm4471 = vcmp.gt.f32.partialorder %v4229, 0.0
        %vm4472 = vcmp.gt.f32.partialorder %v4230, 0.0
        %vm4473 = vcmp.gt.f32.partialorder %v4231, 0.0
        %vm4474 = vcmp.gt.f32.partialorder %v4232, 0.0
        %vm4475 = vcmp.gt.f32.partialorder %v4233, 0.0
        %vm4476 = vcmp.gt.f32.partialorder %v4234, 0.0
        %vm4477 = vcmp.gt.f32.partialorder %v4235, 0.0
        %vm4478 = vcmp.gt.f32.partialorder %v4236, 0.0
        %vm4479 = vcmp.gt.f32.partialorder %v4237, 0.0
        %vm4480 = vcmp.gt.f32.partialorder %v4238, 0.0
        %vm4481 = vcmp.gt.f32.partialorder %v4239, 0.0
        %vm4482 = vcmp.gt.f32.partialorder %v4240, 0.0
        %vm4483 = vcmp.gt.f32.partialorder %v4241, 0.0
        %vm4484 = vcmp.gt.f32.partialorder %v4242, 0.0
        %vm4485 = vcmp.gt.f32.partialorder %v4243, 0.0
        %vm4486 = vcmp.gt.f32.partialorder %v4244, 0.0
        %vm4487 = vcmp.gt.f32.partialorder %v4245, 0.0
        %vm4488 = vcmp.gt.f32.partialorder %v4246, 0.0
        %vm4489 = vcmp.gt.f32.partialorder %v4247, 0.0
        %vm4490 = vcmp.gt.f32.partialorder %v4248, 0.0
        %vm4491 = vcmp.gt.f32.partialorder %v4249, 0.0
        %vm4492 = vcmp.gt.f32.partialorder %v4250, 0.0
        %vm4493 = vcmp.gt.f32.partialorder %v4251, 0.0
        %vm4494 = vcmp.gt.f32.partialorder %v4252, 0.0
        %vm4495 = vcmp.gt.f32.partialorder %v4253, 0.0
        %vm4496 = vcmp.gt.f32.partialorder %v4254, 0.0
        %vm4497 = vcmp.gt.f32.partialorder %v4255, 0.0
        %vm4498 = vcmp.gt.f32.partialorder %v4256, 0.0
        %vm4499 = vcmp.gt.f32.partialorder %v4257, 0.0
        %vm4500 = vcmp.gt.f32.partialorder %v4258, 0.0
        %vm4501 = vcmp.gt.f32.partialorder %v4259, 0.0
        %vm4502 = vcmp.gt.f32.partialorder %v4260, 0.0
        %vm4503 = vcmp.gt.f32.partialorder %v4261, 0.0
        %vm4504 = vcmp.gt.f32.partialorder %v4262, 0.0
        %vm4505 = vcmp.gt.f32.partialorder %v4263, 0.0
        %vm4506 = vcmp.gt.f32.partialorder %v4264, 0.0
        %vm4507 = vcmp.gt.f32.partialorder %v4265, 0.0
        %vm4508 = vcmp.gt.f32.partialorder %v4266, 0.0
        %vm4509 = vcmp.gt.f32.partialorder %v4267, 0.0
        %vm4510 = vcmp.gt.f32.partialorder %v4268, 0.0
        %vm4511 = vcmp.gt.f32.partialorder %v4269, 0.0
        %vm4512 = vcmp.gt.f32.partialorder %v4270, 0.0
        %vm4513 = vcmp.gt.f32.partialorder %v4271, 0.0
        %vm4514 = vcmp.gt.f32.partialorder %v4272, 0.0
        %vm4515 = vcmp.gt.f32.partialorder %v4273, 0.0
        %vm4516 = vcmp.gt.f32.partialorder %v4274, 0.0
        %vm4517 = vcmp.gt.f32.partialorder %v4275, 0.0
        %vm4518 = vcmp.gt.f32.partialorder %v4276, 0.0
        %vm4519 = vcmp.gt.f32.partialorder %v4277, 0.0
        %vm4520 = vcmp.gt.f32.partialorder %v4278, 0.0
        %vm4521 = vcmp.gt.f32.partialorder %v4279, 0.0
        %vm4522 = vcmp.gt.f32.partialorder %v4280, 0.0
        %vm4523 = vcmp.gt.f32.partialorder %v4281, 0.0
        %vm4524 = vcmp.gt.f32.partialorder %v4282, 0.0
        %vm4525 = vcmp.gt.f32.partialorder %v4283, 0.0
        %vm4526 = vcmp.gt.f32.partialorder %v4284, 0.0
        %vm4527 = vcmp.gt.f32.partialorder %v4285, 0.0
        %vm4528 = vcmp.gt.f32.partialorder %v4286, 0.0
        %vm4529 = vcmp.gt.f32.partialorder %v4287, 0.0
        %vm4530 = vcmp.gt.f32.partialorder %v4288, 0.0
        %vm4531 = vcmp.gt.f32.partialorder %v4289, 0.0
        %vm4532 = vcmp.gt.f32.partialorder %v4290, 0.0
        %vm4533 = vcmp.gt.f32.partialorder %v4291, 0.0
        %vm4534 = vcmp.gt.f32.partialorder %v4292, 0.0
        %v4535 = vld [vmem:[%s331] sm:$0x1]
        %v4537 = vlaneseq
        %v4538 = vshrl.u32 %v4537, 7
        %v4539 = vsub.s32 0, %v4538
        %v4540 = vrot.slane %v4535, %v4539
        %v4542 = vmul.f32 %v4051, %v4540
        %v4543 = vmul.f32 %v4052, %v4540
        %v4544 = vmul.f32 %v4053, %v4540
        %v4545 = vmul.f32 %v4054, %v4540
        %v4546 = vmul.f32 %v4055, %v4540
        %v4547 = vmul.f32 %v4056, %v4540
        %v4548 = vmul.f32 %v4057, %v4540
        %v4549 = vmul.f32 %v4058, %v4540
        %v4550 = vmul.f32 %v4059, %v4540
        %v4551 = vmul.f32 %v4060, %v4540
        %v4552 = vmul.f32 %v4061, %v4540
        %v4553 = vmul.f32 %v4062, %v4540
        %v4554 = vmul.f32 %v4063, %v4540
        %v4555 = vmul.f32 %v4064, %v4540
        %v4556 = vmul.f32 %v4065, %v4540
        %v4557 = vmul.f32 %v4066, %v4540
        %v4558 = vmul.f32 %v4067, %v4540
        %v4559 = vmul.f32 %v4068, %v4540
        %v4560 = vmul.f32 %v4069, %v4540
        %v4561 = vmul.f32 %v4070, %v4540
        %v4562 = vmul.f32 %v4071, %v4540
        %v4563 = vmul.f32 %v4072, %v4540
        %v4564 = vmul.f32 %v4073, %v4540
        %v4565 = vmul.f32 %v4074, %v4540
        %v4566 = vmul.f32 %v4075, %v4540
        %v4567 = vmul.f32 %v4076, %v4540
        %v4568 = vmul.f32 %v4077, %v4540
        %v4569 = vmul.f32 %v4078, %v4540
        %v4570 = vmul.f32 %v4079, %v4540
        %v4571 = vmul.f32 %v4080, %v4540
        %v4572 = vmul.f32 %v4081, %v4540
        %v4573 = vmul.f32 %v4082, %v4540
        %v4574 = vmul.f32 %v4083, %v4540
        %v4575 = vmul.f32 %v4084, %v4540
        %v4576 = vmul.f32 %v4085, %v4540
        %v4577 = vmul.f32 %v4086, %v4540
        %v4578 = vmul.f32 %v4087, %v4540
        %v4579 = vmul.f32 %v4088, %v4540
        %v4580 = vmul.f32 %v4089, %v4540
        %v4581 = vmul.f32 %v4090, %v4540
        %v4582 = vmul.f32 %v4091, %v4540
        %v4583 = vmul.f32 %v4092, %v4540
        %v4584 = vmul.f32 %v4093, %v4540
        %v4585 = vmul.f32 %v4094, %v4540
        %v4586 = vmul.f32 %v4095, %v4540
        %v4587 = vmul.f32 %v4096, %v4540
        %v4588 = vmul.f32 %v4097, %v4540
        %v4589 = vmul.f32 %v4098, %v4540
        %v4590 = vmul.f32 %v4099, %v4540
        %v4591 = vmul.f32 %v4100, %v4540
        %v4592 = vmul.f32 %v4101, %v4540
        %v4593 = vmul.f32 %v4102, %v4540
        %v4594 = vmul.f32 %v4103, %v4540
        %v4595 = vmul.f32 %v4104, %v4540
        %v4596 = vmul.f32 %v4105, %v4540
        %v4597 = vmul.f32 %v4106, %v4540
        %v4598 = vmul.f32 %v4107, %v4540
        %v4599 = vmul.f32 %v4108, %v4540
        %v4600 = vmul.f32 %v4109, %v4540
        %v4601 = vmul.f32 %v4110, %v4540
        %v4602 = vmul.f32 %v4111, %v4540
        %v4603 = vmul.f32 %v4112, %v4540
        %v4604 = vmul.f32 %v4113, %v4540
        %v4605 = vmul.f32 %v4114, %v4540
        %v4606 = vmul.f32 %v4115, %v4540
        %v4607 = vmul.f32 %v4116, %v4540
        %v4608 = vmul.f32 %v4117, %v4540
        %v4609 = vmul.f32 %v4118, %v4540
        %v4610 = vmul.f32 %v4119, %v4540
        %v4611 = vmul.f32 %v4120, %v4540
        %v4612 = vmul.f32 %v4121, %v4540
        %v4613 = vmul.f32 %v4122, %v4540
        %v4614 = vmul.f32 %v4123, %v4540
        %v4615 = vmul.f32 %v4124, %v4540
        %v4616 = vmul.f32 %v4125, %v4540
        %v4617 = vmul.f32 %v4126, %v4540
        %v4618 = vmul.f32 %v4127, %v4540
        %v4619 = vmul.f32 %v4128, %v4540
        %v4620 = vmul.f32 %v4129, %v4540
        %v4621 = vmul.f32 %v4130, %v4540
        %v4622 = vmul.f32 %v4131, %v4540
        %v4623 = vmul.f32 %v4132, %v4540
        %v4624 = vmul.f32 %v4133, %v4540
        %v4625 = vmul.f32 %v4134, %v4540
        %v4626 = vmul.f32 %v4135, %v4540
        %v4627 = vmul.f32 %v4136, %v4540
        %v4628 = vmul.f32 %v4137, %v4540
        %v4629 = vmul.f32 %v4138, %v4540
        %v4630 = vmul.f32 %v4139, %v4540
        %v4631 = vmul.f32 %v4140, %v4540
        %v4632 = vmul.f32 %v4141, %v4540
        %v4633 = vmul.f32 %v4142, %v4540
        %v4634 = vmul.f32 %v4143, %v4540
        %v4635 = vmul.f32 %v4144, %v4540
        %v4636 = vmul.f32 %v4145, %v4540
        %v4637 = vmul.f32 %v4146, %v4540
        %v4638 = vmul.f32 %v4147, %v4540
        %v4639 = vmul.f32 %v4148, %v4540
        %v4640 = vmul.f32 %v4149, %v4540
        %v4641 = vmul.f32 %v4150, %v4540
        %v4642 = vmul.f32 %v4151, %v4540
        %v4643 = vmul.f32 %v4152, %v4540
        %v4644 = vmul.f32 %v4153, %v4540
        %v4645 = vmul.f32 %v4154, %v4540
        %v4646 = vmul.f32 %v4155, %v4540
        %v4647 = vmul.f32 %v4156, %v4540
        %v4648 = vmul.f32 %v4157, %v4540
        %v4649 = vmul.f32 %v4158, %v4540
        %v4650 = vmul.f32 %v4159, %v4540
        %v4651 = vmul.f32 %v4160, %v4540
        %v4652 = vmul.f32 %v4161, %v4540
        %v4653 = vmul.f32 %v4162, %v4540
        %v4654 = vmul.f32 %v4163, %v4540
        %v4655 = vmul.f32 %v4164, %v4540
        %v4656 = vmul.f32 %v4165, %v4540
        %v4657 = vmul.f32 %v4166, %v4540
        %v4658 = vmul.f32 %v4167, %v4540
        %v4659 = vmul.f32 %v4168, %v4540
        %v4660 = vmul.f32 %v4169, %v4540
        %v4661 = vmul.f32 %v4170, %v4540
        %v4662 = vmul.f32 %v4171, %v4540
        %v4663 = vmul.f32 %v4172, %v4540
        %v4664 = vmul.f32 %v4173, %v4540
        %v4665 = vmul.f32 %v4174, %v4540
        %v4666 = vmul.f32 %v4175, %v4540
        %v4667 = vmul.f32 %v4176, %v4540
        %v4668 = vmul.f32 %v4177, %v4540
        %v4669 = vmul.f32 %v4178, %v4540
        %v4670 = vmul.f32 %v4179, %v4540
        %v4671 = vmul.f32 %v4180, %v4540
        %v4672 = vmul.f32 %v4181, %v4540
        %v4673 = vmul.f32 %v4182, %v4540
        %v4674 = vmul.f32 %v4183, %v4540
        %v4675 = vmul.f32 %v4184, %v4540
        %v4676 = vmul.f32 %v4185, %v4540
        %v4677 = vmul.f32 %v4186, %v4540
        %v4678 = vmul.f32 %v4187, %v4540
        %v4679 = vmul.f32 %v4188, %v4540
        %v4680 = vmul.f32 %v4189, %v4540
        %v4681 = vmul.f32 %v4190, %v4540
        %v4682 = vmul.f32 %v4191, %v4540
        %v4683 = vmul.f32 %v4192, %v4540
        %v4684 = vmul.f32 %v4193, %v4540
        %v4685 = vmul.f32 %v4194, %v4540
        %v4686 = vmul.f32 %v4195, %v4540
        %v4687 = vmul.f32 %v4196, %v4540
        %v4688 = vmul.f32 %v4197, %v4540
        %v4689 = vmul.f32 %v4198, %v4540
        %v4690 = vmul.f32 %v4199, %v4540
        %v4691 = vmul.f32 %v4200, %v4540
        %v4692 = vmul.f32 %v4201, %v4540
        %v4693 = vmul.f32 %v4202, %v4540
        %v4694 = vmul.f32 %v4203, %v4540
        %v4695 = vmul.f32 %v4204, %v4540
        %v4696 = vmul.f32 %v4205, %v4540
        %v4697 = vmul.f32 %v4206, %v4540
        %v4698 = vmul.f32 %v4207, %v4540
        %v4699 = vmul.f32 %v4208, %v4540
        %v4700 = vmul.f32 %v4209, %v4540
        %v4701 = vmul.f32 %v4210, %v4540
        %v4702 = vmul.f32 %v4211, %v4540
        %v4703 = vmul.f32 %v4212, %v4540
        %v4704 = vmul.f32 %v4213, %v4540
        %v4705 = vmul.f32 %v4214, %v4540
        %v4706 = vmul.f32 %v4215, %v4540
        %v4707 = vmul.f32 %v4216, %v4540
        %v4708 = vmul.f32 %v4217, %v4540
        %v4709 = vmul.f32 %v4218, %v4540
        %v4710 = vmul.f32 %v4219, %v4540
        %v4711 = vmul.f32 %v4220, %v4540
        %v4712 = vmul.f32 %v4221, %v4540
        %v4713 = vmul.f32 %v4222, %v4540
        %v4714 = vmul.f32 %v4223, %v4540
        %v4715 = vmul.f32 %v4224, %v4540
        %v4716 = vmul.f32 %v4225, %v4540
        %v4717 = vmul.f32 %v4226, %v4540
        %v4718 = vmul.f32 %v4227, %v4540
        %v4719 = vmul.f32 %v4228, %v4540
        %v4720 = vmul.f32 %v4229, %v4540
        %v4721 = vmul.f32 %v4230, %v4540
        %v4722 = vmul.f32 %v4231, %v4540
        %v4723 = vmul.f32 %v4232, %v4540
        %v4724 = vmul.f32 %v4233, %v4540
        %v4725 = vmul.f32 %v4234, %v4540
        %v4726 = vmul.f32 %v4235, %v4540
        %v4727 = vmul.f32 %v4236, %v4540
        %v4728 = vmul.f32 %v4237, %v4540
        %v4729 = vmul.f32 %v4238, %v4540
        %v4730 = vmul.f32 %v4239, %v4540
        %v4731 = vmul.f32 %v4240, %v4540
        %v4732 = vmul.f32 %v4241, %v4540
        %v4733 = vmul.f32 %v4242, %v4540
        %v4734 = vmul.f32 %v4243, %v4540
        %v4735 = vmul.f32 %v4244, %v4540
        %v4736 = vmul.f32 %v4245, %v4540
        %v4737 = vmul.f32 %v4246, %v4540
        %v4738 = vmul.f32 %v4247, %v4540
        %v4739 = vmul.f32 %v4248, %v4540
        %v4740 = vmul.f32 %v4249, %v4540
        %v4741 = vmul.f32 %v4250, %v4540
        %v4742 = vmul.f32 %v4251, %v4540
        %v4743 = vmul.f32 %v4252, %v4540
        %v4744 = vmul.f32 %v4253, %v4540
        %v4745 = vmul.f32 %v4254, %v4540
        %v4746 = vmul.f32 %v4255, %v4540
        %v4747 = vmul.f32 %v4256, %v4540
        %v4748 = vmul.f32 %v4257, %v4540
        %v4749 = vmul.f32 %v4258, %v4540
        %v4750 = vmul.f32 %v4259, %v4540
        %v4751 = vmul.f32 %v4260, %v4540
        %v4752 = vmul.f32 %v4261, %v4540
        %v4753 = vmul.f32 %v4262, %v4540
        %v4754 = vmul.f32 %v4263, %v4540
        %v4755 = vmul.f32 %v4264, %v4540
        %v4756 = vmul.f32 %v4265, %v4540
        %v4757 = vmul.f32 %v4266, %v4540
        %v4758 = vmul.f32 %v4267, %v4540
        %v4759 = vmul.f32 %v4268, %v4540
        %v4760 = vmul.f32 %v4269, %v4540
        %v4761 = vmul.f32 %v4270, %v4540
        %v4762 = vmul.f32 %v4271, %v4540
        %v4763 = vmul.f32 %v4272, %v4540
        %v4764 = vmul.f32 %v4273, %v4540
        %v4765 = vmul.f32 %v4274, %v4540
        %v4766 = vmul.f32 %v4275, %v4540
        %v4767 = vmul.f32 %v4276, %v4540
        %v4768 = vmul.f32 %v4277, %v4540
        %v4769 = vmul.f32 %v4278, %v4540
        %v4770 = vmul.f32 %v4279, %v4540
        %v4771 = vmul.f32 %v4280, %v4540
        %v4772 = vmul.f32 %v4281, %v4540
        %v4773 = vmul.f32 %v4282, %v4540
        %v4774 = vmul.f32 %v4283, %v4540
        %v4775 = vmul.f32 %v4284, %v4540
        %v4776 = vmul.f32 %v4285, %v4540
        %v4777 = vmul.f32 %v4286, %v4540
        %v4778 = vmul.f32 %v4287, %v4540
        %v4779 = vmul.f32 %v4288, %v4540
        %v4780 = vmul.f32 %v4289, %v4540
        %v4781 = vmul.f32 %v4290, %v4540
        %v4782 = vmul.f32 %v4291, %v4540
        %v4783 = vmul.f32 %v4292, %v4540
        %v4784 = vsel %vm4293, %v4051, %v4542
        %v4785 = vsel %vm4294, %v4052, %v4543
        %v4786 = vsel %vm4295, %v4053, %v4544
        %v4787 = vsel %vm4296, %v4054, %v4545
        %v4788 = vsel %vm4297, %v4055, %v4546
        %v4789 = vsel %vm4298, %v4056, %v4547
        %v4790 = vsel %vm4299, %v4057, %v4548
        %v4791 = vsel %vm4300, %v4058, %v4549
        %v4792 = vsel %vm4301, %v4059, %v4550
        %v4793 = vsel %vm4302, %v4060, %v4551
        %v4794 = vsel %vm4303, %v4061, %v4552
        %v4795 = vsel %vm4304, %v4062, %v4553
        %v4796 = vsel %vm4305, %v4063, %v4554
        %v4797 = vsel %vm4306, %v4064, %v4555
        %v4798 = vsel %vm4307, %v4065, %v4556
        %v4799 = vsel %vm4308, %v4066, %v4557
        %v4800 = vsel %vm4309, %v4067, %v4558
        %v4801 = vsel %vm4310, %v4068, %v4559
        %v4802 = vsel %vm4311, %v4069, %v4560
        %v4803 = vsel %vm4312, %v4070, %v4561
        %v4804 = vsel %vm4313, %v4071, %v4562
        %v4805 = vsel %vm4314, %v4072, %v4563
        %v4806 = vsel %vm4315, %v4073, %v4564
        %v4807 = vsel %vm4316, %v4074, %v4565
        %v4808 = vsel %vm4317, %v4075, %v4566
        %v4809 = vsel %vm4318, %v4076, %v4567
        %v4810 = vsel %vm4319, %v4077, %v4568
        %v4811 = vsel %vm4320, %v4078, %v4569
        %v4812 = vsel %vm4321, %v4079, %v4570
        %v4813 = vsel %vm4322, %v4080, %v4571
        %v4814 = vsel %vm4323, %v4081, %v4572
        %v4815 = vsel %vm4324, %v4082, %v4573
        %v4816 = vsel %vm4325, %v4083, %v4574
        %v4817 = vsel %vm4326, %v4084, %v4575
        %v4818 = vsel %vm4327, %v4085, %v4576
        %v4819 = vsel %vm4328, %v4086, %v4577
        %v4820 = vsel %vm4329, %v4087, %v4578
        %v4821 = vsel %vm4330, %v4088, %v4579
        %v4822 = vsel %vm4331, %v4089, %v4580
        %v4823 = vsel %vm4332, %v4090, %v4581
        %v4824 = vsel %vm4333, %v4091, %v4582
        %v4825 = vsel %vm4334, %v4092, %v4583
        %v4826 = vsel %vm4335, %v4093, %v4584
        %v4827 = vsel %vm4336, %v4094, %v4585
        %v4828 = vsel %vm4337, %v4095, %v4586
        %v4829 = vsel %vm4338, %v4096, %v4587
        %v4830 = vsel %vm4339, %v4097, %v4588
        %v4831 = vsel %vm4340, %v4098, %v4589
        %v4832 = vsel %vm4341, %v4099, %v4590
        %v4833 = vsel %vm4342, %v4100, %v4591
        %v4834 = vsel %vm4343, %v4101, %v4592
        %v4835 = vsel %vm4344, %v4102, %v4593
        %v4836 = vsel %vm4345, %v4103, %v4594
        %v4837 = vsel %vm4346, %v4104, %v4595
        %v4838 = vsel %vm4347, %v4105, %v4596
        %v4839 = vsel %vm4348, %v4106, %v4597
        %v4840 = vsel %vm4349, %v4107, %v4598
        %v4841 = vsel %vm4350, %v4108, %v4599
        %v4842 = vsel %vm4351, %v4109, %v4600
        %v4843 = vsel %vm4352, %v4110, %v4601
        %v4844 = vsel %vm4353, %v4111, %v4602
        %v4845 = vsel %vm4354, %v4112, %v4603
        %v4846 = vsel %vm4355, %v4113, %v4604
        %v4847 = vsel %vm4356, %v4114, %v4605
        %v4848 = vsel %vm4357, %v4115, %v4606
        %v4849 = vsel %vm4358, %v4116, %v4607
        %v4850 = vsel %vm4359, %v4117, %v4608
        %v4851 = vsel %vm4360, %v4118, %v4609
        %v4852 = vsel %vm4361, %v4119, %v4610
        %v4853 = vsel %vm4362, %v4120, %v4611
        %v4854 = vsel %vm4363, %v4121, %v4612
        %v4855 = vsel %vm4364, %v4122, %v4613
        %v4856 = vsel %vm4365, %v4123, %v4614
        %v4857 = vsel %vm4366, %v4124, %v4615
        %v4858 = vsel %vm4367, %v4125, %v4616
        %v4859 = vsel %vm4368, %v4126, %v4617
        %v4860 = vsel %vm4369, %v4127, %v4618
        %v4861 = vsel %vm4370, %v4128, %v4619
        %v4862 = vsel %vm4371, %v4129, %v4620
        %v4863 = vsel %vm4372, %v4130, %v4621
        %v4864 = vsel %vm4373, %v4131, %v4622
        %v4865 = vsel %vm4374, %v4132, %v4623
        %v4866 = vsel %vm4375, %v4133, %v4624
        %v4867 = vsel %vm4376, %v4134, %v4625
        %v4868 = vsel %vm4377, %v4135, %v4626
        %v4869 = vsel %vm4378, %v4136, %v4627
        %v4870 = vsel %vm4379, %v4137, %v4628
        %v4871 = vsel %vm4380, %v4138, %v4629
        %v4872 = vsel %vm4381, %v4139, %v4630
        %v4873 = vsel %vm4382, %v4140, %v4631
        %v4874 = vsel %vm4383, %v4141, %v4632
        %v4875 = vsel %vm4384, %v4142, %v4633
        %v4876 = vsel %vm4385, %v4143, %v4634
        %v4877 = vsel %vm4386, %v4144, %v4635
        %v4878 = vsel %vm4387, %v4145, %v4636
        %v4879 = vsel %vm4388, %v4146, %v4637
        %v4880 = vsel %vm4389, %v4147, %v4638
        %v4881 = vsel %vm4390, %v4148, %v4639
        %v4882 = vsel %vm4391, %v4149, %v4640
        %v4883 = vsel %vm4392, %v4150, %v4641
        %v4884 = vsel %vm4393, %v4151, %v4642
        %v4885 = vsel %vm4394, %v4152, %v4643
        %v4886 = vsel %vm4395, %v4153, %v4644
        %v4887 = vsel %vm4396, %v4154, %v4645
        %v4888 = vsel %vm4397, %v4155, %v4646
        %v4889 = vsel %vm4398, %v4156, %v4647
        %v4890 = vsel %vm4399, %v4157, %v4648
        %v4891 = vsel %vm4400, %v4158, %v4649
        %v4892 = vsel %vm4401, %v4159, %v4650
        %v4893 = vsel %vm4402, %v4160, %v4651
        %v4894 = vsel %vm4403, %v4161, %v4652
        %v4895 = vsel %vm4404, %v4162, %v4653
        %v4896 = vsel %vm4405, %v4163, %v4654
        %v4897 = vsel %vm4406, %v4164, %v4655
        %v4898 = vsel %vm4407, %v4165, %v4656
        %v4899 = vsel %vm4408, %v4166, %v4657
        %v4900 = vsel %vm4409, %v4167, %v4658
        %v4901 = vsel %vm4410, %v4168, %v4659
        %v4902 = vsel %vm4411, %v4169, %v4660
        %v4903 = vsel %vm4412, %v4170, %v4661
        %v4904 = vsel %vm4413, %v4171, %v4662
        %v4905 = vsel %vm4414, %v4172, %v4663
        %v4906 = vsel %vm4415, %v4173, %v4664
        %v4907 = vsel %vm4416, %v4174, %v4665
        %v4908 = vsel %vm4417, %v4175, %v4666
        %v4909 = vsel %vm4418, %v4176, %v4667
        %v4910 = vsel %vm4419, %v4177, %v4668
        %v4911 = vsel %vm4420, %v4178, %v4669
        %v4912 = vsel %vm4421, %v4179, %v4670
        %v4913 = vsel %vm4422, %v4180, %v4671
        %v4914 = vsel %vm4423, %v4181, %v4672
        %v4915 = vsel %vm4424, %v4182, %v4673
        %v4916 = vsel %vm4425, %v4183, %v4674
        %v4917 = vsel %vm4426, %v4184, %v4675
        %v4918 = vsel %vm4427, %v4185, %v4676
        %v4919 = vsel %vm4428, %v4186, %v4677
        %v4920 = vsel %vm4429, %v4187, %v4678
        %v4921 = vsel %vm4430, %v4188, %v4679
        %v4922 = vsel %vm4431, %v4189, %v4680
        %v4923 = vsel %vm4432, %v4190, %v4681
        %v4924 = vsel %vm4433, %v4191, %v4682
        %v4925 = vsel %vm4434, %v4192, %v4683
        %v4926 = vsel %vm4435, %v4193, %v4684
        %v4927 = vsel %vm4436, %v4194, %v4685
        %v4928 = vsel %vm4437, %v4195, %v4686
        %v4929 = vsel %vm4438, %v4196, %v4687
        %v4930 = vsel %vm4439, %v4197, %v4688
        %v4931 = vsel %vm4440, %v4198, %v4689
        %v4932 = vsel %vm4441, %v4199, %v4690
        %v4933 = vsel %vm4442, %v4200, %v4691
        %v4934 = vsel %vm4443, %v4201, %v4692
        %v4935 = vsel %vm4444, %v4202, %v4693
        %v4936 = vsel %vm4445, %v4203, %v4694
        %v4937 = vsel %vm4446, %v4204, %v4695
        %v4938 = vsel %vm4447, %v4205, %v4696
        %v4939 = vsel %vm4448, %v4206, %v4697
        %v4940 = vsel %vm4449, %v4207, %v4698
        %v4941 = vsel %vm4450, %v4208, %v4699
        %v4942 = vsel %vm4451, %v4209, %v4700
        %v4943 = vsel %vm4452, %v4210, %v4701
        %v4944 = vsel %vm4453, %v4211, %v4702
        %v4945 = vsel %vm4454, %v4212, %v4703
        %v4946 = vsel %vm4455, %v4213, %v4704
        %v4947 = vsel %vm4456, %v4214, %v4705
        %v4948 = vsel %vm4457, %v4215, %v4706
        %v4949 = vsel %vm4458, %v4216, %v4707
        %v4950 = vsel %vm4459, %v4217, %v4708
        %v4951 = vsel %vm4460, %v4218, %v4709
        %v4952 = vsel %vm4461, %v4219, %v4710
        %v4953 = vsel %vm4462, %v4220, %v4711
        %v4954 = vsel %vm4463, %v4221, %v4712
        %v4955 = vsel %vm4464, %v4222, %v4713
        %v4956 = vsel %vm4465, %v4223, %v4714
        %v4957 = vsel %vm4466, %v4224, %v4715
        %v4958 = vsel %vm4467, %v4225, %v4716
        %v4959 = vsel %vm4468, %v4226, %v4717
        %v4960 = vsel %vm4469, %v4227, %v4718
        %v4961 = vsel %vm4470, %v4228, %v4719
        %v4962 = vsel %vm4471, %v4229, %v4720
        %v4963 = vsel %vm4472, %v4230, %v4721
        %v4964 = vsel %vm4473, %v4231, %v4722
        %v4965 = vsel %vm4474, %v4232, %v4723
        %v4966 = vsel %vm4475, %v4233, %v4724
        %v4967 = vsel %vm4476, %v4234, %v4725
        %v4968 = vsel %vm4477, %v4235, %v4726
        %v4969 = vsel %vm4478, %v4236, %v4727
        %v4970 = vsel %vm4479, %v4237, %v4728
        %v4971 = vsel %vm4480, %v4238, %v4729
        %v4972 = vsel %vm4481, %v4239, %v4730
        %v4973 = vsel %vm4482, %v4240, %v4731
        %v4974 = vsel %vm4483, %v4241, %v4732
        %v4975 = vsel %vm4484, %v4242, %v4733
        %v4976 = vsel %vm4485, %v4243, %v4734
        %v4977 = vsel %vm4486, %v4244, %v4735
        %v4978 = vsel %vm4487, %v4245, %v4736
        %v4979 = vsel %vm4488, %v4246, %v4737
        %v4980 = vsel %vm4489, %v4247, %v4738
        %v4981 = vsel %vm4490, %v4248, %v4739
        %v4982 = vsel %vm4491, %v4249, %v4740
        %v4983 = vsel %vm4492, %v4250, %v4741
        %v4984 = vsel %vm4493, %v4251, %v4742
        %v4985 = vsel %vm4494, %v4252, %v4743
        %v4986 = vsel %vm4495, %v4253, %v4744
        %v4987 = vsel %vm4496, %v4254, %v4745
        %v4988 = vsel %vm4497, %v4255, %v4746
        %v4989 = vsel %vm4498, %v4256, %v4747
        %v4990 = vsel %vm4499, %v4257, %v4748
        %v4991 = vsel %vm4500, %v4258, %v4749
        %v4992 = vsel %vm4501, %v4259, %v4750
        %v4993 = vsel %vm4502, %v4260, %v4751
        %v4994 = vsel %vm4503, %v4261, %v4752
        %v4995 = vsel %vm4504, %v4262, %v4753
        %v4996 = vsel %vm4505, %v4263, %v4754
        %v4997 = vsel %vm4506, %v4264, %v4755
        %v4998 = vsel %vm4507, %v4265, %v4756
        %v4999 = vsel %vm4508, %v4266, %v4757
        %v5000 = vsel %vm4509, %v4267, %v4758
        %v5001 = vsel %vm4510, %v4268, %v4759
        %v5002 = vsel %vm4511, %v4269, %v4760
        %v5003 = vsel %vm4512, %v4270, %v4761
        %v5004 = vsel %vm4513, %v4271, %v4762
        %v5005 = vsel %vm4514, %v4272, %v4763
        %v5006 = vsel %vm4515, %v4273, %v4764
        %v5007 = vsel %vm4516, %v4274, %v4765
        %v5008 = vsel %vm4517, %v4275, %v4766
        %v5009 = vsel %vm4518, %v4276, %v4767
        %v5010 = vsel %vm4519, %v4277, %v4768
        %v5011 = vsel %vm4520, %v4278, %v4769
        %v5012 = vsel %vm4521, %v4279, %v4770
        %v5013 = vsel %vm4522, %v4280, %v4771
        %v5014 = vsel %vm4523, %v4281, %v4772
        %v5015 = vsel %vm4524, %v4282, %v4773
        %v5016 = vsel %vm4525, %v4283, %v4774
        %v5017 = vsel %vm4526, %v4284, %v4775
        %v5018 = vsel %vm4527, %v4285, %v4776
        %v5019 = vsel %vm4528, %v4286, %v4777
        %v5020 = vsel %vm4529, %v4287, %v4778
        %v5021 = vsel %vm4530, %v4288, %v4779
        %v5022 = vsel %vm4531, %v4289, %v4780
        %v5023 = vsel %vm4532, %v4290, %v4781
        %v5024 = vsel %vm4533, %v4291, %v4782
        %v5025 = vsel %vm4534, %v4292, %v4783
        %v5026 = vpack.c.bf16 %v4785, %v4784
        %v5027 = vpack.c.bf16 %v4787, %v4786
        %v5028 = vpack.c.bf16 %v4789, %v4788
        %v5029 = vpack.c.bf16 %v4791, %v4790
        %v5030 = vpack.c.bf16 %v4793, %v4792
        %v5031 = vpack.c.bf16 %v4795, %v4794
        %v5032 = vpack.c.bf16 %v4797, %v4796
        %v5033 = vpack.c.bf16 %v4799, %v4798
        %v5034 = vpack.c.bf16 %v4801, %v4800
        %v5035 = vpack.c.bf16 %v4803, %v4802
        %v5036 = vpack.c.bf16 %v4805, %v4804
        %v5037 = vpack.c.bf16 %v4807, %v4806
        %v5038 = vpack.c.bf16 %v4809, %v4808
        %v5039 = vpack.c.bf16 %v4811, %v4810
        %v5040 = vpack.c.bf16 %v4813, %v4812
        %v5041 = vpack.c.bf16 %v4815, %v4814
        %v5042 = vpack.c.bf16 %v4817, %v4816
        %v5043 = vpack.c.bf16 %v4819, %v4818
        %v5044 = vpack.c.bf16 %v4821, %v4820
        %v5045 = vpack.c.bf16 %v4823, %v4822
        %v5046 = vpack.c.bf16 %v4825, %v4824
        %v5047 = vpack.c.bf16 %v4827, %v4826
        %v5048 = vpack.c.bf16 %v4829, %v4828
        %v5049 = vpack.c.bf16 %v4831, %v4830
        %v5050 = vpack.c.bf16 %v4833, %v4832
        %v5051 = vpack.c.bf16 %v4835, %v4834
        %v5052 = vpack.c.bf16 %v4837, %v4836
        %v5053 = vpack.c.bf16 %v4839, %v4838
        %v5054 = vpack.c.bf16 %v4841, %v4840
        %v5055 = vpack.c.bf16 %v4843, %v4842
        %v5056 = vpack.c.bf16 %v4845, %v4844
        %v5057 = vpack.c.bf16 %v4847, %v4846
        %v5058 = vpack.c.bf16 %v4849, %v4848
        %v5059 = vpack.c.bf16 %v4851, %v4850
        %v5060 = vpack.c.bf16 %v4853, %v4852
        %v5061 = vpack.c.bf16 %v4855, %v4854
        %v5062 = vpack.c.bf16 %v4857, %v4856
        %v5063 = vpack.c.bf16 %v4859, %v4858
        %v5064 = vpack.c.bf16 %v4861, %v4860
        %v5065 = vpack.c.bf16 %v4863, %v4862
        %v5066 = vpack.c.bf16 %v4865, %v4864
        %v5067 = vpack.c.bf16 %v4867, %v4866
        %v5068 = vpack.c.bf16 %v4869, %v4868
        %v5069 = vpack.c.bf16 %v4871, %v4870
        %v5070 = vpack.c.bf16 %v4873, %v4872
        %v5071 = vpack.c.bf16 %v4875, %v4874
        %v5072 = vpack.c.bf16 %v4877, %v4876
        %v5073 = vpack.c.bf16 %v4879, %v4878
        %v5074 = vpack.c.bf16 %v4881, %v4880
        %v5075 = vpack.c.bf16 %v4883, %v4882
        %v5076 = vpack.c.bf16 %v4885, %v4884
        %v5077 = vpack.c.bf16 %v4887, %v4886
        %v5078 = vpack.c.bf16 %v4889, %v4888
        %v5079 = vpack.c.bf16 %v4891, %v4890
        %v5080 = vpack.c.bf16 %v4893, %v4892
        %v5081 = vpack.c.bf16 %v4895, %v4894
        %v5082 = vpack.c.bf16 %v4897, %v4896
        %v5083 = vpack.c.bf16 %v4899, %v4898
        %v5084 = vpack.c.bf16 %v4901, %v4900
        %v5085 = vpack.c.bf16 %v4903, %v4902
        %v5086 = vpack.c.bf16 %v4905, %v4904
        %v5087 = vpack.c.bf16 %v4907, %v4906
        %v5088 = vpack.c.bf16 %v4909, %v4908
        %v5089 = vpack.c.bf16 %v4911, %v4910
        %v5090 = vpack.c.bf16 %v4913, %v4912
        %v5091 = vpack.c.bf16 %v4915, %v4914
        %v5092 = vpack.c.bf16 %v4917, %v4916
        %v5093 = vpack.c.bf16 %v4919, %v4918
        %v5094 = vpack.c.bf16 %v4921, %v4920
        %v5095 = vpack.c.bf16 %v4923, %v4922
        %v5096 = vpack.c.bf16 %v4925, %v4924
        %v5097 = vpack.c.bf16 %v4927, %v4926
        %v5098 = vpack.c.bf16 %v4929, %v4928
        %v5099 = vpack.c.bf16 %v4931, %v4930
        %v5100 = vpack.c.bf16 %v4933, %v4932
        %v5101 = vpack.c.bf16 %v4935, %v4934
        %v5102 = vpack.c.bf16 %v4937, %v4936
        %v5103 = vpack.c.bf16 %v4939, %v4938
        %v5104 = vpack.c.bf16 %v4941, %v4940
        %v5105 = vpack.c.bf16 %v4943, %v4942
        %v5106 = vpack.c.bf16 %v4945, %v4944
        %v5107 = vpack.c.bf16 %v4947, %v4946
        %v5108 = vpack.c.bf16 %v4949, %v4948
        %v5109 = vpack.c.bf16 %v4951, %v4950
        %v5110 = vpack.c.bf16 %v4953, %v4952
        %v5111 = vpack.c.bf16 %v4955, %v4954
        %v5112 = vpack.c.bf16 %v4957, %v4956
        %v5113 = vpack.c.bf16 %v4959, %v4958
        %v5114 = vpack.c.bf16 %v4961, %v4960
        %v5115 = vpack.c.bf16 %v4963, %v4962
        %v5116 = vpack.c.bf16 %v4965, %v4964
        %v5117 = vpack.c.bf16 %v4967, %v4966
        %v5118 = vpack.c.bf16 %v4969, %v4968
        %v5119 = vpack.c.bf16 %v4971, %v4970
        %v5120 = vpack.c.bf16 %v4973, %v4972
        %v5121 = vpack.c.bf16 %v4975, %v4974
        %v5122 = vpack.c.bf16 %v4977, %v4976
        %v5123 = vpack.c.bf16 %v4979, %v4978
        %v5124 = vpack.c.bf16 %v4981, %v4980
        %v5125 = vpack.c.bf16 %v4983, %v4982
        %v5126 = vpack.c.bf16 %v4985, %v4984
        %v5127 = vpack.c.bf16 %v4987, %v4986
        %v5128 = vpack.c.bf16 %v4989, %v4988
        %v5129 = vpack.c.bf16 %v4991, %v4990
        %v5130 = vpack.c.bf16 %v4993, %v4992
        %v5131 = vpack.c.bf16 %v4995, %v4994
        %v5132 = vpack.c.bf16 %v4997, %v4996
        %v5133 = vpack.c.bf16 %v4999, %v4998
        %v5134 = vpack.c.bf16 %v5001, %v5000
        %v5135 = vpack.c.bf16 %v5003, %v5002
        %v5136 = vpack.c.bf16 %v5005, %v5004
        %v5137 = vpack.c.bf16 %v5007, %v5006
        %v5138 = vpack.c.bf16 %v5009, %v5008
        %v5139 = vpack.c.bf16 %v5011, %v5010
        %v5140 = vpack.c.bf16 %v5013, %v5012
        %v5141 = vpack.c.bf16 %v5015, %v5014
        %v5142 = vpack.c.bf16 %v5017, %v5016
        %v5143 = vpack.c.bf16 %v5019, %v5018
        %v5144 = vpack.c.bf16 %v5021, %v5020
        %v5145 = vpack.c.bf16 %v5023, %v5022
        %v5146 = vpack.c.bf16 %v5025, %v5024
        %v5268 = vunpack.c.l.b16 %v5026
        %v5269 = vunpack.c.h.b16 %v5026
        %v5270 = vunpack.c.l.b16 %v5027
        %v5271 = vunpack.c.h.b16 %v5027
        %v5272 = vunpack.c.l.b16 %v5028
        %v5273 = vunpack.c.h.b16 %v5028
        %v5274 = vunpack.c.l.b16 %v5029
        %v5275 = vunpack.c.h.b16 %v5029
        %v5276 = vunpack.c.l.b16 %v5030
        %v5277 = vunpack.c.h.b16 %v5030
        %v5278 = vunpack.c.l.b16 %v5031
        %v5279 = vunpack.c.h.b16 %v5031
        %v5280 = vunpack.c.l.b16 %v5032
        %v5281 = vunpack.c.h.b16 %v5032
        %v5282 = vunpack.c.l.b16 %v5033
        %v5283 = vunpack.c.h.b16 %v5033
        %v5284 = vunpack.c.l.b16 %v5034
        %v5285 = vunpack.c.h.b16 %v5034
        %v5286 = vunpack.c.l.b16 %v5035
        %v5287 = vunpack.c.h.b16 %v5035
        %v5288 = vunpack.c.l.b16 %v5036
        %v5289 = vunpack.c.h.b16 %v5036
        %v5290 = vunpack.c.l.b16 %v5037
        %v5291 = vunpack.c.h.b16 %v5037
        %v5292 = vunpack.c.l.b16 %v5038
        %v5293 = vunpack.c.h.b16 %v5038
        %v5294 = vunpack.c.l.b16 %v5039
        %v5295 = vunpack.c.h.b16 %v5039
        %v5296 = vunpack.c.l.b16 %v5040
        %v5297 = vunpack.c.h.b16 %v5040
        %v5298 = vunpack.c.l.b16 %v5041
        %v5299 = vunpack.c.h.b16 %v5041
        %v5300 = vunpack.c.l.b16 %v5042
        %v5301 = vunpack.c.h.b16 %v5042
        %v5302 = vunpack.c.l.b16 %v5043
        %v5303 = vunpack.c.h.b16 %v5043
        %v5304 = vunpack.c.l.b16 %v5044
        %v5305 = vunpack.c.h.b16 %v5044
        %v5306 = vunpack.c.l.b16 %v5045
        %v5307 = vunpack.c.h.b16 %v5045
        %v5308 = vunpack.c.l.b16 %v5046
        %v5309 = vunpack.c.h.b16 %v5046
        %v5310 = vunpack.c.l.b16 %v5047
        %v5311 = vunpack.c.h.b16 %v5047
        %v5312 = vunpack.c.l.b16 %v5048
        %v5313 = vunpack.c.h.b16 %v5048
        %v5314 = vunpack.c.l.b16 %v5049
        %v5315 = vunpack.c.h.b16 %v5049
        %v5316 = vunpack.c.l.b16 %v5050
        %v5317 = vunpack.c.h.b16 %v5050
        %v5318 = vunpack.c.l.b16 %v5051
        %v5319 = vunpack.c.h.b16 %v5051
        %v5320 = vunpack.c.l.b16 %v5052
        %v5321 = vunpack.c.h.b16 %v5052
        %v5322 = vunpack.c.l.b16 %v5053
        %v5323 = vunpack.c.h.b16 %v5053
        %v5324 = vunpack.c.l.b16 %v5054
        %v5325 = vunpack.c.h.b16 %v5054
        %v5326 = vunpack.c.l.b16 %v5055
        %v5327 = vunpack.c.h.b16 %v5055
        %v5328 = vunpack.c.l.b16 %v5056
        %v5329 = vunpack.c.h.b16 %v5056
        %v5330 = vunpack.c.l.b16 %v5057
        %v5331 = vunpack.c.h.b16 %v5057
        %v5332 = vunpack.c.l.b16 %v5058
        %v5333 = vunpack.c.h.b16 %v5058
        %v5334 = vunpack.c.l.b16 %v5059
        %v5335 = vunpack.c.h.b16 %v5059
        %v5336 = vunpack.c.l.b16 %v5060
        %v5337 = vunpack.c.h.b16 %v5060
        %v5338 = vunpack.c.l.b16 %v5061
        %v5339 = vunpack.c.h.b16 %v5061
        %v5340 = vunpack.c.l.b16 %v5062
        %v5341 = vunpack.c.h.b16 %v5062
        %v5342 = vunpack.c.l.b16 %v5063
        %v5343 = vunpack.c.h.b16 %v5063
        %v5344 = vunpack.c.l.b16 %v5064
        %v5345 = vunpack.c.h.b16 %v5064
        %v5346 = vunpack.c.l.b16 %v5065
        %v5347 = vunpack.c.h.b16 %v5065
        %v5348 = vunpack.c.l.b16 %v5066
        %v5349 = vunpack.c.h.b16 %v5066
        %v5350 = vunpack.c.l.b16 %v5067
        %v5351 = vunpack.c.h.b16 %v5067
        %v5352 = vunpack.c.l.b16 %v5068
        %v5353 = vunpack.c.h.b16 %v5068
        %v5354 = vunpack.c.l.b16 %v5069
        %v5355 = vunpack.c.h.b16 %v5069
        %v5356 = vunpack.c.l.b16 %v5070
        %v5357 = vunpack.c.h.b16 %v5070
        %v5358 = vunpack.c.l.b16 %v5071
        %v5359 = vunpack.c.h.b16 %v5071
        %v5360 = vunpack.c.l.b16 %v5072
        %v5361 = vunpack.c.h.b16 %v5072
        %v5362 = vunpack.c.l.b16 %v5073
        %v5363 = vunpack.c.h.b16 %v5073
        %v5364 = vunpack.c.l.b16 %v5074
        %v5365 = vunpack.c.h.b16 %v5074
        %v5366 = vunpack.c.l.b16 %v5075
        %v5367 = vunpack.c.h.b16 %v5075
        %v5368 = vunpack.c.l.b16 %v5076
        %v5369 = vunpack.c.h.b16 %v5076
        %v5370 = vunpack.c.l.b16 %v5077
        %v5371 = vunpack.c.h.b16 %v5077
        %v5372 = vunpack.c.l.b16 %v5078
        %v5373 = vunpack.c.h.b16 %v5078
        %v5374 = vunpack.c.l.b16 %v5079
        %v5375 = vunpack.c.h.b16 %v5079
        %v5376 = vunpack.c.l.b16 %v5080
        %v5377 = vunpack.c.h.b16 %v5080
        %v5378 = vunpack.c.l.b16 %v5081
        %v5379 = vunpack.c.h.b16 %v5081
        %v5380 = vunpack.c.l.b16 %v5082
        %v5381 = vunpack.c.h.b16 %v5082
        %v5382 = vunpack.c.l.b16 %v5083
        %v5383 = vunpack.c.h.b16 %v5083
        %v5384 = vunpack.c.l.b16 %v5084
        %v5385 = vunpack.c.h.b16 %v5084
        %v5386 = vunpack.c.l.b16 %v5085
        %v5387 = vunpack.c.h.b16 %v5085
        %v5388 = vunpack.c.l.b16 %v5086
        %v5389 = vunpack.c.h.b16 %v5086
        %v5390 = vunpack.c.l.b16 %v5087
        %v5391 = vunpack.c.h.b16 %v5087
        %v5392 = vunpack.c.l.b16 %v5088
        %v5393 = vunpack.c.h.b16 %v5088
        %v5394 = vunpack.c.l.b16 %v5089
        %v5395 = vunpack.c.h.b16 %v5089
        %v5396 = vunpack.c.l.b16 %v5090
        %v5397 = vunpack.c.h.b16 %v5090
        %v5398 = vunpack.c.l.b16 %v5091
        %v5399 = vunpack.c.h.b16 %v5091
        %v5400 = vunpack.c.l.b16 %v5092
        %v5401 = vunpack.c.h.b16 %v5092
        %v5402 = vunpack.c.l.b16 %v5093
        %v5403 = vunpack.c.h.b16 %v5093
        %v5404 = vunpack.c.l.b16 %v5094
        %v5405 = vunpack.c.h.b16 %v5094
        %v5406 = vunpack.c.l.b16 %v5095
        %v5407 = vunpack.c.h.b16 %v5095
        %v5408 = vunpack.c.l.b16 %v5096
        %v5409 = vunpack.c.h.b16 %v5096
        %v5410 = vunpack.c.l.b16 %v5097
        %v5411 = vunpack.c.h.b16 %v5097
        %v5412 = vunpack.c.l.b16 %v5098
        %v5413 = vunpack.c.h.b16 %v5098
        %v5414 = vunpack.c.l.b16 %v5099
        %v5415 = vunpack.c.h.b16 %v5099
        %v5416 = vunpack.c.l.b16 %v5100
        %v5417 = vunpack.c.h.b16 %v5100
        %v5418 = vunpack.c.l.b16 %v5101
        %v5419 = vunpack.c.h.b16 %v5101
        %v5420 = vunpack.c.l.b16 %v5102
        %v5421 = vunpack.c.h.b16 %v5102
        %v5422 = vunpack.c.l.b16 %v5103
        %v5423 = vunpack.c.h.b16 %v5103
        %v5424 = vunpack.c.l.b16 %v5104
        %v5425 = vunpack.c.h.b16 %v5104
        %v5426 = vunpack.c.l.b16 %v5105
        %v5427 = vunpack.c.h.b16 %v5105
        %v5428 = vunpack.c.l.b16 %v5106
        %v5429 = vunpack.c.h.b16 %v5106
        %v5430 = vunpack.c.l.b16 %v5107
        %v5431 = vunpack.c.h.b16 %v5107
        %v5432 = vunpack.c.l.b16 %v5108
        %v5433 = vunpack.c.h.b16 %v5108
        %v5434 = vunpack.c.l.b16 %v5109
        %v5435 = vunpack.c.h.b16 %v5109
        %v5436 = vunpack.c.l.b16 %v5110
        %v5437 = vunpack.c.h.b16 %v5110
        %v5438 = vunpack.c.l.b16 %v5111
        %v5439 = vunpack.c.h.b16 %v5111
        %v5440 = vunpack.c.l.b16 %v5112
        %v5441 = vunpack.c.h.b16 %v5112
        %v5442 = vunpack.c.l.b16 %v5113
        %v5443 = vunpack.c.h.b16 %v5113
        %v5444 = vunpack.c.l.b16 %v5114
        %v5445 = vunpack.c.h.b16 %v5114
        %v5446 = vunpack.c.l.b16 %v5115
        %v5447 = vunpack.c.h.b16 %v5115
        %v5448 = vunpack.c.l.b16 %v5116
        %v5449 = vunpack.c.h.b16 %v5116
        %v5450 = vunpack.c.l.b16 %v5117
        %v5451 = vunpack.c.h.b16 %v5117
        %v5452 = vunpack.c.l.b16 %v5118
        %v5453 = vunpack.c.h.b16 %v5118
        %v5454 = vunpack.c.l.b16 %v5119
        %v5455 = vunpack.c.h.b16 %v5119
        %v5456 = vunpack.c.l.b16 %v5120
        %v5457 = vunpack.c.h.b16 %v5120
        %v5458 = vunpack.c.l.b16 %v5121
        %v5459 = vunpack.c.h.b16 %v5121
        %v5460 = vunpack.c.l.b16 %v5122
        %v5461 = vunpack.c.h.b16 %v5122
        %v5462 = vunpack.c.l.b16 %v5123
        %v5463 = vunpack.c.h.b16 %v5123
        %v5464 = vunpack.c.l.b16 %v5124
        %v5465 = vunpack.c.h.b16 %v5124
        %v5466 = vunpack.c.l.b16 %v5125
        %v5467 = vunpack.c.h.b16 %v5125
        %v5468 = vunpack.c.l.b16 %v5126
        %v5469 = vunpack.c.h.b16 %v5126
        %v5470 = vunpack.c.l.b16 %v5127
        %v5471 = vunpack.c.h.b16 %v5127
        %v5472 = vunpack.c.l.b16 %v5128
        %v5473 = vunpack.c.h.b16 %v5128
        %v5474 = vunpack.c.l.b16 %v5129
        %v5475 = vunpack.c.h.b16 %v5129
        %v5476 = vunpack.c.l.b16 %v5130
        %v5477 = vunpack.c.h.b16 %v5130
        %v5478 = vunpack.c.l.b16 %v5131
        %v5479 = vunpack.c.h.b16 %v5131
        %v5480 = vunpack.c.l.b16 %v5132
        %v5481 = vunpack.c.h.b16 %v5132
        %v5482 = vunpack.c.l.b16 %v5133
        %v5483 = vunpack.c.h.b16 %v5133
        %v5484 = vunpack.c.l.b16 %v5134
        %v5485 = vunpack.c.h.b16 %v5134
        %v5486 = vunpack.c.l.b16 %v5135
        %v5487 = vunpack.c.h.b16 %v5135
        %v5488 = vunpack.c.l.b16 %v5136
        %v5489 = vunpack.c.h.b16 %v5136
        %v5490 = vunpack.c.l.b16 %v5137
        %v5491 = vunpack.c.h.b16 %v5137
        %v5492 = vunpack.c.l.b16 %v5138
        %v5493 = vunpack.c.h.b16 %v5138
        %v5494 = vunpack.c.l.b16 %v5139
        %v5495 = vunpack.c.h.b16 %v5139
        %v5496 = vunpack.c.l.b16 %v5140
        %v5497 = vunpack.c.h.b16 %v5140
        %v5498 = vunpack.c.l.b16 %v5141
        %v5499 = vunpack.c.h.b16 %v5141
        %v5500 = vunpack.c.l.b16 %v5142
        %v5501 = vunpack.c.h.b16 %v5142
        %v5502 = vunpack.c.l.b16 %v5143
        %v5503 = vunpack.c.h.b16 %v5143
        %v5504 = vunpack.c.l.b16 %v5144
        %v5505 = vunpack.c.h.b16 %v5144
        %v5506 = vunpack.c.l.b16 %v5145
        %v5507 = vunpack.c.h.b16 %v5145
        %v5508 = vunpack.c.l.b16 %v5146
        %v5509 = vunpack.c.h.b16 %v5146
        %v5510 = vpack.c.b16 %v5268, %v5268
        %v5511 = vpack.c.b16 %v5269, %v5269
        %v5512 = vpack.c.b16 %v5270, %v5270
        %v5513 = vpack.c.b16 %v5271, %v5271
        %v5514 = vpack.c.b16 %v5272, %v5272
        %v5515 = vpack.c.b16 %v5273, %v5273
        %v5516 = vpack.c.b16 %v5274, %v5274
        %v5517 = vpack.c.b16 %v5275, %v5275
        %v5518 = vpack.c.b16 %v5276, %v5276
        %v5519 = vpack.c.b16 %v5277, %v5277
        %v5520 = vpack.c.b16 %v5278, %v5278
        %v5521 = vpack.c.b16 %v5279, %v5279
        %v5522 = vpack.c.b16 %v5280, %v5280
        %v5523 = vpack.c.b16 %v5281, %v5281
        %v5524 = vpack.c.b16 %v5282, %v5282
        %v5525 = vpack.c.b16 %v5283, %v5283
        %v5526 = vpack.c.b16 %v5284, %v5284
        %v5527 = vpack.c.b16 %v5285, %v5285
        %v5528 = vpack.c.b16 %v5286, %v5286
        %v5529 = vpack.c.b16 %v5287, %v5287
        %v5530 = vpack.c.b16 %v5288, %v5288
        %v5531 = vpack.c.b16 %v5289, %v5289
        %v5532 = vpack.c.b16 %v5290, %v5290
        %v5533 = vpack.c.b16 %v5291, %v5291
        %v5534 = vpack.c.b16 %v5292, %v5292
        %v5535 = vpack.c.b16 %v5293, %v5293
        %v5536 = vpack.c.b16 %v5294, %v5294
        %v5537 = vpack.c.b16 %v5295, %v5295
        %v5538 = vpack.c.b16 %v5296, %v5296
        %v5539 = vpack.c.b16 %v5297, %v5297
        %v5540 = vpack.c.b16 %v5298, %v5298
        %v5541 = vpack.c.b16 %v5299, %v5299
        %v5542 = vpack.c.b16 %v5300, %v5300
        %v5543 = vpack.c.b16 %v5301, %v5301
        %v5544 = vpack.c.b16 %v5302, %v5302
        %v5545 = vpack.c.b16 %v5303, %v5303
        %v5546 = vpack.c.b16 %v5304, %v5304
        %v5547 = vpack.c.b16 %v5305, %v5305
        %v5548 = vpack.c.b16 %v5306, %v5306
        %v5549 = vpack.c.b16 %v5307, %v5307
        %v5550 = vpack.c.b16 %v5308, %v5308
        %v5551 = vpack.c.b16 %v5309, %v5309
        %v5552 = vpack.c.b16 %v5310, %v5310
        %v5553 = vpack.c.b16 %v5311, %v5311
        %v5554 = vpack.c.b16 %v5312, %v5312
        %v5555 = vpack.c.b16 %v5313, %v5313
        %v5556 = vpack.c.b16 %v5314, %v5314
        %v5557 = vpack.c.b16 %v5315, %v5315
        %v5558 = vpack.c.b16 %v5316, %v5316
        %v5559 = vpack.c.b16 %v5317, %v5317
        %v5560 = vpack.c.b16 %v5318, %v5318
        %v5561 = vpack.c.b16 %v5319, %v5319
        %v5562 = vpack.c.b16 %v5320, %v5320
        %v5563 = vpack.c.b16 %v5321, %v5321
        %v5564 = vpack.c.b16 %v5322, %v5322
        %v5565 = vpack.c.b16 %v5323, %v5323
        %v5566 = vpack.c.b16 %v5324, %v5324
        %v5567 = vpack.c.b16 %v5325, %v5325
        %v5568 = vpack.c.b16 %v5326, %v5326
        %v5569 = vpack.c.b16 %v5327, %v5327
        %v5570 = vpack.c.b16 %v5328, %v5328
        %v5571 = vpack.c.b16 %v5329, %v5329
        %v5572 = vpack.c.b16 %v5330, %v5330
        %v5573 = vpack.c.b16 %v5331, %v5331
        %v5574 = vpack.c.b16 %v5332, %v5332
        %v5575 = vpack.c.b16 %v5333, %v5333
        %v5576 = vpack.c.b16 %v5334, %v5334
        %v5577 = vpack.c.b16 %v5335, %v5335
        %v5578 = vpack.c.b16 %v5336, %v5336
        %v5579 = vpack.c.b16 %v5337, %v5337
        %v5580 = vpack.c.b16 %v5338, %v5338
        %v5581 = vpack.c.b16 %v5339, %v5339
        %v5582 = vpack.c.b16 %v5340, %v5340
        %v5583 = vpack.c.b16 %v5341, %v5341
        %v5584 = vpack.c.b16 %v5342, %v5342
        %v5585 = vpack.c.b16 %v5343, %v5343
        %v5586 = vpack.c.b16 %v5344, %v5344
        %v5587 = vpack.c.b16 %v5345, %v5345
        %v5588 = vpack.c.b16 %v5346, %v5346
        %v5589 = vpack.c.b16 %v5347, %v5347
        %v5590 = vpack.c.b16 %v5348, %v5348
        %v5591 = vpack.c.b16 %v5349, %v5349
        %v5592 = vpack.c.b16 %v5350, %v5350
        %v5593 = vpack.c.b16 %v5351, %v5351
        %v5594 = vpack.c.b16 %v5352, %v5352
        %v5595 = vpack.c.b16 %v5353, %v5353
        %v5596 = vpack.c.b16 %v5354, %v5354
        %v5597 = vpack.c.b16 %v5355, %v5355
        %v5598 = vpack.c.b16 %v5356, %v5356
        %v5599 = vpack.c.b16 %v5357, %v5357
        %v5600 = vpack.c.b16 %v5358, %v5358
        %v5601 = vpack.c.b16 %v5359, %v5359
        %v5602 = vpack.c.b16 %v5360, %v5360
        %v5603 = vpack.c.b16 %v5361, %v5361
        %v5604 = vpack.c.b16 %v5362, %v5362
        %v5605 = vpack.c.b16 %v5363, %v5363
        %v5606 = vpack.c.b16 %v5364, %v5364
        %v5607 = vpack.c.b16 %v5365, %v5365
        %v5608 = vpack.c.b16 %v5366, %v5366
        %v5609 = vpack.c.b16 %v5367, %v5367
        %v5610 = vpack.c.b16 %v5368, %v5368
        %v5611 = vpack.c.b16 %v5369, %v5369
        %v5612 = vpack.c.b16 %v5370, %v5370
        %v5613 = vpack.c.b16 %v5371, %v5371
        %v5614 = vpack.c.b16 %v5372, %v5372
        %v5615 = vpack.c.b16 %v5373, %v5373
        %v5616 = vpack.c.b16 %v5374, %v5374
        %v5617 = vpack.c.b16 %v5375, %v5375
        %v5618 = vpack.c.b16 %v5376, %v5376
        %v5619 = vpack.c.b16 %v5377, %v5377
        %v5620 = vpack.c.b16 %v5378, %v5378
        %v5621 = vpack.c.b16 %v5379, %v5379
        %v5622 = vpack.c.b16 %v5380, %v5380
        %v5623 = vpack.c.b16 %v5381, %v5381
        %v5624 = vpack.c.b16 %v5382, %v5382
        %v5625 = vpack.c.b16 %v5383, %v5383
        %v5626 = vpack.c.b16 %v5384, %v5384
        %v5627 = vpack.c.b16 %v5385, %v5385
        %v5628 = vpack.c.b16 %v5386, %v5386
        %v5629 = vpack.c.b16 %v5387, %v5387
        %v5630 = vpack.c.b16 %v5388, %v5388
        %v5631 = vpack.c.b16 %v5389, %v5389
        %v5632 = vpack.c.b16 %v5390, %v5390
        %v5633 = vpack.c.b16 %v5391, %v5391
        %v5634 = vpack.c.b16 %v5392, %v5392
        %v5635 = vpack.c.b16 %v5393, %v5393
        %v5636 = vpack.c.b16 %v5394, %v5394
        %v5637 = vpack.c.b16 %v5395, %v5395
        %v5638 = vpack.c.b16 %v5396, %v5396
        %v5639 = vpack.c.b16 %v5397, %v5397
        %v5640 = vpack.c.b16 %v5398, %v5398
        %v5641 = vpack.c.b16 %v5399, %v5399
        %v5642 = vpack.c.b16 %v5400, %v5400
        %v5643 = vpack.c.b16 %v5401, %v5401
        %v5644 = vpack.c.b16 %v5402, %v5402
        %v5645 = vpack.c.b16 %v5403, %v5403
        %v5646 = vpack.c.b16 %v5404, %v5404
        %v5647 = vpack.c.b16 %v5405, %v5405
        %v5648 = vpack.c.b16 %v5406, %v5406
        %v5649 = vpack.c.b16 %v5407, %v5407
        %v5650 = vpack.c.b16 %v5408, %v5408
        %v5651 = vpack.c.b16 %v5409, %v5409
        %v5652 = vpack.c.b16 %v5410, %v5410
        %v5653 = vpack.c.b16 %v5411, %v5411
        %v5654 = vpack.c.b16 %v5412, %v5412
        %v5655 = vpack.c.b16 %v5413, %v5413
        %v5656 = vpack.c.b16 %v5414, %v5414
        %v5657 = vpack.c.b16 %v5415, %v5415
        %v5658 = vpack.c.b16 %v5416, %v5416
        %v5659 = vpack.c.b16 %v5417, %v5417
        %v5660 = vpack.c.b16 %v5418, %v5418
        %v5661 = vpack.c.b16 %v5419, %v5419
        %v5662 = vpack.c.b16 %v5420, %v5420
        %v5663 = vpack.c.b16 %v5421, %v5421
        %v5664 = vpack.c.b16 %v5422, %v5422
        %v5665 = vpack.c.b16 %v5423, %v5423
        %v5666 = vpack.c.b16 %v5424, %v5424
        %v5667 = vpack.c.b16 %v5425, %v5425
        %v5668 = vpack.c.b16 %v5426, %v5426
        %v5669 = vpack.c.b16 %v5427, %v5427
        %v5670 = vpack.c.b16 %v5428, %v5428
        %v5671 = vpack.c.b16 %v5429, %v5429
        %v5672 = vpack.c.b16 %v5430, %v5430
        %v5673 = vpack.c.b16 %v5431, %v5431
        %v5674 = vpack.c.b16 %v5432, %v5432
        %v5675 = vpack.c.b16 %v5433, %v5433
        %v5676 = vpack.c.b16 %v5434, %v5434
        %v5677 = vpack.c.b16 %v5435, %v5435
        %v5678 = vpack.c.b16 %v5436, %v5436
        %v5679 = vpack.c.b16 %v5437, %v5437
        %v5680 = vpack.c.b16 %v5438, %v5438
        %v5681 = vpack.c.b16 %v5439, %v5439
        %v5682 = vpack.c.b16 %v5440, %v5440
        %v5683 = vpack.c.b16 %v5441, %v5441
        %v5684 = vpack.c.b16 %v5442, %v5442
        %v5685 = vpack.c.b16 %v5443, %v5443
        %v5686 = vpack.c.b16 %v5444, %v5444
        %v5687 = vpack.c.b16 %v5445, %v5445
        %v5688 = vpack.c.b16 %v5446, %v5446
        %v5689 = vpack.c.b16 %v5447, %v5447
        %v5690 = vpack.c.b16 %v5448, %v5448
        %v5691 = vpack.c.b16 %v5449, %v5449
        %v5692 = vpack.c.b16 %v5450, %v5450
        %v5693 = vpack.c.b16 %v5451, %v5451
        %v5694 = vpack.c.b16 %v5452, %v5452
        %v5695 = vpack.c.b16 %v5453, %v5453
        %v5696 = vpack.c.b16 %v5454, %v5454
        %v5697 = vpack.c.b16 %v5455, %v5455
        %v5698 = vpack.c.b16 %v5456, %v5456
        %v5699 = vpack.c.b16 %v5457, %v5457
        %v5700 = vpack.c.b16 %v5458, %v5458
        %v5701 = vpack.c.b16 %v5459, %v5459
        %v5702 = vpack.c.b16 %v5460, %v5460
        %v5703 = vpack.c.b16 %v5461, %v5461
        %v5704 = vpack.c.b16 %v5462, %v5462
        %v5705 = vpack.c.b16 %v5463, %v5463
        %v5706 = vpack.c.b16 %v5464, %v5464
        %v5707 = vpack.c.b16 %v5465, %v5465
        %v5708 = vpack.c.b16 %v5466, %v5466
        %v5709 = vpack.c.b16 %v5467, %v5467
        %v5710 = vpack.c.b16 %v5468, %v5468
        %v5711 = vpack.c.b16 %v5469, %v5469
        %v5712 = vpack.c.b16 %v5470, %v5470
        %v5713 = vpack.c.b16 %v5471, %v5471
        %v5714 = vpack.c.b16 %v5472, %v5472
        %v5715 = vpack.c.b16 %v5473, %v5473
        %v5716 = vpack.c.b16 %v5474, %v5474
        %v5717 = vpack.c.b16 %v5475, %v5475
        %v5718 = vpack.c.b16 %v5476, %v5476
        %v5719 = vpack.c.b16 %v5477, %v5477
        %v5720 = vpack.c.b16 %v5478, %v5478
        %v5721 = vpack.c.b16 %v5479, %v5479
        %v5722 = vpack.c.b16 %v5480, %v5480
        %v5723 = vpack.c.b16 %v5481, %v5481
        %v5724 = vpack.c.b16 %v5482, %v5482
        %v5725 = vpack.c.b16 %v5483, %v5483
        %v5726 = vpack.c.b16 %v5484, %v5484
        %v5727 = vpack.c.b16 %v5485, %v5485
        %v5728 = vpack.c.b16 %v5486, %v5486
        %v5729 = vpack.c.b16 %v5487, %v5487
        %v5730 = vpack.c.b16 %v5488, %v5488
        %v5731 = vpack.c.b16 %v5489, %v5489
        %v5732 = vpack.c.b16 %v5490, %v5490
        %v5733 = vpack.c.b16 %v5491, %v5491
        %v5734 = vpack.c.b16 %v5492, %v5492
        %v5735 = vpack.c.b16 %v5493, %v5493
        %v5736 = vpack.c.b16 %v5494, %v5494
        %v5737 = vpack.c.b16 %v5495, %v5495
        %v5738 = vpack.c.b16 %v5496, %v5496
        %v5739 = vpack.c.b16 %v5497, %v5497
        %v5740 = vpack.c.b16 %v5498, %v5498
        %v5741 = vpack.c.b16 %v5499, %v5499
        %v5742 = vpack.c.b16 %v5500, %v5500
        %v5743 = vpack.c.b16 %v5501, %v5501
        %v5744 = vpack.c.b16 %v5502, %v5502
        %v5745 = vpack.c.b16 %v5503, %v5503
        %v5746 = vpack.c.b16 %v5504, %v5504
        %v5747 = vpack.c.b16 %v5505, %v5505
        %v5748 = vpack.c.b16 %v5506, %v5506
        %v5749 = vpack.c.b16 %v5507, %v5507
        %v5750 = vpack.c.b16 %v5508, %v5508
        %v5751 = vpack.c.b16 %v5509, %v5509
        %vm5994 = vcmask 519168
        %5995 = vst.msk [vmem:[%s339] sm:$0xf] %vm5994, %v5510
        %5996 = vst.msk [vmem:[%s339 + $0x4] sm:$0xf] %vm5994, %v5511
        %5997 = vst.msk [vmem:[%s339 + $0x8] sm:$0xf] %vm5994, %v5512
        %5998 = vst.msk [vmem:[%s339 + $0xc] sm:$0xf] %vm5994, %v5513
        %5999 = vst.msk [vmem:[%s339 + $0x10] sm:$0xf] %vm5994, %v5514
        %6000 = vst.msk [vmem:[%s339 + $0x14] sm:$0xf] %vm5994, %v5515
        %6001 = vst.msk [vmem:[%s339 + $0x18] sm:$0xf] %vm5994, %v5516
        %6002 = vst.msk [vmem:[%s339 + $0x1c] sm:$0xf] %vm5994, %v5517
        %6003 = vst.msk [vmem:[%s339 + $0x20] sm:$0xf] %vm5994, %v5518
        %6004 = vst.msk [vmem:[%s339 + $0x24] sm:$0xf] %vm5994, %v5519
        %6005 = vst.msk [vmem:[%s339 + $0x28] sm:$0xf] %vm5994, %v5520
        %6006 = vst.msk [vmem:[%s339 + $0x2c] sm:$0xf] %vm5994, %v5521
        %6007 = vst.msk [vmem:[%s339 + $0x30] sm:$0xf] %vm5994, %v5522
        %6008 = vst.msk [vmem:[%s339 + $0x34] sm:$0xf] %vm5994, %v5523
        %6009 = vst.msk [vmem:[%s339 + $0x38] sm:$0xf] %vm5994, %v5524
        %6010 = vst.msk [vmem:[%s339 + $0x3c] sm:$0xf] %vm5994, %v5525
        %6011 = vst.msk [vmem:[%s339 + $0x40] sm:$0xf] %vm5994, %v5526
        %6012 = vst.msk [vmem:[%s339 + $0x44] sm:$0xf] %vm5994, %v5527
        %6013 = vst.msk [vmem:[%s339 + $0x48] sm:$0xf] %vm5994, %v5528
        %6014 = vst.msk [vmem:[%s339 + $0x4c] sm:$0xf] %vm5994, %v5529
        %6015 = vst.msk [vmem:[%s339 + $0x50] sm:$0xf] %vm5994, %v5530
        %6016 = vst.msk [vmem:[%s339 + $0x54] sm:$0xf] %vm5994, %v5531
        %6017 = vst.msk [vmem:[%s339 + $0x58] sm:$0xf] %vm5994, %v5532
        %6018 = vst.msk [vmem:[%s339 + $0x5c] sm:$0xf] %vm5994, %v5533
        %6019 = vst.msk [vmem:[%s339 + $0x60] sm:$0xf] %vm5994, %v5534
        %6020 = vst.msk [vmem:[%s339 + $0x64] sm:$0xf] %vm5994, %v5535
        %6021 = vst.msk [vmem:[%s339 + $0x68] sm:$0xf] %vm5994, %v5536
        %6022 = vst.msk [vmem:[%s339 + $0x6c] sm:$0xf] %vm5994, %v5537
        %6023 = vst.msk [vmem:[%s339 + $0x70] sm:$0xf] %vm5994, %v5538
        %6024 = vst.msk [vmem:[%s339 + $0x74] sm:$0xf] %vm5994, %v5539
        %6025 = vst.msk [vmem:[%s339 + $0x78] sm:$0xf] %vm5994, %v5540
        %6026 = vst.msk [vmem:[%s339 + $0x7c] sm:$0xf] %vm5994, %v5541
        %6027 = vst.msk [vmem:[%s339 + $0x80] sm:$0xf] %vm5994, %v5542
        %6028 = vst.msk [vmem:[%s339 + $0x84] sm:$0xf] %vm5994, %v5543
        %6029 = vst.msk [vmem:[%s339 + $0x88] sm:$0xf] %vm5994, %v5544
        %6030 = vst.msk [vmem:[%s339 + $0x8c] sm:$0xf] %vm5994, %v5545
        %6031 = vst.msk [vmem:[%s339 + $0x90] sm:$0xf] %vm5994, %v5546
        %6032 = vst.msk [vmem:[%s339 + $0x94] sm:$0xf] %vm5994, %v5547
        %6033 = vst.msk [vmem:[%s339 + $0x98] sm:$0xf] %vm5994, %v5548
        %6034 = vst.msk [vmem:[%s339 + $0x9c] sm:$0xf] %vm5994, %v5549
        %6035 = vst.msk [vmem:[%s339 + $0xa0] sm:$0xf] %vm5994, %v5550
        %6036 = vst.msk [vmem:[%s339 + $0xa4] sm:$0xf] %vm5994, %v5551
        %6037 = vst.msk [vmem:[%s339 + $0xa8] sm:$0xf] %vm5994, %v5552
        %6038 = vst.msk [vmem:[%s339 + $0xac] sm:$0xf] %vm5994, %v5553
        %6039 = vst.msk [vmem:[%s339 + $0xb0] sm:$0xf] %vm5994, %v5554
        %6040 = vst.msk [vmem:[%s339 + $0xb4] sm:$0xf] %vm5994, %v5555
        %6041 = vst.msk [vmem:[%s339 + $0xb8] sm:$0xf] %vm5994, %v5556
        %6042 = vst.msk [vmem:[%s339 + $0xbc] sm:$0xf] %vm5994, %v5557
        %6043 = vst.msk [vmem:[%s339 + $0xc0] sm:$0xf] %vm5994, %v5558
        %6044 = vst.msk [vmem:[%s339 + $0xc4] sm:$0xf] %vm5994, %v5559
        %6045 = vst.msk [vmem:[%s339 + $0xc8] sm:$0xf] %vm5994, %v5560
        %6046 = vst.msk [vmem:[%s339 + $0xcc] sm:$0xf] %vm5994, %v5561
        %6047 = vst.msk [vmem:[%s339 + $0xd0] sm:$0xf] %vm5994, %v5562
        %6048 = vst.msk [vmem:[%s339 + $0xd4] sm:$0xf] %vm5994, %v5563
        %6049 = vst.msk [vmem:[%s339 + $0xd8] sm:$0xf] %vm5994, %v5564
        %6050 = vst.msk [vmem:[%s339 + $0xdc] sm:$0xf] %vm5994, %v5565
        %6051 = vst.msk [vmem:[%s339 + $0xe0] sm:$0xf] %vm5994, %v5566
        %6052 = vst.msk [vmem:[%s339 + $0xe4] sm:$0xf] %vm5994, %v5567
        %6053 = vst.msk [vmem:[%s339 + $0xe8] sm:$0xf] %vm5994, %v5568
        %6054 = vst.msk [vmem:[%s339 + $0xec] sm:$0xf] %vm5994, %v5569
        %6055 = vst.msk [vmem:[%s339 + $0xf0] sm:$0xf] %vm5994, %v5570
        %6056 = vst.msk [vmem:[%s339 + $0xf4] sm:$0xf] %vm5994, %v5571
        %6057 = vst.msk [vmem:[%s339 + $0xf8] sm:$0xf] %vm5994, %v5572
        %6058 = vst.msk [vmem:[%s339 + $0xfc] sm:$0xf] %vm5994, %v5573
        %6059 = vst.msk [vmem:[%s339 + $0x100] sm:$0xf] %vm5994, %v5574
        %6060 = vst.msk [vmem:[%s339 + $0x104] sm:$0xf] %vm5994, %v5575
        %6061 = vst.msk [vmem:[%s339 + $0x108] sm:$0xf] %vm5994, %v5576
        %6062 = vst.msk [vmem:[%s339 + $0x10c] sm:$0xf] %vm5994, %v5577
        %6063 = vst.msk [vmem:[%s339 + $0x110] sm:$0xf] %vm5994, %v5578
        %6064 = vst.msk [vmem:[%s339 + $0x114] sm:$0xf] %vm5994, %v5579
        %6065 = vst.msk [vmem:[%s339 + $0x118] sm:$0xf] %vm5994, %v5580
        %6066 = vst.msk [vmem:[%s339 + $0x11c] sm:$0xf] %vm5994, %v5581
        %6067 = vst.msk [vmem:[%s339 + $0x120] sm:$0xf] %vm5994, %v5582
        %6068 = vst.msk [vmem:[%s339 + $0x124] sm:$0xf] %vm5994, %v5583
        %6069 = vst.msk [vmem:[%s339 + $0x128] sm:$0xf] %vm5994, %v5584
        %6070 = vst.msk [vmem:[%s339 + $0x12c] sm:$0xf] %vm5994, %v5585
        %6071 = vst.msk [vmem:[%s339 + $0x130] sm:$0xf] %vm5994, %v5586
        %6072 = vst.msk [vmem:[%s339 + $0x134] sm:$0xf] %vm5994, %v5587
        %6073 = vst.msk [vmem:[%s339 + $0x138] sm:$0xf] %vm5994, %v5588
        %6074 = vst.msk [vmem:[%s339 + $0x13c] sm:$0xf] %vm5994, %v5589
        %6075 = vst.msk [vmem:[%s339 + $0x140] sm:$0xf] %vm5994, %v5590
        %6076 = vst.msk [vmem:[%s339 + $0x144] sm:$0xf] %vm5994, %v5591
        %6077 = vst.msk [vmem:[%s339 + $0x148] sm:$0xf] %vm5994, %v5592
        %6078 = vst.msk [vmem:[%s339 + $0x14c] sm:$0xf] %vm5994, %v5593
        %6079 = vst.msk [vmem:[%s339 + $0x150] sm:$0xf] %vm5994, %v5594
        %6080 = vst.msk [vmem:[%s339 + $0x154] sm:$0xf] %vm5994, %v5595
        %6081 = vst.msk [vmem:[%s339 + $0x158] sm:$0xf] %vm5994, %v5596
        %6082 = vst.msk [vmem:[%s339 + $0x15c] sm:$0xf] %vm5994, %v5597
        %6083 = vst.msk [vmem:[%s339 + $0x160] sm:$0xf] %vm5994, %v5598
        %6084 = vst.msk [vmem:[%s339 + $0x164] sm:$0xf] %vm5994, %v5599
        %6085 = vst.msk [vmem:[%s339 + $0x168] sm:$0xf] %vm5994, %v5600
        %6086 = vst.msk [vmem:[%s339 + $0x16c] sm:$0xf] %vm5994, %v5601
        %6087 = vst.msk [vmem:[%s339 + $0x170] sm:$0xf] %vm5994, %v5602
        %6088 = vst.msk [vmem:[%s339 + $0x174] sm:$0xf] %vm5994, %v5603
        %6089 = vst.msk [vmem:[%s339 + $0x178] sm:$0xf] %vm5994, %v5604
        %6090 = vst.msk [vmem:[%s339 + $0x17c] sm:$0xf] %vm5994, %v5605
        %6091 = vst.msk [vmem:[%s339 + $0x180] sm:$0xf] %vm5994, %v5606
        %6092 = vst.msk [vmem:[%s339 + $0x184] sm:$0xf] %vm5994, %v5607
        %6093 = vst.msk [vmem:[%s339 + $0x188] sm:$0xf] %vm5994, %v5608
        %6094 = vst.msk [vmem:[%s339 + $0x18c] sm:$0xf] %vm5994, %v5609
        %6095 = vst.msk [vmem:[%s339 + $0x190] sm:$0xf] %vm5994, %v5610
        %6096 = vst.msk [vmem:[%s339 + $0x194] sm:$0xf] %vm5994, %v5611
        %6097 = vst.msk [vmem:[%s339 + $0x198] sm:$0xf] %vm5994, %v5612
        %6098 = vst.msk [vmem:[%s339 + $0x19c] sm:$0xf] %vm5994, %v5613
        %6099 = vst.msk [vmem:[%s339 + $0x1a0] sm:$0xf] %vm5994, %v5614
        %6100 = vst.msk [vmem:[%s339 + $0x1a4] sm:$0xf] %vm5994, %v5615
        %6101 = vst.msk [vmem:[%s339 + $0x1a8] sm:$0xf] %vm5994, %v5616
        %6102 = vst.msk [vmem:[%s339 + $0x1ac] sm:$0xf] %vm5994, %v5617
        %6103 = vst.msk [vmem:[%s339 + $0x1b0] sm:$0xf] %vm5994, %v5618
        %6104 = vst.msk [vmem:[%s339 + $0x1b4] sm:$0xf] %vm5994, %v5619
        %6105 = vst.msk [vmem:[%s339 + $0x1b8] sm:$0xf] %vm5994, %v5620
        %6106 = vst.msk [vmem:[%s339 + $0x1bc] sm:$0xf] %vm5994, %v5621
        %6107 = vst.msk [vmem:[%s339 + $0x1c0] sm:$0xf] %vm5994, %v5622
        %6108 = vst.msk [vmem:[%s339 + $0x1c4] sm:$0xf] %vm5994, %v5623
        %6109 = vst.msk [vmem:[%s339 + $0x1c8] sm:$0xf] %vm5994, %v5624
        %6110 = vst.msk [vmem:[%s339 + $0x1cc] sm:$0xf] %vm5994, %v5625
        %6111 = vst.msk [vmem:[%s339 + $0x1d0] sm:$0xf] %vm5994, %v5626
        %6112 = vst.msk [vmem:[%s339 + $0x1d4] sm:$0xf] %vm5994, %v5627
        %6113 = vst.msk [vmem:[%s339 + $0x1d8] sm:$0xf] %vm5994, %v5628
        %6114 = vst.msk [vmem:[%s339 + $0x1dc] sm:$0xf] %vm5994, %v5629
        %6115 = vst.msk [vmem:[%s339 + $0x1e0] sm:$0xf] %vm5994, %v5630
        %6116 = vst.msk [vmem:[%s339 + $0x1e4] sm:$0xf] %vm5994, %v5631
        %6117 = vst.msk [vmem:[%s339 + $0x1e8] sm:$0xf] %vm5994, %v5632
        %6118 = vst.msk [vmem:[%s339 + $0x1ec] sm:$0xf] %vm5994, %v5633
        %6119 = vst.msk [vmem:[%s339 + $0x1f0] sm:$0xf] %vm5994, %v5634
        %6120 = vst.msk [vmem:[%s339 + $0x1f4] sm:$0xf] %vm5994, %v5635
        %6121 = vst.msk [vmem:[%s339 + $0x1f8] sm:$0xf] %vm5994, %v5636
        %6122 = vst.msk [vmem:[%s339 + $0x1fc] sm:$0xf] %vm5994, %v5637
        %6123 = vst.msk [vmem:[%s339 + $0x200] sm:$0xf] %vm5994, %v5638
        %6124 = vst.msk [vmem:[%s339 + $0x204] sm:$0xf] %vm5994, %v5639
        %6125 = vst.msk [vmem:[%s339 + $0x208] sm:$0xf] %vm5994, %v5640
        %6126 = vst.msk [vmem:[%s339 + $0x20c] sm:$0xf] %vm5994, %v5641
        %6127 = vst.msk [vmem:[%s339 + $0x210] sm:$0xf] %vm5994, %v5642
        %6128 = vst.msk [vmem:[%s339 + $0x214] sm:$0xf] %vm5994, %v5643
        %6129 = vst.msk [vmem:[%s339 + $0x218] sm:$0xf] %vm5994, %v5644
        %6130 = vst.msk [vmem:[%s339 + $0x21c] sm:$0xf] %vm5994, %v5645
        %6131 = vst.msk [vmem:[%s339 + $0x220] sm:$0xf] %vm5994, %v5646
        %6132 = vst.msk [vmem:[%s339 + $0x224] sm:$0xf] %vm5994, %v5647
        %6133 = vst.msk [vmem:[%s339 + $0x228] sm:$0xf] %vm5994, %v5648
        %6134 = vst.msk [vmem:[%s339 + $0x22c] sm:$0xf] %vm5994, %v5649
        %6135 = vst.msk [vmem:[%s339 + $0x230] sm:$0xf] %vm5994, %v5650
        %6136 = vst.msk [vmem:[%s339 + $0x234] sm:$0xf] %vm5994, %v5651
        %6137 = vst.msk [vmem:[%s339 + $0x238] sm:$0xf] %vm5994, %v5652
        %6138 = vst.msk [vmem:[%s339 + $0x23c] sm:$0xf] %vm5994, %v5653
        %6139 = vst.msk [vmem:[%s339 + $0x240] sm:$0xf] %vm5994, %v5654
        %6140 = vst.msk [vmem:[%s339 + $0x244] sm:$0xf] %vm5994, %v5655
        %6141 = vst.msk [vmem:[%s339 + $0x248] sm:$0xf] %vm5994, %v5656
        %6142 = vst.msk [vmem:[%s339 + $0x24c] sm:$0xf] %vm5994, %v5657
        %6143 = vst.msk [vmem:[%s339 + $0x250] sm:$0xf] %vm5994, %v5658
        %6144 = vst.msk [vmem:[%s339 + $0x254] sm:$0xf] %vm5994, %v5659
        %6145 = vst.msk [vmem:[%s339 + $0x258] sm:$0xf] %vm5994, %v5660
        %6146 = vst.msk [vmem:[%s339 + $0x25c] sm:$0xf] %vm5994, %v5661
        %6147 = vst.msk [vmem:[%s339 + $0x260] sm:$0xf] %vm5994, %v5662
        %6148 = vst.msk [vmem:[%s339 + $0x264] sm:$0xf] %vm5994, %v5663
        %6149 = vst.msk [vmem:[%s339 + $0x268] sm:$0xf] %vm5994, %v5664
        %6150 = vst.msk [vmem:[%s339 + $0x26c] sm:$0xf] %vm5994, %v5665
        %6151 = vst.msk [vmem:[%s339 + $0x270] sm:$0xf] %vm5994, %v5666
        %6152 = vst.msk [vmem:[%s339 + $0x274] sm:$0xf] %vm5994, %v5667
        %6153 = vst.msk [vmem:[%s339 + $0x278] sm:$0xf] %vm5994, %v5668
        %6154 = vst.msk [vmem:[%s339 + $0x27c] sm:$0xf] %vm5994, %v5669
        %6155 = vst.msk [vmem:[%s339 + $0x280] sm:$0xf] %vm5994, %v5670
        %6156 = vst.msk [vmem:[%s339 + $0x284] sm:$0xf] %vm5994, %v5671
        %6157 = vst.msk [vmem:[%s339 + $0x288] sm:$0xf] %vm5994, %v5672
        %6158 = vst.msk [vmem:[%s339 + $0x28c] sm:$0xf] %vm5994, %v5673
        %6159 = vst.msk [vmem:[%s339 + $0x290] sm:$0xf] %vm5994, %v5674
        %6160 = vst.msk [vmem:[%s339 + $0x294] sm:$0xf] %vm5994, %v5675
        %6161 = vst.msk [vmem:[%s339 + $0x298] sm:$0xf] %vm5994, %v5676
        %6162 = vst.msk [vmem:[%s339 + $0x29c] sm:$0xf] %vm5994, %v5677
        %6163 = vst.msk [vmem:[%s339 + $0x2a0] sm:$0xf] %vm5994, %v5678
        %6164 = vst.msk [vmem:[%s339 + $0x2a4] sm:$0xf] %vm5994, %v5679
        %6165 = vst.msk [vmem:[%s339 + $0x2a8] sm:$0xf] %vm5994, %v5680
        %6166 = vst.msk [vmem:[%s339 + $0x2ac] sm:$0xf] %vm5994, %v5681
        %6167 = vst.msk [vmem:[%s339 + $0x2b0] sm:$0xf] %vm5994, %v5682
        %6168 = vst.msk [vmem:[%s339 + $0x2b4] sm:$0xf] %vm5994, %v5683
        %6169 = vst.msk [vmem:[%s339 + $0x2b8] sm:$0xf] %vm5994, %v5684
        %6170 = vst.msk [vmem:[%s339 + $0x2bc] sm:$0xf] %vm5994, %v5685
        %6171 = vst.msk [vmem:[%s339 + $0x2c0] sm:$0xf] %vm5994, %v5686
        %6172 = vst.msk [vmem:[%s339 + $0x2c4] sm:$0xf] %vm5994, %v5687
        %6173 = vst.msk [vmem:[%s339 + $0x2c8] sm:$0xf] %vm5994, %v5688
        %6174 = vst.msk [vmem:[%s339 + $0x2cc] sm:$0xf] %vm5994, %v5689
        %6175 = vst.msk [vmem:[%s339 + $0x2d0] sm:$0xf] %vm5994, %v5690
        %6176 = vst.msk [vmem:[%s339 + $0x2d4] sm:$0xf] %vm5994, %v5691
        %6177 = vst.msk [vmem:[%s339 + $0x2d8] sm:$0xf] %vm5994, %v5692
        %6178 = vst.msk [vmem:[%s339 + $0x2dc] sm:$0xf] %vm5994, %v5693
        %6179 = vst.msk [vmem:[%s339 + $0x2e0] sm:$0xf] %vm5994, %v5694
        %6180 = vst.msk [vmem:[%s339 + $0x2e4] sm:$0xf] %vm5994, %v5695
        %6181 = vst.msk [vmem:[%s339 + $0x2e8] sm:$0xf] %vm5994, %v5696
        %6182 = vst.msk [vmem:[%s339 + $0x2ec] sm:$0xf] %vm5994, %v5697
        %6183 = vst.msk [vmem:[%s339 + $0x2f0] sm:$0xf] %vm5994, %v5698
        %6184 = vst.msk [vmem:[%s339 + $0x2f4] sm:$0xf] %vm5994, %v5699
        %6185 = vst.msk [vmem:[%s339 + $0x2f8] sm:$0xf] %vm5994, %v5700
        %6186 = vst.msk [vmem:[%s339 + $0x2fc] sm:$0xf] %vm5994, %v5701
        %6187 = vst.msk [vmem:[%s339 + $0x300] sm:$0xf] %vm5994, %v5702
        %6188 = vst.msk [vmem:[%s339 + $0x304] sm:$0xf] %vm5994, %v5703
        %6189 = vst.msk [vmem:[%s339 + $0x308] sm:$0xf] %vm5994, %v5704
        %6190 = vst.msk [vmem:[%s339 + $0x30c] sm:$0xf] %vm5994, %v5705
        %6191 = vst.msk [vmem:[%s339 + $0x310] sm:$0xf] %vm5994, %v5706
        %6192 = vst.msk [vmem:[%s339 + $0x314] sm:$0xf] %vm5994, %v5707
        %6193 = vst.msk [vmem:[%s339 + $0x318] sm:$0xf] %vm5994, %v5708
        %6194 = vst.msk [vmem:[%s339 + $0x31c] sm:$0xf] %vm5994, %v5709
        %6195 = vst.msk [vmem:[%s339 + $0x320] sm:$0xf] %vm5994, %v5710
        %6196 = vst.msk [vmem:[%s339 + $0x324] sm:$0xf] %vm5994, %v5711
        %6197 = vst.msk [vmem:[%s339 + $0x328] sm:$0xf] %vm5994, %v5712
        %6198 = vst.msk [vmem:[%s339 + $0x32c] sm:$0xf] %vm5994, %v5713
        %6199 = vst.msk [vmem:[%s339 + $0x330] sm:$0xf] %vm5994, %v5714
        %6200 = vst.msk [vmem:[%s339 + $0x334] sm:$0xf] %vm5994, %v5715
        %6201 = vst.msk [vmem:[%s339 + $0x338] sm:$0xf] %vm5994, %v5716
        %6202 = vst.msk [vmem:[%s339 + $0x33c] sm:$0xf] %vm5994, %v5717
        %6203 = vst.msk [vmem:[%s339 + $0x340] sm:$0xf] %vm5994, %v5718
        %6204 = vst.msk [vmem:[%s339 + $0x344] sm:$0xf] %vm5994, %v5719
        %6205 = vst.msk [vmem:[%s339 + $0x348] sm:$0xf] %vm5994, %v5720
        %6206 = vst.msk [vmem:[%s339 + $0x34c] sm:$0xf] %vm5994, %v5721
        %6207 = vst.msk [vmem:[%s339 + $0x350] sm:$0xf] %vm5994, %v5722
        %6208 = vst.msk [vmem:[%s339 + $0x354] sm:$0xf] %vm5994, %v5723
        %6209 = vst.msk [vmem:[%s339 + $0x358] sm:$0xf] %vm5994, %v5724
        %6210 = vst.msk [vmem:[%s339 + $0x35c] sm:$0xf] %vm5994, %v5725
        %6211 = vst.msk [vmem:[%s339 + $0x360] sm:$0xf] %vm5994, %v5726
        %6212 = vst.msk [vmem:[%s339 + $0x364] sm:$0xf] %vm5994, %v5727
        %6213 = vst.msk [vmem:[%s339 + $0x368] sm:$0xf] %vm5994, %v5728
        %6214 = vst.msk [vmem:[%s339 + $0x36c] sm:$0xf] %vm5994, %v5729
        %6215 = vst.msk [vmem:[%s339 + $0x370] sm:$0xf] %vm5994, %v5730
        %6216 = vst.msk [vmem:[%s339 + $0x374] sm:$0xf] %vm5994, %v5731
        %6217 = vst.msk [vmem:[%s339 + $0x378] sm:$0xf] %vm5994, %v5732
        %6218 = vst.msk [vmem:[%s339 + $0x37c] sm:$0xf] %vm5994, %v5733
        %6219 = vst.msk [vmem:[%s339 + $0x380] sm:$0xf] %vm5994, %v5734
        %6220 = vst.msk [vmem:[%s339 + $0x384] sm:$0xf] %vm5994, %v5735
        %6221 = vst.msk [vmem:[%s339 + $0x388] sm:$0xf] %vm5994, %v5736
        %6222 = vst.msk [vmem:[%s339 + $0x38c] sm:$0xf] %vm5994, %v5737
        %6223 = vst.msk [vmem:[%s339 + $0x390] sm:$0xf] %vm5994, %v5738
        %6224 = vst.msk [vmem:[%s339 + $0x394] sm:$0xf] %vm5994, %v5739
        %6225 = vst.msk [vmem:[%s339 + $0x398] sm:$0xf] %vm5994, %v5740
        %6226 = vst.msk [vmem:[%s339 + $0x39c] sm:$0xf] %vm5994, %v5741
        %6227 = vst.msk [vmem:[%s339 + $0x3a0] sm:$0xf] %vm5994, %v5742
        %6228 = vst.msk [vmem:[%s339 + $0x3a4] sm:$0xf] %vm5994, %v5743
        %6229 = vst.msk [vmem:[%s339 + $0x3a8] sm:$0xf] %vm5994, %v5744
        %6230 = vst.msk [vmem:[%s339 + $0x3ac] sm:$0xf] %vm5994, %v5745
        %6231 = vst.msk [vmem:[%s339 + $0x3b0] sm:$0xf] %vm5994, %v5746
        %6232 = vst.msk [vmem:[%s339 + $0x3b4] sm:$0xf] %vm5994, %v5747
        %6233 = vst.msk [vmem:[%s339 + $0x3b8] sm:$0xf] %vm5994, %v5748
        %6234 = vst.msk [vmem:[%s339 + $0x3bc] sm:$0xf] %vm5994, %v5749
        %6235 = vst.msk [vmem:[%s339 + $0x3c0] sm:$0xf] %vm5994, %v5750
        %6236 = vst.msk [vmem:[%s339 + $0x3c4] sm:$0xf] %vm5994, %v5751
      $region48: #{_stem_fn.1} parent=39 // pred_fallthru
        _
      %s6237 = smul.u32 242, %s21
      %p6238 = scmp.lt.s32.totalorder %s6237, 3145
      %s6239 = scalar_select %p6238, %s6237, 3145
      %p6240 = scmp.lt.s32.totalorder %s22, 0
      %s6241 = scalar_select %p6240, %s22, 0
      %s6242 = sadd.s32 %s6241, %s6239
      %s6243 = smul.addr %s6242, 4
      %s6244 = scalar_lea.vmem %s5, %s6243
      // Predicated region
      $region49: #{_stem_fn.1} parent=39 // pred_check
        %p6245 = pneg %p189
      $region50: #{_stem_fn.1} parent=39 // pred_check_branch
        %6247 = sbr.rel (%p6245) target = $region52
      $region51: #{_stem_fn.1} parent=39 // pred_region
        %s6248 = smul.u32 242, %s21
      $region52: #{_stem_fn.1} parent=39 // pred_fallthru
        _
    $region40: #{_stem_fn.1} parent=5 // pred_fallthru
      _
    %p6249 = scmp.le.s32.totalorder 2, %s11
    // Predicated region
    $region53: #{_stem_fn.1} parent=5 // pred_check
      %p6250 = pneg %p6249
    $region54: #{_stem_fn.1} parent=5 // pred_check_branch
      %6252 = sbr.rel (%p6250) target = $region56
    $region55: #{_stem_fn.1} parent=5 // pred_region
      %s6253 = ssub.s32 %s11, 2
      // Predicated region
      $region57: #{_stem_fn.1} parent=55 // pred_check
        %p6254 = pneg %p195
      $region58: #{_stem_fn.1} parent=55 // pred_check_branch
        %6256 = sbr.rel (%p6254) target = $region60
      $region59: #{_stem_fn.1} parent=55 // pred_region
        %s6257 = smul.u32 242, %s24
        %p6258 = scmp.lt.s32.totalorder %s6257, 3145
        %s6259 = scalar_select %p6258, %s6257, 3145
        %p6260 = scmp.lt.s32.totalorder %s25, 0
        %s6261 = scalar_select %p6260, %s25, 0
        %s6262 = sadd.s32 %s6261, %s6259
        %s6263 = smul.addr %s6262, 4
        %s6264 = scalar_lea.vmem %s5, %s6263
      $region60: #{_stem_fn.1} parent=55 // pred_fallthru
        _
    $region56: #{_stem_fn.1} parent=5 // pred_fallthru
      _
  $region6: #{_stem_fn.1} parent=0 // loop_footer
    %s15 = sadd.s32 1, %s11
  $region7: #{_stem_fn.1} parent=0 // loop_footer_branch
    %10 = sbr.rel target = $region3
  $region8: #{_stem_fn.1} parent=0 // loop_exit
    _

</llo_original>
